<compile_context>
chip_gen: v7x
topology: tpu7x:2x2x1
jax: 0.10.0
libtpu: 0.0.40
codegen_flags: <defaults>
</compile_context>

<pallas_src>
import math

import jax
import jax.numpy as jnp
from jax import lax
from jax.experimental import pallas as pl
from jax.experimental.pallas import tpu as pltpu


# -----------------------------------------------------------------------------
# Model hyper-parameters (small, consistent with the module's constructor args)
# -----------------------------------------------------------------------------
B = 2                      # batch
T = 16                     # audio time frames
F_MEL = 16                 # mel bands == in_channels_encoder
C = 16                     # out_waveblock_encoder = [16, 16]
DILATIONS = (1, 2)         # dilation levels inside each wave block
LAST_DIM = 32              # last_dim_encoder == n_features_decoder
NUM_LAYERS = 2             # num_layers_decoder
NUM_HEADS = 4              # num_heads_decoder
E_FEAT = 32                # n_features_decoder
DH = E_FEAT // NUM_HEADS   # head dim
N_HIDDEN = 64              # n_hidden_decoder
NB_CLASSES = 20            # vocabulary size
CLS_PAD = 128              # classifier output padded to a full lane group (lane-dense store)
L_SEQ = 8                  # caption length (y has shape (B, L_SEQ))
L_DEC = L_SEQ - 1
LB = L_DEC * B             # real decoder token rows (l, b)
LB_PAD = 16                # decoder rows padded to a sublane-aligned count
BT = B * T                 # encoder rows (b, t)
POOLS = (4, 2, 2)          # frequency max-pool factors in the E_tf branch (16 -> 1)
BN_EPS = 1e-5
LN_EPS = 1e-5
NEG_INF = -1e30

assert T & (T - 1) == 0, "T must be a power of two (row % T is computed with a bit mask)"


def _dws_dims():
    dims = []
    f_in, cin = F_MEL, 1
    for pool in POOLS:
        dims.append((f_in, cin, C, pool))
        f_in //= pool
        cin = C
    return tuple(dims)


DWS_DIMS = _dws_dims()     # ((16,1,16,4), (4,16,16,2), (2,16,16,2))


# -----------------------------------------------------------------------------
# Parameter slab layout (shared by the offline packer and the kernel)
# -----------------------------------------------------------------------------
def _round_up(v, m):
    return ((v + m - 1) // m) * m


def _layout(entries, align=8):
    offs, r = {}, 0
    for name, nr, nc in entries:
        offs[name] = (r, nr, nc)
        r += _round_up(nr, align)
    return offs, _round_up(r, align)


def _enc_entry_list():
    ents = []
    cins = (F_MEL, C)
    for blk in range(2):
        ents.append((f"w0_{blk}", cins[blk], C))
        ents.append((f"b0_{blk}", 1, C))
        for di in range(len(DILATIONS)):
            ents.append((f"wfg_{blk}_{di}", 3 * C, 2 * C))
            ents.append((f"bfg_{blk}_{di}", 1, 2 * C))
            ents.append((f"wc_{blk}_{di}", C, C))
            ents.append((f"bc_{blk}_{di}", 1, C))
        ents.append((f"bn_{blk}", 2, C))
    for i, (f_in, cin, cout, _pool) in enumerate(DWS_DIMS):
        ents.append((f"M{i}", 3 * f_in * cin, f_in * cout))
        ents.append((f"bM{i}", 1, f_in * cout))
    ents.append(("Amfc", 3 * 2 * C, LAST_DIM))
    ents.append(("fcb", 1, LAST_DIM))
    return ents


def _dec_entry_list():
    ents = [("emb", NB_CLASSES, E_FEAT), ("pe", LB_PAD, E_FEAT),
            ("smask", LB_PAD, LB_PAD), ("xmask", LB_PAD, BT)]
    for l in range(NUM_LAYERS):
        ents += [(f"wqkv_{l}", E_FEAT, 3 * E_FEAT), (f"bqkv_{l}", 1, 3 * E_FEAT),
                 (f"wos_{l}", E_FEAT, E_FEAT), (f"bos_{l}", 1, E_FEAT),
                 (f"wqc_{l}", E_FEAT, E_FEAT), (f"bqc_{l}", 1, E_FEAT),
                 (f"wkvc_{l}", E_FEAT, 2 * E_FEAT), (f"bkvc_{l}", 1, 2 * E_FEAT),
                 (f"woc_{l}", E_FEAT, E_FEAT), (f"boc_{l}", 1, E_FEAT),
                 (f"ffw1_{l}", E_FEAT, N_HIDDEN), (f"ffb1_{l}", 1, N_HIDDEN),
                 (f"ffw2_{l}", N_HIDDEN, E_FEAT), (f"ffb2_{l}", 1, E_FEAT)]
        for i in range(3):
            ents += [(f"lng_{l}_{i}", 1, E_FEAT), (f"lnb_{l}_{i}", 1, E_FEAT)]
    ents += [("clsw", E_FEAT, CLS_PAD), ("clsb", 1, CLS_PAD)]
    return ents


_ENC_ENTS = _enc_entry_list()
_DEC_ENTS = _dec_entry_list()
ENC_OFF, ENC_ROWS = _layout(_ENC_ENTS)
DEC_OFF, DEC_ROWS = _layout(_DEC_ENTS)
ENC_W = _round_up(max(nc for _, _, nc in _ENC_ENTS), 128)     # 256 (widest folded DWS mat)
DEC_W = _round_up(max(nc for _, _, nc in _DEC_ENTS), 128)     # 128


def _pack(arrays, offs, rows, width):
    slab = jnp.zeros((rows, width), jnp.float32)
    for name, (r, nr, nc) in offs.items():
        a = jnp.asarray(arrays[name], jnp.float32)
        assert a.shape == (nr, nc), (name, a.shape, (nr, nc))
        slab = slab.at[r:r + nr, :nc].set(a)
    return slab


# -----------------------------------------------------------------------------
# The fused mega-kernel: encoder + decoder, everything resident on-chip
# -----------------------------------------------------------------------------
def _wave_transformer_kernel(x_ref, y_ref, enc_ref, dec_ref, out_ref):
    f32 = jnp.float32

    def mm(a, b):
        return jnp.dot(a, b, preferred_element_type=f32)

    def carve(ref, offs):
        def get(name):
            r, nr, nc = offs[name]
            return ref[r:r + nr, 0:nc]          # static slice of the packed slab
        return get

    eget = carve(enc_ref, ENC_OFF)
    dget = carve(dec_ref, DEC_OFF)

    # time shift within each batch segment: XLU roll + VPU boundary mask (no MXU)
    t_idx = lax.broadcasted_iota(jnp.int32, (BT, 1), 0) & (T - 1)      # t = row % T

    def tshift(h, off):                          # h[t + off] within the segment, else 0
        rolled = pltpu.roll(h, shift=(-off) % BT, axis=0)
        mask = jnp.logical_and(t_idx + off >= 0, t_idx + off < T).astype(f32)
        return rolled * mask

    def tap3(h, d):                              # [h[t-d] | h[t] | h[t+d]]  -> one wide GEMM
        return jnp.concatenate([tshift(h, -d), h, tshift(h, d)], axis=1)

    def sigmoid(z):                              # single EUP tanh
        return 0.5 * jnp.tanh(0.5 * z) + 0.5

    x = x_ref[...]                               # (BT, F_MEL), rows (b, t)

    # ---------------- E_temp: two gated WaveBlocks ----------------
    cur_in = x
    for blk in range(2):
        h = mm(cur_in, eget(f"w0_{blk}")) + eget(f"b0_{blk}")          # 1x1 conv Cin -> C
        res = h
        cur = h
        for di, d in enumerate(DILATIONS):
            fg = mm(tap3(cur, d), eget(f"wfg_{blk}_{di}")) + eget(f"bfg_{blk}_{di}")
            gated = jnp.tanh(fg[:, :C]) * sigmoid(fg[:, C:])
            cur = mm(gated, eget(f"wc_{blk}_{di}")) + eget(f"bc_{blk}_{di}")
            res = res + cur
        bn = eget(f"bn_{blk}")                   # rows: [scale, shift] (eval-mode BN)
        cur_in = res * bn[0:1, :] + bn[1:2, :]
    x1 = cur_in                                  # (BT, C)

    # ---------------- E_tf: DWS-CNN blocks (dw+pw folded, pool via lane-slice max) --------
    x2 = x
    for i, (f_in, _cin, cout, pool) in enumerate(DWS_DIMS):
        pre = mm(tap3(x2, 1), eget(f"M{i}")) + eget(f"bM{i}")
        act = jnp.maximum(pre, 0.0)
        w = (f_in // pool) * cout
        pooled = act[:, 0:w]
        for q in range(1, pool):
            pooled = jnp.maximum(pooled, act[:, q * w:(q + 1) * w])
        x2 = pooled                              # columns ordered (f_out, channel)

    # ---------------- E_merge (3x3 conv, 2ch -> 1ch) folded with the final FC -------------
    cat12 = jnp.concatenate([x1, x2], axis=1)                           # (BT, 2C)
    mem = jnp.maximum(mm(tap3(cat12, 1), eget("Amfc")) + eget("fcb"), 0.0)  # (BT, E_FEAT)

    # ---------------- decoder: embedding + PE + transformer blocks + classifier -----------
    scale = 1.0 / math.sqrt(DH)

    def layer_norm(v, l, i):
        mu = jnp.mean(v, axis=-1, keepdims=True)
        var = jnp.mean((v - mu) ** 2, axis=-1, keepdims=True)
        return (v - mu) * lax.rsqrt(var + LN_EPS) * dget(f"lng_{l}_{i}") + dget(f"lnb_{l}_{i}")

    def mha(q_all, k_all, v_all, wo, bo, mask_add):
        q_all = q_all * scale                    # scale once, not per head
        heads = []
        for hh in range(NUM_HEADS):
            sl = slice(hh * DH, (hh + 1) * DH)
            s = lax.dot_general(q_all[:, sl], k_all[:, sl], (((1,), (1,)), ((), ())),
                                preferred_element_type=f32) + mask_add
            s = s - jnp.max(s, axis=-1, keepdims=True)
            p = jnp.exp(s)
            p = p / jnp.sum(p, axis=-1, keepdims=True)       # exact softmax denominator
            heads.append(mm(p, v_all[:, sl]))
        return mm(jnp.concatenate(heads, axis=1), wo) + bo   # ONE output projection

    classes = lax.broadcasted_iota(jnp.int32, (LB_PAD, NB_CLASSES), 1)
    onehot = (y_ref[...] == classes).astype(f32)             # (LB_PAD, NB_CLASSES)
    xd = mm(onehot, dget("emb")) + dget("pe")                # token embedding + PE
    smask = dget("smask")
    xmask = dget("xmask")

    for l in range(NUM_LAYERS):
        # self-attention (fused QKV projection, causal + batch + padding mask)
        qkv = mm(xd, dget(f"wqkv_{l}")) + dget(f"bqkv_{l}")
        a = mha(qkv[:, 0:E_FEAT], qkv[:, E_FEAT:2 * E_FEAT], qkv[:, 2 * E_FEAT:3 * E_FEAT],
                dget(f"wos_{l}"), dget(f"bos_{l}"), smask)
        xd = layer_norm(xd + a, l, 0)
        # cross-attention (fused KV projection over encoder memory)
        q = mm(xd, dget(f"wqc_{l}")) + dget(f"bqc_{l}")
        kv = mm(mem, dget(f"wkvc_{l}")) + dget(f"bkvc_{l}")
        a = mha(q, kv[:, 0:E_FEAT], kv[:, E_FEAT:2 * E_FEAT],
                dget(f"woc_{l}"), dget(f"boc_{l}"), xmask)
        xd = layer_norm(xd + a, l, 1)
        # feed-forward
        h1 = jnp.maximum(mm(xd, dget(f"ffw1_{l}")) + dget(f"ffb1_{l}"), 0.0)
        xd = layer_norm(xd + mm(h1, dget(f"ffw2_{l}")) + dget(f"ffb2_{l}"), l, 2)

    out_ref[...] = mm(xd, dget("clsw")) + dget("clsb")       # (LB_PAD, CLS_PAD) lane-dense


# -----------------------------------------------------------------------------
# Wrapper: one pallas_call, no grid, whole arrays in VMEM
# -----------------------------------------------------------------------------
def wave_transformer10_forward(x, y, enc_slab, dec_slab):
    # training-pass branch of WaveTransformer10.forward (y is not None)
    x2d = x.reshape(BT, F_MEL).astype(jnp.float32)                       # rows (b, t)
    y_in = jnp.transpose(y, (1, 0))[:-1].reshape(LB, 1).astype(jnp.int32)  # rows (l, b)
    y_pad = jnp.zeros((LB_PAD, 1), jnp.int32).at[:LB].set(y_in)

    out = pl.pallas_call(
        _wave_transformer_kernel,
        out_shape=jax.ShapeDtypeStruct((LB_PAD, CLS_PAD), jnp.float32),
        in_specs=[pl.BlockSpec(memory_space=pltpu.MemorySpace.VMEM) for _ in range(4)],
        out_specs=pl.BlockSpec(memory_space=pltpu.MemorySpace.VMEM),
    )(x2d, y_pad, enc_slab, dec_slab)
    return out[:LB, :NB_CLASSES].reshape(L_DEC, B, NB_CLASSES)


# -----------------------------------------------------------------------------
# Offline parameter preparation (weight folding + slab packing)
# -----------------------------------------------------------------------------
def _freq_shift(n, dj):
    a = jnp.arange(n)
    # (X @ P)[:, b] = X[:, b + dj], zero padded at the borders
    return (a[:, None] == (a[None, :] + dj)).astype(jnp.float32)


def _dws_fold(dw, wpw, bpw, f_in, pool):
    """Fold depthwise 3x3 + pointwise 1x1 (channels-last cols (f, c)) into one stacked
    (3*f*cin, f*cout) matrix; output columns permuted to (q, f_out, c) so the frequency
    max-pool becomes a max over `pool` contiguous lane slices."""
    cin, cout = dw.shape[0], wpw.shape[1]
    wblk = jnp.kron(jnp.eye(f_in, dtype=jnp.float32), wpw)              # (f*cin, f*cout)
    mats = []
    for dt_i in range(3):
        r = jnp.zeros((f_in * cin, f_in * cin), jnp.float32)
        for df_i, df in enumerate((-1, 0, 1)):
            p = jnp.kron(_freq_shift(f_in, df), jnp.eye(cin, dtype=jnp.float32))
            r = r + p * jnp.tile(dw[:, dt_i, df_i], f_in)[None, :]
        mats.append(r @ wblk)
    m = jnp.concatenate(mats, axis=0)                                   # (3*f*cin, f*cout)
    bias = jnp.tile(bpw, f_in)[None, :]                                 # (1, f*cout)
    f_out = f_in // pool
    perm = jnp.asarray([(fo * pool + q) * cout + c
                        for q in range(pool) for fo in range(f_out) for c in range(cout)],
                       dtype=jnp.int32)
    return m[:, perm], bias[:, perm]


def _merge_fc_fold(wm, bm, fc_w, fc_b):
    """Fold the 3x3 2ch->1ch merge conv with the final FC into one (3*2C, LAST_DIM) matrix
    whose row blocks match [x1x2[t-1] | x1x2[t] | x1x2[t+1]]."""
    blocks = []
    for dt_i in range(3):
        for ch in range(2):
            a = jnp.zeros((C, C), jnp.float32)
            for dj_i, dj in enumerate((-1, 0, 1)):
                a = a + _freq_shift(C, dj) * wm[ch, dt_i, dj_i]
            blocks.append(a @ fc_w)
    amfc = jnp.concatenate(blocks, axis=0)                              # (6C, LAST_DIM)
    fcb = (fc_b + bm * jnp.sum(fc_w, axis=0))[None, :]                  # conv bias folded in
    return amfc, fcb


def positional_encoding(L, E):
    pos = jnp.arange(L, dtype=jnp.float32)[:, None]
    i = jnp.arange(0, E, 2, dtype=jnp.float32)[None, :]
    angle = pos / jnp.power(10000.0, i / E)
    pe = jnp.zeros((L, E), jnp.float32)
    pe = pe.at[:, 0::2].set(jnp.sin(angle))
    pe = pe.at[:, 1::2].set(jnp.cos(angle))
    return pe


def init_params(key):
    keys = iter(jax.random.split(key, 128))

    def nrm(shape, scale=0.1):
        return (scale * jax.random.normal(next(keys), shape)).astype(jnp.float32)

    # ---------------- encoder slab ----------------
    enc = {}
    cins = (F_MEL, C)
    for blk in range(2):
        enc[f"w0_{blk}"] = nrm((cins[blk], C))
        enc[f"b0_{blk}"] = nrm((1, C))
        for di in range(len(DILATIONS)):
            # rows [0:C] hit h[t-d], [C:2C] hit h[t], [2C:3C] hit h[t+d]; cols = filter|gate
            enc[f"wfg_{blk}_{di}"] = jnp.concatenate([nrm((C, 2 * C)) for _ in range(3)],
                                                     axis=0)
            enc[f"bfg_{blk}_{di}"] = nrm((1, 2 * C))
            enc[f"wc_{blk}_{di}"] = nrm((C, C))
            enc[f"bc_{blk}_{di}"] = nrm((1, C))
        gamma, beta = jnp.ones((C,), jnp.float32), jnp.zeros((C,), jnp.float32)
        enc[f"bn_{blk}"] = jnp.stack([gamma / jnp.sqrt(1.0 + BN_EPS), beta])  # eval BN
    for i, (f_in, cin, cout, pool) in enumerate(DWS_DIMS):
        dw, pw_w, pw_b = nrm((cin, 3, 3)), nrm((cin, cout)), nrm((cout,))
        enc[f"M{i}"], enc[f"bM{i}"] = _dws_fold(dw, pw_w, pw_b, f_in, pool)
    wm, bm = nrm((2, 3, 3)), nrm(())
    fc_w, fc_b = nrm((C, LAST_DIM)), nrm((LAST_DIM,))
    enc["Amfc"], enc["fcb"] = _merge_fc_fold(wm, bm, fc_w, fc_b)
    enc_slab = _pack(enc, ENC_OFF, ENC_ROWS, ENC_W)

    # ---------------- decoder slab ----------------
    dec = {}
    dec["emb"] = nrm((NB_CLASSES, E_FEAT))
    pe = jnp.zeros((LB_PAD, E_FEAT), jnp.float32)
    dec["pe"] = pe.at[:LB].set(jnp.repeat(positional_encoding(L_DEC, E_FEAT), B, axis=0))

    di = jnp.arange(LB_PAD)
    real = di < LB
    dl = jnp.where(real, di // B, 0)
    db = jnp.where(real, di % B, -1)             # padded rows never match a real batch id
    smask = jnp.where((db[:, None] == db[None, :]) & (dl[None, :] <= dl[:, None]),
                      0.0, NEG_INF).astype(jnp.float32)        # causal + same batch item
    eb = jnp.arange(BT) // T
    xmask = jnp.where(db[:, None] == eb[None, :], 0.0, NEG_INF).astype(jnp.float32)
    dec["smask"], dec["xmask"] = smask, xmask

    for l in range(NUM_LAYERS):
        dec[f"wqkv_{l}"] = nrm((E_FEAT, 3 * E_FEAT))           # fused Q|K|V
        dec[f"bqkv_{l}"] = nrm((1, 3 * E_FEAT))
        dec[f"wos_{l}"] = nrm((E_FEAT, E_FEAT))
        dec[f"bos_{l}"] = nrm((1, E_FEAT))
        dec[f"wqc_{l}"] = nrm((E_FEAT, E_FEAT))
        dec[f"bqc_{l}"] = nrm((1, E_FEAT))
        dec[f"wkvc_{l}"] = nrm((E_FEAT, 2 * E_FEAT))           # fused K|V (cross)
        dec[f"bkvc_{l}"] = nrm((1, 2 * E_FEAT))
        dec[f"woc_{l}"] = nrm((E_FEAT, E_FEAT))
        dec[f"boc_{l}"] = nrm((1, E_FEAT))
        dec[f"ffw1_{l}"] = nrm((E_FEAT, N_HIDDEN))
        dec[f"ffb1_{l}"] = nrm((1, N_HIDDEN))
        dec[f"ffw2_{l}"] = nrm((N_HIDDEN, E_FEAT))
        dec[f"ffb2_{l}"] = nrm((1, E_FEAT))
        for i in range(3):
            dec[f"lng_{l}_{i}"] = jnp.ones((1, E_FEAT), jnp.float32)
            dec[f"lnb_{l}_{i}"] = jnp.zeros((1, E_FEAT), jnp.float32)
    dec["clsw"] = jnp.zeros((E_FEAT, CLS_PAD), jnp.float32).at[:, :NB_CLASSES].set(
        nrm((E_FEAT, NB_CLASSES)))
    dec["clsb"] = jnp.zeros((1, CLS_PAD), jnp.float32).at[:, :NB_CLASSES].set(
        nrm((1, NB_CLASSES)))
    dec_slab = _pack(dec, DEC_OFF, DEC_ROWS, DEC_W)
    return enc_slab, dec_slab


# -----------------------------------------------------------------------------
if __name__ == "__main__":
    root = jax.random.PRNGKey(0)
    k_param, k_x, k_y = jax.random.split(root, 3)

    enc_slab, dec_slab = init_params(k_param)
    x = jax.random.normal(k_x, (B, T, F_MEL), dtype=jnp.float32)
    y = jax.random.randint(k_y, (B, L_SEQ), 0, NB_CLASSES, dtype=jnp.int32)

    fwd = jax.jit(lambda xx, yy: wave_transformer10_forward(xx, yy, enc_slab, dec_slab))
    out = jax.block_until_ready(fwd(x, y))

    assert out.shape == (L_SEQ - 1, B, NB_CLASSES), out.shape
    assert bool(jnp.all(jnp.isfinite(out)))
    print("KERNEL_OK")
</pallas_src>

<mosaic_0001>
module attributes {stable_mosaic.version = 11 : i64} {
  func.func @_wave_transformer_kernel(%arg0: memref<32x16xf32, #tpu.memory_space<vmem>>, %arg1: memref<16x1xi32, #tpu.memory_space<vmem>>, %arg2: memref<848x256xf32, #tpu.memory_space<vmem>>, %arg3: memref<832x128xf32, #tpu.memory_space<vmem>>, %arg4: memref<16x128xf32, #tpu.memory_space<vmem>>) attributes {dimension_semantics = [], scalar_prefetch = 0 : i64, scratch_operands = 0 : i64, tpu.core_type = #tpu.core_type<tc>} {
    %0 = tpu.iota {dimensions = array<i32: 0>} : vector<32x1xi32>
    %c15_i32 = arith.constant 15 : i32
    %1 = vector.broadcast %c15_i32 : i32 to vector<32x1xi32>
    %2 = arith.andi %0, %1 : vector<32x1xi32>
    %c0 = arith.constant 0 : index
    %c0_0 = arith.constant 0 : index
    %3 = vector.load %arg0[%c0, %c0_0] : memref<32x16xf32, #tpu.memory_space<vmem>>, vector<32x16xf32>
    %c0_1 = arith.constant 0 : index
    %c0_2 = arith.constant 0 : index
    %4 = vector.load %arg2[%c0_1, %c0_2] : memref<848x256xf32, #tpu.memory_space<vmem>>, vector<16x16xf32>
    %cst = arith.constant dense<0.000000e+00> : vector<32x16xf32>
    %5 = tpu.matmul %3, %4, %cst {dimension_numbers = #tpu.dot_dimension_numbers<[1], [0], [0], [1], [0, 0, 1, 1], [], []>} : vector<32x16xf32>, vector<16x16xf32>, vector<32x16xf32> -> vector<32x16xf32>
    %c16 = arith.constant 16 : index
    %c0_3 = arith.constant 0 : index
    %6 = vector.load %arg2[%c16, %c0_3] : memref<848x256xf32, #tpu.memory_space<vmem>>, vector<1x16xf32>
    %7 = vector.broadcast %6 : vector<1x16xf32> to vector<32x16xf32>
    %8 = arith.addf %5, %7 : vector<32x16xf32>
    %c1_i32 = arith.constant 1 : i32
    %9 = tpu.dynamic_rotate %8 by %c1_i32 dim 0 : vector<32x16xf32>, i32 -> vector<32x16xf32>
    %c-1_i32 = arith.constant -1 : i32
    %10 = vector.broadcast %c-1_i32 : i32 to vector<32x1xi32>
    %11 = arith.addi %2, %10 : vector<32x1xi32>
    %c0_i32 = arith.constant 0 : i32
    %12 = vector.broadcast %c0_i32 : i32 to vector<32x1xi32>
    %13 = arith.cmpi sge, %11, %12 : vector<32x1xi32>
    %c-1_i32_4 = arith.constant -1 : i32
    %14 = vector.broadcast %c-1_i32_4 : i32 to vector<32x1xi32>
    %15 = arith.addi %2, %14 : vector<32x1xi32>
    %c16_i32 = arith.constant 16 : i32
    %16 = vector.broadcast %c16_i32 : i32 to vector<32x1xi32>
    %17 = arith.cmpi slt, %15, %16 : vector<32x1xi32>
    %18 = arith.andi %13, %17 : vector<32x1xi1>
    %19 = arith.extui %18 : vector<32x1xi1> to vector<32x1xi32>
    %20 = arith.sitofp %19 : vector<32x1xi32> to vector<32x1xf32>
    %21 = vector.broadcast %20 : vector<32x1xf32> to vector<32x16xf32>
    %22 = arith.mulf %9, %21 : vector<32x16xf32>
    %c31_i32 = arith.constant 31 : i32
    %23 = tpu.dynamic_rotate %8 by %c31_i32 dim 0 : vector<32x16xf32>, i32 -> vector<32x16xf32>
    %c1_i32_5 = arith.constant 1 : i32
    %24 = vector.broadcast %c1_i32_5 : i32 to vector<32x1xi32>
    %25 = arith.addi %2, %24 : vector<32x1xi32>
    %c0_i32_6 = arith.constant 0 : i32
    %26 = vector.broadcast %c0_i32_6 : i32 to vector<32x1xi32>
    %27 = arith.cmpi sge, %25, %26 : vector<32x1xi32>
    %c1_i32_7 = arith.constant 1 : i32
    %28 = vector.broadcast %c1_i32_7 : i32 to vector<32x1xi32>
    %29 = arith.addi %2, %28 : vector<32x1xi32>
    %c16_i32_8 = arith.constant 16 : i32
    %30 = vector.broadcast %c16_i32_8 : i32 to vector<32x1xi32>
    %31 = arith.cmpi slt, %29, %30 : vector<32x1xi32>
    %32 = arith.andi %27, %31 : vector<32x1xi1>
    %33 = arith.extui %32 : vector<32x1xi1> to vector<32x1xi32>
    %34 = arith.sitofp %33 : vector<32x1xi32> to vector<32x1xf32>
    %35 = vector.broadcast %34 : vector<32x1xf32> to vector<32x16xf32>
    %36 = arith.mulf %23, %35 : vector<32x16xf32>
    %37 = tpu.concatenate %22, %8, %36 in 1 : vector<32x16xf32>, vector<32x16xf32>, vector<32x16xf32> -> vector<32x48xf32>
    %c24 = arith.constant 24 : index
    %c0_9 = arith.constant 0 : index
    %38 = vector.load %arg2[%c24, %c0_9] : memref<848x256xf32, #tpu.memory_space<vmem>>, vector<48x32xf32>
    %cst_10 = arith.constant dense<0.000000e+00> : vector<32x32xf32>
    %39 = tpu.matmul %37, %38, %cst_10 {dimension_numbers = #tpu.dot_dimension_numbers<[1], [0], [0], [1], [0, 0, 1, 1], [], []>} : vector<32x48xf32>, vector<48x32xf32>, vector<32x32xf32> -> vector<32x32xf32>
    %c72 = arith.constant 72 : index
    %c0_11 = arith.constant 0 : index
    %40 = vector.load %arg2[%c72, %c0_11] : memref<848x256xf32, #tpu.memory_space<vmem>>, vector<1x32xf32>
    %41 = vector.broadcast %40 : vector<1x32xf32> to vector<32x32xf32>
    %42 = arith.addf %39, %41 : vector<32x32xf32>
    %43 = vector.extract_strided_slice %42 {offsets = [0, 0], sizes = [32, 16], strides = [1, 1]} : vector<32x32xf32> to vector<32x16xf32>
    %44 = math.tanh %43 : vector<32x16xf32>
    %45 = vector.extract_strided_slice %42 {offsets = [0, 16], sizes = [32, 16], strides = [1, 1]} : vector<32x32xf32> to vector<32x16xf32>
    %cst_12 = arith.constant 5.000000e-01 : f32
    %46 = vector.broadcast %cst_12 : f32 to vector<32x16xf32>
    %47 = arith.mulf %46, %45 : vector<32x16xf32>
    %48 = math.tanh %47 : vector<32x16xf32>
    %cst_13 = arith.constant 5.000000e-01 : f32
    %49 = vector.broadcast %cst_13 : f32 to vector<32x16xf32>
    %50 = arith.mulf %49, %48 : vector<32x16xf32>
    %cst_14 = arith.constant 5.000000e-01 : f32
    %51 = vector.broadcast %cst_14 : f32 to vector<32x16xf32>
    %52 = arith.addf %50, %51 : vector<32x16xf32>
    %53 = arith.mulf %44, %52 : vector<32x16xf32>
    %c80 = arith.constant 80 : index
    %c0_15 = arith.constant 0 : index
    %54 = vector.load %arg2[%c80, %c0_15] : memref<848x256xf32, #tpu.memory_space<vmem>>, vector<16x16xf32>
    %cst_16 = arith.constant dense<0.000000e+00> : vector<32x16xf32>
    %55 = tpu.matmul %53, %54, %cst_16 {dimension_numbers = #tpu.dot_dimension_numbers<[1], [0], [0], [1], [0, 0, 1, 1], [], []>} : vector<32x16xf32>, vector<16x16xf32>, vector<32x16xf32> -> vector<32x16xf32>
    %c96 = arith.constant 96 : index
    %c0_17 = arith.constant 0 : index
    %56 = vector.load %arg2[%c96, %c0_17] : memref<848x256xf32, #tpu.memory_space<vmem>>, vector<1x16xf32>
    %57 = vector.broadcast %56 : vector<1x16xf32> to vector<32x16xf32>
    %58 = arith.addf %55, %57 : vector<32x16xf32>
    %59 = arith.addf %8, %58 : vector<32x16xf32>
    %c2_i32 = arith.constant 2 : i32
    %60 = tpu.dynamic_rotate %58 by %c2_i32 dim 0 : vector<32x16xf32>, i32 -> vector<32x16xf32>
    %c-2_i32 = arith.constant -2 : i32
    %61 = vector.broadcast %c-2_i32 : i32 to vector<32x1xi32>
    %62 = arith.addi %2, %61 : vector<32x1xi32>
    %c0_i32_18 = arith.constant 0 : i32
    %63 = vector.broadcast %c0_i32_18 : i32 to vector<32x1xi32>
    %64 = arith.cmpi sge, %62, %63 : vector<32x1xi32>
    %c-2_i32_19 = arith.constant -2 : i32
    %65 = vector.broadcast %c-2_i32_19 : i32 to vector<32x1xi32>
    %66 = arith.addi %2, %65 : vector<32x1xi32>
    %c16_i32_20 = arith.constant 16 : i32
    %67 = vector.broadcast %c16_i32_20 : i32 to vector<32x1xi32>
    %68 = arith.cmpi slt, %66, %67 : vector<32x1xi32>
    %69 = arith.andi %64, %68 : vector<32x1xi1>
    %70 = arith.extui %69 : vector<32x1xi1> to vector<32x1xi32>
    %71 = arith.sitofp %70 : vector<32x1xi32> to vector<32x1xf32>
    %72 = vector.broadcast %71 : vector<32x1xf32> to vector<32x16xf32>
    %73 = arith.mulf %60, %72 : vector<32x16xf32>
    %c30_i32 = arith.constant 30 : i32
    %74 = tpu.dynamic_rotate %58 by %c30_i32 dim 0 : vector<32x16xf32>, i32 -> vector<32x16xf32>
    %c2_i32_21 = arith.constant 2 : i32
    %75 = vector.broadcast %c2_i32_21 : i32 to vector<32x1xi32>
    %76 = arith.addi %2, %75 : vector<32x1xi32>
    %c0_i32_22 = arith.constant 0 : i32
    %77 = vector.broadcast %c0_i32_22 : i32 to vector<32x1xi32>
    %78 = arith.cmpi sge, %76, %77 : vector<32x1xi32>
    %c2_i32_23 = arith.constant 2 : i32
    %79 = vector.broadcast %c2_i32_23 : i32 to vector<32x1xi32>
    %80 = arith.addi %2, %79 : vector<32x1xi32>
    %c16_i32_24 = arith.constant 16 : i32
    %81 = vector.broadcast %c16_i32_24 : i32 to vector<32x1xi32>
    %82 = arith.cmpi slt, %80, %81 : vector<32x1xi32>
    %83 = arith.andi %78, %82 : vector<32x1xi1>
    %84 = arith.extui %83 : vector<32x1xi1> to vector<32x1xi32>
    %85 = arith.sitofp %84 : vector<32x1xi32> to vector<32x1xf32>
    %86 = vector.broadcast %85 : vector<32x1xf32> to vector<32x16xf32>
    %87 = arith.mulf %74, %86 : vector<32x16xf32>
    %88 = tpu.concatenate %73, %58, %87 in 1 : vector<32x16xf32>, vector<32x16xf32>, vector<32x16xf32> -> vector<32x48xf32>
    %c104 = arith.constant 104 : index
    %c0_25 = arith.constant 0 : index
    %89 = vector.load %arg2[%c104, %c0_25] : memref<848x256xf32, #tpu.memory_space<vmem>>, vector<48x32xf32>
    %cst_26 = arith.constant dense<0.000000e+00> : vector<32x32xf32>
    %90 = tpu.matmul %88, %89, %cst_26 {dimension_numbers = #tpu.dot_dimension_numbers<[1], [0], [0], [1], [0, 0, 1, 1], [], []>} : vector<32x48xf32>, vector<48x32xf32>, vector<32x32xf32> -> vector<32x32xf32>
    %c152 = arith.constant 152 : index
    %c0_27 = arith.constant 0 : index
    %91 = vector.load %arg2[%c152, %c0_27] : memref<848x256xf32, #tpu.memory_space<vmem>>, vector<1x32xf32>
    %92 = vector.broadcast %91 : vector<1x32xf32> to vector<32x32xf32>
    %93 = arith.addf %90, %92 : vector<32x32xf32>
    %94 = vector.extract_strided_slice %93 {offsets = [0, 0], sizes = [32, 16], strides = [1, 1]} : vector<32x32xf32> to vector<32x16xf32>
    %95 = math.tanh %94 : vector<32x16xf32>
    %96 = vector.extract_strided_slice %93 {offsets = [0, 16], sizes = [32, 16], strides = [1, 1]} : vector<32x32xf32> to vector<32x16xf32>
    %cst_28 = arith.constant 5.000000e-01 : f32
    %97 = vector.broadcast %cst_28 : f32 to vector<32x16xf32>
    %98 = arith.mulf %97, %96 : vector<32x16xf32>
    %99 = math.tanh %98 : vector<32x16xf32>
    %cst_29 = arith.constant 5.000000e-01 : f32
    %100 = vector.broadcast %cst_29 : f32 to vector<32x16xf32>
    %101 = arith.mulf %100, %99 : vector<32x16xf32>
    %cst_30 = arith.constant 5.000000e-01 : f32
    %102 = vector.broadcast %cst_30 : f32 to vector<32x16xf32>
    %103 = arith.addf %101, %102 : vector<32x16xf32>
    %104 = arith.mulf %95, %103 : vector<32x16xf32>
    %c160 = arith.constant 160 : index
    %c0_31 = arith.constant 0 : index
    %105 = vector.load %arg2[%c160, %c0_31] : memref<848x256xf32, #tpu.memory_space<vmem>>, vector<16x16xf32>
    %cst_32 = arith.constant dense<0.000000e+00> : vector<32x16xf32>
    %106 = tpu.matmul %104, %105, %cst_32 {dimension_numbers = #tpu.dot_dimension_numbers<[1], [0], [0], [1], [0, 0, 1, 1], [], []>} : vector<32x16xf32>, vector<16x16xf32>, vector<32x16xf32> -> vector<32x16xf32>
    %c176 = arith.constant 176 : index
    %c0_33 = arith.constant 0 : index
    %107 = vector.load %arg2[%c176, %c0_33] : memref<848x256xf32, #tpu.memory_space<vmem>>, vector<1x16xf32>
    %108 = vector.broadcast %107 : vector<1x16xf32> to vector<32x16xf32>
    %109 = arith.addf %106, %108 : vector<32x16xf32>
    %110 = arith.addf %59, %109 : vector<32x16xf32>
    %c184 = arith.constant 184 : index
    %c0_34 = arith.constant 0 : index
    %111 = vector.load %arg2[%c184, %c0_34] : memref<848x256xf32, #tpu.memory_space<vmem>>, vector<2x16xf32>
    %112 = vector.extract_strided_slice %111 {offsets = [0, 0], sizes = [1, 16], strides = [1, 1]} : vector<2x16xf32> to vector<1x16xf32>
    %113 = vector.broadcast %112 : vector<1x16xf32> to vector<32x16xf32>
    %114 = arith.mulf %110, %113 : vector<32x16xf32>
    %115 = vector.extract_strided_slice %111 {offsets = [1, 0], sizes = [1, 16], strides = [1, 1]} : vector<2x16xf32> to vector<1x16xf32>
    %116 = vector.broadcast %115 : vector<1x16xf32> to vector<32x16xf32>
    %117 = arith.addf %114, %116 : vector<32x16xf32>
    %c192 = arith.constant 192 : index
    %c0_35 = arith.constant 0 : index
    %118 = vector.load %arg2[%c192, %c0_35] : memref<848x256xf32, #tpu.memory_space<vmem>>, vector<16x16xf32>
    %cst_36 = arith.constant dense<0.000000e+00> : vector<32x16xf32>
    %119 = tpu.matmul %117, %118, %cst_36 {dimension_numbers = #tpu.dot_dimension_numbers<[1], [0], [0], [1], [0, 0, 1, 1], [], []>} : vector<32x16xf32>, vector<16x16xf32>, vector<32x16xf32> -> vector<32x16xf32>
    %c208 = arith.constant 208 : index
    %c0_37 = arith.constant 0 : index
    %120 = vector.load %arg2[%c208, %c0_37] : memref<848x256xf32, #tpu.memory_space<vmem>>, vector<1x16xf32>
    %121 = vector.broadcast %120 : vector<1x16xf32> to vector<32x16xf32>
    %122 = arith.addf %119, %121 : vector<32x16xf32>
    %c1_i32_38 = arith.constant 1 : i32
    %123 = tpu.dynamic_rotate %122 by %c1_i32_38 dim 0 : vector<32x16xf32>, i32 -> vector<32x16xf32>
    %c-1_i32_39 = arith.constant -1 : i32
    %124 = vector.broadcast %c-1_i32_39 : i32 to vector<32x1xi32>
    %125 = arith.addi %2, %124 : vector<32x1xi32>
    %c0_i32_40 = arith.constant 0 : i32
    %126 = vector.broadcast %c0_i32_40 : i32 to vector<32x1xi32>
    %127 = arith.cmpi sge, %125, %126 : vector<32x1xi32>
    %c-1_i32_41 = arith.constant -1 : i32
    %128 = vector.broadcast %c-1_i32_41 : i32 to vector<32x1xi32>
    %129 = arith.addi %2, %128 : vector<32x1xi32>
    %c16_i32_42 = arith.constant 16 : i32
    %130 = vector.broadcast %c16_i32_42 : i32 to vector<32x1xi32>
    %131 = arith.cmpi slt, %129, %130 : vector<32x1xi32>
    %132 = arith.andi %127, %131 : vector<32x1xi1>
    %133 = arith.extui %132 : vector<32x1xi1> to vector<32x1xi32>
    %134 = arith.sitofp %133 : vector<32x1xi32> to vector<32x1xf32>
    %135 = vector.broadcast %134 : vector<32x1xf32> to vector<32x16xf32>
    %136 = arith.mulf %123, %135 : vector<32x16xf32>
    %c31_i32_43 = arith.constant 31 : i32
    %137 = tpu.dynamic_rotate %122 by %c31_i32_43 dim 0 : vector<32x16xf32>, i32 -> vector<32x16xf32>
    %c1_i32_44 = arith.constant 1 : i32
    %138 = vector.broadcast %c1_i32_44 : i32 to vector<32x1xi32>
    %139 = arith.addi %2, %138 : vector<32x1xi32>
    %c0_i32_45 = arith.constant 0 : i32
    %140 = vector.broadcast %c0_i32_45 : i32 to vector<32x1xi32>
    %141 = arith.cmpi sge, %139, %140 : vector<32x1xi32>
    %c1_i32_46 = arith.constant 1 : i32
    %142 = vector.broadcast %c1_i32_46 : i32 to vector<32x1xi32>
    %143 = arith.addi %2, %142 : vector<32x1xi32>
    %c16_i32_47 = arith.constant 16 : i32
    %144 = vector.broadcast %c16_i32_47 : i32 to vector<32x1xi32>
    %145 = arith.cmpi slt, %143, %144 : vector<32x1xi32>
    %146 = arith.andi %141, %145 : vector<32x1xi1>
    %147 = arith.extui %146 : vector<32x1xi1> to vector<32x1xi32>
    %148 = arith.sitofp %147 : vector<32x1xi32> to vector<32x1xf32>
    %149 = vector.broadcast %148 : vector<32x1xf32> to vector<32x16xf32>
    %150 = arith.mulf %137, %149 : vector<32x16xf32>
    %151 = tpu.concatenate %136, %122, %150 in 1 : vector<32x16xf32>, vector<32x16xf32>, vector<32x16xf32> -> vector<32x48xf32>
    %c216 = arith.constant 216 : index
    %c0_48 = arith.constant 0 : index
    %152 = vector.load %arg2[%c216, %c0_48] : memref<848x256xf32, #tpu.memory_space<vmem>>, vector<48x32xf32>
    %cst_49 = arith.constant dense<0.000000e+00> : vector<32x32xf32>
    %153 = tpu.matmul %151, %152, %cst_49 {dimension_numbers = #tpu.dot_dimension_numbers<[1], [0], [0], [1], [0, 0, 1, 1], [], []>} : vector<32x48xf32>, vector<48x32xf32>, vector<32x32xf32> -> vector<32x32xf32>
    %c264 = arith.constant 264 : index
    %c0_50 = arith.constant 0 : index
    %154 = vector.load %arg2[%c264, %c0_50] : memref<848x256xf32, #tpu.memory_space<vmem>>, vector<1x32xf32>
    %155 = vector.broadcast %154 : vector<1x32xf32> to vector<32x32xf32>
    %156 = arith.addf %153, %155 : vector<32x32xf32>
    %157 = vector.extract_strided_slice %156 {offsets = [0, 0], sizes = [32, 16], strides = [1, 1]} : vector<32x32xf32> to vector<32x16xf32>
    %158 = math.tanh %157 : vector<32x16xf32>
    %159 = vector.extract_strided_slice %156 {offsets = [0, 16], sizes = [32, 16], strides = [1, 1]} : vector<32x32xf32> to vector<32x16xf32>
    %cst_51 = arith.constant 5.000000e-01 : f32
    %160 = vector.broadcast %cst_51 : f32 to vector<32x16xf32>
    %161 = arith.mulf %160, %159 : vector<32x16xf32>
    %162 = math.tanh %161 : vector<32x16xf32>
    %cst_52 = arith.constant 5.000000e-01 : f32
    %163 = vector.broadcast %cst_52 : f32 to vector<32x16xf32>
    %164 = arith.mulf %163, %162 : vector<32x16xf32>
    %cst_53 = arith.constant 5.000000e-01 : f32
    %165 = vector.broadcast %cst_53 : f32 to vector<32x16xf32>
    %166 = arith.addf %164, %165 : vector<32x16xf32>
    %167 = arith.mulf %158, %166 : vector<32x16xf32>
    %c272 = arith.constant 272 : index
    %c0_54 = arith.constant 0 : index
    %168 = vector.load %arg2[%c272, %c0_54] : memref<848x256xf32, #tpu.memory_space<vmem>>, vector<16x16xf32>
    %cst_55 = arith.constant dense<0.000000e+00> : vector<32x16xf32>
    %169 = tpu.matmul %167, %168, %cst_55 {dimension_numbers = #tpu.dot_dimension_numbers<[1], [0], [0], [1], [0, 0, 1, 1], [], []>} : vector<32x16xf32>, vector<16x16xf32>, vector<32x16xf32> -> vector<32x16xf32>
    %c288 = arith.constant 288 : index
    %c0_56 = arith.constant 0 : index
    %170 = vector.load %arg2[%c288, %c0_56] : memref<848x256xf32, #tpu.memory_space<vmem>>, vector<1x16xf32>
    %171 = vector.broadcast %170 : vector<1x16xf32> to vector<32x16xf32>
    %172 = arith.addf %169, %171 : vector<32x16xf32>
    %173 = arith.addf %122, %172 : vector<32x16xf32>
    %c2_i32_57 = arith.constant 2 : i32
    %174 = tpu.dynamic_rotate %172 by %c2_i32_57 dim 0 : vector<32x16xf32>, i32 -> vector<32x16xf32>
    %c-2_i32_58 = arith.constant -2 : i32
    %175 = vector.broadcast %c-2_i32_58 : i32 to vector<32x1xi32>
    %176 = arith.addi %2, %175 : vector<32x1xi32>
    %c0_i32_59 = arith.constant 0 : i32
    %177 = vector.broadcast %c0_i32_59 : i32 to vector<32x1xi32>
    %178 = arith.cmpi sge, %176, %177 : vector<32x1xi32>
    %c-2_i32_60 = arith.constant -2 : i32
    %179 = vector.broadcast %c-2_i32_60 : i32 to vector<32x1xi32>
    %180 = arith.addi %2, %179 : vector<32x1xi32>
    %c16_i32_61 = arith.constant 16 : i32
    %181 = vector.broadcast %c16_i32_61 : i32 to vector<32x1xi32>
    %182 = arith.cmpi slt, %180, %181 : vector<32x1xi32>
    %183 = arith.andi %178, %182 : vector<32x1xi1>
    %184 = arith.extui %183 : vector<32x1xi1> to vector<32x1xi32>
    %185 = arith.sitofp %184 : vector<32x1xi32> to vector<32x1xf32>
    %186 = vector.broadcast %185 : vector<32x1xf32> to vector<32x16xf32>
    %187 = arith.mulf %174, %186 : vector<32x16xf32>
    %c30_i32_62 = arith.constant 30 : i32
    %188 = tpu.dynamic_rotate %172 by %c30_i32_62 dim 0 : vector<32x16xf32>, i32 -> vector<32x16xf32>
    %c2_i32_63 = arith.constant 2 : i32
    %189 = vector.broadcast %c2_i32_63 : i32 to vector<32x1xi32>
    %190 = arith.addi %2, %189 : vector<32x1xi32>
    %c0_i32_64 = arith.constant 0 : i32
    %191 = vector.broadcast %c0_i32_64 : i32 to vector<32x1xi32>
    %192 = arith.cmpi sge, %190, %191 : vector<32x1xi32>
    %c2_i32_65 = arith.constant 2 : i32
    %193 = vector.broadcast %c2_i32_65 : i32 to vector<32x1xi32>
    %194 = arith.addi %2, %193 : vector<32x1xi32>
    %c16_i32_66 = arith.constant 16 : i32
    %195 = vector.broadcast %c16_i32_66 : i32 to vector<32x1xi32>
    %196 = arith.cmpi slt, %194, %195 : vector<32x1xi32>
    %197 = arith.andi %192, %196 : vector<32x1xi1>
    %198 = arith.extui %197 : vector<32x1xi1> to vector<32x1xi32>
    %199 = arith.sitofp %198 : vector<32x1xi32> to vector<32x1xf32>
    %200 = vector.broadcast %199 : vector<32x1xf32> to vector<32x16xf32>
    %201 = arith.mulf %188, %200 : vector<32x16xf32>
    %202 = tpu.concatenate %187, %172, %201 in 1 : vector<32x16xf32>, vector<32x16xf32>, vector<32x16xf32> -> vector<32x48xf32>
    %c296 = arith.constant 296 : index
    %c0_67 = arith.constant 0 : index
    %203 = vector.load %arg2[%c296, %c0_67] : memref<848x256xf32, #tpu.memory_space<vmem>>, vector<48x32xf32>
    %cst_68 = arith.constant dense<0.000000e+00> : vector<32x32xf32>
    %204 = tpu.matmul %202, %203, %cst_68 {dimension_numbers = #tpu.dot_dimension_numbers<[1], [0], [0], [1], [0, 0, 1, 1], [], []>} : vector<32x48xf32>, vector<48x32xf32>, vector<32x32xf32> -> vector<32x32xf32>
    %c344 = arith.constant 344 : index
    %c0_69 = arith.constant 0 : index
    %205 = vector.load %arg2[%c344, %c0_69] : memref<848x256xf32, #tpu.memory_space<vmem>>, vector<1x32xf32>
    %206 = vector.broadcast %205 : vector<1x32xf32> to vector<32x32xf32>
    %207 = arith.addf %204, %206 : vector<32x32xf32>
    %208 = vector.extract_strided_slice %207 {offsets = [0, 0], sizes = [32, 16], strides = [1, 1]} : vector<32x32xf32> to vector<32x16xf32>
    %209 = math.tanh %208 : vector<32x16xf32>
    %210 = vector.extract_strided_slice %207 {offsets = [0, 16], sizes = [32, 16], strides = [1, 1]} : vector<32x32xf32> to vector<32x16xf32>
    %cst_70 = arith.constant 5.000000e-01 : f32
    %211 = vector.broadcast %cst_70 : f32 to vector<32x16xf32>
    %212 = arith.mulf %211, %210 : vector<32x16xf32>
    %213 = math.tanh %212 : vector<32x16xf32>
    %cst_71 = arith.constant 5.000000e-01 : f32
    %214 = vector.broadcast %cst_71 : f32 to vector<32x16xf32>
    %215 = arith.mulf %214, %213 : vector<32x16xf32>
    %cst_72 = arith.constant 5.000000e-01 : f32
    %216 = vector.broadcast %cst_72 : f32 to vector<32x16xf32>
    %217 = arith.addf %215, %216 : vector<32x16xf32>
    %218 = arith.mulf %209, %217 : vector<32x16xf32>
    %c352 = arith.constant 352 : index
    %c0_73 = arith.constant 0 : index
    %219 = vector.load %arg2[%c352, %c0_73] : memref<848x256xf32, #tpu.memory_space<vmem>>, vector<16x16xf32>
    %cst_74 = arith.constant dense<0.000000e+00> : vector<32x16xf32>
    %220 = tpu.matmul %218, %219, %cst_74 {dimension_numbers = #tpu.dot_dimension_numbers<[1], [0], [0], [1], [0, 0, 1, 1], [], []>} : vector<32x16xf32>, vector<16x16xf32>, vector<32x16xf32> -> vector<32x16xf32>
    %c368 = arith.constant 368 : index
    %c0_75 = arith.constant 0 : index
    %221 = vector.load %arg2[%c368, %c0_75] : memref<848x256xf32, #tpu.memory_space<vmem>>, vector<1x16xf32>
    %222 = vector.broadcast %221 : vector<1x16xf32> to vector<32x16xf32>
    %223 = arith.addf %220, %222 : vector<32x16xf32>
    %224 = arith.addf %173, %223 : vector<32x16xf32>
    %c376 = arith.constant 376 : index
    %c0_76 = arith.constant 0 : index
    %225 = vector.load %arg2[%c376, %c0_76] : memref<848x256xf32, #tpu.memory_space<vmem>>, vector<2x16xf32>
    %226 = vector.extract_strided_slice %225 {offsets = [0, 0], sizes = [1, 16], strides = [1, 1]} : vector<2x16xf32> to vector<1x16xf32>
    %227 = vector.broadcast %226 : vector<1x16xf32> to vector<32x16xf32>
    %228 = arith.mulf %224, %227 : vector<32x16xf32>
    %229 = vector.extract_strided_slice %225 {offsets = [1, 0], sizes = [1, 16], strides = [1, 1]} : vector<2x16xf32> to vector<1x16xf32>
    %230 = vector.broadcast %229 : vector<1x16xf32> to vector<32x16xf32>
    %231 = arith.addf %228, %230 : vector<32x16xf32>
    %c1_i32_77 = arith.constant 1 : i32
    %232 = tpu.dynamic_rotate %3 by %c1_i32_77 dim 0 : vector<32x16xf32>, i32 -> vector<32x16xf32>
    %c-1_i32_78 = arith.constant -1 : i32
    %233 = vector.broadcast %c-1_i32_78 : i32 to vector<32x1xi32>
    %234 = arith.addi %2, %233 : vector<32x1xi32>
    %c0_i32_79 = arith.constant 0 : i32
    %235 = vector.broadcast %c0_i32_79 : i32 to vector<32x1xi32>
    %236 = arith.cmpi sge, %234, %235 : vector<32x1xi32>
    %c-1_i32_80 = arith.constant -1 : i32
    %237 = vector.broadcast %c-1_i32_80 : i32 to vector<32x1xi32>
    %238 = arith.addi %2, %237 : vector<32x1xi32>
    %c16_i32_81 = arith.constant 16 : i32
    %239 = vector.broadcast %c16_i32_81 : i32 to vector<32x1xi32>
    %240 = arith.cmpi slt, %238, %239 : vector<32x1xi32>
    %241 = arith.andi %236, %240 : vector<32x1xi1>
    %242 = arith.extui %241 : vector<32x1xi1> to vector<32x1xi32>
    %243 = arith.sitofp %242 : vector<32x1xi32> to vector<32x1xf32>
    %244 = vector.broadcast %243 : vector<32x1xf32> to vector<32x16xf32>
    %245 = arith.mulf %232, %244 : vector<32x16xf32>
    %c31_i32_82 = arith.constant 31 : i32
    %246 = tpu.dynamic_rotate %3 by %c31_i32_82 dim 0 : vector<32x16xf32>, i32 -> vector<32x16xf32>
    %c1_i32_83 = arith.constant 1 : i32
    %247 = vector.broadcast %c1_i32_83 : i32 to vector<32x1xi32>
    %248 = arith.addi %2, %247 : vector<32x1xi32>
    %c0_i32_84 = arith.constant 0 : i32
    %249 = vector.broadcast %c0_i32_84 : i32 to vector<32x1xi32>
    %250 = arith.cmpi sge, %248, %249 : vector<32x1xi32>
    %c1_i32_85 = arith.constant 1 : i32
    %251 = vector.broadcast %c1_i32_85 : i32 to vector<32x1xi32>
    %252 = arith.addi %2, %251 : vector<32x1xi32>
    %c16_i32_86 = arith.constant 16 : i32
    %253 = vector.broadcast %c16_i32_86 : i32 to vector<32x1xi32>
    %254 = arith.cmpi slt, %252, %253 : vector<32x1xi32>
    %255 = arith.andi %250, %254 : vector<32x1xi1>
    %256 = arith.extui %255 : vector<32x1xi1> to vector<32x1xi32>
    %257 = arith.sitofp %256 : vector<32x1xi32> to vector<32x1xf32>
    %258 = vector.broadcast %257 : vector<32x1xf32> to vector<32x16xf32>
    %259 = arith.mulf %246, %258 : vector<32x16xf32>
    %260 = tpu.concatenate %245, %3, %259 in 1 : vector<32x16xf32>, vector<32x16xf32>, vector<32x16xf32> -> vector<32x48xf32>
    %c384 = arith.constant 384 : index
    %c0_87 = arith.constant 0 : index
    %261 = vector.load %arg2[%c384, %c0_87] : memref<848x256xf32, #tpu.memory_space<vmem>>, vector<48x256xf32>
    %cst_88 = arith.constant dense<0.000000e+00> : vector<32x256xf32>
    %262 = tpu.matmul %260, %261, %cst_88 {dimension_numbers = #tpu.dot_dimension_numbers<[1], [0], [0], [1], [0, 0, 1, 1], [], []>} : vector<32x48xf32>, vector<48x256xf32>, vector<32x256xf32> -> vector<32x256xf32>
    %c432 = arith.constant 432 : index
    %c0_89 = arith.constant 0 : index
    %263 = vector.load %arg2[%c432, %c0_89] : memref<848x256xf32, #tpu.memory_space<vmem>>, vector<1x256xf32>
    %264 = vector.broadcast %263 : vector<1x256xf32> to vector<32x256xf32>
    %265 = arith.addf %262, %264 : vector<32x256xf32>
    %cst_90 = arith.constant 0.000000e+00 : f32
    %266 = vector.broadcast %cst_90 : f32 to vector<32x256xf32>
    %267 = arith.maximumf %265, %266 : vector<32x256xf32>
    %268 = vector.extract_strided_slice %267 {offsets = [0, 0], sizes = [32, 64], strides = [1, 1]} : vector<32x256xf32> to vector<32x64xf32>
    %269 = vector.extract_strided_slice %267 {offsets = [0, 64], sizes = [32, 64], strides = [1, 1]} : vector<32x256xf32> to vector<32x64xf32>
    %270 = arith.maximumf %268, %269 : vector<32x64xf32>
    %271 = vector.extract_strided_slice %267 {offsets = [0, 128], sizes = [32, 64], strides = [1, 1]} : vector<32x256xf32> to vector<32x64xf32>
    %272 = arith.maximumf %270, %271 : vector<32x64xf32>
    %273 = vector.extract_strided_slice %267 {offsets = [0, 192], sizes = [32, 64], strides = [1, 1]} : vector<32x256xf32> to vector<32x64xf32>
    %274 = arith.maximumf %272, %273 : vector<32x64xf32>
    %c1_i32_91 = arith.constant 1 : i32
    %275 = tpu.dynamic_rotate %274 by %c1_i32_91 dim 0 : vector<32x64xf32>, i32 -> vector<32x64xf32>
    %c-1_i32_92 = arith.constant -1 : i32
    %276 = vector.broadcast %c-1_i32_92 : i32 to vector<32x1xi32>
    %277 = arith.addi %2, %276 : vector<32x1xi32>
    %c0_i32_93 = arith.constant 0 : i32
    %278 = vector.broadcast %c0_i32_93 : i32 to vector<32x1xi32>
    %279 = arith.cmpi sge, %277, %278 : vector<32x1xi32>
    %c-1_i32_94 = arith.constant -1 : i32
    %280 = vector.broadcast %c-1_i32_94 : i32 to vector<32x1xi32>
    %281 = arith.addi %2, %280 : vector<32x1xi32>
    %c16_i32_95 = arith.constant 16 : i32
    %282 = vector.broadcast %c16_i32_95 : i32 to vector<32x1xi32>
    %283 = arith.cmpi slt, %281, %282 : vector<32x1xi32>
    %284 = arith.andi %279, %283 : vector<32x1xi1>
    %285 = arith.extui %284 : vector<32x1xi1> to vector<32x1xi32>
    %286 = arith.sitofp %285 : vector<32x1xi32> to vector<32x1xf32>
    %287 = vector.broadcast %286 : vector<32x1xf32> to vector<32x64xf32>
    %288 = arith.mulf %275, %287 : vector<32x64xf32>
    %c31_i32_96 = arith.constant 31 : i32
    %289 = tpu.dynamic_rotate %274 by %c31_i32_96 dim 0 : vector<32x64xf32>, i32 -> vector<32x64xf32>
    %c1_i32_97 = arith.constant 1 : i32
    %290 = vector.broadcast %c1_i32_97 : i32 to vector<32x1xi32>
    %291 = arith.addi %2, %290 : vector<32x1xi32>
    %c0_i32_98 = arith.constant 0 : i32
    %292 = vector.broadcast %c0_i32_98 : i32 to vector<32x1xi32>
    %293 = arith.cmpi sge, %291, %292 : vector<32x1xi32>
    %c1_i32_99 = arith.constant 1 : i32
    %294 = vector.broadcast %c1_i32_99 : i32 to vector<32x1xi32>
    %295 = arith.addi %2, %294 : vector<32x1xi32>
    %c16_i32_100 = arith.constant 16 : i32
    %296 = vector.broadcast %c16_i32_100 : i32 to vector<32x1xi32>
    %297 = arith.cmpi slt, %295, %296 : vector<32x1xi32>
    %298 = arith.andi %293, %297 : vector<32x1xi1>
    %299 = arith.extui %298 : vector<32x1xi1> to vector<32x1xi32>
    %300 = arith.sitofp %299 : vector<32x1xi32> to vector<32x1xf32>
    %301 = vector.broadcast %300 : vector<32x1xf32> to vector<32x64xf32>
    %302 = arith.mulf %289, %301 : vector<32x64xf32>
    %303 = tpu.concatenate %288, %274, %302 in 1 : vector<32x64xf32>, vector<32x64xf32>, vector<32x64xf32> -> vector<32x192xf32>
    %c440 = arith.constant 440 : index
    %c0_101 = arith.constant 0 : index
    %304 = vector.load %arg2[%c440, %c0_101] : memref<848x256xf32, #tpu.memory_space<vmem>>, vector<192x64xf32>
    %cst_102 = arith.constant dense<0.000000e+00> : vector<32x64xf32>
    %305 = tpu.matmul %303, %304, %cst_102 {dimension_numbers = #tpu.dot_dimension_numbers<[1], [0], [0], [1], [0, 0, 1, 1], [], []>} : vector<32x192xf32>, vector<192x64xf32>, vector<32x64xf32> -> vector<32x64xf32>
    %c632 = arith.constant 632 : index
    %c0_103 = arith.constant 0 : index
    %306 = vector.load %arg2[%c632, %c0_103] : memref<848x256xf32, #tpu.memory_space<vmem>>, vector<1x64xf32>
    %307 = vector.broadcast %306 : vector<1x64xf32> to vector<32x64xf32>
    %308 = arith.addf %305, %307 : vector<32x64xf32>
    %cst_104 = arith.constant 0.000000e+00 : f32
    %309 = vector.broadcast %cst_104 : f32 to vector<32x64xf32>
    %310 = arith.maximumf %308, %309 : vector<32x64xf32>
    %311 = vector.extract_strided_slice %310 {offsets = [0, 0], sizes = [32, 32], strides = [1, 1]} : vector<32x64xf32> to vector<32x32xf32>
    %312 = vector.extract_strided_slice %310 {offsets = [0, 32], sizes = [32, 32], strides = [1, 1]} : vector<32x64xf32> to vector<32x32xf32>
    %313 = arith.maximumf %311, %312 : vector<32x32xf32>
    %c1_i32_105 = arith.constant 1 : i32
    %314 = tpu.dynamic_rotate %313 by %c1_i32_105 dim 0 : vector<32x32xf32>, i32 -> vector<32x32xf32>
    %c-1_i32_106 = arith.constant -1 : i32
    %315 = vector.broadcast %c-1_i32_106 : i32 to vector<32x1xi32>
    %316 = arith.addi %2, %315 : vector<32x1xi32>
    %c0_i32_107 = arith.constant 0 : i32
    %317 = vector.broadcast %c0_i32_107 : i32 to vector<32x1xi32>
    %318 = arith.cmpi sge, %316, %317 : vector<32x1xi32>
    %c-1_i32_108 = arith.constant -1 : i32
    %319 = vector.broadcast %c-1_i32_108 : i32 to vector<32x1xi32>
    %320 = arith.addi %2, %319 : vector<32x1xi32>
    %c16_i32_109 = arith.constant 16 : i32
    %321 = vector.broadcast %c16_i32_109 : i32 to vector<32x1xi32>
    %322 = arith.cmpi slt, %320, %321 : vector<32x1xi32>
    %323 = arith.andi %318, %322 : vector<32x1xi1>
    %324 = arith.extui %323 : vector<32x1xi1> to vector<32x1xi32>
    %325 = arith.sitofp %324 : vector<32x1xi32> to vector<32x1xf32>
    %326 = vector.broadcast %325 : vector<32x1xf32> to vector<32x32xf32>
    %327 = arith.mulf %314, %326 : vector<32x32xf32>
    %c31_i32_110 = arith.constant 31 : i32
    %328 = tpu.dynamic_rotate %313 by %c31_i32_110 dim 0 : vector<32x32xf32>, i32 -> vector<32x32xf32>
    %c1_i32_111 = arith.constant 1 : i32
    %329 = vector.broadcast %c1_i32_111 : i32 to vector<32x1xi32>
    %330 = arith.addi %2, %329 : vector<32x1xi32>
    %c0_i32_112 = arith.constant 0 : i32
    %331 = vector.broadcast %c0_i32_112 : i32 to vector<32x1xi32>
    %332 = arith.cmpi sge, %330, %331 : vector<32x1xi32>
    %c1_i32_113 = arith.constant 1 : i32
    %333 = vector.broadcast %c1_i32_113 : i32 to vector<32x1xi32>
    %334 = arith.addi %2, %333 : vector<32x1xi32>
    %c16_i32_114 = arith.constant 16 : i32
    %335 = vector.broadcast %c16_i32_114 : i32 to vector<32x1xi32>
    %336 = arith.cmpi slt, %334, %335 : vector<32x1xi32>
    %337 = arith.andi %332, %336 : vector<32x1xi1>
    %338 = arith.extui %337 : vector<32x1xi1> to vector<32x1xi32>
    %339 = arith.sitofp %338 : vector<32x1xi32> to vector<32x1xf32>
    %340 = vector.broadcast %339 : vector<32x1xf32> to vector<32x32xf32>
    %341 = arith.mulf %328, %340 : vector<32x32xf32>
    %342 = tpu.concatenate %327, %313, %341 in 1 : vector<32x32xf32>, vector<32x32xf32>, vector<32x32xf32> -> vector<32x96xf32>
    %c640 = arith.constant 640 : index
    %c0_115 = arith.constant 0 : index
    %343 = vector.load %arg2[%c640, %c0_115] : memref<848x256xf32, #tpu.memory_space<vmem>>, vector<96x32xf32>
    %cst_116 = arith.constant dense<0.000000e+00> : vector<32x32xf32>
    %344 = tpu.matmul %342, %343, %cst_116 {dimension_numbers = #tpu.dot_dimension_numbers<[1], [0], [0], [1], [0, 0, 1, 1], [], []>} : vector<32x96xf32>, vector<96x32xf32>, vector<32x32xf32> -> vector<32x32xf32>
    %c736 = arith.constant 736 : index
    %c0_117 = arith.constant 0 : index
    %345 = vector.load %arg2[%c736, %c0_117] : memref<848x256xf32, #tpu.memory_space<vmem>>, vector<1x32xf32>
    %346 = vector.broadcast %345 : vector<1x32xf32> to vector<32x32xf32>
    %347 = arith.addf %344, %346 : vector<32x32xf32>
    %cst_118 = arith.constant 0.000000e+00 : f32
    %348 = vector.broadcast %cst_118 : f32 to vector<32x32xf32>
    %349 = arith.maximumf %347, %348 : vector<32x32xf32>
    %350 = vector.extract_strided_slice %349 {offsets = [0, 0], sizes = [32, 16], strides = [1, 1]} : vector<32x32xf32> to vector<32x16xf32>
    %351 = vector.extract_strided_slice %349 {offsets = [0, 16], sizes = [32, 16], strides = [1, 1]} : vector<32x32xf32> to vector<32x16xf32>
    %352 = arith.maximumf %350, %351 : vector<32x16xf32>
    %353 = tpu.concatenate %231, %352 in 1 : vector<32x16xf32>, vector<32x16xf32> -> vector<32x32xf32>
    %c1_i32_119 = arith.constant 1 : i32
    %354 = tpu.dynamic_rotate %353 by %c1_i32_119 dim 0 : vector<32x32xf32>, i32 -> vector<32x32xf32>
    %c-1_i32_120 = arith.constant -1 : i32
    %355 = vector.broadcast %c-1_i32_120 : i32 to vector<32x1xi32>
    %356 = arith.addi %2, %355 : vector<32x1xi32>
    %c0_i32_121 = arith.constant 0 : i32
    %357 = vector.broadcast %c0_i32_121 : i32 to vector<32x1xi32>
    %358 = arith.cmpi sge, %356, %357 : vector<32x1xi32>
    %c-1_i32_122 = arith.constant -1 : i32
    %359 = vector.broadcast %c-1_i32_122 : i32 to vector<32x1xi32>
    %360 = arith.addi %2, %359 : vector<32x1xi32>
    %c16_i32_123 = arith.constant 16 : i32
    %361 = vector.broadcast %c16_i32_123 : i32 to vector<32x1xi32>
    %362 = arith.cmpi slt, %360, %361 : vector<32x1xi32>
    %363 = arith.andi %358, %362 : vector<32x1xi1>
    %364 = arith.extui %363 : vector<32x1xi1> to vector<32x1xi32>
    %365 = arith.sitofp %364 : vector<32x1xi32> to vector<32x1xf32>
    %366 = vector.broadcast %365 : vector<32x1xf32> to vector<32x32xf32>
    %367 = arith.mulf %354, %366 : vector<32x32xf32>
    %c31_i32_124 = arith.constant 31 : i32
    %368 = tpu.dynamic_rotate %353 by %c31_i32_124 dim 0 : vector<32x32xf32>, i32 -> vector<32x32xf32>
    %c1_i32_125 = arith.constant 1 : i32
    %369 = vector.broadcast %c1_i32_125 : i32 to vector<32x1xi32>
    %370 = arith.addi %2, %369 : vector<32x1xi32>
    %c0_i32_126 = arith.constant 0 : i32
    %371 = vector.broadcast %c0_i32_126 : i32 to vector<32x1xi32>
    %372 = arith.cmpi sge, %370, %371 : vector<32x1xi32>
    %c1_i32_127 = arith.constant 1 : i32
    %373 = vector.broadcast %c1_i32_127 : i32 to vector<32x1xi32>
    %374 = arith.addi %2, %373 : vector<32x1xi32>
    %c16_i32_128 = arith.constant 16 : i32
    %375 = vector.broadcast %c16_i32_128 : i32 to vector<32x1xi32>
    %376 = arith.cmpi slt, %374, %375 : vector<32x1xi32>
    %377 = arith.andi %372, %376 : vector<32x1xi1>
    %378 = arith.extui %377 : vector<32x1xi1> to vector<32x1xi32>
    %379 = arith.sitofp %378 : vector<32x1xi32> to vector<32x1xf32>
    %380 = vector.broadcast %379 : vector<32x1xf32> to vector<32x32xf32>
    %381 = arith.mulf %368, %380 : vector<32x32xf32>
    %382 = tpu.concatenate %367, %353, %381 in 1 : vector<32x32xf32>, vector<32x32xf32>, vector<32x32xf32> -> vector<32x96xf32>
    %c744 = arith.constant 744 : index
    %c0_129 = arith.constant 0 : index
    %383 = vector.load %arg2[%c744, %c0_129] : memref<848x256xf32, #tpu.memory_space<vmem>>, vector<96x32xf32>
    %cst_130 = arith.constant dense<0.000000e+00> : vector<32x32xf32>
    %384 = tpu.matmul %382, %383, %cst_130 {dimension_numbers = #tpu.dot_dimension_numbers<[1], [0], [0], [1], [0, 0, 1, 1], [], []>} : vector<32x96xf32>, vector<96x32xf32>, vector<32x32xf32> -> vector<32x32xf32>
    %c840 = arith.constant 840 : index
    %c0_131 = arith.constant 0 : index
    %385 = vector.load %arg2[%c840, %c0_131] : memref<848x256xf32, #tpu.memory_space<vmem>>, vector<1x32xf32>
    %386 = vector.broadcast %385 : vector<1x32xf32> to vector<32x32xf32>
    %387 = arith.addf %384, %386 : vector<32x32xf32>
    %cst_132 = arith.constant 0.000000e+00 : f32
    %388 = vector.broadcast %cst_132 : f32 to vector<32x32xf32>
    %389 = arith.maximumf %387, %388 : vector<32x32xf32>
    %390 = tpu.iota {dimensions = array<i32: 1>} : vector<16x20xi32>
    %c0_133 = arith.constant 0 : index
    %c0_134 = arith.constant 0 : index
    %391 = vector.load %arg1[%c0_133, %c0_134] : memref<16x1xi32, #tpu.memory_space<vmem>>, vector<16x1xi32>
    %392 = vector.broadcast %391 : vector<16x1xi32> to vector<16x20xi32>
    %393 = arith.cmpi eq, %392, %390 : vector<16x20xi32>
    %394 = arith.extui %393 : vector<16x20xi1> to vector<16x20xi32>
    %395 = arith.sitofp %394 : vector<16x20xi32> to vector<16x20xf32>
    %c0_135 = arith.constant 0 : index
    %c0_136 = arith.constant 0 : index
    %396 = vector.load %arg3[%c0_135, %c0_136] : memref<832x128xf32, #tpu.memory_space<vmem>>, vector<20x32xf32>
    %cst_137 = arith.constant dense<0.000000e+00> : vector<16x32xf32>
    %397 = tpu.matmul %395, %396, %cst_137 {dimension_numbers = #tpu.dot_dimension_numbers<[1], [0], [0], [1], [0, 0, 1, 1], [], []>} : vector<16x20xf32>, vector<20x32xf32>, vector<16x32xf32> -> vector<16x32xf32>
    %c24_138 = arith.constant 24 : index
    %c0_139 = arith.constant 0 : index
    %398 = vector.load %arg3[%c24_138, %c0_139] : memref<832x128xf32, #tpu.memory_space<vmem>>, vector<16x32xf32>
    %399 = arith.addf %397, %398 : vector<16x32xf32>
    %c40 = arith.constant 40 : index
    %c0_140 = arith.constant 0 : index
    %400 = vector.load %arg3[%c40, %c0_140] : memref<832x128xf32, #tpu.memory_space<vmem>>, vector<16x16xf32>
    %c56 = arith.constant 56 : index
    %c0_141 = arith.constant 0 : index
    %401 = vector.load %arg3[%c56, %c0_141] : memref<832x128xf32, #tpu.memory_space<vmem>>, vector<16x32xf32>
    %c72_142 = arith.constant 72 : index
    %c0_143 = arith.constant 0 : index
    %402 = vector.load %arg3[%c72_142, %c0_143] : memref<832x128xf32, #tpu.memory_space<vmem>>, vector<32x96xf32>
    %cst_144 = arith.constant dense<0.000000e+00> : vector<16x96xf32>
    %403 = tpu.matmul %399, %402, %cst_144 {dimension_numbers = #tpu.dot_dimension_numbers<[1], [0], [0], [1], [0, 0, 1, 1], [], []>} : vector<16x32xf32>, vector<32x96xf32>, vector<16x96xf32> -> vector<16x96xf32>
    %c104_145 = arith.constant 104 : index
    %c0_146 = arith.constant 0 : index
    %404 = vector.load %arg3[%c104_145, %c0_146] : memref<832x128xf32, #tpu.memory_space<vmem>>, vector<1x96xf32>
    %405 = vector.broadcast %404 : vector<1x96xf32> to vector<16x96xf32>
    %406 = arith.addf %403, %405 : vector<16x96xf32>
    %407 = vector.extract_strided_slice %406 {offsets = [0, 0], sizes = [16, 32], strides = [1, 1]} : vector<16x96xf32> to vector<16x32xf32>
    %408 = vector.extract_strided_slice %406 {offsets = [0, 32], sizes = [16, 32], strides = [1, 1]} : vector<16x96xf32> to vector<16x32xf32>
    %409 = vector.extract_strided_slice %406 {offsets = [0, 64], sizes = [16, 32], strides = [1, 1]} : vector<16x96xf32> to vector<16x32xf32>
    %c112 = arith.constant 112 : index
    %c0_147 = arith.constant 0 : index
    %410 = vector.load %arg3[%c112, %c0_147] : memref<832x128xf32, #tpu.memory_space<vmem>>, vector<32x32xf32>
    %c144 = arith.constant 144 : index
    %c0_148 = arith.constant 0 : index
    %411 = vector.load %arg3[%c144, %c0_148] : memref<832x128xf32, #tpu.memory_space<vmem>>, vector<1x32xf32>
    %cst_149 = arith.constant 0.353553385 : f32
    %412 = vector.broadcast %cst_149 : f32 to vector<16x32xf32>
    %413 = arith.mulf %407, %412 : vector<16x32xf32>
    %414 = vector.extract_strided_slice %413 {offsets = [0, 0], sizes = [16, 8], strides = [1, 1]} : vector<16x32xf32> to vector<16x8xf32>
    %415 = vector.extract_strided_slice %408 {offsets = [0, 0], sizes = [16, 8], strides = [1, 1]} : vector<16x32xf32> to vector<16x8xf32>
    %cst_150 = arith.constant dense<0.000000e+00> : vector<16x16xf32>
    %416 = tpu.matmul %414, %415, %cst_150 {dimension_numbers = #tpu.dot_dimension_numbers<[1], [1], [0], [0], [0, 0, 1, 0], [], []>} : vector<16x8xf32>, vector<16x8xf32>, vector<16x16xf32> -> vector<16x16xf32>
    %417 = arith.addf %416, %400 : vector<16x16xf32>
    %cst_151 = arith.constant dense<0xFF800000> : vector<16xf32>
    %418 = vector.multi_reduction <maximumf>, %417, %cst_151 [1] : vector<16x16xf32> to vector<16xf32>
    %419 = vector.shape_cast %418 : vector<16xf32> to vector<16x1xf32>
    %420 = vector.broadcast %419 : vector<16x1xf32> to vector<16x16xf32>
    %421 = arith.subf %417, %420 : vector<16x16xf32>
    %422 = math.exp %421 : vector<16x16xf32>
    %cst_152 = arith.constant dense<0.000000e+00> : vector<16xf32>
    %423 = vector.multi_reduction <add>, %422, %cst_152 [1] : vector<16x16xf32> to vector<16xf32>
    %424 = vector.shape_cast %423 : vector<16xf32> to vector<16x1xf32>
    %425 = vector.broadcast %424 : vector<16x1xf32> to vector<16x16xf32>
    %426 = arith.divf %422, %425 : vector<16x16xf32>
    %427 = vector.extract_strided_slice %409 {offsets = [0, 0], sizes = [16, 8], strides = [1, 1]} : vector<16x32xf32> to vector<16x8xf32>
    %cst_153 = arith.constant dense<0.000000e+00> : vector<16x8xf32>
    %428 = tpu.matmul %426, %427, %cst_153 {dimension_numbers = #tpu.dot_dimension_numbers<[1], [0], [0], [1], [0, 0, 1, 1], [], []>} : vector<16x16xf32>, vector<16x8xf32>, vector<16x8xf32> -> vector<16x8xf32>
    %429 = vector.extract_strided_slice %413 {offsets = [0, 8], sizes = [16, 8], strides = [1, 1]} : vector<16x32xf32> to vector<16x8xf32>
    %430 = vector.extract_strided_slice %408 {offsets = [0, 8], sizes = [16, 8], strides = [1, 1]} : vector<16x32xf32> to vector<16x8xf32>
    %cst_154 = arith.constant dense<0.000000e+00> : vector<16x16xf32>
    %431 = tpu.matmul %429, %430, %cst_154 {dimension_numbers = #tpu.dot_dimension_numbers<[1], [1], [0], [0], [0, 0, 1, 0], [], []>} : vector<16x8xf32>, vector<16x8xf32>, vector<16x16xf32> -> vector<16x16xf32>
    %432 = arith.addf %431, %400 : vector<16x16xf32>
    %cst_155 = arith.constant dense<0xFF800000> : vector<16xf32>
    %433 = vector.multi_reduction <maximumf>, %432, %cst_155 [1] : vector<16x16xf32> to vector<16xf32>
    %434 = vector.shape_cast %433 : vector<16xf32> to vector<16x1xf32>
    %435 = vector.broadcast %434 : vector<16x1xf32> to vector<16x16xf32>
    %436 = arith.subf %432, %435 : vector<16x16xf32>
    %437 = math.exp %436 : vector<16x16xf32>
    %cst_156 = arith.constant dense<0.000000e+00> : vector<16xf32>
    %438 = vector.multi_reduction <add>, %437, %cst_156 [1] : vector<16x16xf32> to vector<16xf32>
    %439 = vector.shape_cast %438 : vector<16xf32> to vector<16x1xf32>
    %440 = vector.broadcast %439 : vector<16x1xf32> to vector<16x16xf32>
    %441 = arith.divf %437, %440 : vector<16x16xf32>
    %442 = vector.extract_strided_slice %409 {offsets = [0, 8], sizes = [16, 8], strides = [1, 1]} : vector<16x32xf32> to vector<16x8xf32>
    %cst_157 = arith.constant dense<0.000000e+00> : vector<16x8xf32>
    %443 = tpu.matmul %441, %442, %cst_157 {dimension_numbers = #tpu.dot_dimension_numbers<[1], [0], [0], [1], [0, 0, 1, 1], [], []>} : vector<16x16xf32>, vector<16x8xf32>, vector<16x8xf32> -> vector<16x8xf32>
    %444 = vector.extract_strided_slice %413 {offsets = [0, 16], sizes = [16, 8], strides = [1, 1]} : vector<16x32xf32> to vector<16x8xf32>
    %445 = vector.extract_strided_slice %408 {offsets = [0, 16], sizes = [16, 8], strides = [1, 1]} : vector<16x32xf32> to vector<16x8xf32>
    %cst_158 = arith.constant dense<0.000000e+00> : vector<16x16xf32>
    %446 = tpu.matmul %444, %445, %cst_158 {dimension_numbers = #tpu.dot_dimension_numbers<[1], [1], [0], [0], [0, 0, 1, 0], [], []>} : vector<16x8xf32>, vector<16x8xf32>, vector<16x16xf32> -> vector<16x16xf32>
    %447 = arith.addf %446, %400 : vector<16x16xf32>
    %cst_159 = arith.constant dense<0xFF800000> : vector<16xf32>
    %448 = vector.multi_reduction <maximumf>, %447, %cst_159 [1] : vector<16x16xf32> to vector<16xf32>
    %449 = vector.shape_cast %448 : vector<16xf32> to vector<16x1xf32>
    %450 = vector.broadcast %449 : vector<16x1xf32> to vector<16x16xf32>
    %451 = arith.subf %447, %450 : vector<16x16xf32>
    %452 = math.exp %451 : vector<16x16xf32>
    %cst_160 = arith.constant dense<0.000000e+00> : vector<16xf32>
    %453 = vector.multi_reduction <add>, %452, %cst_160 [1] : vector<16x16xf32> to vector<16xf32>
    %454 = vector.shape_cast %453 : vector<16xf32> to vector<16x1xf32>
    %455 = vector.broadcast %454 : vector<16x1xf32> to vector<16x16xf32>
    %456 = arith.divf %452, %455 : vector<16x16xf32>
    %457 = vector.extract_strided_slice %409 {offsets = [0, 16], sizes = [16, 8], strides = [1, 1]} : vector<16x32xf32> to vector<16x8xf32>
    %cst_161 = arith.constant dense<0.000000e+00> : vector<16x8xf32>
    %458 = tpu.matmul %456, %457, %cst_161 {dimension_numbers = #tpu.dot_dimension_numbers<[1], [0], [0], [1], [0, 0, 1, 1], [], []>} : vector<16x16xf32>, vector<16x8xf32>, vector<16x8xf32> -> vector<16x8xf32>
    %459 = vector.extract_strided_slice %413 {offsets = [0, 24], sizes = [16, 8], strides = [1, 1]} : vector<16x32xf32> to vector<16x8xf32>
    %460 = vector.extract_strided_slice %408 {offsets = [0, 24], sizes = [16, 8], strides = [1, 1]} : vector<16x32xf32> to vector<16x8xf32>
    %cst_162 = arith.constant dense<0.000000e+00> : vector<16x16xf32>
    %461 = tpu.matmul %459, %460, %cst_162 {dimension_numbers = #tpu.dot_dimension_numbers<[1], [1], [0], [0], [0, 0, 1, 0], [], []>} : vector<16x8xf32>, vector<16x8xf32>, vector<16x16xf32> -> vector<16x16xf32>
    %462 = arith.addf %461, %400 : vector<16x16xf32>
    %cst_163 = arith.constant dense<0xFF800000> : vector<16xf32>
    %463 = vector.multi_reduction <maximumf>, %462, %cst_163 [1] : vector<16x16xf32> to vector<16xf32>
    %464 = vector.shape_cast %463 : vector<16xf32> to vector<16x1xf32>
    %465 = vector.broadcast %464 : vector<16x1xf32> to vector<16x16xf32>
    %466 = arith.subf %462, %465 : vector<16x16xf32>
    %467 = math.exp %466 : vector<16x16xf32>
    %cst_164 = arith.constant dense<0.000000e+00> : vector<16xf32>
    %468 = vector.multi_reduction <add>, %467, %cst_164 [1] : vector<16x16xf32> to vector<16xf32>
    %469 = vector.shape_cast %468 : vector<16xf32> to vector<16x1xf32>
    %470 = vector.broadcast %469 : vector<16x1xf32> to vector<16x16xf32>
    %471 = arith.divf %467, %470 : vector<16x16xf32>
    %472 = vector.extract_strided_slice %409 {offsets = [0, 24], sizes = [16, 8], strides = [1, 1]} : vector<16x32xf32> to vector<16x8xf32>
    %cst_165 = arith.constant dense<0.000000e+00> : vector<16x8xf32>
    %473 = tpu.matmul %471, %472, %cst_165 {dimension_numbers = #tpu.dot_dimension_numbers<[1], [0], [0], [1], [0, 0, 1, 1], [], []>} : vector<16x16xf32>, vector<16x8xf32>, vector<16x8xf32> -> vector<16x8xf32>
    %474 = tpu.concatenate %428, %443, %458, %473 in 1 : vector<16x8xf32>, vector<16x8xf32>, vector<16x8xf32>, vector<16x8xf32> -> vector<16x32xf32>
    %cst_166 = arith.constant dense<0.000000e+00> : vector<16x32xf32>
    %475 = tpu.matmul %474, %410, %cst_166 {dimension_numbers = #tpu.dot_dimension_numbers<[1], [0], [0], [1], [0, 0, 1, 1], [], []>} : vector<16x32xf32>, vector<32x32xf32>, vector<16x32xf32> -> vector<16x32xf32>
    %476 = vector.broadcast %411 : vector<1x32xf32> to vector<16x32xf32>
    %477 = arith.addf %475, %476 : vector<16x32xf32>
    %478 = arith.addf %399, %477 : vector<16x32xf32>
    %cst_167 = arith.constant dense<0.000000e+00> : vector<16xf32>
    %479 = vector.multi_reduction <add>, %478, %cst_167 [1] : vector<16x32xf32> to vector<16xf32>
    %480 = vector.shape_cast %479 : vector<16xf32> to vector<16x1xf32>
    %cst_168 = arith.constant 3.200000e+01 : f32
    %481 = vector.broadcast %cst_168 : f32 to vector<16x1xf32>
    %482 = arith.divf %480, %481 : vector<16x1xf32>
    %483 = vector.broadcast %482 : vector<16x1xf32> to vector<16x32xf32>
    %484 = arith.subf %478, %483 : vector<16x32xf32>
    %485 = arith.mulf %484, %484 : vector<16x32xf32>
    %cst_169 = arith.constant dense<0.000000e+00> : vector<16xf32>
    %486 = vector.multi_reduction <add>, %485, %cst_169 [1] : vector<16x32xf32> to vector<16xf32>
    %487 = vector.shape_cast %486 : vector<16xf32> to vector<16x1xf32>
    %cst_170 = arith.constant 3.200000e+01 : f32
    %488 = vector.broadcast %cst_170 : f32 to vector<16x1xf32>
    %489 = arith.divf %487, %488 : vector<16x1xf32>
    %490 = vector.broadcast %482 : vector<16x1xf32> to vector<16x32xf32>
    %491 = arith.subf %478, %490 : vector<16x32xf32>
    %cst_171 = arith.constant 9.99999974E-6 : f32
    %492 = vector.broadcast %cst_171 : f32 to vector<16x1xf32>
    %493 = arith.addf %489, %492 : vector<16x1xf32>
    %494 = math.rsqrt %493 : vector<16x1xf32>
    %495 = vector.broadcast %494 : vector<16x1xf32> to vector<16x32xf32>
    %496 = arith.mulf %491, %495 : vector<16x32xf32>
    %c384_172 = arith.constant 384 : index
    %c0_173 = arith.constant 0 : index
    %497 = vector.load %arg3[%c384_172, %c0_173] : memref<832x128xf32, #tpu.memory_space<vmem>>, vector<1x32xf32>
    %498 = vector.broadcast %497 : vector<1x32xf32> to vector<16x32xf32>
    %499 = arith.mulf %496, %498 : vector<16x32xf32>
    %c392 = arith.constant 392 : index
    %c0_174 = arith.constant 0 : index
    %500 = vector.load %arg3[%c392, %c0_174] : memref<832x128xf32, #tpu.memory_space<vmem>>, vector<1x32xf32>
    %501 = vector.broadcast %500 : vector<1x32xf32> to vector<16x32xf32>
    %502 = arith.addf %499, %501 : vector<16x32xf32>
    %c152_175 = arith.constant 152 : index
    %c0_176 = arith.constant 0 : index
    %503 = vector.load %arg3[%c152_175, %c0_176] : memref<832x128xf32, #tpu.memory_space<vmem>>, vector<32x32xf32>
    %cst_177 = arith.constant dense<0.000000e+00> : vector<16x32xf32>
    %504 = tpu.matmul %502, %503, %cst_177 {dimension_numbers = #tpu.dot_dimension_numbers<[1], [0], [0], [1], [0, 0, 1, 1], [], []>} : vector<16x32xf32>, vector<32x32xf32>, vector<16x32xf32> -> vector<16x32xf32>
    %c184_178 = arith.constant 184 : index
    %c0_179 = arith.constant 0 : index
    %505 = vector.load %arg3[%c184_178, %c0_179] : memref<832x128xf32, #tpu.memory_space<vmem>>, vector<1x32xf32>
    %506 = vector.broadcast %505 : vector<1x32xf32> to vector<16x32xf32>
    %507 = arith.addf %504, %506 : vector<16x32xf32>
    %c192_180 = arith.constant 192 : index
    %c0_181 = arith.constant 0 : index
    %508 = vector.load %arg3[%c192_180, %c0_181] : memref<832x128xf32, #tpu.memory_space<vmem>>, vector<32x64xf32>
    %cst_182 = arith.constant dense<0.000000e+00> : vector<32x64xf32>
    %509 = tpu.matmul %389, %508, %cst_182 {dimension_numbers = #tpu.dot_dimension_numbers<[1], [0], [0], [1], [0, 0, 1, 1], [], []>} : vector<32x32xf32>, vector<32x64xf32>, vector<32x64xf32> -> vector<32x64xf32>
    %c224 = arith.constant 224 : index
    %c0_183 = arith.constant 0 : index
    %510 = vector.load %arg3[%c224, %c0_183] : memref<832x128xf32, #tpu.memory_space<vmem>>, vector<1x64xf32>
    %511 = vector.broadcast %510 : vector<1x64xf32> to vector<32x64xf32>
    %512 = arith.addf %509, %511 : vector<32x64xf32>
    %513 = vector.extract_strided_slice %512 {offsets = [0, 0], sizes = [32, 32], strides = [1, 1]} : vector<32x64xf32> to vector<32x32xf32>
    %514 = vector.extract_strided_slice %512 {offsets = [0, 32], sizes = [32, 32], strides = [1, 1]} : vector<32x64xf32> to vector<32x32xf32>
    %c232 = arith.constant 232 : index
    %c0_184 = arith.constant 0 : index
    %515 = vector.load %arg3[%c232, %c0_184] : memref<832x128xf32, #tpu.memory_space<vmem>>, vector<32x32xf32>
    %c264_185 = arith.constant 264 : index
    %c0_186 = arith.constant 0 : index
    %516 = vector.load %arg3[%c264_185, %c0_186] : memref<832x128xf32, #tpu.memory_space<vmem>>, vector<1x32xf32>
    %cst_187 = arith.constant 0.353553385 : f32
    %517 = vector.broadcast %cst_187 : f32 to vector<16x32xf32>
    %518 = arith.mulf %507, %517 : vector<16x32xf32>
    %519 = vector.extract_strided_slice %518 {offsets = [0, 0], sizes = [16, 8], strides = [1, 1]} : vector<16x32xf32> to vector<16x8xf32>
    %520 = vector.extract_strided_slice %513 {offsets = [0, 0], sizes = [32, 8], strides = [1, 1]} : vector<32x32xf32> to vector<32x8xf32>
    %cst_188 = arith.constant dense<0.000000e+00> : vector<16x32xf32>
    %521 = tpu.matmul %519, %520, %cst_188 {dimension_numbers = #tpu.dot_dimension_numbers<[1], [1], [0], [0], [0, 0, 1, 0], [], []>} : vector<16x8xf32>, vector<32x8xf32>, vector<16x32xf32> -> vector<16x32xf32>
    %522 = arith.addf %521, %401 : vector<16x32xf32>
    %cst_189 = arith.constant dense<0xFF800000> : vector<16xf32>
    %523 = vector.multi_reduction <maximumf>, %522, %cst_189 [1] : vector<16x32xf32> to vector<16xf32>
    %524 = vector.shape_cast %523 : vector<16xf32> to vector<16x1xf32>
    %525 = vector.broadcast %524 : vector<16x1xf32> to vector<16x32xf32>
    %526 = arith.subf %522, %525 : vector<16x32xf32>
    %527 = math.exp %526 : vector<16x32xf32>
    %cst_190 = arith.constant dense<0.000000e+00> : vector<16xf32>
    %528 = vector.multi_reduction <add>, %527, %cst_190 [1] : vector<16x32xf32> to vector<16xf32>
    %529 = vector.shape_cast %528 : vector<16xf32> to vector<16x1xf32>
    %530 = vector.broadcast %529 : vector<16x1xf32> to vector<16x32xf32>
    %531 = arith.divf %527, %530 : vector<16x32xf32>
    %532 = vector.extract_strided_slice %514 {offsets = [0, 0], sizes = [32, 8], strides = [1, 1]} : vector<32x32xf32> to vector<32x8xf32>
    %cst_191 = arith.constant dense<0.000000e+00> : vector<16x8xf32>
    %533 = tpu.matmul %531, %532, %cst_191 {dimension_numbers = #tpu.dot_dimension_numbers<[1], [0], [0], [1], [0, 0, 1, 1], [], []>} : vector<16x32xf32>, vector<32x8xf32>, vector<16x8xf32> -> vector<16x8xf32>
    %534 = vector.extract_strided_slice %518 {offsets = [0, 8], sizes = [16, 8], strides = [1, 1]} : vector<16x32xf32> to vector<16x8xf32>
    %535 = vector.extract_strided_slice %513 {offsets = [0, 8], sizes = [32, 8], strides = [1, 1]} : vector<32x32xf32> to vector<32x8xf32>
    %cst_192 = arith.constant dense<0.000000e+00> : vector<16x32xf32>
    %536 = tpu.matmul %534, %535, %cst_192 {dimension_numbers = #tpu.dot_dimension_numbers<[1], [1], [0], [0], [0, 0, 1, 0], [], []>} : vector<16x8xf32>, vector<32x8xf32>, vector<16x32xf32> -> vector<16x32xf32>
    %537 = arith.addf %536, %401 : vector<16x32xf32>
    %cst_193 = arith.constant dense<0xFF800000> : vector<16xf32>
    %538 = vector.multi_reduction <maximumf>, %537, %cst_193 [1] : vector<16x32xf32> to vector<16xf32>
    %539 = vector.shape_cast %538 : vector<16xf32> to vector<16x1xf32>
    %540 = vector.broadcast %539 : vector<16x1xf32> to vector<16x32xf32>
    %541 = arith.subf %537, %540 : vector<16x32xf32>
    %542 = math.exp %541 : vector<16x32xf32>
    %cst_194 = arith.constant dense<0.000000e+00> : vector<16xf32>
    %543 = vector.multi_reduction <add>, %542, %cst_194 [1] : vector<16x32xf32> to vector<16xf32>
    %544 = vector.shape_cast %543 : vector<16xf32> to vector<16x1xf32>
    %545 = vector.broadcast %544 : vector<16x1xf32> to vector<16x32xf32>
    %546 = arith.divf %542, %545 : vector<16x32xf32>
    %547 = vector.extract_strided_slice %514 {offsets = [0, 8], sizes = [32, 8], strides = [1, 1]} : vector<32x32xf32> to vector<32x8xf32>
    %cst_195 = arith.constant dense<0.000000e+00> : vector<16x8xf32>
    %548 = tpu.matmul %546, %547, %cst_195 {dimension_numbers = #tpu.dot_dimension_numbers<[1], [0], [0], [1], [0, 0, 1, 1], [], []>} : vector<16x32xf32>, vector<32x8xf32>, vector<16x8xf32> -> vector<16x8xf32>
    %549 = vector.extract_strided_slice %518 {offsets = [0, 16], sizes = [16, 8], strides = [1, 1]} : vector<16x32xf32> to vector<16x8xf32>
    %550 = vector.extract_strided_slice %513 {offsets = [0, 16], sizes = [32, 8], strides = [1, 1]} : vector<32x32xf32> to vector<32x8xf32>
    %cst_196 = arith.constant dense<0.000000e+00> : vector<16x32xf32>
    %551 = tpu.matmul %549, %550, %cst_196 {dimension_numbers = #tpu.dot_dimension_numbers<[1], [1], [0], [0], [0, 0, 1, 0], [], []>} : vector<16x8xf32>, vector<32x8xf32>, vector<16x32xf32> -> vector<16x32xf32>
    %552 = arith.addf %551, %401 : vector<16x32xf32>
    %cst_197 = arith.constant dense<0xFF800000> : vector<16xf32>
    %553 = vector.multi_reduction <maximumf>, %552, %cst_197 [1] : vector<16x32xf32> to vector<16xf32>
    %554 = vector.shape_cast %553 : vector<16xf32> to vector<16x1xf32>
    %555 = vector.broadcast %554 : vector<16x1xf32> to vector<16x32xf32>
    %556 = arith.subf %552, %555 : vector<16x32xf32>
    %557 = math.exp %556 : vector<16x32xf32>
    %cst_198 = arith.constant dense<0.000000e+00> : vector<16xf32>
    %558 = vector.multi_reduction <add>, %557, %cst_198 [1] : vector<16x32xf32> to vector<16xf32>
    %559 = vector.shape_cast %558 : vector<16xf32> to vector<16x1xf32>
    %560 = vector.broadcast %559 : vector<16x1xf32> to vector<16x32xf32>
    %561 = arith.divf %557, %560 : vector<16x32xf32>
    %562 = vector.extract_strided_slice %514 {offsets = [0, 16], sizes = [32, 8], strides = [1, 1]} : vector<32x32xf32> to vector<32x8xf32>
    %cst_199 = arith.constant dense<0.000000e+00> : vector<16x8xf32>
    %563 = tpu.matmul %561, %562, %cst_199 {dimension_numbers = #tpu.dot_dimension_numbers<[1], [0], [0], [1], [0, 0, 1, 1], [], []>} : vector<16x32xf32>, vector<32x8xf32>, vector<16x8xf32> -> vector<16x8xf32>
    %564 = vector.extract_strided_slice %518 {offsets = [0, 24], sizes = [16, 8], strides = [1, 1]} : vector<16x32xf32> to vector<16x8xf32>
    %565 = vector.extract_strided_slice %513 {offsets = [0, 24], sizes = [32, 8], strides = [1, 1]} : vector<32x32xf32> to vector<32x8xf32>
    %cst_200 = arith.constant dense<0.000000e+00> : vector<16x32xf32>
    %566 = tpu.matmul %564, %565, %cst_200 {dimension_numbers = #tpu.dot_dimension_numbers<[1], [1], [0], [0], [0, 0, 1, 0], [], []>} : vector<16x8xf32>, vector<32x8xf32>, vector<16x32xf32> -> vector<16x32xf32>
    %567 = arith.addf %566, %401 : vector<16x32xf32>
    %cst_201 = arith.constant dense<0xFF800000> : vector<16xf32>
    %568 = vector.multi_reduction <maximumf>, %567, %cst_201 [1] : vector<16x32xf32> to vector<16xf32>
    %569 = vector.shape_cast %568 : vector<16xf32> to vector<16x1xf32>
    %570 = vector.broadcast %569 : vector<16x1xf32> to vector<16x32xf32>
    %571 = arith.subf %567, %570 : vector<16x32xf32>
    %572 = math.exp %571 : vector<16x32xf32>
    %cst_202 = arith.constant dense<0.000000e+00> : vector<16xf32>
    %573 = vector.multi_reduction <add>, %572, %cst_202 [1] : vector<16x32xf32> to vector<16xf32>
    %574 = vector.shape_cast %573 : vector<16xf32> to vector<16x1xf32>
    %575 = vector.broadcast %574 : vector<16x1xf32> to vector<16x32xf32>
    %576 = arith.divf %572, %575 : vector<16x32xf32>
    %577 = vector.extract_strided_slice %514 {offsets = [0, 24], sizes = [32, 8], strides = [1, 1]} : vector<32x32xf32> to vector<32x8xf32>
    %cst_203 = arith.constant dense<0.000000e+00> : vector<16x8xf32>
    %578 = tpu.matmul %576, %577, %cst_203 {dimension_numbers = #tpu.dot_dimension_numbers<[1], [0], [0], [1], [0, 0, 1, 1], [], []>} : vector<16x32xf32>, vector<32x8xf32>, vector<16x8xf32> -> vector<16x8xf32>
    %579 = tpu.concatenate %533, %548, %563, %578 in 1 : vector<16x8xf32>, vector<16x8xf32>, vector<16x8xf32>, vector<16x8xf32> -> vector<16x32xf32>
    %cst_204 = arith.constant dense<0.000000e+00> : vector<16x32xf32>
    %580 = tpu.matmul %579, %515, %cst_204 {dimension_numbers = #tpu.dot_dimension_numbers<[1], [0], [0], [1], [0, 0, 1, 1], [], []>} : vector<16x32xf32>, vector<32x32xf32>, vector<16x32xf32> -> vector<16x32xf32>
    %581 = vector.broadcast %516 : vector<1x32xf32> to vector<16x32xf32>
    %582 = arith.addf %580, %581 : vector<16x32xf32>
    %583 = arith.addf %502, %582 : vector<16x32xf32>
    %cst_205 = arith.constant dense<0.000000e+00> : vector<16xf32>
    %584 = vector.multi_reduction <add>, %583, %cst_205 [1] : vector<16x32xf32> to vector<16xf32>
    %585 = vector.shape_cast %584 : vector<16xf32> to vector<16x1xf32>
    %cst_206 = arith.constant 3.200000e+01 : f32
    %586 = vector.broadcast %cst_206 : f32 to vector<16x1xf32>
    %587 = arith.divf %585, %586 : vector<16x1xf32>
    %588 = vector.broadcast %587 : vector<16x1xf32> to vector<16x32xf32>
    %589 = arith.subf %583, %588 : vector<16x32xf32>
    %590 = arith.mulf %589, %589 : vector<16x32xf32>
    %cst_207 = arith.constant dense<0.000000e+00> : vector<16xf32>
    %591 = vector.multi_reduction <add>, %590, %cst_207 [1] : vector<16x32xf32> to vector<16xf32>
    %592 = vector.shape_cast %591 : vector<16xf32> to vector<16x1xf32>
    %cst_208 = arith.constant 3.200000e+01 : f32
    %593 = vector.broadcast %cst_208 : f32 to vector<16x1xf32>
    %594 = arith.divf %592, %593 : vector<16x1xf32>
    %595 = vector.broadcast %587 : vector<16x1xf32> to vector<16x32xf32>
    %596 = arith.subf %583, %595 : vector<16x32xf32>
    %cst_209 = arith.constant 9.99999974E-6 : f32
    %597 = vector.broadcast %cst_209 : f32 to vector<16x1xf32>
    %598 = arith.addf %594, %597 : vector<16x1xf32>
    %599 = math.rsqrt %598 : vector<16x1xf32>
    %600 = vector.broadcast %599 : vector<16x1xf32> to vector<16x32xf32>
    %601 = arith.mulf %596, %600 : vector<16x32xf32>
    %c400 = arith.constant 400 : index
    %c0_210 = arith.constant 0 : index
    %602 = vector.load %arg3[%c400, %c0_210] : memref<832x128xf32, #tpu.memory_space<vmem>>, vector<1x32xf32>
    %603 = vector.broadcast %602 : vector<1x32xf32> to vector<16x32xf32>
    %604 = arith.mulf %601, %603 : vector<16x32xf32>
    %c408 = arith.constant 408 : index
    %c0_211 = arith.constant 0 : index
    %605 = vector.load %arg3[%c408, %c0_211] : memref<832x128xf32, #tpu.memory_space<vmem>>, vector<1x32xf32>
    %606 = vector.broadcast %605 : vector<1x32xf32> to vector<16x32xf32>
    %607 = arith.addf %604, %606 : vector<16x32xf32>
    %c272_212 = arith.constant 272 : index
    %c0_213 = arith.constant 0 : index
    %608 = vector.load %arg3[%c272_212, %c0_213] : memref<832x128xf32, #tpu.memory_space<vmem>>, vector<32x64xf32>
    %cst_214 = arith.constant dense<0.000000e+00> : vector<16x64xf32>
    %609 = tpu.matmul %607, %608, %cst_214 {dimension_numbers = #tpu.dot_dimension_numbers<[1], [0], [0], [1], [0, 0, 1, 1], [], []>} : vector<16x32xf32>, vector<32x64xf32>, vector<16x64xf32> -> vector<16x64xf32>
    %c304 = arith.constant 304 : index
    %c0_215 = arith.constant 0 : index
    %610 = vector.load %arg3[%c304, %c0_215] : memref<832x128xf32, #tpu.memory_space<vmem>>, vector<1x64xf32>
    %611 = vector.broadcast %610 : vector<1x64xf32> to vector<16x64xf32>
    %612 = arith.addf %609, %611 : vector<16x64xf32>
    %cst_216 = arith.constant 0.000000e+00 : f32
    %613 = vector.broadcast %cst_216 : f32 to vector<16x64xf32>
    %614 = arith.maximumf %612, %613 : vector<16x64xf32>
    %c312 = arith.constant 312 : index
    %c0_217 = arith.constant 0 : index
    %615 = vector.load %arg3[%c312, %c0_217] : memref<832x128xf32, #tpu.memory_space<vmem>>, vector<64x32xf32>
    %cst_218 = arith.constant dense<0.000000e+00> : vector<16x32xf32>
    %616 = tpu.matmul %614, %615, %cst_218 {dimension_numbers = #tpu.dot_dimension_numbers<[1], [0], [0], [1], [0, 0, 1, 1], [], []>} : vector<16x64xf32>, vector<64x32xf32>, vector<16x32xf32> -> vector<16x32xf32>
    %617 = arith.addf %607, %616 : vector<16x32xf32>
    %c376_219 = arith.constant 376 : index
    %c0_220 = arith.constant 0 : index
    %618 = vector.load %arg3[%c376_219, %c0_220] : memref<832x128xf32, #tpu.memory_space<vmem>>, vector<1x32xf32>
    %619 = vector.broadcast %618 : vector<1x32xf32> to vector<16x32xf32>
    %620 = arith.addf %617, %619 : vector<16x32xf32>
    %cst_221 = arith.constant dense<0.000000e+00> : vector<16xf32>
    %621 = vector.multi_reduction <add>, %620, %cst_221 [1] : vector<16x32xf32> to vector<16xf32>
    %622 = vector.shape_cast %621 : vector<16xf32> to vector<16x1xf32>
    %cst_222 = arith.constant 3.200000e+01 : f32
    %623 = vector.broadcast %cst_222 : f32 to vector<16x1xf32>
    %624 = arith.divf %622, %623 : vector<16x1xf32>
    %625 = vector.broadcast %624 : vector<16x1xf32> to vector<16x32xf32>
    %626 = arith.subf %620, %625 : vector<16x32xf32>
    %627 = arith.mulf %626, %626 : vector<16x32xf32>
    %cst_223 = arith.constant dense<0.000000e+00> : vector<16xf32>
    %628 = vector.multi_reduction <add>, %627, %cst_223 [1] : vector<16x32xf32> to vector<16xf32>
    %629 = vector.shape_cast %628 : vector<16xf32> to vector<16x1xf32>
    %cst_224 = arith.constant 3.200000e+01 : f32
    %630 = vector.broadcast %cst_224 : f32 to vector<16x1xf32>
    %631 = arith.divf %629, %630 : vector<16x1xf32>
    %632 = vector.broadcast %624 : vector<16x1xf32> to vector<16x32xf32>
    %633 = arith.subf %620, %632 : vector<16x32xf32>
    %cst_225 = arith.constant 9.99999974E-6 : f32
    %634 = vector.broadcast %cst_225 : f32 to vector<16x1xf32>
    %635 = arith.addf %631, %634 : vector<16x1xf32>
    %636 = math.rsqrt %635 : vector<16x1xf32>
    %637 = vector.broadcast %636 : vector<16x1xf32> to vector<16x32xf32>
    %638 = arith.mulf %633, %637 : vector<16x32xf32>
    %c416 = arith.constant 416 : index
    %c0_226 = arith.constant 0 : index
    %639 = vector.load %arg3[%c416, %c0_226] : memref<832x128xf32, #tpu.memory_space<vmem>>, vector<1x32xf32>
    %640 = vector.broadcast %639 : vector<1x32xf32> to vector<16x32xf32>
    %641 = arith.mulf %638, %640 : vector<16x32xf32>
    %c424 = arith.constant 424 : index
    %c0_227 = arith.constant 0 : index
    %642 = vector.load %arg3[%c424, %c0_227] : memref<832x128xf32, #tpu.memory_space<vmem>>, vector<1x32xf32>
    %643 = vector.broadcast %642 : vector<1x32xf32> to vector<16x32xf32>
    %644 = arith.addf %641, %643 : vector<16x32xf32>
    %c432_228 = arith.constant 432 : index
    %c0_229 = arith.constant 0 : index
    %645 = vector.load %arg3[%c432_228, %c0_229] : memref<832x128xf32, #tpu.memory_space<vmem>>, vector<32x96xf32>
    %cst_230 = arith.constant dense<0.000000e+00> : vector<16x96xf32>
    %646 = tpu.matmul %644, %645, %cst_230 {dimension_numbers = #tpu.dot_dimension_numbers<[1], [0], [0], [1], [0, 0, 1, 1], [], []>} : vector<16x32xf32>, vector<32x96xf32>, vector<16x96xf32> -> vector<16x96xf32>
    %c464 = arith.constant 464 : index
    %c0_231 = arith.constant 0 : index
    %647 = vector.load %arg3[%c464, %c0_231] : memref<832x128xf32, #tpu.memory_space<vmem>>, vector<1x96xf32>
    %648 = vector.broadcast %647 : vector<1x96xf32> to vector<16x96xf32>
    %649 = arith.addf %646, %648 : vector<16x96xf32>
    %650 = vector.extract_strided_slice %649 {offsets = [0, 0], sizes = [16, 32], strides = [1, 1]} : vector<16x96xf32> to vector<16x32xf32>
    %651 = vector.extract_strided_slice %649 {offsets = [0, 32], sizes = [16, 32], strides = [1, 1]} : vector<16x96xf32> to vector<16x32xf32>
    %652 = vector.extract_strided_slice %649 {offsets = [0, 64], sizes = [16, 32], strides = [1, 1]} : vector<16x96xf32> to vector<16x32xf32>
    %c472 = arith.constant 472 : index
    %c0_232 = arith.constant 0 : index
    %653 = vector.load %arg3[%c472, %c0_232] : memref<832x128xf32, #tpu.memory_space<vmem>>, vector<32x32xf32>
    %c504 = arith.constant 504 : index
    %c0_233 = arith.constant 0 : index
    %654 = vector.load %arg3[%c504, %c0_233] : memref<832x128xf32, #tpu.memory_space<vmem>>, vector<1x32xf32>
    %cst_234 = arith.constant 0.353553385 : f32
    %655 = vector.broadcast %cst_234 : f32 to vector<16x32xf32>
    %656 = arith.mulf %650, %655 : vector<16x32xf32>
    %657 = vector.extract_strided_slice %656 {offsets = [0, 0], sizes = [16, 8], strides = [1, 1]} : vector<16x32xf32> to vector<16x8xf32>
    %658 = vector.extract_strided_slice %651 {offsets = [0, 0], sizes = [16, 8], strides = [1, 1]} : vector<16x32xf32> to vector<16x8xf32>
    %cst_235 = arith.constant dense<0.000000e+00> : vector<16x16xf32>
    %659 = tpu.matmul %657, %658, %cst_235 {dimension_numbers = #tpu.dot_dimension_numbers<[1], [1], [0], [0], [0, 0, 1, 0], [], []>} : vector<16x8xf32>, vector<16x8xf32>, vector<16x16xf32> -> vector<16x16xf32>
    %660 = arith.addf %659, %400 : vector<16x16xf32>
    %cst_236 = arith.constant dense<0xFF800000> : vector<16xf32>
    %661 = vector.multi_reduction <maximumf>, %660, %cst_236 [1] : vector<16x16xf32> to vector<16xf32>
    %662 = vector.shape_cast %661 : vector<16xf32> to vector<16x1xf32>
    %663 = vector.broadcast %662 : vector<16x1xf32> to vector<16x16xf32>
    %664 = arith.subf %660, %663 : vector<16x16xf32>
    %665 = math.exp %664 : vector<16x16xf32>
    %cst_237 = arith.constant dense<0.000000e+00> : vector<16xf32>
    %666 = vector.multi_reduction <add>, %665, %cst_237 [1] : vector<16x16xf32> to vector<16xf32>
    %667 = vector.shape_cast %666 : vector<16xf32> to vector<16x1xf32>
    %668 = vector.broadcast %667 : vector<16x1xf32> to vector<16x16xf32>
    %669 = arith.divf %665, %668 : vector<16x16xf32>
    %670 = vector.extract_strided_slice %652 {offsets = [0, 0], sizes = [16, 8], strides = [1, 1]} : vector<16x32xf32> to vector<16x8xf32>
    %cst_238 = arith.constant dense<0.000000e+00> : vector<16x8xf32>
    %671 = tpu.matmul %669, %670, %cst_238 {dimension_numbers = #tpu.dot_dimension_numbers<[1], [0], [0], [1], [0, 0, 1, 1], [], []>} : vector<16x16xf32>, vector<16x8xf32>, vector<16x8xf32> -> vector<16x8xf32>
    %672 = vector.extract_strided_slice %656 {offsets = [0, 8], sizes = [16, 8], strides = [1, 1]} : vector<16x32xf32> to vector<16x8xf32>
    %673 = vector.extract_strided_slice %651 {offsets = [0, 8], sizes = [16, 8], strides = [1, 1]} : vector<16x32xf32> to vector<16x8xf32>
    %cst_239 = arith.constant dense<0.000000e+00> : vector<16x16xf32>
    %674 = tpu.matmul %672, %673, %cst_239 {dimension_numbers = #tpu.dot_dimension_numbers<[1], [1], [0], [0], [0, 0, 1, 0], [], []>} : vector<16x8xf32>, vector<16x8xf32>, vector<16x16xf32> -> vector<16x16xf32>
    %675 = arith.addf %674, %400 : vector<16x16xf32>
    %cst_240 = arith.constant dense<0xFF800000> : vector<16xf32>
    %676 = vector.multi_reduction <maximumf>, %675, %cst_240 [1] : vector<16x16xf32> to vector<16xf32>
    %677 = vector.shape_cast %676 : vector<16xf32> to vector<16x1xf32>
    %678 = vector.broadcast %677 : vector<16x1xf32> to vector<16x16xf32>
    %679 = arith.subf %675, %678 : vector<16x16xf32>
    %680 = math.exp %679 : vector<16x16xf32>
    %cst_241 = arith.constant dense<0.000000e+00> : vector<16xf32>
    %681 = vector.multi_reduction <add>, %680, %cst_241 [1] : vector<16x16xf32> to vector<16xf32>
    %682 = vector.shape_cast %681 : vector<16xf32> to vector<16x1xf32>
    %683 = vector.broadcast %682 : vector<16x1xf32> to vector<16x16xf32>
    %684 = arith.divf %680, %683 : vector<16x16xf32>
    %685 = vector.extract_strided_slice %652 {offsets = [0, 8], sizes = [16, 8], strides = [1, 1]} : vector<16x32xf32> to vector<16x8xf32>
    %cst_242 = arith.constant dense<0.000000e+00> : vector<16x8xf32>
    %686 = tpu.matmul %684, %685, %cst_242 {dimension_numbers = #tpu.dot_dimension_numbers<[1], [0], [0], [1], [0, 0, 1, 1], [], []>} : vector<16x16xf32>, vector<16x8xf32>, vector<16x8xf32> -> vector<16x8xf32>
    %687 = vector.extract_strided_slice %656 {offsets = [0, 16], sizes = [16, 8], strides = [1, 1]} : vector<16x32xf32> to vector<16x8xf32>
    %688 = vector.extract_strided_slice %651 {offsets = [0, 16], sizes = [16, 8], strides = [1, 1]} : vector<16x32xf32> to vector<16x8xf32>
    %cst_243 = arith.constant dense<0.000000e+00> : vector<16x16xf32>
    %689 = tpu.matmul %687, %688, %cst_243 {dimension_numbers = #tpu.dot_dimension_numbers<[1], [1], [0], [0], [0, 0, 1, 0], [], []>} : vector<16x8xf32>, vector<16x8xf32>, vector<16x16xf32> -> vector<16x16xf32>
    %690 = arith.addf %689, %400 : vector<16x16xf32>
    %cst_244 = arith.constant dense<0xFF800000> : vector<16xf32>
    %691 = vector.multi_reduction <maximumf>, %690, %cst_244 [1] : vector<16x16xf32> to vector<16xf32>
    %692 = vector.shape_cast %691 : vector<16xf32> to vector<16x1xf32>
    %693 = vector.broadcast %692 : vector<16x1xf32> to vector<16x16xf32>
    %694 = arith.subf %690, %693 : vector<16x16xf32>
    %695 = math.exp %694 : vector<16x16xf32>
    %cst_245 = arith.constant dense<0.000000e+00> : vector<16xf32>
    %696 = vector.multi_reduction <add>, %695, %cst_245 [1] : vector<16x16xf32> to vector<16xf32>
    %697 = vector.shape_cast %696 : vector<16xf32> to vector<16x1xf32>
    %698 = vector.broadcast %697 : vector<16x1xf32> to vector<16x16xf32>
    %699 = arith.divf %695, %698 : vector<16x16xf32>
    %700 = vector.extract_strided_slice %652 {offsets = [0, 16], sizes = [16, 8], strides = [1, 1]} : vector<16x32xf32> to vector<16x8xf32>
    %cst_246 = arith.constant dense<0.000000e+00> : vector<16x8xf32>
    %701 = tpu.matmul %699, %700, %cst_246 {dimension_numbers = #tpu.dot_dimension_numbers<[1], [0], [0], [1], [0, 0, 1, 1], [], []>} : vector<16x16xf32>, vector<16x8xf32>, vector<16x8xf32> -> vector<16x8xf32>
    %702 = vector.extract_strided_slice %656 {offsets = [0, 24], sizes = [16, 8], strides = [1, 1]} : vector<16x32xf32> to vector<16x8xf32>
    %703 = vector.extract_strided_slice %651 {offsets = [0, 24], sizes = [16, 8], strides = [1, 1]} : vector<16x32xf32> to vector<16x8xf32>
    %cst_247 = arith.constant dense<0.000000e+00> : vector<16x16xf32>
    %704 = tpu.matmul %702, %703, %cst_247 {dimension_numbers = #tpu.dot_dimension_numbers<[1], [1], [0], [0], [0, 0, 1, 0], [], []>} : vector<16x8xf32>, vector<16x8xf32>, vector<16x16xf32> -> vector<16x16xf32>
    %705 = arith.addf %704, %400 : vector<16x16xf32>
    %cst_248 = arith.constant dense<0xFF800000> : vector<16xf32>
    %706 = vector.multi_reduction <maximumf>, %705, %cst_248 [1] : vector<16x16xf32> to vector<16xf32>
    %707 = vector.shape_cast %706 : vector<16xf32> to vector<16x1xf32>
    %708 = vector.broadcast %707 : vector<16x1xf32> to vector<16x16xf32>
    %709 = arith.subf %705, %708 : vector<16x16xf32>
    %710 = math.exp %709 : vector<16x16xf32>
    %cst_249 = arith.constant dense<0.000000e+00> : vector<16xf32>
    %711 = vector.multi_reduction <add>, %710, %cst_249 [1] : vector<16x16xf32> to vector<16xf32>
    %712 = vector.shape_cast %711 : vector<16xf32> to vector<16x1xf32>
    %713 = vector.broadcast %712 : vector<16x1xf32> to vector<16x16xf32>
    %714 = arith.divf %710, %713 : vector<16x16xf32>
    %715 = vector.extract_strided_slice %652 {offsets = [0, 24], sizes = [16, 8], strides = [1, 1]} : vector<16x32xf32> to vector<16x8xf32>
    %cst_250 = arith.constant dense<0.000000e+00> : vector<16x8xf32>
    %716 = tpu.matmul %714, %715, %cst_250 {dimension_numbers = #tpu.dot_dimension_numbers<[1], [0], [0], [1], [0, 0, 1, 1], [], []>} : vector<16x16xf32>, vector<16x8xf32>, vector<16x8xf32> -> vector<16x8xf32>
    %717 = tpu.concatenate %671, %686, %701, %716 in 1 : vector<16x8xf32>, vector<16x8xf32>, vector<16x8xf32>, vector<16x8xf32> -> vector<16x32xf32>
    %cst_251 = arith.constant dense<0.000000e+00> : vector<16x32xf32>
    %718 = tpu.matmul %717, %653, %cst_251 {dimension_numbers = #tpu.dot_dimension_numbers<[1], [0], [0], [1], [0, 0, 1, 1], [], []>} : vector<16x32xf32>, vector<32x32xf32>, vector<16x32xf32> -> vector<16x32xf32>
    %719 = vector.broadcast %654 : vector<1x32xf32> to vector<16x32xf32>
    %720 = arith.addf %718, %719 : vector<16x32xf32>
    %721 = arith.addf %644, %720 : vector<16x32xf32>
    %cst_252 = arith.constant dense<0.000000e+00> : vector<16xf32>
    %722 = vector.multi_reduction <add>, %721, %cst_252 [1] : vector<16x32xf32> to vector<16xf32>
    %723 = vector.shape_cast %722 : vector<16xf32> to vector<16x1xf32>
    %cst_253 = arith.constant 3.200000e+01 : f32
    %724 = vector.broadcast %cst_253 : f32 to vector<16x1xf32>
    %725 = arith.divf %723, %724 : vector<16x1xf32>
    %726 = vector.broadcast %725 : vector<16x1xf32> to vector<16x32xf32>
    %727 = arith.subf %721, %726 : vector<16x32xf32>
    %728 = arith.mulf %727, %727 : vector<16x32xf32>
    %cst_254 = arith.constant dense<0.000000e+00> : vector<16xf32>
    %729 = vector.multi_reduction <add>, %728, %cst_254 [1] : vector<16x32xf32> to vector<16xf32>
    %730 = vector.shape_cast %729 : vector<16xf32> to vector<16x1xf32>
    %cst_255 = arith.constant 3.200000e+01 : f32
    %731 = vector.broadcast %cst_255 : f32 to vector<16x1xf32>
    %732 = arith.divf %730, %731 : vector<16x1xf32>
    %733 = vector.broadcast %725 : vector<16x1xf32> to vector<16x32xf32>
    %734 = arith.subf %721, %733 : vector<16x32xf32>
    %cst_256 = arith.constant 9.99999974E-6 : f32
    %735 = vector.broadcast %cst_256 : f32 to vector<16x1xf32>
    %736 = arith.addf %732, %735 : vector<16x1xf32>
    %737 = math.rsqrt %736 : vector<16x1xf32>
    %738 = vector.broadcast %737 : vector<16x1xf32> to vector<16x32xf32>
    %739 = arith.mulf %734, %738 : vector<16x32xf32>
    %c744_257 = arith.constant 744 : index
    %c0_258 = arith.constant 0 : index
    %740 = vector.load %arg3[%c744_257, %c0_258] : memref<832x128xf32, #tpu.memory_space<vmem>>, vector<1x32xf32>
    %741 = vector.broadcast %740 : vector<1x32xf32> to vector<16x32xf32>
    %742 = arith.mulf %739, %741 : vector<16x32xf32>
    %c752 = arith.constant 752 : index
    %c0_259 = arith.constant 0 : index
    %743 = vector.load %arg3[%c752, %c0_259] : memref<832x128xf32, #tpu.memory_space<vmem>>, vector<1x32xf32>
    %744 = vector.broadcast %743 : vector<1x32xf32> to vector<16x32xf32>
    %745 = arith.addf %742, %744 : vector<16x32xf32>
    %c512 = arith.constant 512 : index
    %c0_260 = arith.constant 0 : index
    %746 = vector.load %arg3[%c512, %c0_260] : memref<832x128xf32, #tpu.memory_space<vmem>>, vector<32x32xf32>
    %cst_261 = arith.constant dense<0.000000e+00> : vector<16x32xf32>
    %747 = tpu.matmul %745, %746, %cst_261 {dimension_numbers = #tpu.dot_dimension_numbers<[1], [0], [0], [1], [0, 0, 1, 1], [], []>} : vector<16x32xf32>, vector<32x32xf32>, vector<16x32xf32> -> vector<16x32xf32>
    %c544 = arith.constant 544 : index
    %c0_262 = arith.constant 0 : index
    %748 = vector.load %arg3[%c544, %c0_262] : memref<832x128xf32, #tpu.memory_space<vmem>>, vector<1x32xf32>
    %749 = vector.broadcast %748 : vector<1x32xf32> to vector<16x32xf32>
    %750 = arith.addf %747, %749 : vector<16x32xf32>
    %c552 = arith.constant 552 : index
    %c0_263 = arith.constant 0 : index
    %751 = vector.load %arg3[%c552, %c0_263] : memref<832x128xf32, #tpu.memory_space<vmem>>, vector<32x64xf32>
    %cst_264 = arith.constant dense<0.000000e+00> : vector<32x64xf32>
    %752 = tpu.matmul %389, %751, %cst_264 {dimension_numbers = #tpu.dot_dimension_numbers<[1], [0], [0], [1], [0, 0, 1, 1], [], []>} : vector<32x32xf32>, vector<32x64xf32>, vector<32x64xf32> -> vector<32x64xf32>
    %c584 = arith.constant 584 : index
    %c0_265 = arith.constant 0 : index
    %753 = vector.load %arg3[%c584, %c0_265] : memref<832x128xf32, #tpu.memory_space<vmem>>, vector<1x64xf32>
    %754 = vector.broadcast %753 : vector<1x64xf32> to vector<32x64xf32>
    %755 = arith.addf %752, %754 : vector<32x64xf32>
    %756 = vector.extract_strided_slice %755 {offsets = [0, 0], sizes = [32, 32], strides = [1, 1]} : vector<32x64xf32> to vector<32x32xf32>
    %757 = vector.extract_strided_slice %755 {offsets = [0, 32], sizes = [32, 32], strides = [1, 1]} : vector<32x64xf32> to vector<32x32xf32>
    %c592 = arith.constant 592 : index
    %c0_266 = arith.constant 0 : index
    %758 = vector.load %arg3[%c592, %c0_266] : memref<832x128xf32, #tpu.memory_space<vmem>>, vector<32x32xf32>
    %c624 = arith.constant 624 : index
    %c0_267 = arith.constant 0 : index
    %759 = vector.load %arg3[%c624, %c0_267] : memref<832x128xf32, #tpu.memory_space<vmem>>, vector<1x32xf32>
    %cst_268 = arith.constant 0.353553385 : f32
    %760 = vector.broadcast %cst_268 : f32 to vector<16x32xf32>
    %761 = arith.mulf %750, %760 : vector<16x32xf32>
    %762 = vector.extract_strided_slice %761 {offsets = [0, 0], sizes = [16, 8], strides = [1, 1]} : vector<16x32xf32> to vector<16x8xf32>
    %763 = vector.extract_strided_slice %756 {offsets = [0, 0], sizes = [32, 8], strides = [1, 1]} : vector<32x32xf32> to vector<32x8xf32>
    %cst_269 = arith.constant dense<0.000000e+00> : vector<16x32xf32>
    %764 = tpu.matmul %762, %763, %cst_269 {dimension_numbers = #tpu.dot_dimension_numbers<[1], [1], [0], [0], [0, 0, 1, 0], [], []>} : vector<16x8xf32>, vector<32x8xf32>, vector<16x32xf32> -> vector<16x32xf32>
    %765 = arith.addf %764, %401 : vector<16x32xf32>
    %cst_270 = arith.constant dense<0xFF800000> : vector<16xf32>
    %766 = vector.multi_reduction <maximumf>, %765, %cst_270 [1] : vector<16x32xf32> to vector<16xf32>
    %767 = vector.shape_cast %766 : vector<16xf32> to vector<16x1xf32>
    %768 = vector.broadcast %767 : vector<16x1xf32> to vector<16x32xf32>
    %769 = arith.subf %765, %768 : vector<16x32xf32>
    %770 = math.exp %769 : vector<16x32xf32>
    %cst_271 = arith.constant dense<0.000000e+00> : vector<16xf32>
    %771 = vector.multi_reduction <add>, %770, %cst_271 [1] : vector<16x32xf32> to vector<16xf32>
    %772 = vector.shape_cast %771 : vector<16xf32> to vector<16x1xf32>
    %773 = vector.broadcast %772 : vector<16x1xf32> to vector<16x32xf32>
    %774 = arith.divf %770, %773 : vector<16x32xf32>
    %775 = vector.extract_strided_slice %757 {offsets = [0, 0], sizes = [32, 8], strides = [1, 1]} : vector<32x32xf32> to vector<32x8xf32>
    %cst_272 = arith.constant dense<0.000000e+00> : vector<16x8xf32>
    %776 = tpu.matmul %774, %775, %cst_272 {dimension_numbers = #tpu.dot_dimension_numbers<[1], [0], [0], [1], [0, 0, 1, 1], [], []>} : vector<16x32xf32>, vector<32x8xf32>, vector<16x8xf32> -> vector<16x8xf32>
    %777 = vector.extract_strided_slice %761 {offsets = [0, 8], sizes = [16, 8], strides = [1, 1]} : vector<16x32xf32> to vector<16x8xf32>
    %778 = vector.extract_strided_slice %756 {offsets = [0, 8], sizes = [32, 8], strides = [1, 1]} : vector<32x32xf32> to vector<32x8xf32>
    %cst_273 = arith.constant dense<0.000000e+00> : vector<16x32xf32>
    %779 = tpu.matmul %777, %778, %cst_273 {dimension_numbers = #tpu.dot_dimension_numbers<[1], [1], [0], [0], [0, 0, 1, 0], [], []>} : vector<16x8xf32>, vector<32x8xf32>, vector<16x32xf32> -> vector<16x32xf32>
    %780 = arith.addf %779, %401 : vector<16x32xf32>
    %cst_274 = arith.constant dense<0xFF800000> : vector<16xf32>
    %781 = vector.multi_reduction <maximumf>, %780, %cst_274 [1] : vector<16x32xf32> to vector<16xf32>
    %782 = vector.shape_cast %781 : vector<16xf32> to vector<16x1xf32>
    %783 = vector.broadcast %782 : vector<16x1xf32> to vector<16x32xf32>
    %784 = arith.subf %780, %783 : vector<16x32xf32>
    %785 = math.exp %784 : vector<16x32xf32>
    %cst_275 = arith.constant dense<0.000000e+00> : vector<16xf32>
    %786 = vector.multi_reduction <add>, %785, %cst_275 [1] : vector<16x32xf32> to vector<16xf32>
    %787 = vector.shape_cast %786 : vector<16xf32> to vector<16x1xf32>
    %788 = vector.broadcast %787 : vector<16x1xf32> to vector<16x32xf32>
    %789 = arith.divf %785, %788 : vector<16x32xf32>
    %790 = vector.extract_strided_slice %757 {offsets = [0, 8], sizes = [32, 8], strides = [1, 1]} : vector<32x32xf32> to vector<32x8xf32>
    %cst_276 = arith.constant dense<0.000000e+00> : vector<16x8xf32>
    %791 = tpu.matmul %789, %790, %cst_276 {dimension_numbers = #tpu.dot_dimension_numbers<[1], [0], [0], [1], [0, 0, 1, 1], [], []>} : vector<16x32xf32>, vector<32x8xf32>, vector<16x8xf32> -> vector<16x8xf32>
    %792 = vector.extract_strided_slice %761 {offsets = [0, 16], sizes = [16, 8], strides = [1, 1]} : vector<16x32xf32> to vector<16x8xf32>
    %793 = vector.extract_strided_slice %756 {offsets = [0, 16], sizes = [32, 8], strides = [1, 1]} : vector<32x32xf32> to vector<32x8xf32>
    %cst_277 = arith.constant dense<0.000000e+00> : vector<16x32xf32>
    %794 = tpu.matmul %792, %793, %cst_277 {dimension_numbers = #tpu.dot_dimension_numbers<[1], [1], [0], [0], [0, 0, 1, 0], [], []>} : vector<16x8xf32>, vector<32x8xf32>, vector<16x32xf32> -> vector<16x32xf32>
    %795 = arith.addf %794, %401 : vector<16x32xf32>
    %cst_278 = arith.constant dense<0xFF800000> : vector<16xf32>
    %796 = vector.multi_reduction <maximumf>, %795, %cst_278 [1] : vector<16x32xf32> to vector<16xf32>
    %797 = vector.shape_cast %796 : vector<16xf32> to vector<16x1xf32>
    %798 = vector.broadcast %797 : vector<16x1xf32> to vector<16x32xf32>
    %799 = arith.subf %795, %798 : vector<16x32xf32>
    %800 = math.exp %799 : vector<16x32xf32>
    %cst_279 = arith.constant dense<0.000000e+00> : vector<16xf32>
    %801 = vector.multi_reduction <add>, %800, %cst_279 [1] : vector<16x32xf32> to vector<16xf32>
    %802 = vector.shape_cast %801 : vector<16xf32> to vector<16x1xf32>
    %803 = vector.broadcast %802 : vector<16x1xf32> to vector<16x32xf32>
    %804 = arith.divf %800, %803 : vector<16x32xf32>
    %805 = vector.extract_strided_slice %757 {offsets = [0, 16], sizes = [32, 8], strides = [1, 1]} : vector<32x32xf32> to vector<32x8xf32>
    %cst_280 = arith.constant dense<0.000000e+00> : vector<16x8xf32>
    %806 = tpu.matmul %804, %805, %cst_280 {dimension_numbers = #tpu.dot_dimension_numbers<[1], [0], [0], [1], [0, 0, 1, 1], [], []>} : vector<16x32xf32>, vector<32x8xf32>, vector<16x8xf32> -> vector<16x8xf32>
    %807 = vector.extract_strided_slice %761 {offsets = [0, 24], sizes = [16, 8], strides = [1, 1]} : vector<16x32xf32> to vector<16x8xf32>
    %808 = vector.extract_strided_slice %756 {offsets = [0, 24], sizes = [32, 8], strides = [1, 1]} : vector<32x32xf32> to vector<32x8xf32>
    %cst_281 = arith.constant dense<0.000000e+00> : vector<16x32xf32>
    %809 = tpu.matmul %807, %808, %cst_281 {dimension_numbers = #tpu.dot_dimension_numbers<[1], [1], [0], [0], [0, 0, 1, 0], [], []>} : vector<16x8xf32>, vector<32x8xf32>, vector<16x32xf32> -> vector<16x32xf32>
    %810 = arith.addf %809, %401 : vector<16x32xf32>
    %cst_282 = arith.constant dense<0xFF800000> : vector<16xf32>
    %811 = vector.multi_reduction <maximumf>, %810, %cst_282 [1] : vector<16x32xf32> to vector<16xf32>
    %812 = vector.shape_cast %811 : vector<16xf32> to vector<16x1xf32>
    %813 = vector.broadcast %812 : vector<16x1xf32> to vector<16x32xf32>
    %814 = arith.subf %810, %813 : vector<16x32xf32>
    %815 = math.exp %814 : vector<16x32xf32>
    %cst_283 = arith.constant dense<0.000000e+00> : vector<16xf32>
    %816 = vector.multi_reduction <add>, %815, %cst_283 [1] : vector<16x32xf32> to vector<16xf32>
    %817 = vector.shape_cast %816 : vector<16xf32> to vector<16x1xf32>
    %818 = vector.broadcast %817 : vector<16x1xf32> to vector<16x32xf32>
    %819 = arith.divf %815, %818 : vector<16x32xf32>
    %820 = vector.extract_strided_slice %757 {offsets = [0, 24], sizes = [32, 8], strides = [1, 1]} : vector<32x32xf32> to vector<32x8xf32>
    %cst_284 = arith.constant dense<0.000000e+00> : vector<16x8xf32>
    %821 = tpu.matmul %819, %820, %cst_284 {dimension_numbers = #tpu.dot_dimension_numbers<[1], [0], [0], [1], [0, 0, 1, 1], [], []>} : vector<16x32xf32>, vector<32x8xf32>, vector<16x8xf32> -> vector<16x8xf32>
    %822 = tpu.concatenate %776, %791, %806, %821 in 1 : vector<16x8xf32>, vector<16x8xf32>, vector<16x8xf32>, vector<16x8xf32> -> vector<16x32xf32>
    %cst_285 = arith.constant dense<0.000000e+00> : vector<16x32xf32>
    %823 = tpu.matmul %822, %758, %cst_285 {dimension_numbers = #tpu.dot_dimension_numbers<[1], [0], [0], [1], [0, 0, 1, 1], [], []>} : vector<16x32xf32>, vector<32x32xf32>, vector<16x32xf32> -> vector<16x32xf32>
    %824 = vector.broadcast %759 : vector<1x32xf32> to vector<16x32xf32>
    %825 = arith.addf %823, %824 : vector<16x32xf32>
    %826 = arith.addf %745, %825 : vector<16x32xf32>
    %cst_286 = arith.constant dense<0.000000e+00> : vector<16xf32>
    %827 = vector.multi_reduction <add>, %826, %cst_286 [1] : vector<16x32xf32> to vector<16xf32>
    %828 = vector.shape_cast %827 : vector<16xf32> to vector<16x1xf32>
    %cst_287 = arith.constant 3.200000e+01 : f32
    %829 = vector.broadcast %cst_287 : f32 to vector<16x1xf32>
    %830 = arith.divf %828, %829 : vector<16x1xf32>
    %831 = vector.broadcast %830 : vector<16x1xf32> to vector<16x32xf32>
    %832 = arith.subf %826, %831 : vector<16x32xf32>
    %833 = arith.mulf %832, %832 : vector<16x32xf32>
    %cst_288 = arith.constant dense<0.000000e+00> : vector<16xf32>
    %834 = vector.multi_reduction <add>, %833, %cst_288 [1] : vector<16x32xf32> to vector<16xf32>
    %835 = vector.shape_cast %834 : vector<16xf32> to vector<16x1xf32>
    %cst_289 = arith.constant 3.200000e+01 : f32
    %836 = vector.broadcast %cst_289 : f32 to vector<16x1xf32>
    %837 = arith.divf %835, %836 : vector<16x1xf32>
    %838 = vector.broadcast %830 : vector<16x1xf32> to vector<16x32xf32>
    %839 = arith.subf %826, %838 : vector<16x32xf32>
    %cst_290 = arith.constant 9.99999974E-6 : f32
    %840 = vector.broadcast %cst_290 : f32 to vector<16x1xf32>
    %841 = arith.addf %837, %840 : vector<16x1xf32>
    %842 = math.rsqrt %841 : vector<16x1xf32>
    %843 = vector.broadcast %842 : vector<16x1xf32> to vector<16x32xf32>
    %844 = arith.mulf %839, %843 : vector<16x32xf32>
    %c760 = arith.constant 760 : index
    %c0_291 = arith.constant 0 : index
    %845 = vector.load %arg3[%c760, %c0_291] : memref<832x128xf32, #tpu.memory_space<vmem>>, vector<1x32xf32>
    %846 = vector.broadcast %845 : vector<1x32xf32> to vector<16x32xf32>
    %847 = arith.mulf %844, %846 : vector<16x32xf32>
    %c768 = arith.constant 768 : index
    %c0_292 = arith.constant 0 : index
    %848 = vector.load %arg3[%c768, %c0_292] : memref<832x128xf32, #tpu.memory_space<vmem>>, vector<1x32xf32>
    %849 = vector.broadcast %848 : vector<1x32xf32> to vector<16x32xf32>
    %850 = arith.addf %847, %849 : vector<16x32xf32>
    %c632_293 = arith.constant 632 : index
    %c0_294 = arith.constant 0 : index
    %851 = vector.load %arg3[%c632_293, %c0_294] : memref<832x128xf32, #tpu.memory_space<vmem>>, vector<32x64xf32>
    %cst_295 = arith.constant dense<0.000000e+00> : vector<16x64xf32>
    %852 = tpu.matmul %850, %851, %cst_295 {dimension_numbers = #tpu.dot_dimension_numbers<[1], [0], [0], [1], [0, 0, 1, 1], [], []>} : vector<16x32xf32>, vector<32x64xf32>, vector<16x64xf32> -> vector<16x64xf32>
    %c664 = arith.constant 664 : index
    %c0_296 = arith.constant 0 : index
    %853 = vector.load %arg3[%c664, %c0_296] : memref<832x128xf32, #tpu.memory_space<vmem>>, vector<1x64xf32>
    %854 = vector.broadcast %853 : vector<1x64xf32> to vector<16x64xf32>
    %855 = arith.addf %852, %854 : vector<16x64xf32>
    %cst_297 = arith.constant 0.000000e+00 : f32
    %856 = vector.broadcast %cst_297 : f32 to vector<16x64xf32>
    %857 = arith.maximumf %855, %856 : vector<16x64xf32>
    %c672 = arith.constant 672 : index
    %c0_298 = arith.constant 0 : index
    %858 = vector.load %arg3[%c672, %c0_298] : memref<832x128xf32, #tpu.memory_space<vmem>>, vector<64x32xf32>
    %cst_299 = arith.constant dense<0.000000e+00> : vector<16x32xf32>
    %859 = tpu.matmul %857, %858, %cst_299 {dimension_numbers = #tpu.dot_dimension_numbers<[1], [0], [0], [1], [0, 0, 1, 1], [], []>} : vector<16x64xf32>, vector<64x32xf32>, vector<16x32xf32> -> vector<16x32xf32>
    %860 = arith.addf %850, %859 : vector<16x32xf32>
    %c736_300 = arith.constant 736 : index
    %c0_301 = arith.constant 0 : index
    %861 = vector.load %arg3[%c736_300, %c0_301] : memref<832x128xf32, #tpu.memory_space<vmem>>, vector<1x32xf32>
    %862 = vector.broadcast %861 : vector<1x32xf32> to vector<16x32xf32>
    %863 = arith.addf %860, %862 : vector<16x32xf32>
    %cst_302 = arith.constant dense<0.000000e+00> : vector<16xf32>
    %864 = vector.multi_reduction <add>, %863, %cst_302 [1] : vector<16x32xf32> to vector<16xf32>
    %865 = vector.shape_cast %864 : vector<16xf32> to vector<16x1xf32>
    %cst_303 = arith.constant 3.200000e+01 : f32
    %866 = vector.broadcast %cst_303 : f32 to vector<16x1xf32>
    %867 = arith.divf %865, %866 : vector<16x1xf32>
    %868 = vector.broadcast %867 : vector<16x1xf32> to vector<16x32xf32>
    %869 = arith.subf %863, %868 : vector<16x32xf32>
    %870 = arith.mulf %869, %869 : vector<16x32xf32>
    %cst_304 = arith.constant dense<0.000000e+00> : vector<16xf32>
    %871 = vector.multi_reduction <add>, %870, %cst_304 [1] : vector<16x32xf32> to vector<16xf32>
    %872 = vector.shape_cast %871 : vector<16xf32> to vector<16x1xf32>
    %cst_305 = arith.constant 3.200000e+01 : f32
    %873 = vector.broadcast %cst_305 : f32 to vector<16x1xf32>
    %874 = arith.divf %872, %873 : vector<16x1xf32>
    %875 = vector.broadcast %867 : vector<16x1xf32> to vector<16x32xf32>
    %876 = arith.subf %863, %875 : vector<16x32xf32>
    %cst_306 = arith.constant 9.99999974E-6 : f32
    %877 = vector.broadcast %cst_306 : f32 to vector<16x1xf32>
    %878 = arith.addf %874, %877 : vector<16x1xf32>
    %879 = math.rsqrt %878 : vector<16x1xf32>
    %880 = vector.broadcast %879 : vector<16x1xf32> to vector<16x32xf32>
    %881 = arith.mulf %876, %880 : vector<16x32xf32>
    %c776 = arith.constant 776 : index
    %c0_307 = arith.constant 0 : index
    %882 = vector.load %arg3[%c776, %c0_307] : memref<832x128xf32, #tpu.memory_space<vmem>>, vector<1x32xf32>
    %883 = vector.broadcast %882 : vector<1x32xf32> to vector<16x32xf32>
    %884 = arith.mulf %881, %883 : vector<16x32xf32>
    %c784 = arith.constant 784 : index
    %c0_308 = arith.constant 0 : index
    %885 = vector.load %arg3[%c784, %c0_308] : memref<832x128xf32, #tpu.memory_space<vmem>>, vector<1x32xf32>
    %886 = vector.broadcast %885 : vector<1x32xf32> to vector<16x32xf32>
    %887 = arith.addf %884, %886 : vector<16x32xf32>
    %c792 = arith.constant 792 : index
    %c0_309 = arith.constant 0 : index
    %888 = vector.load %arg3[%c792, %c0_309] : memref<832x128xf32, #tpu.memory_space<vmem>>, vector<32x128xf32>
    %cst_310 = arith.constant dense<0.000000e+00> : vector<16x128xf32>
    %889 = tpu.matmul %887, %888, %cst_310 {dimension_numbers = #tpu.dot_dimension_numbers<[1], [0], [0], [1], [0, 0, 1, 1], [], []>} : vector<16x32xf32>, vector<32x128xf32>, vector<16x128xf32> -> vector<16x128xf32>
    %c824 = arith.constant 824 : index
    %c0_311 = arith.constant 0 : index
    %890 = vector.load %arg3[%c824, %c0_311] : memref<832x128xf32, #tpu.memory_space<vmem>>, vector<1x128xf32>
    %891 = vector.broadcast %890 : vector<1x128xf32> to vector<16x128xf32>
    %892 = arith.addf %889, %891 : vector<16x128xf32>
    %c0_312 = arith.constant 0 : index
    %c0_313 = arith.constant 0 : index
    %893 = vector.load %arg4[%c0_312, %c0_313] : memref<16x128xf32, #tpu.memory_space<vmem>>, vector<16x128xf32>
    tpu.vector_store %arg4[%c0_312, %c0_313], %892 {strides = array<i32>} : memref<16x128xf32, #tpu.memory_space<vmem>>, vector<16x128xf32>,
    return
  }
}

</mosaic_0001>

<llo_original>
// kernel: _lambda_.1
$region0: #{_lambda_.1}
  #allocation0 [shape = 'u32[]', space=smem, size = 0x4, offset = 0x4, fixed_abs, tag = 'smem constant byte address 0x4 - core index']
  #allocation1 [shape = 'u32[144,128]{1,0:T(1,128)}', space=vmem, size = 0x12000, scoped, tag = 'internal scratch']
  %s0 = inlined_call_operand.vmem [shape: f32[32,16], index: 0, kind: input, shape index: {}]
  %s1 = inlined_call_operand.vmem [shape: s32[16,1], index: 1, kind: input, shape index: {}]
  %s2 = inlined_call_operand.hbm [shape: f32[848,256], index: 2, kind: input, shape index: {}]
  %s3 = inlined_call_operand.hbm [shape: f32[832,128], index: 3, kind: input, shape index: {}]
  %s4 = inlined_call_operand.vmem [shape: f32[16,128], index: 4, kind: output, shape index: {}]
  %s5 = sld [smem:[#allocation0]]
  $region34: #{_lambda_.1} parent=0
    _
  %s7 = ssub.s32 1, %s5
  %s8 = scalar_select 0, %s7, %s5
  $region1: #{_lambda_.1} parent=0
    #allocation2 [shape = 'u8[868352]{0}', space=vmem, size = 0xd4000, scoped, tag = 'input window, operand 2, single buffered']
    #allocation3 [shape = 's32[1]{0}', space=sflag, size = 0x4, scoped, tag = 'scoped memory for _lambda_.1']
    #allocation4 [shape = 'u8[425984]{0}', space=vmem, size = 0x68000, scoped, tag = 'input window, operand 3, single buffered']
    #allocation5 [shape = 's32[1]{0}', space=sflag, size = 0x4, scoped, tag = 'scoped memory for _lambda_.1']
    %9 = vsyncpa [#allocation3], 0
    %10 = vsyncpa [#allocation5], 0
    // Predicated region
    $region2: #{_lambda_.1} parent=1 // pred_check
      _
    $region3: #{_lambda_.1} parent=1 // pred_check_branch
      %12 = sbr.rel (0) target = $region5
    $region4: #{_lambda_.1} parent=1 // pred_region
      _
    $region5: #{_lambda_.1} parent=1 // pred_fallthru
      _
    // Predicated region
    $region6: #{_lambda_.1} parent=1 // pred_check
      _
    $region7: #{_lambda_.1} parent=1 // pred_check_branch
      %14 = sbr.rel (0) target = $region9
    $region8: #{_lambda_.1} parent=1 // pred_region
      _
    $region9: #{_lambda_.1} parent=1 // pred_fallthru
      _
    // Predicated region
    $region10: #{_lambda_.1} parent=1 // pred_check
      _
    $region11: #{_lambda_.1} parent=1 // pred_check_branch
      %16 = sbr.rel (0) target = $region13
    $region12: #{_lambda_.1} parent=1 // pred_region
      %s18 = ssub.s32 27136, 27136
      %19 = vsyncadd [#allocation3], %s18
      %s20 = sshll.u32 [#allocation2], 4
      %s21 = int_to_ptr.vmem [resolvable:$true] %s20
      %26 = dma.hbm_to_vmem [thread:$0]  %s2, 27136, %s21, [#allocation3], 256, 256, 16
    $region13: #{_lambda_.1} parent=1 // pred_fallthru
      _
    // Predicated region
    $region14: #{_lambda_.1} parent=1 // pred_check
      _
    $region15: #{_lambda_.1} parent=1 // pred_check_branch
      %28 = sbr.rel (0) target = $region17
    $region16: #{_lambda_.1} parent=1 // pred_region
      %s30 = ssub.s32 13312, 13312
      %31 = vsyncadd [#allocation5], %s30
      %s32 = sshll.u32 [#allocation4], 4
      %s33 = int_to_ptr.vmem [resolvable:$true] %s32
      %38 = dma.hbm_to_vmem [thread:$0]  %s3, 13312, %s33, [#allocation5], 128, 128, 8
    $region17: #{_lambda_.1} parent=1 // pred_fallthru
      _
    // Predicated region
    $region18: #{_lambda_.1} parent=1 // pred_check
      _
    $region19: #{_lambda_.1} parent=1 // pred_check_branch
      %40 = sbr.rel (0) target = $region21
    $region20: #{_lambda_.1} parent=1 // pred_region
      %41 = dma.done [#allocation3], 27136
    $region21: #{_lambda_.1} parent=1 // pred_fallthru
      _
    // Predicated region
    $region22: #{_lambda_.1} parent=1 // pred_check
      _
    $region23: #{_lambda_.1} parent=1 // pred_check_branch
      %43 = sbr.rel (0) target = $region25
    $region24: #{_lambda_.1} parent=1 // pred_region
      %44 = dma.done [#allocation5], 13312
    $region25: #{_lambda_.1} parent=1 // pred_fallthru
      _
    %v45 = vlaneseq
    %v46 = vshrl.u32 %v45, 7
    %v47 = vadd.s32 %v46, 8
    %v48 = vadd.s32 %v46, 16
    %v49 = vadd.s32 %v46, 24
    %v50 = vand.u32 %v46, 15
    %v51 = vand.u32 %v47, 15
    %v52 = vand.u32 %v48, 15
    %v53 = vand.u32 %v49, 15
    %v54 = vld [vmem:[%s0] sm:$0xff]
    %v55 = vld [vmem:[%s0 + $0x8] sm:$0xff]
    %v56 = vld [vmem:[%s0 + $0x10] sm:$0xff]
    %v57 = vld [vmem:[%s0 + $0x18] sm:$0xff]
    %v58 = vld [vmem:[#allocation2] sm:$0xff]
    %v59 = vld [vmem:[#allocation2 + $0x10] sm:$0xff]
    %v60 = vld [vmem:[#allocation2 + $0x20] ss:$0 sm:$0xff]
    %vm61 = vcmask 130048
    %v63 = vsel %vm61, %v54, 0
    %v66 = vsel %vm61, %v55, 0
    %v69 = vsel %vm61, %v56, 0
    %v72 = vsel %vm61, %v57, 0
    %74 = vmatprep.subr.mxu0 0.0
    %75 = vmatpush1.msra.mxu0 %v58
    %76 = vmatprep.subr.mxu0 0.0
    %77 = vmatpush1.msra.mxu0 %v59
    %78 = vmatprep.subr.mxu0 0.0
    %79 = vmatpush1.msra.mxu0 0.0
    %80 = vmatprep.subr.mxu0 0.0
    %81 = vmatpush1.msra.mxu0 0.0
    %82 = vmatprep.subr.mxu0 0.0
    %83 = vmatpush1.msra.mxu0 0.0
    %84 = vmatprep.subr.mxu0 0.0
    %85 = vmatpush1.msra.mxu0 0.0
    %86 = vmatprep.subr.mxu0 0.0
    %87 = vmatpush1.msra.mxu0 0.0
    %88 = vmatprep.subr.mxu0 0.0
    %89 = vmatpush1.msra.mxu0 0.0
    %90 = vmatprep.subr.mxu0 0.0
    %91 = vmatpush1.msra.mxu0 0.0
    %92 = vmatprep.subr.mxu0 0.0
    %93 = vmatpush1.msra.mxu0 0.0
    %94 = vmatprep.subr.mxu0 0.0
    %95 = vmatpush1.msra.mxu0 0.0
    %96 = vmatprep.subr.mxu0 0.0
    %97 = vmatpush1.msra.mxu0 0.0
    %98 = vmatprep.subr.mxu0 0.0
    %99 = vmatpush1.msra.mxu0 0.0
    %100 = vmatprep.subr.mxu0 0.0
    %101 = vmatpush1.msra.mxu0 0.0
    %102 = vmatprep.subr.mxu0 0.0
    %103 = vmatpush1.msra.mxu0 0.0
    %104 = vmatprep.subr.mxu0 0.0
    %105 = vmatpush1.msra.mxu0 0.0
    %106 = vmatprep.subr.mxu0 0.0
    %107 = vmatpush1.msra.mxu0 0.0
    %108 = vmatprep.subr.mxu0 0.0
    %109 = vmatpush1.msra.mxu0 0.0
    %110 = vmatprep.subr.mxu0 0.0
    %111 = vmatpush1.msra.mxu0 0.0
    %112 = vmatprep.subr.mxu0 0.0
    %113 = vmatpush1.msra.mxu0 0.0
    %114 = vmatprep.subr.mxu0 0.0
    %115 = vmatpush1.msra.mxu0 0.0
    %116 = vmatprep.subr.mxu0 0.0
    %117 = vmatpush1.msra.mxu0 0.0
    %118 = vmatprep.subr.mxu0 0.0
    %119 = vmatpush1.msra.mxu0 0.0
    %120 = vmatprep.subr.mxu0 0.0
    %121 = vmatpush1.msra.mxu0 0.0
    %122 = vmatprep.subr.mxu0 0.0
    %123 = vmatpush1.msra.mxu0 0.0
    %124 = vmatprep.subr.mxu0 0.0
    %125 = vmatpush1.msra.mxu0 0.0
    %126 = vmatprep.subr.mxu0 0.0
    %127 = vmatpush1.msra.mxu0 0.0
    %128 = vmatprep.subr.mxu0 0.0
    %129 = vmatpush1.msra.mxu0 0.0
    %130 = vmatprep.subr.mxu0 0.0
    %131 = vmatpush1.msra.mxu0 0.0
    %132 = vmatprep.subr.mxu0 0.0
    %133 = vmatpush1.msra.mxu0 0.0
    %134 = vmatprep.subr.mxu0 0.0
    %135 = vmatpush1.msra.mxu0 0.0
    %136 = vmatprep.subr.mxu0 0.0
    %137 = vmatpush1.msra.mxu0 0.0
    %138 = vmatprep.mubr.f32.mxu0 0.0
    %139 = vmatmul.mubr.f32.gmra.mrb[0].mxu0 %v63
    %v140 = vpop.f32.mrb[0].mxu0
    %v141 = vadd.f32 %v60, %v140
    %v142 = vpop.f32.mrb[0].mxu0
    %143 = vmatprep.mubr.f32.mxu0 0.0
    %144 = vmatmul.mubr.f32.gmra.mrb[0].mxu0 %v66
    %v145 = vpop.f32.mrb[0].mxu0
    %v146 = vadd.f32 %v60, %v145
    %v147 = vpop.f32.mrb[0].mxu0
    %148 = vmatprep.mubr.f32.mxu0 0.0
    %149 = vmatmul.mubr.f32.gmra.mrb[0].mxu0 %v69
    %v150 = vpop.f32.mrb[0].mxu0
    %v151 = vadd.f32 %v60, %v150
    %v152 = vpop.f32.mrb[0].mxu0
    %153 = vmatprep.mubr.f32.mxu0 0.0
    %154 = vmatmul.mubr.f32.gmra.mrb[0].mxu0 %v72
    %v155 = vpop.f32.mrb[0].mxu0
    %v156 = vadd.f32 %v60, %v155
    %v157 = vpop.f32.mrb[0].mxu0
    %158 = vdwg.mxu0
    %v159 = vrot.slane %v141, 7
    %v160 = vrot.slane %v146, 7
    %v161 = vrot.slane %v151, 7
    %v162 = vrot.slane %v156, 7
    %vm163 = vcmp.lt.s32.totalorder %v46, 1
    %v164 = vsel %vm163, %v161, %v162
    %v165 = vsel %vm163, %v160, %v161
    %v166 = vsel %vm163, %v159, %v160
    %v167 = vsel %vm163, %v162, %v159
    %v168 = vadd.s32 %v50, 4294967295
    %v169 = vadd.s32 %v51, 4294967295
    %v170 = vadd.s32 %v52, 4294967295
    %v171 = vadd.s32 %v53, 4294967295
    %vm172 = vcmp.ge.s32.totalorder %v168, 0
    %vm173 = vcmp.ge.s32.totalorder %v169, 0
    %vm174 = vcmp.ge.s32.totalorder %v170, 0
    %vm175 = vcmp.ge.s32.totalorder %v171, 0
    %vm176 = vcmp.lt.s32.totalorder %v168, 16
    %vm177 = vcmp.lt.s32.totalorder %v169, 16
    %vm178 = vcmp.lt.s32.totalorder %v170, 16
    %vm179 = vcmp.lt.s32.totalorder %v171, 16
    %vm180 = vmand %vm172, %vm176
    %vm181 = vmand %vm173, %vm177
    %vm182 = vmand %vm174, %vm178
    %vm183 = vmand %vm175, %vm179
    %v184 = vsel %vm180, 1, 0
    %v185 = vsel %vm181, 1, 0
    %v186 = vsel %vm182, 1, 0
    %v187 = vsel %vm183, 1, 0
    %v188 = vcvt.s32.f32 %v184
    %v189 = vcvt.s32.f32 %v185
    %v190 = vcvt.s32.f32 %v186
    %v191 = vcvt.s32.f32 %v187
    %v192 = vmul.f32 %v167, %v188
    %v193 = vmul.f32 %v166, %v189
    %v194 = vmul.f32 %v165, %v190
    %v195 = vmul.f32 %v164, %v191
    %v196 = vrot.slane %v141, 1
    %v197 = vrot.slane %v146, 1
    %v198 = vrot.slane %v151, 1
    %v199 = vrot.slane %v156, 1
    %vm200 = vcmp.lt.s32.totalorder %v46, 7
    %v201 = vsel %vm200, %v198, %v199
    %v202 = vsel %vm200, %v197, %v198
    %v203 = vsel %vm200, %v196, %v197
    %v204 = vsel %vm200, %v199, %v196
    %v205 = vadd.s32 %v50, 1
    %v206 = vadd.s32 %v51, 1
    %v207 = vadd.s32 %v52, 1
    %v208 = vadd.s32 %v53, 1
    %vm209 = vcmp.ge.s32.totalorder %v205, 0
    %vm210 = vcmp.ge.s32.totalorder %v206, 0
    %vm211 = vcmp.ge.s32.totalorder %v207, 0
    %vm212 = vcmp.ge.s32.totalorder %v208, 0
    %vm213 = vcmp.lt.s32.totalorder %v205, 16
    %vm214 = vcmp.lt.s32.totalorder %v206, 16
    %vm215 = vcmp.lt.s32.totalorder %v207, 16
    %vm216 = vcmp.lt.s32.totalorder %v208, 16
    %vm217 = vmand %vm209, %vm213
    %vm218 = vmand %vm210, %vm214
    %vm219 = vmand %vm211, %vm215
    %vm220 = vmand %vm212, %vm216
    %v221 = vsel %vm217, 1, 0
    %v222 = vsel %vm218, 1, 0
    %v223 = vsel %vm219, 1, 0
    %v224 = vsel %vm220, 1, 0
    %v225 = vcvt.s32.f32 %v221
    %v226 = vcvt.s32.f32 %v222
    %v227 = vcvt.s32.f32 %v223
    %v228 = vcvt.s32.f32 %v224
    %v229 = vmul.f32 %v203, %v225
    %v230 = vmul.f32 %v202, %v226
    %v231 = vmul.f32 %v201, %v227
    %v232 = vmul.f32 %v204, %v228
    %237 = vrot.lane.b32.xlu0 %v141, 16
    %v238 = vpop.permute.xlu0 %237
    %239 = vrot.lane.b32.xlu0 %v146, 16
    %v240 = vpop.permute.xlu0 %239
    %241 = vrot.lane.b32.xlu0 %v151, 16
    %v242 = vpop.permute.xlu0 %241
    %243 = vrot.lane.b32.xlu0 %v156, 16
    %v244 = vpop.permute.xlu0 %243
    %253 = vrot.lane.b32.xlu0 %v229, 32
    %v254 = vpop.permute.xlu0 %253
    %255 = vrot.lane.b32.xlu0 %v230, 32
    %v256 = vpop.permute.xlu0 %255
    %257 = vrot.lane.b32.xlu0 %v231, 32
    %v258 = vpop.permute.xlu0 %257
    %259 = vrot.lane.b32.xlu0 %v232, 32
    %v260 = vpop.permute.xlu0 %259
    %v265 = vsel %vm61, %v192, %v238
    %v266 = vsel %vm61, %v193, %v240
    %v267 = vsel %vm61, %v194, %v242
    %v268 = vsel %vm61, %v195, %v244
    %vm269 = vcmask 261120
    %v270 = vsel %vm269, %v265, %v254
    %v271 = vsel %vm269, %v266, %v256
    %v272 = vsel %vm269, %v267, %v258
    %v273 = vsel %vm269, %v268, %v260
    %v274 = vld [vmem:[#allocation2 + $0x30] sm:$0xff]
    %v275 = vld [vmem:[#allocation2 + $0x40] sm:$0xff]
    %v276 = vld [vmem:[#allocation2 + $0x50] sm:$0xff]
    %v277 = vld [vmem:[#allocation2 + $0x60] sm:$0xff]
    %v278 = vld [vmem:[#allocation2 + $0x70] sm:$0xff]
    %v279 = vld [vmem:[#allocation2 + $0x80] sm:$0xff]
    %v280 = vld [vmem:[#allocation2 + $0x90] ss:$0 sm:$0xff]
    %vm281 = vcmask 392192
    %v283 = vsel %vm281, %v270, 0
    %v286 = vsel %vm281, %v271, 0
    %v289 = vsel %vm281, %v272, 0
    %v292 = vsel %vm281, %v273, 0
    %294 = vmatprep.subr.mxu0 0.0
    %295 = vmatpush1.msra.mxu0 %v274
    %296 = vmatprep.subr.mxu0 0.0
    %297 = vmatpush1.msra.mxu0 %v275
    %298 = vmatprep.subr.mxu0 0.0
    %299 = vmatpush1.msra.mxu0 %v276
    %300 = vmatprep.subr.mxu0 0.0
    %301 = vmatpush1.msra.mxu0 %v277
    %302 = vmatprep.subr.mxu0 0.0
    %303 = vmatpush1.msra.mxu0 %v278
    %304 = vmatprep.subr.mxu0 0.0
    %305 = vmatpush1.msra.mxu0 %v279
    %306 = vmatprep.subr.mxu0 0.0
    %307 = vmatpush1.msra.mxu0 0.0
    %308 = vmatprep.subr.mxu0 0.0
    %309 = vmatpush1.msra.mxu0 0.0
    %310 = vmatprep.subr.mxu0 0.0
    %311 = vmatpush1.msra.mxu0 0.0
    %312 = vmatprep.subr.mxu0 0.0
    %313 = vmatpush1.msra.mxu0 0.0
    %314 = vmatprep.subr.mxu0 0.0
    %315 = vmatpush1.msra.mxu0 0.0
    %316 = vmatprep.subr.mxu0 0.0
    %317 = vmatpush1.msra.mxu0 0.0
    %318 = vmatprep.subr.mxu0 0.0
    %319 = vmatpush1.msra.mxu0 0.0
    %320 = vmatprep.subr.mxu0 0.0
    %321 = vmatpush1.msra.mxu0 0.0
    %322 = vmatprep.subr.mxu0 0.0
    %323 = vmatpush1.msra.mxu0 0.0
    %324 = vmatprep.subr.mxu0 0.0
    %325 = vmatpush1.msra.mxu0 0.0
    %326 = vmatprep.subr.mxu0 0.0
    %327 = vmatpush1.msra.mxu0 0.0
    %328 = vmatprep.subr.mxu0 0.0
    %329 = vmatpush1.msra.mxu0 0.0
    %330 = vmatprep.subr.mxu0 0.0
    %331 = vmatpush1.msra.mxu0 0.0
    %332 = vmatprep.subr.mxu0 0.0
    %333 = vmatpush1.msra.mxu0 0.0
    %334 = vmatprep.subr.mxu0 0.0
    %335 = vmatpush1.msra.mxu0 0.0
    %336 = vmatprep.subr.mxu0 0.0
    %337 = vmatpush1.msra.mxu0 0.0
    %338 = vmatprep.subr.mxu0 0.0
    %339 = vmatpush1.msra.mxu0 0.0
    %340 = vmatprep.subr.mxu0 0.0
    %341 = vmatpush1.msra.mxu0 0.0
    %342 = vmatprep.subr.mxu0 0.0
    %343 = vmatpush1.msra.mxu0 0.0
    %344 = vmatprep.subr.mxu0 0.0
    %345 = vmatpush1.msra.mxu0 0.0
    %346 = vmatprep.subr.mxu0 0.0
    %347 = vmatpush1.msra.mxu0 0.0
    %348 = vmatprep.subr.mxu0 0.0
    %349 = vmatpush1.msra.mxu0 0.0
    %350 = vmatprep.subr.mxu0 0.0
    %351 = vmatpush1.msra.mxu0 0.0
    %352 = vmatprep.subr.mxu0 0.0
    %353 = vmatpush1.msra.mxu0 0.0
    %354 = vmatprep.subr.mxu0 0.0
    %355 = vmatpush1.msra.mxu0 0.0
    %356 = vmatprep.subr.mxu0 0.0
    %357 = vmatpush1.msra.mxu0 0.0
    %358 = vmatprep.mubr.f32.mxu0 0.0
    %359 = vmatmul.mubr.f32.gmra.mrb[0].mxu0 %v283
    %v360 = vpop.f32.mrb[0].mxu0
    %v361 = vadd.f32 %v280, %v360
    %v362 = vpop.f32.mrb[0].mxu0
    %363 = vmatprep.mubr.f32.mxu0 0.0
    %364 = vmatmul.mubr.f32.gmra.mrb[0].mxu0 %v286
    %v365 = vpop.f32.mrb[0].mxu0
    %v366 = vadd.f32 %v280, %v365
    %v367 = vpop.f32.mrb[0].mxu0
    %368 = vmatprep.mubr.f32.mxu0 0.0
    %369 = vmatmul.mubr.f32.gmra.mrb[0].mxu0 %v289
    %v370 = vpop.f32.mrb[0].mxu0
    %v371 = vadd.f32 %v280, %v370
    %v372 = vpop.f32.mrb[0].mxu0
    %373 = vmatprep.mubr.f32.mxu0 0.0
    %374 = vmatmul.mubr.f32.gmra.mrb[0].mxu0 %v292
    %v375 = vpop.f32.mrb[0].mxu0
    %v376 = vadd.f32 %v280, %v375
    %v377 = vpop.f32.mrb[0].mxu0
    %378 = vdwg.mxu0
    %v379 = vtanh.pop %v361
    %v380 = vtanh.pop %v366
    %v381 = vtanh.pop %v371
    %v382 = vtanh.pop %v376
    %v383 = vmul.f32 %v361, 0.5
    %v384 = vmul.f32 %v366, 0.5
    %v385 = vmul.f32 %v371, 0.5
    %v386 = vmul.f32 %v376, 0.5
    %v387 = vtanh.pop %v383
    %v388 = vtanh.pop %v384
    %v389 = vtanh.pop %v385
    %v390 = vtanh.pop %v386
    %v391 = vmul.f32 %v387, 0.5
    %v392 = vmul.f32 %v388, 0.5
    %v393 = vmul.f32 %v389, 0.5
    %v394 = vmul.f32 %v390, 0.5
    %v395 = vadd.f32 %v391, 0.5
    %v396 = vadd.f32 %v392, 0.5
    %v397 = vadd.f32 %v393, 0.5
    %v398 = vadd.f32 %v394, 0.5
    %403 = vrot.lane.b32.xlu0 %v395, 112
    %v404 = vpop.permute.xlu0 %403
    %405 = vrot.lane.b32.xlu0 %v396, 112
    %v406 = vpop.permute.xlu0 %405
    %407 = vrot.lane.b32.xlu0 %v397, 112
    %v408 = vpop.permute.xlu0 %407
    %409 = vrot.lane.b32.xlu0 %v398, 112
    %v410 = vpop.permute.xlu0 %409
    %v415 = vmul.f32 %v379, %v404
    %v416 = vmul.f32 %v380, %v406
    %v417 = vmul.f32 %v381, %v408
    %v418 = vmul.f32 %v382, %v410
    %v419 = vld [vmem:[#allocation2 + $0xa0] sm:$0xff]
    %v420 = vld [vmem:[#allocation2 + $0xb0] sm:$0xff]
    %v421 = vld [vmem:[#allocation2 + $0xc0] ss:$0 sm:$0xff]
    %v423 = vsel %vm61, %v415, 0
    %v426 = vsel %vm61, %v416, 0
    %v429 = vsel %vm61, %v417, 0
    %v432 = vsel %vm61, %v418, 0
    %434 = vmatprep.subr.mxu0 0.0
    %435 = vmatpush1.msra.mxu0 %v419
    %436 = vmatprep.subr.mxu0 0.0
    %437 = vmatpush1.msra.mxu0 %v420
    %438 = vmatprep.subr.mxu0 0.0
    %439 = vmatpush1.msra.mxu0 0.0
    %440 = vmatprep.subr.mxu0 0.0
    %441 = vmatpush1.msra.mxu0 0.0
    %442 = vmatprep.subr.mxu0 0.0
    %443 = vmatpush1.msra.mxu0 0.0
    %444 = vmatprep.subr.mxu0 0.0
    %445 = vmatpush1.msra.mxu0 0.0
    %446 = vmatprep.subr.mxu0 0.0
    %447 = vmatpush1.msra.mxu0 0.0
    %448 = vmatprep.subr.mxu0 0.0
    %449 = vmatpush1.msra.mxu0 0.0
    %450 = vmatprep.subr.mxu0 0.0
    %451 = vmatpush1.msra.mxu0 0.0
    %452 = vmatprep.subr.mxu0 0.0
    %453 = vmatpush1.msra.mxu0 0.0
    %454 = vmatprep.subr.mxu0 0.0
    %455 = vmatpush1.msra.mxu0 0.0
    %456 = vmatprep.subr.mxu0 0.0
    %457 = vmatpush1.msra.mxu0 0.0
    %458 = vmatprep.subr.mxu0 0.0
    %459 = vmatpush1.msra.mxu0 0.0
    %460 = vmatprep.subr.mxu0 0.0
    %461 = vmatpush1.msra.mxu0 0.0
    %462 = vmatprep.subr.mxu0 0.0
    %463 = vmatpush1.msra.mxu0 0.0
    %464 = vmatprep.subr.mxu0 0.0
    %465 = vmatpush1.msra.mxu0 0.0
    %466 = vmatprep.subr.mxu0 0.0
    %467 = vmatpush1.msra.mxu0 0.0
    %468 = vmatprep.subr.mxu0 0.0
    %469 = vmatpush1.msra.mxu0 0.0
    %470 = vmatprep.subr.mxu0 0.0
    %471 = vmatpush1.msra.mxu0 0.0
    %472 = vmatprep.subr.mxu0 0.0
    %473 = vmatpush1.msra.mxu0 0.0
    %474 = vmatprep.subr.mxu0 0.0
    %475 = vmatpush1.msra.mxu0 0.0
    %476 = vmatprep.subr.mxu0 0.0
    %477 = vmatpush1.msra.mxu0 0.0
    %478 = vmatprep.subr.mxu0 0.0
    %479 = vmatpush1.msra.mxu0 0.0
    %480 = vmatprep.subr.mxu0 0.0
    %481 = vmatpush1.msra.mxu0 0.0
    %482 = vmatprep.subr.mxu0 0.0
    %483 = vmatpush1.msra.mxu0 0.0
    %484 = vmatprep.subr.mxu0 0.0
    %485 = vmatpush1.msra.mxu0 0.0
    %486 = vmatprep.subr.mxu0 0.0
    %487 = vmatpush1.msra.mxu0 0.0
    %488 = vmatprep.subr.mxu0 0.0
    %489 = vmatpush1.msra.mxu0 0.0
    %490 = vmatprep.subr.mxu0 0.0
    %491 = vmatpush1.msra.mxu0 0.0
    %492 = vmatprep.subr.mxu0 0.0
    %493 = vmatpush1.msra.mxu0 0.0
    %494 = vmatprep.subr.mxu0 0.0
    %495 = vmatpush1.msra.mxu0 0.0
    %496 = vmatprep.subr.mxu0 0.0
    %497 = vmatpush1.msra.mxu0 0.0
    %498 = vmatprep.mubr.f32.mxu0 0.0
    %499 = vmatmul.mubr.f32.gmra.mrb[0].mxu0 %v423
    %v500 = vpop.f32.mrb[0].mxu0
    %v501 = vadd.f32 %v421, %v500
    %v502 = vpop.f32.mrb[0].mxu0
    %503 = vmatprep.mubr.f32.mxu0 0.0
    %504 = vmatmul.mubr.f32.gmra.mrb[0].mxu0 %v426
    %v505 = vpop.f32.mrb[0].mxu0
    %v506 = vadd.f32 %v421, %v505
    %v507 = vpop.f32.mrb[0].mxu0
    %508 = vmatprep.mubr.f32.mxu0 0.0
    %509 = vmatmul.mubr.f32.gmra.mrb[0].mxu0 %v429
    %v510 = vpop.f32.mrb[0].mxu0
    %v511 = vadd.f32 %v421, %v510
    %v512 = vpop.f32.mrb[0].mxu0
    %513 = vmatprep.mubr.f32.mxu0 0.0
    %514 = vmatmul.mubr.f32.gmra.mrb[0].mxu0 %v432
    %v515 = vpop.f32.mrb[0].mxu0
    %v516 = vadd.f32 %v421, %v515
    %v517 = vpop.f32.mrb[0].mxu0
    %518 = vdwg.mxu0
    %v519 = vadd.f32 %v141, %v501
    %v520 = vadd.f32 %v146, %v506
    %v521 = vadd.f32 %v151, %v511
    %v522 = vadd.f32 %v156, %v516
    %v523 = vrot.slane %v501, 6
    %v524 = vrot.slane %v506, 6
    %v525 = vrot.slane %v511, 6
    %v526 = vrot.slane %v516, 6
    %vm527 = vcmp.lt.s32.totalorder %v46, 2
    %v528 = vsel %vm527, %v525, %v526
    %v529 = vsel %vm527, %v524, %v525
    %v530 = vsel %vm527, %v523, %v524
    %v531 = vsel %vm527, %v526, %v523
    %v532 = vadd.s32 %v50, 4294967294
    %v533 = vadd.s32 %v51, 4294967294
    %v534 = vadd.s32 %v52, 4294967294
    %v535 = vadd.s32 %v53, 4294967294
    %vm536 = vcmp.ge.s32.totalorder %v532, 0
    %vm537 = vcmp.ge.s32.totalorder %v533, 0
    %vm538 = vcmp.ge.s32.totalorder %v534, 0
    %vm539 = vcmp.ge.s32.totalorder %v535, 0
    %vm540 = vcmp.lt.s32.totalorder %v532, 16
    %vm541 = vcmp.lt.s32.totalorder %v533, 16
    %vm542 = vcmp.lt.s32.totalorder %v534, 16
    %vm543 = vcmp.lt.s32.totalorder %v535, 16
    %vm544 = vmand %vm536, %vm540
    %vm545 = vmand %vm537, %vm541
    %vm546 = vmand %vm538, %vm542
    %vm547 = vmand %vm539, %vm543
    %v548 = vsel %vm544, 1, 0
    %v549 = vsel %vm545, 1, 0
    %v550 = vsel %vm546, 1, 0
    %v551 = vsel %vm547, 1, 0
    %v552 = vcvt.s32.f32 %v548
    %v553 = vcvt.s32.f32 %v549
    %v554 = vcvt.s32.f32 %v550
    %v555 = vcvt.s32.f32 %v551
    %v556 = vmul.f32 %v531, %v552
    %v557 = vmul.f32 %v530, %v553
    %v558 = vmul.f32 %v529, %v554
    %v559 = vmul.f32 %v528, %v555
    %v560 = vrot.slane %v501, 2
    %v561 = vrot.slane %v506, 2
    %v562 = vrot.slane %v511, 2
    %v563 = vrot.slane %v516, 2
    %vm564 = vcmp.lt.s32.totalorder %v46, 6
    %v565 = vsel %vm564, %v562, %v563
    %v566 = vsel %vm564, %v561, %v562
    %v567 = vsel %vm564, %v560, %v561
    %v568 = vsel %vm564, %v563, %v560
    %v569 = vadd.s32 %v50, 2
    %v570 = vadd.s32 %v51, 2
    %v571 = vadd.s32 %v52, 2
    %v572 = vadd.s32 %v53, 2
    %vm573 = vcmp.ge.s32.totalorder %v569, 0
    %vm574 = vcmp.ge.s32.totalorder %v570, 0
    %vm575 = vcmp.ge.s32.totalorder %v571, 0
    %vm576 = vcmp.ge.s32.totalorder %v572, 0
    %vm577 = vcmp.lt.s32.totalorder %v569, 16
    %vm578 = vcmp.lt.s32.totalorder %v570, 16
    %vm579 = vcmp.lt.s32.totalorder %v571, 16
    %vm580 = vcmp.lt.s32.totalorder %v572, 16
    %vm581 = vmand %vm573, %vm577
    %vm582 = vmand %vm574, %vm578
    %vm583 = vmand %vm575, %vm579
    %vm584 = vmand %vm576, %vm580
    %v585 = vsel %vm581, 1, 0
    %v586 = vsel %vm582, 1, 0
    %v587 = vsel %vm583, 1, 0
    %v588 = vsel %vm584, 1, 0
    %v589 = vcvt.s32.f32 %v585
    %v590 = vcvt.s32.f32 %v586
    %v591 = vcvt.s32.f32 %v587
    %v592 = vcvt.s32.f32 %v588
    %v593 = vmul.f32 %v567, %v589
    %v594 = vmul.f32 %v566, %v590
    %v595 = vmul.f32 %v565, %v591
    %v596 = vmul.f32 %v568, %v592
    %601 = vrot.lane.b32.xlu0 %v501, 16
    %v602 = vpop.permute.xlu0 %601
    %603 = vrot.lane.b32.xlu0 %v506, 16
    %v604 = vpop.permute.xlu0 %603
    %605 = vrot.lane.b32.xlu0 %v511, 16
    %v606 = vpop.permute.xlu0 %605
    %607 = vrot.lane.b32.xlu0 %v516, 16
    %v608 = vpop.permute.xlu0 %607
    %617 = vrot.lane.b32.xlu0 %v593, 32
    %v618 = vpop.permute.xlu0 %617
    %619 = vrot.lane.b32.xlu0 %v594, 32
    %v620 = vpop.permute.xlu0 %619
    %621 = vrot.lane.b32.xlu0 %v595, 32
    %v622 = vpop.permute.xlu0 %621
    %623 = vrot.lane.b32.xlu0 %v596, 32
    %v624 = vpop.permute.xlu0 %623
    %v629 = vsel %vm61, %v556, %v602
    %v630 = vsel %vm61, %v557, %v604
    %v631 = vsel %vm61, %v558, %v606
    %v632 = vsel %vm61, %v559, %v608
    %v633 = vsel %vm269, %v629, %v618
    %v634 = vsel %vm269, %v630, %v620
    %v635 = vsel %vm269, %v631, %v622
    %v636 = vsel %vm269, %v632, %v624
    %v637 = vld [vmem:[#allocation2 + $0xd0] sm:$0xff]
    %v638 = vld [vmem:[#allocation2 + $0xe0] sm:$0xff]
    %v639 = vld [vmem:[#allocation2 + $0xf0] sm:$0xff]
    %v640 = vld [vmem:[#allocation2 + $0x100] sm:$0xff]
    %v641 = vld [vmem:[#allocation2 + $0x110] sm:$0xff]
    %v642 = vld [vmem:[#allocation2 + $0x120] sm:$0xff]
    %v643 = vld [vmem:[#allocation2 + $0x130] ss:$0 sm:$0xff]
    %v645 = vsel %vm281, %v633, 0
    %v648 = vsel %vm281, %v634, 0
    %v651 = vsel %vm281, %v635, 0
    %v654 = vsel %vm281, %v636, 0
    %656 = vmatprep.subr.mxu0 0.0
    %657 = vmatpush1.msra.mxu0 %v637
    %658 = vmatprep.subr.mxu0 0.0
    %659 = vmatpush1.msra.mxu0 %v638
    %660 = vmatprep.subr.mxu0 0.0
    %661 = vmatpush1.msra.mxu0 %v639
    %662 = vmatprep.subr.mxu0 0.0
    %663 = vmatpush1.msra.mxu0 %v640
    %664 = vmatprep.subr.mxu0 0.0
    %665 = vmatpush1.msra.mxu0 %v641
    %666 = vmatprep.subr.mxu0 0.0
    %667 = vmatpush1.msra.mxu0 %v642
    %668 = vmatprep.subr.mxu0 0.0
    %669 = vmatpush1.msra.mxu0 0.0
    %670 = vmatprep.subr.mxu0 0.0
    %671 = vmatpush1.msra.mxu0 0.0
    %672 = vmatprep.subr.mxu0 0.0
    %673 = vmatpush1.msra.mxu0 0.0
    %674 = vmatprep.subr.mxu0 0.0
    %675 = vmatpush1.msra.mxu0 0.0
    %676 = vmatprep.subr.mxu0 0.0
    %677 = vmatpush1.msra.mxu0 0.0
    %678 = vmatprep.subr.mxu0 0.0
    %679 = vmatpush1.msra.mxu0 0.0
    %680 = vmatprep.subr.mxu0 0.0
    %681 = vmatpush1.msra.mxu0 0.0
    %682 = vmatprep.subr.mxu0 0.0
    %683 = vmatpush1.msra.mxu0 0.0
    %684 = vmatprep.subr.mxu0 0.0
    %685 = vmatpush1.msra.mxu0 0.0
    %686 = vmatprep.subr.mxu0 0.0
    %687 = vmatpush1.msra.mxu0 0.0
    %688 = vmatprep.subr.mxu0 0.0
    %689 = vmatpush1.msra.mxu0 0.0
    %690 = vmatprep.subr.mxu0 0.0
    %691 = vmatpush1.msra.mxu0 0.0
    %692 = vmatprep.subr.mxu0 0.0
    %693 = vmatpush1.msra.mxu0 0.0
    %694 = vmatprep.subr.mxu0 0.0
    %695 = vmatpush1.msra.mxu0 0.0
    %696 = vmatprep.subr.mxu0 0.0
    %697 = vmatpush1.msra.mxu0 0.0
    %698 = vmatprep.subr.mxu0 0.0
    %699 = vmatpush1.msra.mxu0 0.0
    %700 = vmatprep.subr.mxu0 0.0
    %701 = vmatpush1.msra.mxu0 0.0
    %702 = vmatprep.subr.mxu0 0.0
    %703 = vmatpush1.msra.mxu0 0.0
    %704 = vmatprep.subr.mxu0 0.0
    %705 = vmatpush1.msra.mxu0 0.0
    %706 = vmatprep.subr.mxu0 0.0
    %707 = vmatpush1.msra.mxu0 0.0
    %708 = vmatprep.subr.mxu0 0.0
    %709 = vmatpush1.msra.mxu0 0.0
    %710 = vmatprep.subr.mxu0 0.0
    %711 = vmatpush1.msra.mxu0 0.0
    %712 = vmatprep.subr.mxu0 0.0
    %713 = vmatpush1.msra.mxu0 0.0
    %714 = vmatprep.subr.mxu0 0.0
    %715 = vmatpush1.msra.mxu0 0.0
    %716 = vmatprep.subr.mxu0 0.0
    %717 = vmatpush1.msra.mxu0 0.0
    %718 = vmatprep.subr.mxu0 0.0
    %719 = vmatpush1.msra.mxu0 0.0
    %720 = vmatprep.mubr.f32.mxu0 0.0
    %721 = vmatmul.mubr.f32.gmra.mrb[0].mxu0 %v645
    %v722 = vpop.f32.mrb[0].mxu0
    %v723 = vadd.f32 %v643, %v722
    %v724 = vpop.f32.mrb[0].mxu0
    %725 = vmatprep.mubr.f32.mxu0 0.0
    %726 = vmatmul.mubr.f32.gmra.mrb[0].mxu0 %v648
    %v727 = vpop.f32.mrb[0].mxu0
    %v728 = vadd.f32 %v643, %v727
    %v729 = vpop.f32.mrb[0].mxu0
    %730 = vmatprep.mubr.f32.mxu0 0.0
    %731 = vmatmul.mubr.f32.gmra.mrb[0].mxu0 %v651
    %v732 = vpop.f32.mrb[0].mxu0
    %v733 = vadd.f32 %v643, %v732
    %v734 = vpop.f32.mrb[0].mxu0
    %735 = vmatprep.mubr.f32.mxu0 0.0
    %736 = vmatmul.mubr.f32.gmra.mrb[0].mxu0 %v654
    %v737 = vpop.f32.mrb[0].mxu0
    %v738 = vadd.f32 %v643, %v737
    %v739 = vpop.f32.mrb[0].mxu0
    %740 = vdwg.mxu0
    %v741 = vtanh.pop %v723
    %v742 = vtanh.pop %v728
    %v743 = vtanh.pop %v733
    %v744 = vtanh.pop %v738
    %v745 = vmul.f32 %v723, 0.5
    %v746 = vmul.f32 %v728, 0.5
    %v747 = vmul.f32 %v733, 0.5
    %v748 = vmul.f32 %v738, 0.5
    %v749 = vtanh.pop %v745
    %v750 = vtanh.pop %v746
    %v751 = vtanh.pop %v747
    %v752 = vtanh.pop %v748
    %v753 = vmul.f32 %v749, 0.5
    %v754 = vmul.f32 %v750, 0.5
    %v755 = vmul.f32 %v751, 0.5
    %v756 = vmul.f32 %v752, 0.5
    %v757 = vadd.f32 %v753, 0.5
    %v758 = vadd.f32 %v754, 0.5
    %v759 = vadd.f32 %v755, 0.5
    %v760 = vadd.f32 %v756, 0.5
    %765 = vrot.lane.b32.xlu0 %v757, 112
    %v766 = vpop.permute.xlu0 %765
    %767 = vrot.lane.b32.xlu0 %v758, 112
    %v768 = vpop.permute.xlu0 %767
    %769 = vrot.lane.b32.xlu0 %v759, 112
    %v770 = vpop.permute.xlu0 %769
    %771 = vrot.lane.b32.xlu0 %v760, 112
    %v772 = vpop.permute.xlu0 %771
    %v777 = vmul.f32 %v741, %v766
    %v778 = vmul.f32 %v742, %v768
    %v779 = vmul.f32 %v743, %v770
    %v780 = vmul.f32 %v744, %v772
    %v781 = vld [vmem:[#allocation2 + $0x140] sm:$0xff]
    %v782 = vld [vmem:[#allocation2 + $0x150] sm:$0xff]
    %v783 = vld [vmem:[#allocation2 + $0x160] ss:$0 sm:$0xff]
    %v785 = vsel %vm61, %v777, 0
    %v788 = vsel %vm61, %v778, 0
    %v791 = vsel %vm61, %v779, 0
    %v794 = vsel %vm61, %v780, 0
    %796 = vmatprep.subr.mxu0 0.0
    %797 = vmatpush1.msra.mxu0 %v781
    %798 = vmatprep.subr.mxu0 0.0
    %799 = vmatpush1.msra.mxu0 %v782
    %800 = vmatprep.subr.mxu0 0.0
    %801 = vmatpush1.msra.mxu0 0.0
    %802 = vmatprep.subr.mxu0 0.0
    %803 = vmatpush1.msra.mxu0 0.0
    %804 = vmatprep.subr.mxu0 0.0
    %805 = vmatpush1.msra.mxu0 0.0
    %806 = vmatprep.subr.mxu0 0.0
    %807 = vmatpush1.msra.mxu0 0.0
    %808 = vmatprep.subr.mxu0 0.0
    %809 = vmatpush1.msra.mxu0 0.0
    %810 = vmatprep.subr.mxu0 0.0
    %811 = vmatpush1.msra.mxu0 0.0
    %812 = vmatprep.subr.mxu0 0.0
    %813 = vmatpush1.msra.mxu0 0.0
    %814 = vmatprep.subr.mxu0 0.0
    %815 = vmatpush1.msra.mxu0 0.0
    %816 = vmatprep.subr.mxu0 0.0
    %817 = vmatpush1.msra.mxu0 0.0
    %818 = vmatprep.subr.mxu0 0.0
    %819 = vmatpush1.msra.mxu0 0.0
    %820 = vmatprep.subr.mxu0 0.0
    %821 = vmatpush1.msra.mxu0 0.0
    %822 = vmatprep.subr.mxu0 0.0
    %823 = vmatpush1.msra.mxu0 0.0
    %824 = vmatprep.subr.mxu0 0.0
    %825 = vmatpush1.msra.mxu0 0.0
    %826 = vmatprep.subr.mxu0 0.0
    %827 = vmatpush1.msra.mxu0 0.0
    %828 = vmatprep.subr.mxu0 0.0
    %829 = vmatpush1.msra.mxu0 0.0
    %830 = vmatprep.subr.mxu0 0.0
    %831 = vmatpush1.msra.mxu0 0.0
    %832 = vmatprep.subr.mxu0 0.0
    %833 = vmatpush1.msra.mxu0 0.0
    %834 = vmatprep.subr.mxu0 0.0
    %835 = vmatpush1.msra.mxu0 0.0
    %836 = vmatprep.subr.mxu0 0.0
    %837 = vmatpush1.msra.mxu0 0.0
    %838 = vmatprep.subr.mxu0 0.0
    %839 = vmatpush1.msra.mxu0 0.0
    %840 = vmatprep.subr.mxu0 0.0
    %841 = vmatpush1.msra.mxu0 0.0
    %842 = vmatprep.subr.mxu0 0.0
    %843 = vmatpush1.msra.mxu0 0.0
    %844 = vmatprep.subr.mxu0 0.0
    %845 = vmatpush1.msra.mxu0 0.0
    %846 = vmatprep.subr.mxu0 0.0
    %847 = vmatpush1.msra.mxu0 0.0
    %848 = vmatprep.subr.mxu0 0.0
    %849 = vmatpush1.msra.mxu0 0.0
    %850 = vmatprep.subr.mxu0 0.0
    %851 = vmatpush1.msra.mxu0 0.0
    %852 = vmatprep.subr.mxu0 0.0
    %853 = vmatpush1.msra.mxu0 0.0
    %854 = vmatprep.subr.mxu0 0.0
    %855 = vmatpush1.msra.mxu0 0.0
    %856 = vmatprep.subr.mxu0 0.0
    %857 = vmatpush1.msra.mxu0 0.0
    %858 = vmatprep.subr.mxu0 0.0
    %859 = vmatpush1.msra.mxu0 0.0
    %860 = vmatprep.mubr.f32.mxu0 0.0
    %861 = vmatmul.mubr.f32.gmra.mrb[0].mxu0 %v785
    %v862 = vpop.f32.mrb[0].mxu0
    %v863 = vadd.f32 %v783, %v862
    %v864 = vpop.f32.mrb[0].mxu0
    %865 = vmatprep.mubr.f32.mxu0 0.0
    %866 = vmatmul.mubr.f32.gmra.mrb[0].mxu0 %v788
    %v867 = vpop.f32.mrb[0].mxu0
    %v868 = vadd.f32 %v783, %v867
    %v869 = vpop.f32.mrb[0].mxu0
    %870 = vmatprep.mubr.f32.mxu0 0.0
    %871 = vmatmul.mubr.f32.gmra.mrb[0].mxu0 %v791
    %v872 = vpop.f32.mrb[0].mxu0
    %v873 = vadd.f32 %v783, %v872
    %v874 = vpop.f32.mrb[0].mxu0
    %875 = vmatprep.mubr.f32.mxu0 0.0
    %876 = vmatmul.mubr.f32.gmra.mrb[0].mxu0 %v794
    %v877 = vpop.f32.mrb[0].mxu0
    %v878 = vadd.f32 %v783, %v877
    %v879 = vpop.f32.mrb[0].mxu0
    %880 = vdwg.mxu0
    %v881 = vadd.f32 %v519, %v863
    %v882 = vadd.f32 %v520, %v868
    %v883 = vadd.f32 %v521, %v873
    %v884 = vadd.f32 %v522, %v878
    %v885 = vld [vmem:[#allocation2 + $0x170] sm:$0x3]
    %v886 = vlaneseq
    %v887 = vshrl.u32 %v886, 7
    %v888 = vsub.s32 0, %v887
    %v889 = vrot.slane %v885, %v888
    %v890 = vmul.f32 %v881, %v889
    %v891 = vmul.f32 %v882, %v889
    %v892 = vmul.f32 %v883, %v889
    %v893 = vmul.f32 %v884, %v889
    %v894 = vlaneseq
    %v895 = vshrl.u32 %v894, 7
    %v896 = vsub.s32 1, %v895
    %v897 = vrot.slane %v885, %v896
    %v898 = vadd.f32 %v890, %v897
    %v899 = vadd.f32 %v891, %v897
    %v900 = vadd.f32 %v892, %v897
    %v901 = vadd.f32 %v893, %v897
    %v902 = vld [vmem:[#allocation2 + $0x180] sm:$0xff]
    %v903 = vld [vmem:[#allocation2 + $0x190] sm:$0xff]
    %v904 = vld [vmem:[#allocation2 + $0x1a0] ss:$0 sm:$0xff]
    %v906 = vsel %vm61, %v898, 0
    %v909 = vsel %vm61, %v899, 0
    %v912 = vsel %vm61, %v900, 0
    %v915 = vsel %vm61, %v901, 0
    %917 = vmatprep.subr.mxu0 0.0
    %918 = vmatpush1.msra.mxu0 %v902
    %919 = vmatprep.subr.mxu0 0.0
    %920 = vmatpush1.msra.mxu0 %v903
    %921 = vmatprep.subr.mxu0 0.0
    %922 = vmatpush1.msra.mxu0 0.0
    %923 = vmatprep.subr.mxu0 0.0
    %924 = vmatpush1.msra.mxu0 0.0
    %925 = vmatprep.subr.mxu0 0.0
    %926 = vmatpush1.msra.mxu0 0.0
    %927 = vmatprep.subr.mxu0 0.0
    %928 = vmatpush1.msra.mxu0 0.0
    %929 = vmatprep.subr.mxu0 0.0
    %930 = vmatpush1.msra.mxu0 0.0
    %931 = vmatprep.subr.mxu0 0.0
    %932 = vmatpush1.msra.mxu0 0.0
    %933 = vmatprep.subr.mxu0 0.0
    %934 = vmatpush1.msra.mxu0 0.0
    %935 = vmatprep.subr.mxu0 0.0
    %936 = vmatpush1.msra.mxu0 0.0
    %937 = vmatprep.subr.mxu0 0.0
    %938 = vmatpush1.msra.mxu0 0.0
    %939 = vmatprep.subr.mxu0 0.0
    %940 = vmatpush1.msra.mxu0 0.0
    %941 = vmatprep.subr.mxu0 0.0
    %942 = vmatpush1.msra.mxu0 0.0
    %943 = vmatprep.subr.mxu0 0.0
    %944 = vmatpush1.msra.mxu0 0.0
    %945 = vmatprep.subr.mxu0 0.0
    %946 = vmatpush1.msra.mxu0 0.0
    %947 = vmatprep.subr.mxu0 0.0
    %948 = vmatpush1.msra.mxu0 0.0
    %949 = vmatprep.subr.mxu0 0.0
    %950 = vmatpush1.msra.mxu0 0.0
    %951 = vmatprep.subr.mxu0 0.0
    %952 = vmatpush1.msra.mxu0 0.0
    %953 = vmatprep.subr.mxu0 0.0
    %954 = vmatpush1.msra.mxu0 0.0
    %955 = vmatprep.subr.mxu0 0.0
    %956 = vmatpush1.msra.mxu0 0.0
    %957 = vmatprep.subr.mxu0 0.0
    %958 = vmatpush1.msra.mxu0 0.0
    %959 = vmatprep.subr.mxu0 0.0
    %960 = vmatpush1.msra.mxu0 0.0
    %961 = vmatprep.subr.mxu0 0.0
    %962 = vmatpush1.msra.mxu0 0.0
    %963 = vmatprep.subr.mxu0 0.0
    %964 = vmatpush1.msra.mxu0 0.0
    %965 = vmatprep.subr.mxu0 0.0
    %966 = vmatpush1.msra.mxu0 0.0
    %967 = vmatprep.subr.mxu0 0.0
    %968 = vmatpush1.msra.mxu0 0.0
    %969 = vmatprep.subr.mxu0 0.0
    %970 = vmatpush1.msra.mxu0 0.0
    %971 = vmatprep.subr.mxu0 0.0
    %972 = vmatpush1.msra.mxu0 0.0
    %973 = vmatprep.subr.mxu0 0.0
    %974 = vmatpush1.msra.mxu0 0.0
    %975 = vmatprep.subr.mxu0 0.0
    %976 = vmatpush1.msra.mxu0 0.0
    %977 = vmatprep.subr.mxu0 0.0
    %978 = vmatpush1.msra.mxu0 0.0
    %979 = vmatprep.subr.mxu0 0.0
    %980 = vmatpush1.msra.mxu0 0.0
    %981 = vmatprep.mubr.f32.mxu0 0.0
    %982 = vmatmul.mubr.f32.gmra.mrb[0].mxu0 %v906
    %v983 = vpop.f32.mrb[0].mxu0
    %v984 = vadd.f32 %v904, %v983
    %v985 = vpop.f32.mrb[0].mxu0
    %986 = vmatprep.mubr.f32.mxu0 0.0
    %987 = vmatmul.mubr.f32.gmra.mrb[0].mxu0 %v909
    %v988 = vpop.f32.mrb[0].mxu0
    %v989 = vadd.f32 %v904, %v988
    %v990 = vpop.f32.mrb[0].mxu0
    %991 = vmatprep.mubr.f32.mxu0 0.0
    %992 = vmatmul.mubr.f32.gmra.mrb[0].mxu0 %v912
    %v993 = vpop.f32.mrb[0].mxu0
    %v994 = vadd.f32 %v904, %v993
    %v995 = vpop.f32.mrb[0].mxu0
    %996 = vmatprep.mubr.f32.mxu0 0.0
    %997 = vmatmul.mubr.f32.gmra.mrb[0].mxu0 %v915
    %v998 = vpop.f32.mrb[0].mxu0
    %v999 = vadd.f32 %v904, %v998
    %v1000 = vpop.f32.mrb[0].mxu0
    %1001 = vdwg.mxu0
    %v1002 = vrot.slane %v984, 7
    %v1003 = vrot.slane %v989, 7
    %v1004 = vrot.slane %v994, 7
    %v1005 = vrot.slane %v999, 7
    %v1006 = vsel %vm163, %v1004, %v1005
    %v1007 = vsel %vm163, %v1003, %v1004
    %v1008 = vsel %vm163, %v1002, %v1003
    %v1009 = vsel %vm163, %v1005, %v1002
    %v1010 = vmul.f32 %v1009, %v188
    %v1011 = vmul.f32 %v1008, %v189
    %v1012 = vmul.f32 %v1007, %v190
    %v1013 = vmul.f32 %v1006, %v191
    %v1014 = vrot.slane %v984, 1
    %v1015 = vrot.slane %v989, 1
    %v1016 = vrot.slane %v994, 1
    %v1017 = vrot.slane %v999, 1
    %v1018 = vsel %vm200, %v1016, %v1017
    %v1019 = vsel %vm200, %v1015, %v1016
    %v1020 = vsel %vm200, %v1014, %v1015
    %v1021 = vsel %vm200, %v1017, %v1014
    %v1022 = vmul.f32 %v1020, %v225
    %v1023 = vmul.f32 %v1019, %v226
    %v1024 = vmul.f32 %v1018, %v227
    %v1025 = vmul.f32 %v1021, %v228
    %1030 = vrot.lane.b32.xlu0 %v984, 16
    %v1031 = vpop.permute.xlu0 %1030
    %1032 = vrot.lane.b32.xlu0 %v989, 16
    %v1033 = vpop.permute.xlu0 %1032
    %1034 = vrot.lane.b32.xlu0 %v994, 16
    %v1035 = vpop.permute.xlu0 %1034
    %1036 = vrot.lane.b32.xlu0 %v999, 16
    %v1037 = vpop.permute.xlu0 %1036
    %1046 = vrot.lane.b32.xlu0 %v1022, 32
    %v1047 = vpop.permute.xlu0 %1046
    %1048 = vrot.lane.b32.xlu0 %v1023, 32
    %v1049 = vpop.permute.xlu0 %1048
    %1050 = vrot.lane.b32.xlu0 %v1024, 32
    %v1051 = vpop.permute.xlu0 %1050
    %1052 = vrot.lane.b32.xlu0 %v1025, 32
    %v1053 = vpop.permute.xlu0 %1052
    %v1058 = vsel %vm61, %v1010, %v1031
    %v1059 = vsel %vm61, %v1011, %v1033
    %v1060 = vsel %vm61, %v1012, %v1035
    %v1061 = vsel %vm61, %v1013, %v1037
    %v1062 = vsel %vm269, %v1058, %v1047
    %v1063 = vsel %vm269, %v1059, %v1049
    %v1064 = vsel %vm269, %v1060, %v1051
    %v1065 = vsel %vm269, %v1061, %v1053
    %v1066 = vld [vmem:[#allocation2 + $0x1b0] sm:$0xff]
    %v1067 = vld [vmem:[#allocation2 + $0x1c0] sm:$0xff]
    %v1068 = vld [vmem:[#allocation2 + $0x1d0] sm:$0xff]
    %v1069 = vld [vmem:[#allocation2 + $0x1e0] sm:$0xff]
    %v1070 = vld [vmem:[#allocation2 + $0x1f0] sm:$0xff]
    %v1071 = vld [vmem:[#allocation2 + $0x200] sm:$0xff]
    %v1072 = vld [vmem:[#allocation2 + $0x210] ss:$0 sm:$0xff]
    %v1074 = vsel %vm281, %v1062, 0
    %v1077 = vsel %vm281, %v1063, 0
    %v1080 = vsel %vm281, %v1064, 0
    %v1083 = vsel %vm281, %v1065, 0
    %1085 = vmatprep.subr.mxu0 0.0
    %1086 = vmatpush1.msra.mxu0 %v1066
    %1087 = vmatprep.subr.mxu0 0.0
    %1088 = vmatpush1.msra.mxu0 %v1067
    %1089 = vmatprep.subr.mxu0 0.0
    %1090 = vmatpush1.msra.mxu0 %v1068
    %1091 = vmatprep.subr.mxu0 0.0
    %1092 = vmatpush1.msra.mxu0 %v1069
    %1093 = vmatprep.subr.mxu0 0.0
    %1094 = vmatpush1.msra.mxu0 %v1070
    %1095 = vmatprep.subr.mxu0 0.0
    %1096 = vmatpush1.msra.mxu0 %v1071
    %1097 = vmatprep.subr.mxu0 0.0
    %1098 = vmatpush1.msra.mxu0 0.0
    %1099 = vmatprep.subr.mxu0 0.0
    %1100 = vmatpush1.msra.mxu0 0.0
    %1101 = vmatprep.subr.mxu0 0.0
    %1102 = vmatpush1.msra.mxu0 0.0
    %1103 = vmatprep.subr.mxu0 0.0
    %1104 = vmatpush1.msra.mxu0 0.0
    %1105 = vmatprep.subr.mxu0 0.0
    %1106 = vmatpush1.msra.mxu0 0.0
    %1107 = vmatprep.subr.mxu0 0.0
    %1108 = vmatpush1.msra.mxu0 0.0
    %1109 = vmatprep.subr.mxu0 0.0
    %1110 = vmatpush1.msra.mxu0 0.0
    %1111 = vmatprep.subr.mxu0 0.0
    %1112 = vmatpush1.msra.mxu0 0.0
    %1113 = vmatprep.subr.mxu0 0.0
    %1114 = vmatpush1.msra.mxu0 0.0
    %1115 = vmatprep.subr.mxu0 0.0
    %1116 = vmatpush1.msra.mxu0 0.0
    %1117 = vmatprep.subr.mxu0 0.0
    %1118 = vmatpush1.msra.mxu0 0.0
    %1119 = vmatprep.subr.mxu0 0.0
    %1120 = vmatpush1.msra.mxu0 0.0
    %1121 = vmatprep.subr.mxu0 0.0
    %1122 = vmatpush1.msra.mxu0 0.0
    %1123 = vmatprep.subr.mxu0 0.0
    %1124 = vmatpush1.msra.mxu0 0.0
    %1125 = vmatprep.subr.mxu0 0.0
    %1126 = vmatpush1.msra.mxu0 0.0
    %1127 = vmatprep.subr.mxu0 0.0
    %1128 = vmatpush1.msra.mxu0 0.0
    %1129 = vmatprep.subr.mxu0 0.0
    %1130 = vmatpush1.msra.mxu0 0.0
    %1131 = vmatprep.subr.mxu0 0.0
    %1132 = vmatpush1.msra.mxu0 0.0
    %1133 = vmatprep.subr.mxu0 0.0
    %1134 = vmatpush1.msra.mxu0 0.0
    %1135 = vmatprep.subr.mxu0 0.0
    %1136 = vmatpush1.msra.mxu0 0.0
    %1137 = vmatprep.subr.mxu0 0.0
    %1138 = vmatpush1.msra.mxu0 0.0
    %1139 = vmatprep.subr.mxu0 0.0
    %1140 = vmatpush1.msra.mxu0 0.0
    %1141 = vmatprep.subr.mxu0 0.0
    %1142 = vmatpush1.msra.mxu0 0.0
    %1143 = vmatprep.subr.mxu0 0.0
    %1144 = vmatpush1.msra.mxu0 0.0
    %1145 = vmatprep.subr.mxu0 0.0
    %1146 = vmatpush1.msra.mxu0 0.0
    %1147 = vmatprep.subr.mxu0 0.0
    %1148 = vmatpush1.msra.mxu0 0.0
    %1149 = vmatprep.mubr.f32.mxu0 0.0
    %1150 = vmatmul.mubr.f32.gmra.mrb[0].mxu0 %v1074
    %v1151 = vpop.f32.mrb[0].mxu0
    %v1152 = vadd.f32 %v1072, %v1151
    %v1153 = vpop.f32.mrb[0].mxu0
    %1154 = vmatprep.mubr.f32.mxu0 0.0
    %1155 = vmatmul.mubr.f32.gmra.mrb[0].mxu0 %v1077
    %v1156 = vpop.f32.mrb[0].mxu0
    %v1157 = vadd.f32 %v1072, %v1156
    %v1158 = vpop.f32.mrb[0].mxu0
    %1159 = vmatprep.mubr.f32.mxu0 0.0
    %1160 = vmatmul.mubr.f32.gmra.mrb[0].mxu0 %v1080
    %v1161 = vpop.f32.mrb[0].mxu0
    %v1162 = vadd.f32 %v1072, %v1161
    %v1163 = vpop.f32.mrb[0].mxu0
    %1164 = vmatprep.mubr.f32.mxu0 0.0
    %1165 = vmatmul.mubr.f32.gmra.mrb[0].mxu0 %v1083
    %v1166 = vpop.f32.mrb[0].mxu0
    %v1167 = vadd.f32 %v1072, %v1166
    %v1168 = vpop.f32.mrb[0].mxu0
    %1169 = vdwg.mxu0
    %v1170 = vtanh.pop %v1152
    %v1171 = vtanh.pop %v1157
    %v1172 = vtanh.pop %v1162
    %v1173 = vtanh.pop %v1167
    %v1174 = vmul.f32 %v1152, 0.5
    %v1175 = vmul.f32 %v1157, 0.5
    %v1176 = vmul.f32 %v1162, 0.5
    %v1177 = vmul.f32 %v1167, 0.5
    %v1178 = vtanh.pop %v1174
    %v1179 = vtanh.pop %v1175
    %v1180 = vtanh.pop %v1176
    %v1181 = vtanh.pop %v1177
    %v1182 = vmul.f32 %v1178, 0.5
    %v1183 = vmul.f32 %v1179, 0.5
    %v1184 = vmul.f32 %v1180, 0.5
    %v1185 = vmul.f32 %v1181, 0.5
    %v1186 = vadd.f32 %v1182, 0.5
    %v1187 = vadd.f32 %v1183, 0.5
    %v1188 = vadd.f32 %v1184, 0.5
    %v1189 = vadd.f32 %v1185, 0.5
    %1194 = vrot.lane.b32.xlu0 %v1186, 112
    %v1195 = vpop.permute.xlu0 %1194
    %1196 = vrot.lane.b32.xlu0 %v1187, 112
    %v1197 = vpop.permute.xlu0 %1196
    %1198 = vrot.lane.b32.xlu0 %v1188, 112
    %v1199 = vpop.permute.xlu0 %1198
    %1200 = vrot.lane.b32.xlu0 %v1189, 112
    %v1201 = vpop.permute.xlu0 %1200
    %v1206 = vmul.f32 %v1170, %v1195
    %v1207 = vmul.f32 %v1171, %v1197
    %v1208 = vmul.f32 %v1172, %v1199
    %v1209 = vmul.f32 %v1173, %v1201
    %v1210 = vld [vmem:[#allocation2 + $0x220] sm:$0xff]
    %v1211 = vld [vmem:[#allocation2 + $0x230] sm:$0xff]
    %v1212 = vld [vmem:[#allocation2 + $0x240] ss:$0 sm:$0xff]
    %v1214 = vsel %vm61, %v1206, 0
    %v1217 = vsel %vm61, %v1207, 0
    %v1220 = vsel %vm61, %v1208, 0
    %v1223 = vsel %vm61, %v1209, 0
    %1225 = vmatprep.subr.mxu0 0.0
    %1226 = vmatpush1.msra.mxu0 %v1210
    %1227 = vmatprep.subr.mxu0 0.0
    %1228 = vmatpush1.msra.mxu0 %v1211
    %1229 = vmatprep.subr.mxu0 0.0
    %1230 = vmatpush1.msra.mxu0 0.0
    %1231 = vmatprep.subr.mxu0 0.0
    %1232 = vmatpush1.msra.mxu0 0.0
    %1233 = vmatprep.subr.mxu0 0.0
    %1234 = vmatpush1.msra.mxu0 0.0
    %1235 = vmatprep.subr.mxu0 0.0
    %1236 = vmatpush1.msra.mxu0 0.0
    %1237 = vmatprep.subr.mxu0 0.0
    %1238 = vmatpush1.msra.mxu0 0.0
    %1239 = vmatprep.subr.mxu0 0.0
    %1240 = vmatpush1.msra.mxu0 0.0
    %1241 = vmatprep.subr.mxu0 0.0
    %1242 = vmatpush1.msra.mxu0 0.0
    %1243 = vmatprep.subr.mxu0 0.0
    %1244 = vmatpush1.msra.mxu0 0.0
    %1245 = vmatprep.subr.mxu0 0.0
    %1246 = vmatpush1.msra.mxu0 0.0
    %1247 = vmatprep.subr.mxu0 0.0
    %1248 = vmatpush1.msra.mxu0 0.0
    %1249 = vmatprep.subr.mxu0 0.0
    %1250 = vmatpush1.msra.mxu0 0.0
    %1251 = vmatprep.subr.mxu0 0.0
    %1252 = vmatpush1.msra.mxu0 0.0
    %1253 = vmatprep.subr.mxu0 0.0
    %1254 = vmatpush1.msra.mxu0 0.0
    %1255 = vmatprep.subr.mxu0 0.0
    %1256 = vmatpush1.msra.mxu0 0.0
    %1257 = vmatprep.subr.mxu0 0.0
    %1258 = vmatpush1.msra.mxu0 0.0
    %1259 = vmatprep.subr.mxu0 0.0
    %1260 = vmatpush1.msra.mxu0 0.0
    %1261 = vmatprep.subr.mxu0 0.0
    %1262 = vmatpush1.msra.mxu0 0.0
    %1263 = vmatprep.subr.mxu0 0.0
    %1264 = vmatpush1.msra.mxu0 0.0
    %1265 = vmatprep.subr.mxu0 0.0
    %1266 = vmatpush1.msra.mxu0 0.0
    %1267 = vmatprep.subr.mxu0 0.0
    %1268 = vmatpush1.msra.mxu0 0.0
    %1269 = vmatprep.subr.mxu0 0.0
    %1270 = vmatpush1.msra.mxu0 0.0
    %1271 = vmatprep.subr.mxu0 0.0
    %1272 = vmatpush1.msra.mxu0 0.0
    %1273 = vmatprep.subr.mxu0 0.0
    %1274 = vmatpush1.msra.mxu0 0.0
    %1275 = vmatprep.subr.mxu0 0.0
    %1276 = vmatpush1.msra.mxu0 0.0
    %1277 = vmatprep.subr.mxu0 0.0
    %1278 = vmatpush1.msra.mxu0 0.0
    %1279 = vmatprep.subr.mxu0 0.0
    %1280 = vmatpush1.msra.mxu0 0.0
    %1281 = vmatprep.subr.mxu0 0.0
    %1282 = vmatpush1.msra.mxu0 0.0
    %1283 = vmatprep.subr.mxu0 0.0
    %1284 = vmatpush1.msra.mxu0 0.0
    %1285 = vmatprep.subr.mxu0 0.0
    %1286 = vmatpush1.msra.mxu0 0.0
    %1287 = vmatprep.subr.mxu0 0.0
    %1288 = vmatpush1.msra.mxu0 0.0
    %1289 = vmatprep.mubr.f32.mxu0 0.0
    %1290 = vmatmul.mubr.f32.gmra.mrb[0].mxu0 %v1214
    %v1291 = vpop.f32.mrb[0].mxu0
    %v1292 = vadd.f32 %v1212, %v1291
    %v1293 = vpop.f32.mrb[0].mxu0
    %1294 = vmatprep.mubr.f32.mxu0 0.0
    %1295 = vmatmul.mubr.f32.gmra.mrb[0].mxu0 %v1217
    %v1296 = vpop.f32.mrb[0].mxu0
    %v1297 = vadd.f32 %v1212, %v1296
    %v1298 = vpop.f32.mrb[0].mxu0
    %1299 = vmatprep.mubr.f32.mxu0 0.0
    %1300 = vmatmul.mubr.f32.gmra.mrb[0].mxu0 %v1220
    %v1301 = vpop.f32.mrb[0].mxu0
    %v1302 = vadd.f32 %v1212, %v1301
    %v1303 = vpop.f32.mrb[0].mxu0
    %1304 = vmatprep.mubr.f32.mxu0 0.0
    %1305 = vmatmul.mubr.f32.gmra.mrb[0].mxu0 %v1223
    %v1306 = vpop.f32.mrb[0].mxu0
    %v1307 = vadd.f32 %v1212, %v1306
    %v1308 = vpop.f32.mrb[0].mxu0
    %1309 = vdwg.mxu0
    %v1310 = vadd.f32 %v984, %v1292
    %v1311 = vadd.f32 %v989, %v1297
    %v1312 = vadd.f32 %v994, %v1302
    %v1313 = vadd.f32 %v999, %v1307
    %v1314 = vrot.slane %v1292, 6
    %v1315 = vrot.slane %v1297, 6
    %v1316 = vrot.slane %v1302, 6
    %v1317 = vrot.slane %v1307, 6
    %v1318 = vsel %vm527, %v1316, %v1317
    %v1319 = vsel %vm527, %v1315, %v1316
    %v1320 = vsel %vm527, %v1314, %v1315
    %v1321 = vsel %vm527, %v1317, %v1314
    %v1322 = vmul.f32 %v1321, %v552
    %v1323 = vmul.f32 %v1320, %v553
    %v1324 = vmul.f32 %v1319, %v554
    %v1325 = vmul.f32 %v1318, %v555
    %v1326 = vrot.slane %v1292, 2
    %v1327 = vrot.slane %v1297, 2
    %v1328 = vrot.slane %v1302, 2
    %v1329 = vrot.slane %v1307, 2
    %v1330 = vsel %vm564, %v1328, %v1329
    %v1331 = vsel %vm564, %v1327, %v1328
    %v1332 = vsel %vm564, %v1326, %v1327
    %v1333 = vsel %vm564, %v1329, %v1326
    %v1334 = vmul.f32 %v1332, %v589
    %v1335 = vmul.f32 %v1331, %v590
    %v1336 = vmul.f32 %v1330, %v591
    %v1337 = vmul.f32 %v1333, %v592
    %1342 = vrot.lane.b32.xlu0 %v1292, 16
    %v1343 = vpop.permute.xlu0 %1342
    %1344 = vrot.lane.b32.xlu0 %v1297, 16
    %v1345 = vpop.permute.xlu0 %1344
    %1346 = vrot.lane.b32.xlu0 %v1302, 16
    %v1347 = vpop.permute.xlu0 %1346
    %1348 = vrot.lane.b32.xlu0 %v1307, 16
    %v1349 = vpop.permute.xlu0 %1348
    %1358 = vrot.lane.b32.xlu0 %v1334, 32
    %v1359 = vpop.permute.xlu0 %1358
    %1360 = vrot.lane.b32.xlu0 %v1335, 32
    %v1361 = vpop.permute.xlu0 %1360
    %1362 = vrot.lane.b32.xlu0 %v1336, 32
    %v1363 = vpop.permute.xlu0 %1362
    %1364 = vrot.lane.b32.xlu0 %v1337, 32
    %v1365 = vpop.permute.xlu0 %1364
    %v1370 = vsel %vm61, %v1322, %v1343
    %v1371 = vsel %vm61, %v1323, %v1345
    %v1372 = vsel %vm61, %v1324, %v1347
    %v1373 = vsel %vm61, %v1325, %v1349
    %v1374 = vsel %vm269, %v1370, %v1359
    %v1375 = vsel %vm269, %v1371, %v1361
    %v1376 = vsel %vm269, %v1372, %v1363
    %v1377 = vsel %vm269, %v1373, %v1365
    %v1378 = vld [vmem:[#allocation2 + $0x250] sm:$0xff]
    %v1379 = vld [vmem:[#allocation2 + $0x260] sm:$0xff]
    %v1380 = vld [vmem:[#allocation2 + $0x270] sm:$0xff]
    %v1381 = vld [vmem:[#allocation2 + $0x280] sm:$0xff]
    %v1382 = vld [vmem:[#allocation2 + $0x290] sm:$0xff]
    %v1383 = vld [vmem:[#allocation2 + $0x2a0] sm:$0xff]
    %v1384 = vld [vmem:[#allocation2 + $0x2b0] ss:$0 sm:$0xff]
    %v1386 = vsel %vm281, %v1374, 0
    %v1389 = vsel %vm281, %v1375, 0
    %v1392 = vsel %vm281, %v1376, 0
    %v1395 = vsel %vm281, %v1377, 0
    %1397 = vmatprep.subr.mxu0 0.0
    %1398 = vmatpush1.msra.mxu0 %v1378
    %1399 = vmatprep.subr.mxu0 0.0
    %1400 = vmatpush1.msra.mxu0 %v1379
    %1401 = vmatprep.subr.mxu0 0.0
    %1402 = vmatpush1.msra.mxu0 %v1380
    %1403 = vmatprep.subr.mxu0 0.0
    %1404 = vmatpush1.msra.mxu0 %v1381
    %1405 = vmatprep.subr.mxu0 0.0
    %1406 = vmatpush1.msra.mxu0 %v1382
    %1407 = vmatprep.subr.mxu0 0.0
    %1408 = vmatpush1.msra.mxu0 %v1383
    %1409 = vmatprep.subr.mxu0 0.0
    %1410 = vmatpush1.msra.mxu0 0.0
    %1411 = vmatprep.subr.mxu0 0.0
    %1412 = vmatpush1.msra.mxu0 0.0
    %1413 = vmatprep.subr.mxu0 0.0
    %1414 = vmatpush1.msra.mxu0 0.0
    %1415 = vmatprep.subr.mxu0 0.0
    %1416 = vmatpush1.msra.mxu0 0.0
    %1417 = vmatprep.subr.mxu0 0.0
    %1418 = vmatpush1.msra.mxu0 0.0
    %1419 = vmatprep.subr.mxu0 0.0
    %1420 = vmatpush1.msra.mxu0 0.0
    %1421 = vmatprep.subr.mxu0 0.0
    %1422 = vmatpush1.msra.mxu0 0.0
    %1423 = vmatprep.subr.mxu0 0.0
    %1424 = vmatpush1.msra.mxu0 0.0
    %1425 = vmatprep.subr.mxu0 0.0
    %1426 = vmatpush1.msra.mxu0 0.0
    %1427 = vmatprep.subr.mxu0 0.0
    %1428 = vmatpush1.msra.mxu0 0.0
    %1429 = vmatprep.subr.mxu0 0.0
    %1430 = vmatpush1.msra.mxu0 0.0
    %1431 = vmatprep.subr.mxu0 0.0
    %1432 = vmatpush1.msra.mxu0 0.0
    %1433 = vmatprep.subr.mxu0 0.0
    %1434 = vmatpush1.msra.mxu0 0.0
    %1435 = vmatprep.subr.mxu0 0.0
    %1436 = vmatpush1.msra.mxu0 0.0
    %1437 = vmatprep.subr.mxu0 0.0
    %1438 = vmatpush1.msra.mxu0 0.0
    %1439 = vmatprep.subr.mxu0 0.0
    %1440 = vmatpush1.msra.mxu0 0.0
    %1441 = vmatprep.subr.mxu0 0.0
    %1442 = vmatpush1.msra.mxu0 0.0
    %1443 = vmatprep.subr.mxu0 0.0
    %1444 = vmatpush1.msra.mxu0 0.0
    %1445 = vmatprep.subr.mxu0 0.0
    %1446 = vmatpush1.msra.mxu0 0.0
    %1447 = vmatprep.subr.mxu0 0.0
    %1448 = vmatpush1.msra.mxu0 0.0
    %1449 = vmatprep.subr.mxu0 0.0
    %1450 = vmatpush1.msra.mxu0 0.0
    %1451 = vmatprep.subr.mxu0 0.0
    %1452 = vmatpush1.msra.mxu0 0.0
    %1453 = vmatprep.subr.mxu0 0.0
    %1454 = vmatpush1.msra.mxu0 0.0
    %1455 = vmatprep.subr.mxu0 0.0
    %1456 = vmatpush1.msra.mxu0 0.0
    %1457 = vmatprep.subr.mxu0 0.0
    %1458 = vmatpush1.msra.mxu0 0.0
    %1459 = vmatprep.subr.mxu0 0.0
    %1460 = vmatpush1.msra.mxu0 0.0
    %1461 = vmatprep.mubr.f32.mxu0 0.0
    %1462 = vmatmul.mubr.f32.gmra.mrb[0].mxu0 %v1386
    %v1463 = vpop.f32.mrb[0].mxu0
    %v1464 = vadd.f32 %v1384, %v1463
    %v1465 = vpop.f32.mrb[0].mxu0
    %1466 = vmatprep.mubr.f32.mxu0 0.0
    %1467 = vmatmul.mubr.f32.gmra.mrb[0].mxu0 %v1389
    %v1468 = vpop.f32.mrb[0].mxu0
    %v1469 = vadd.f32 %v1384, %v1468
    %v1470 = vpop.f32.mrb[0].mxu0
    %1471 = vmatprep.mubr.f32.mxu0 0.0
    %1472 = vmatmul.mubr.f32.gmra.mrb[0].mxu0 %v1392
    %v1473 = vpop.f32.mrb[0].mxu0
    %v1474 = vadd.f32 %v1384, %v1473
    %v1475 = vpop.f32.mrb[0].mxu0
    %1476 = vmatprep.mubr.f32.mxu0 0.0
    %1477 = vmatmul.mubr.f32.gmra.mrb[0].mxu0 %v1395
    %v1478 = vpop.f32.mrb[0].mxu0
    %v1479 = vadd.f32 %v1384, %v1478
    %v1480 = vpop.f32.mrb[0].mxu0
    %1481 = vdwg.mxu0
    %v1482 = vtanh.pop %v1464
    %v1483 = vtanh.pop %v1469
    %v1484 = vtanh.pop %v1474
    %v1485 = vtanh.pop %v1479
    %v1486 = vmul.f32 %v1464, 0.5
    %v1487 = vmul.f32 %v1469, 0.5
    %v1488 = vmul.f32 %v1474, 0.5
    %v1489 = vmul.f32 %v1479, 0.5
    %v1490 = vtanh.pop %v1486
    %v1491 = vtanh.pop %v1487
    %v1492 = vtanh.pop %v1488
    %v1493 = vtanh.pop %v1489
    %v1494 = vmul.f32 %v1490, 0.5
    %v1495 = vmul.f32 %v1491, 0.5
    %v1496 = vmul.f32 %v1492, 0.5
    %v1497 = vmul.f32 %v1493, 0.5
    %v1498 = vadd.f32 %v1494, 0.5
    %v1499 = vadd.f32 %v1495, 0.5
    %v1500 = vadd.f32 %v1496, 0.5
    %v1501 = vadd.f32 %v1497, 0.5
    %1506 = vrot.lane.b32.xlu0 %v1498, 112
    %v1507 = vpop.permute.xlu0 %1506
    %1508 = vrot.lane.b32.xlu0 %v1499, 112
    %v1509 = vpop.permute.xlu0 %1508
    %1510 = vrot.lane.b32.xlu0 %v1500, 112
    %v1511 = vpop.permute.xlu0 %1510
    %1512 = vrot.lane.b32.xlu0 %v1501, 112
    %v1513 = vpop.permute.xlu0 %1512
    %v1518 = vmul.f32 %v1482, %v1507
    %v1519 = vmul.f32 %v1483, %v1509
    %v1520 = vmul.f32 %v1484, %v1511
    %v1521 = vmul.f32 %v1485, %v1513
    %v1522 = vld [vmem:[#allocation2 + $0x2c0] sm:$0xff]
    %v1523 = vld [vmem:[#allocation2 + $0x2d0] sm:$0xff]
    %v1524 = vld [vmem:[#allocation2 + $0x2e0] ss:$0 sm:$0xff]
    %v1526 = vsel %vm61, %v1518, 0
    %v1529 = vsel %vm61, %v1519, 0
    %v1532 = vsel %vm61, %v1520, 0
    %v1535 = vsel %vm61, %v1521, 0
    %1537 = vmatprep.subr.mxu0 0.0
    %1538 = vmatpush1.msra.mxu0 %v1522
    %1539 = vmatprep.subr.mxu0 0.0
    %1540 = vmatpush1.msra.mxu0 %v1523
    %1541 = vmatprep.subr.mxu0 0.0
    %1542 = vmatpush1.msra.mxu0 0.0
    %1543 = vmatprep.subr.mxu0 0.0
    %1544 = vmatpush1.msra.mxu0 0.0
    %1545 = vmatprep.subr.mxu0 0.0
    %1546 = vmatpush1.msra.mxu0 0.0
    %1547 = vmatprep.subr.mxu0 0.0
    %1548 = vmatpush1.msra.mxu0 0.0
    %1549 = vmatprep.subr.mxu0 0.0
    %1550 = vmatpush1.msra.mxu0 0.0
    %1551 = vmatprep.subr.mxu0 0.0
    %1552 = vmatpush1.msra.mxu0 0.0
    %1553 = vmatprep.subr.mxu0 0.0
    %1554 = vmatpush1.msra.mxu0 0.0
    %1555 = vmatprep.subr.mxu0 0.0
    %1556 = vmatpush1.msra.mxu0 0.0
    %1557 = vmatprep.subr.mxu0 0.0
    %1558 = vmatpush1.msra.mxu0 0.0
    %1559 = vmatprep.subr.mxu0 0.0
    %1560 = vmatpush1.msra.mxu0 0.0
    %1561 = vmatprep.subr.mxu0 0.0
    %1562 = vmatpush1.msra.mxu0 0.0
    %1563 = vmatprep.subr.mxu0 0.0
    %1564 = vmatpush1.msra.mxu0 0.0
    %1565 = vmatprep.subr.mxu0 0.0
    %1566 = vmatpush1.msra.mxu0 0.0
    %1567 = vmatprep.subr.mxu0 0.0
    %1568 = vmatpush1.msra.mxu0 0.0
    %1569 = vmatprep.subr.mxu0 0.0
    %1570 = vmatpush1.msra.mxu0 0.0
    %1571 = vmatprep.subr.mxu0 0.0
    %1572 = vmatpush1.msra.mxu0 0.0
    %1573 = vmatprep.subr.mxu0 0.0
    %1574 = vmatpush1.msra.mxu0 0.0
    %1575 = vmatprep.subr.mxu0 0.0
    %1576 = vmatpush1.msra.mxu0 0.0
    %1577 = vmatprep.subr.mxu0 0.0
    %1578 = vmatpush1.msra.mxu0 0.0
    %1579 = vmatprep.subr.mxu0 0.0
    %1580 = vmatpush1.msra.mxu0 0.0
    %1581 = vmatprep.subr.mxu0 0.0
    %1582 = vmatpush1.msra.mxu0 0.0
    %1583 = vmatprep.subr.mxu0 0.0
    %1584 = vmatpush1.msra.mxu0 0.0
    %1585 = vmatprep.subr.mxu0 0.0
    %1586 = vmatpush1.msra.mxu0 0.0
    %1587 = vmatprep.subr.mxu0 0.0
    %1588 = vmatpush1.msra.mxu0 0.0
    %1589 = vmatprep.subr.mxu0 0.0
    %1590 = vmatpush1.msra.mxu0 0.0
    %1591 = vmatprep.subr.mxu0 0.0
    %1592 = vmatpush1.msra.mxu0 0.0
    %1593 = vmatprep.subr.mxu0 0.0
    %1594 = vmatpush1.msra.mxu0 0.0
    %1595 = vmatprep.subr.mxu0 0.0
    %1596 = vmatpush1.msra.mxu0 0.0
    %1597 = vmatprep.subr.mxu0 0.0
    %1598 = vmatpush1.msra.mxu0 0.0
    %1599 = vmatprep.subr.mxu0 0.0
    %1600 = vmatpush1.msra.mxu0 0.0
    %1601 = vmatprep.mubr.f32.mxu0 0.0
    %1602 = vmatmul.mubr.f32.gmra.mrb[0].mxu0 %v1526
    %v1603 = vpop.f32.mrb[0].mxu0
    %v1604 = vadd.f32 %v1524, %v1603
    %v1605 = vpop.f32.mrb[0].mxu0
    %1606 = vmatprep.mubr.f32.mxu0 0.0
    %1607 = vmatmul.mubr.f32.gmra.mrb[0].mxu0 %v1529
    %v1608 = vpop.f32.mrb[0].mxu0
    %v1609 = vadd.f32 %v1524, %v1608
    %v1610 = vpop.f32.mrb[0].mxu0
    %1611 = vmatprep.mubr.f32.mxu0 0.0
    %1612 = vmatmul.mubr.f32.gmra.mrb[0].mxu0 %v1532
    %v1613 = vpop.f32.mrb[0].mxu0
    %v1614 = vadd.f32 %v1524, %v1613
    %v1615 = vpop.f32.mrb[0].mxu0
    %1616 = vmatprep.mubr.f32.mxu0 0.0
    %1617 = vmatmul.mubr.f32.gmra.mrb[0].mxu0 %v1535
    %v1618 = vpop.f32.mrb[0].mxu0
    %v1619 = vadd.f32 %v1524, %v1618
    %v1620 = vpop.f32.mrb[0].mxu0
    %1621 = vdwg.mxu0
    %v1622 = vadd.f32 %v1310, %v1604
    %v1623 = vadd.f32 %v1311, %v1609
    %v1624 = vadd.f32 %v1312, %v1614
    %v1625 = vadd.f32 %v1313, %v1619
    %v1626 = vld [vmem:[#allocation2 + $0x2f0] sm:$0x3]
    %v1627 = vlaneseq
    %v1628 = vshrl.u32 %v1627, 7
    %v1629 = vsub.s32 0, %v1628
    %v1630 = vrot.slane %v1626, %v1629
    %v1631 = vmul.f32 %v1622, %v1630
    %v1632 = vmul.f32 %v1623, %v1630
    %v1633 = vmul.f32 %v1624, %v1630
    %v1634 = vmul.f32 %v1625, %v1630
    %v1635 = vlaneseq
    %v1636 = vshrl.u32 %v1635, 7
    %v1637 = vsub.s32 1, %v1636
    %v1638 = vrot.slane %v1626, %v1637
    %v1639 = vadd.f32 %v1631, %v1638
    %v1640 = vadd.f32 %v1632, %v1638
    %v1641 = vadd.f32 %v1633, %v1638
    %v1642 = vadd.f32 %v1634, %v1638
    %v1643 = vrot.slane %v54, 7
    %v1644 = vrot.slane %v55, 7
    %v1645 = vrot.slane %v56, 7
    %v1646 = vrot.slane %v57, 7
    %v1647 = vsel %vm163, %v1645, %v1646
    %v1648 = vsel %vm163, %v1644, %v1645
    %v1649 = vsel %vm163, %v1643, %v1644
    %v1650 = vsel %vm163, %v1646, %v1643
    %v1651 = vmul.f32 %v1650, %v188
    %v1652 = vmul.f32 %v1649, %v189
    %v1653 = vmul.f32 %v1648, %v190
    %v1654 = vmul.f32 %v1647, %v191
    %v1655 = vrot.slane %v54, 1
    %v1656 = vrot.slane %v55, 1
    %v1657 = vrot.slane %v56, 1
    %v1658 = vrot.slane %v57, 1
    %v1659 = vsel %vm200, %v1657, %v1658
    %v1660 = vsel %vm200, %v1656, %v1657
    %v1661 = vsel %vm200, %v1655, %v1656
    %v1662 = vsel %vm200, %v1658, %v1655
    %v1663 = vmul.f32 %v1661, %v225
    %v1664 = vmul.f32 %v1660, %v226
    %v1665 = vmul.f32 %v1659, %v227
    %v1666 = vmul.f32 %v1662, %v228
    %1667 = vrot.lane.b32.xlu0 %v54, 16
    %v1668 = vpop.permute.xlu0 %1667
    %1669 = vrot.lane.b32.xlu0 %v55, 16
    %v1670 = vpop.permute.xlu0 %1669
    %1671 = vrot.lane.b32.xlu0 %v56, 16
    %v1672 = vpop.permute.xlu0 %1671
    %1673 = vrot.lane.b32.xlu0 %v57, 16
    %v1674 = vpop.permute.xlu0 %1673
    %1683 = vrot.lane.b32.xlu0 %v1663, 32
    %v1684 = vpop.permute.xlu0 %1683
    %1685 = vrot.lane.b32.xlu0 %v1664, 32
    %v1686 = vpop.permute.xlu0 %1685
    %1687 = vrot.lane.b32.xlu0 %v1665, 32
    %v1688 = vpop.permute.xlu0 %1687
    %1689 = vrot.lane.b32.xlu0 %v1666, 32
    %v1690 = vpop.permute.xlu0 %1689
    %v1695 = vsel %vm61, %v1651, %v1668
    %v1696 = vsel %vm61, %v1652, %v1670
    %v1697 = vsel %vm61, %v1653, %v1672
    %v1698 = vsel %vm61, %v1654, %v1674
    %v1699 = vsel %vm269, %v1695, %v1684
    %v1700 = vsel %vm269, %v1696, %v1686
    %v1701 = vsel %vm269, %v1697, %v1688
    %v1702 = vsel %vm269, %v1698, %v1690
    %v1703 = vld [vmem:[#allocation2 + $0x300] sm:$0xff]
    %v1704 = vld [vmem:[#allocation2 + $0x308] sm:$0xff]
    %v1705 = vld [vmem:[#allocation2 + $0x310] sm:$0xff]
    %v1706 = vld [vmem:[#allocation2 + $0x318] sm:$0xff]
    %v1707 = vld [vmem:[#allocation2 + $0x320] sm:$0xff]
    %v1708 = vld [vmem:[#allocation2 + $0x328] sm:$0xff]
    %v1709 = vld [vmem:[#allocation2 + $0x330] sm:$0xff]
    %v1710 = vld [vmem:[#allocation2 + $0x338] sm:$0xff]
    %v1711 = vld [vmem:[#allocation2 + $0x340] sm:$0xff]
    %v1712 = vld [vmem:[#allocation2 + $0x348] sm:$0xff]
    %v1713 = vld [vmem:[#allocation2 + $0x350] sm:$0xff]
    %v1714 = vld [vmem:[#allocation2 + $0x358] sm:$0xff]
    %s1715 = scalar_lea.vmem [#allocation2], 864
    %v1716 = vld [vmem:[%s1715] ss:$8 sm:$0x3]
    %v1718 = vlaneseq
    %v1719 = vshrl.u32 %v1718, 7
    %v1720 = vsub.s32 0, %v1719
    %v1721 = vrot.slane %v1716, %v1720
    %v1722 = vlaneseq
    %v1723 = vshrl.u32 %v1722, 7
    %v1724 = vsub.s32 1, %v1723
    %v1725 = vrot.slane %v1716, %v1724
    %v1729 = vsel %vm281, %v1699, 0
    %v1732 = vsel %vm281, %v1700, 0
    %v1735 = vsel %vm281, %v1701, 0
    %v1738 = vsel %vm281, %v1702, 0
    %1740 = vmatprep.subr.mxu0 %v1704
    %1741 = vmatpush1.msra.mxu0 %v1703
    %1742 = vmatprep.subr.mxu0 %v1706
    %1743 = vmatpush1.msra.mxu0 %v1705
    %1744 = vmatprep.subr.mxu0 %v1708
    %1745 = vmatpush1.msra.mxu0 %v1707
    %1746 = vmatprep.subr.mxu0 %v1710
    %1747 = vmatpush1.msra.mxu0 %v1709
    %1748 = vmatprep.subr.mxu0 %v1712
    %1749 = vmatpush1.msra.mxu0 %v1711
    %1750 = vmatprep.subr.mxu0 %v1714
    %1751 = vmatpush1.msra.mxu0 %v1713
    %1752 = vmatprep.subr.mxu0 0.0
    %1753 = vmatpush1.msra.mxu0 0.0
    %1754 = vmatprep.subr.mxu0 0.0
    %1755 = vmatpush1.msra.mxu0 0.0
    %1756 = vmatprep.subr.mxu0 0.0
    %1757 = vmatpush1.msra.mxu0 0.0
    %1758 = vmatprep.subr.mxu0 0.0
    %1759 = vmatpush1.msra.mxu0 0.0
    %1760 = vmatprep.subr.mxu0 0.0
    %1761 = vmatpush1.msra.mxu0 0.0
    %1762 = vmatprep.subr.mxu0 0.0
    %1763 = vmatpush1.msra.mxu0 0.0
    %1764 = vmatprep.subr.mxu0 0.0
    %1765 = vmatpush1.msra.mxu0 0.0
    %1766 = vmatprep.subr.mxu0 0.0
    %1767 = vmatpush1.msra.mxu0 0.0
    %1768 = vmatprep.subr.mxu0 0.0
    %1769 = vmatpush1.msra.mxu0 0.0
    %1770 = vmatprep.subr.mxu0 0.0
    %1771 = vmatpush1.msra.mxu0 0.0
    %1772 = vmatprep.subr.mxu0 0.0
    %1773 = vmatpush1.msra.mxu0 0.0
    %1774 = vmatprep.subr.mxu0 0.0
    %1775 = vmatpush1.msra.mxu0 0.0
    %1776 = vmatprep.subr.mxu0 0.0
    %1777 = vmatpush1.msra.mxu0 0.0
    %1778 = vmatprep.subr.mxu0 0.0
    %1779 = vmatpush1.msra.mxu0 0.0
    %1780 = vmatprep.subr.mxu0 0.0
    %1781 = vmatpush1.msra.mxu0 0.0
    %1782 = vmatprep.subr.mxu0 0.0
    %1783 = vmatpush1.msra.mxu0 0.0
    %1784 = vmatprep.subr.mxu0 0.0
    %1785 = vmatpush1.msra.mxu0 0.0
    %1786 = vmatprep.subr.mxu0 0.0
    %1787 = vmatpush1.msra.mxu0 0.0
    %1788 = vmatprep.subr.mxu0 0.0
    %1789 = vmatpush1.msra.mxu0 0.0
    %1790 = vmatprep.subr.mxu0 0.0
    %1791 = vmatpush1.msra.mxu0 0.0
    %1792 = vmatprep.subr.mxu0 0.0
    %1793 = vmatpush1.msra.mxu0 0.0
    %1794 = vmatprep.subr.mxu0 0.0
    %1795 = vmatpush1.msra.mxu0 0.0
    %1796 = vmatprep.subr.mxu0 0.0
    %1797 = vmatpush1.msra.mxu0 0.0
    %1798 = vmatprep.subr.mxu0 0.0
    %1799 = vmatpush1.msra.mxu0 0.0
    %1800 = vmatprep.subr.mxu0 0.0
    %1801 = vmatpush1.msra.mxu0 0.0
    %1802 = vmatprep.subr.mxu0 0.0
    %1803 = vmatpush1.msra.mxu0 0.0
    %1804 = vmatprep.mubr.f32.mxu0 0.0
    %1805 = vmatmul.mubr.f32.gmra.mrb[0].mxu0 %v1729
    %v1806 = vpop.f32.mrb[0].mxu0
    %v1807 = vadd.f32 %v1721, %v1806
    %v1808 = vpop.f32.mrb[0].mxu0
    %v1809 = vadd.f32 %v1725, %v1808
    %1810 = vmatprep.mubr.f32.mxu0 0.0
    %1811 = vmatmul.mubr.f32.gmra.mrb[0].mxu0 %v1732
    %v1812 = vpop.f32.mrb[0].mxu0
    %v1813 = vadd.f32 %v1721, %v1812
    %v1814 = vpop.f32.mrb[0].mxu0
    %v1815 = vadd.f32 %v1725, %v1814
    %1816 = vmatprep.mubr.f32.mxu0 0.0
    %1817 = vmatmul.mubr.f32.gmra.mrb[0].mxu0 %v1735
    %v1818 = vpop.f32.mrb[0].mxu0
    %v1819 = vadd.f32 %v1721, %v1818
    %v1820 = vpop.f32.mrb[0].mxu0
    %v1821 = vadd.f32 %v1725, %v1820
    %1822 = vmatprep.mubr.f32.mxu0 0.0
    %1823 = vmatmul.mubr.f32.gmra.mrb[0].mxu0 %v1738
    %v1824 = vpop.f32.mrb[0].mxu0
    %v1825 = vadd.f32 %v1721, %v1824
    %v1826 = vpop.f32.mrb[0].mxu0
    %v1827 = vadd.f32 %v1725, %v1826
    %1828 = vdwg.mxu0
    %v1829 = vmax.f32 %v1807, 0.0
    %v1830 = vmax.f32 %v1809, 0.0
    %v1831 = vmax.f32 %v1813, 0.0
    %v1832 = vmax.f32 %v1815, 0.0
    %v1833 = vmax.f32 %v1819, 0.0
    %v1834 = vmax.f32 %v1821, 0.0
    %v1835 = vmax.f32 %v1825, 0.0
    %v1836 = vmax.f32 %v1827, 0.0
    %1841 = vrot.lane.b32.xlu0 %v1829, 64
    %v1842 = vpop.permute.xlu0 %1841
    %1843 = vrot.lane.b32.xlu0 %v1831, 64
    %v1844 = vpop.permute.xlu0 %1843
    %1845 = vrot.lane.b32.xlu0 %v1833, 64
    %v1846 = vpop.permute.xlu0 %1845
    %1847 = vrot.lane.b32.xlu0 %v1835, 64
    %v1848 = vpop.permute.xlu0 %1847
    %v1853 = vmax.f32 %v1829, %v1842
    %v1854 = vmax.f32 %v1831, %v1844
    %v1855 = vmax.f32 %v1833, %v1846
    %v1856 = vmax.f32 %v1835, %v1848
    %v1857 = vmax.f32 %v1853, %v1830
    %v1858 = vmax.f32 %v1854, %v1832
    %v1859 = vmax.f32 %v1855, %v1834
    %v1860 = vmax.f32 %v1856, %v1836
    %1865 = vrot.lane.b32.xlu0 %v1830, 64
    %v1866 = vpop.permute.xlu0 %1865
    %1867 = vrot.lane.b32.xlu0 %v1832, 64
    %v1868 = vpop.permute.xlu0 %1867
    %1869 = vrot.lane.b32.xlu0 %v1834, 64
    %v1870 = vpop.permute.xlu0 %1869
    %1871 = vrot.lane.b32.xlu0 %v1836, 64
    %v1872 = vpop.permute.xlu0 %1871
    %v1877 = vmax.f32 %v1857, %v1866
    %v1878 = vmax.f32 %v1858, %v1868
    %v1879 = vmax.f32 %v1859, %v1870
    %v1880 = vmax.f32 %v1860, %v1872
    %v1881 = vrot.slane %v1877, 7
    %v1882 = vrot.slane %v1878, 7
    %v1883 = vrot.slane %v1879, 7
    %v1884 = vrot.slane %v1880, 7
    %v1885 = vsel %vm163, %v1883, %v1884
    %v1886 = vsel %vm163, %v1882, %v1883
    %v1887 = vsel %vm163, %v1881, %v1882
    %v1888 = vsel %vm163, %v1884, %v1881
    %v1889 = vmul.f32 %v1888, %v188
    %v1890 = vmul.f32 %v1887, %v189
    %v1891 = vmul.f32 %v1886, %v190
    %v1892 = vmul.f32 %v1885, %v191
    %v1893 = vrot.slane %v1877, 1
    %v1894 = vrot.slane %v1878, 1
    %v1895 = vrot.slane %v1879, 1
    %v1896 = vrot.slane %v1880, 1
    %v1897 = vsel %vm200, %v1895, %v1896
    %v1898 = vsel %vm200, %v1894, %v1895
    %v1899 = vsel %vm200, %v1893, %v1894
    %v1900 = vsel %vm200, %v1896, %v1893
    %v1901 = vmul.f32 %v1899, %v225
    %v1902 = vmul.f32 %v1898, %v226
    %v1903 = vmul.f32 %v1897, %v227
    %v1904 = vmul.f32 %v1900, %v228
    %1909 = vrot.lane.b32.xlu0 %v1877, 64
    %v1910 = vpop.permute.xlu0 %1909
    %1911 = vrot.lane.b32.xlu0 %v1878, 64
    %v1912 = vpop.permute.xlu0 %1911
    %1913 = vrot.lane.b32.xlu0 %v1879, 64
    %v1914 = vpop.permute.xlu0 %1913
    %1915 = vrot.lane.b32.xlu0 %v1880, 64
    %v1916 = vpop.permute.xlu0 %1915
    %vm1921 = vcmask 523264
    %v1922 = vsel %vm1921, %v1889, %v1910
    %v1923 = vsel %vm1921, %v1890, %v1912
    %v1924 = vsel %vm1921, %v1891, %v1914
    %v1925 = vsel %vm1921, %v1892, %v1916
    %v1926 = vld [vmem:[#allocation2 + $0x370] sm:$0xff]
    %v1927 = vld [vmem:[#allocation2 + $0x380] sm:$0xff]
    %v1928 = vld [vmem:[#allocation2 + $0x390] sm:$0xff]
    %v1929 = vld [vmem:[#allocation2 + $0x3a0] sm:$0xff]
    %v1930 = vld [vmem:[#allocation2 + $0x3b0] sm:$0xff]
    %v1931 = vld [vmem:[#allocation2 + $0x3c0] sm:$0xff]
    %v1932 = vld [vmem:[#allocation2 + $0x3d0] sm:$0xff]
    %v1933 = vld [vmem:[#allocation2 + $0x3e0] sm:$0xff]
    %v1934 = vld [vmem:[#allocation2 + $0x3f0] sm:$0xff]
    %v1935 = vld [vmem:[#allocation2 + $0x400] sm:$0xff]
    %v1936 = vld [vmem:[#allocation2 + $0x410] sm:$0xff]
    %v1937 = vld [vmem:[#allocation2 + $0x420] sm:$0xff]
    %v1938 = vld [vmem:[#allocation2 + $0x430] sm:$0xff]
    %v1939 = vld [vmem:[#allocation2 + $0x440] sm:$0xff]
    %v1940 = vld [vmem:[#allocation2 + $0x450] sm:$0xff]
    %v1941 = vld [vmem:[#allocation2 + $0x460] sm:$0xff]
    %v1942 = vld [vmem:[#allocation2 + $0x470] sm:$0xff]
    %v1943 = vld [vmem:[#allocation2 + $0x480] sm:$0xff]
    %v1944 = vld [vmem:[#allocation2 + $0x490] sm:$0xff]
    %v1945 = vld [vmem:[#allocation2 + $0x4a0] sm:$0xff]
    %v1946 = vld [vmem:[#allocation2 + $0x4b0] sm:$0xff]
    %v1947 = vld [vmem:[#allocation2 + $0x4c0] sm:$0xff]
    %v1948 = vld [vmem:[#allocation2 + $0x4d0] sm:$0xff]
    %v1949 = vld [vmem:[#allocation2 + $0x4e0] sm:$0xff]
    %v1950 = vld [vmem:[#allocation2 + $0x4f0] ss:$0 sm:$0xff]
    %v1952 = vsel %vm1921, %v1901, 0
    %v1955 = vsel %vm1921, %v1902, 0
    %v1958 = vsel %vm1921, %v1903, 0
    %v1961 = vsel %vm1921, %v1904, 0
    %1963 = vmatprep.subr.mxu0 0.0
    %1964 = vmatpush1.msra.mxu0 %v1926
    %1965 = vmatprep.subr.mxu0 0.0
    %1966 = vmatpush1.msra.mxu0 %v1927
    %1967 = vmatprep.subr.mxu0 0.0
    %1968 = vmatpush1.msra.mxu0 %v1928
    %1969 = vmatprep.subr.mxu0 0.0
    %1970 = vmatpush1.msra.mxu0 %v1929
    %1971 = vmatprep.subr.mxu0 0.0
    %1972 = vmatpush1.msra.mxu0 %v1930
    %1973 = vmatprep.subr.mxu0 0.0
    %1974 = vmatpush1.msra.mxu0 %v1931
    %1975 = vmatprep.subr.mxu0 0.0
    %1976 = vmatpush1.msra.mxu0 %v1932
    %1977 = vmatprep.subr.mxu0 0.0
    %1978 = vmatpush1.msra.mxu0 %v1933
    %1979 = vmatprep.subr.mxu0 0.0
    %1980 = vmatpush1.msra.mxu0 %v1934
    %1981 = vmatprep.subr.mxu0 0.0
    %1982 = vmatpush1.msra.mxu0 %v1935
    %1983 = vmatprep.subr.mxu0 0.0
    %1984 = vmatpush1.msra.mxu0 %v1936
    %1985 = vmatprep.subr.mxu0 0.0
    %1986 = vmatpush1.msra.mxu0 %v1937
    %1987 = vmatprep.subr.mxu0 0.0
    %1988 = vmatpush1.msra.mxu0 %v1938
    %1989 = vmatprep.subr.mxu0 0.0
    %1990 = vmatpush1.msra.mxu0 %v1939
    %1991 = vmatprep.subr.mxu0 0.0
    %1992 = vmatpush1.msra.mxu0 %v1940
    %1993 = vmatprep.subr.mxu0 0.0
    %1994 = vmatpush1.msra.mxu0 %v1941
    %1995 = vmatprep.subr.mxu0 0.0
    %1996 = vmatpush1.msra.mxu0 %v1942
    %1997 = vmatprep.subr.mxu0 0.0
    %1998 = vmatpush1.msra.mxu0 %v1943
    %1999 = vmatprep.subr.mxu0 0.0
    %2000 = vmatpush1.msra.mxu0 %v1944
    %2001 = vmatprep.subr.mxu0 0.0
    %2002 = vmatpush1.msra.mxu0 %v1945
    %2003 = vmatprep.subr.mxu0 0.0
    %2004 = vmatpush1.msra.mxu0 %v1946
    %2005 = vmatprep.subr.mxu0 0.0
    %2006 = vmatpush1.msra.mxu0 %v1947
    %2007 = vmatprep.subr.mxu0 0.0
    %2008 = vmatpush1.msra.mxu0 %v1948
    %2009 = vmatprep.subr.mxu0 0.0
    %2010 = vmatpush1.msra.mxu0 %v1949
    %2011 = vmatprep.subr.mxu0 0.0
    %2012 = vmatpush1.msra.mxu0 0.0
    %2013 = vmatprep.subr.mxu0 0.0
    %2014 = vmatpush1.msra.mxu0 0.0
    %2015 = vmatprep.subr.mxu0 0.0
    %2016 = vmatpush1.msra.mxu0 0.0
    %2017 = vmatprep.subr.mxu0 0.0
    %2018 = vmatpush1.msra.mxu0 0.0
    %2019 = vmatprep.subr.mxu0 0.0
    %2020 = vmatpush1.msra.mxu0 0.0
    %2021 = vmatprep.subr.mxu0 0.0
    %2022 = vmatpush1.msra.mxu0 0.0
    %2023 = vmatprep.subr.mxu0 0.0
    %2024 = vmatpush1.msra.mxu0 0.0
    %2025 = vmatprep.subr.mxu0 0.0
    %2026 = vmatpush1.msra.mxu0 0.0
    %2027 = vmatprep.mubr.f32.mxu0 %v1952
    %2028 = vmatmul.mubr.f32.gmra.mrb[0].mxu0 %v1922
    %v2029 = vpop.f32.mrb[0].mxu0
    %v2030 = vadd.f32 %v1950, %v2029
    %v2031 = vpop.f32.mrb[0].mxu0
    %2032 = vmatprep.mubr.f32.mxu0 %v1955
    %2033 = vmatmul.mubr.f32.gmra.mrb[0].mxu0 %v1923
    %v2034 = vpop.f32.mrb[0].mxu0
    %v2035 = vadd.f32 %v1950, %v2034
    %v2036 = vpop.f32.mrb[0].mxu0
    %2037 = vmatprep.mubr.f32.mxu0 %v1958
    %2038 = vmatmul.mubr.f32.gmra.mrb[0].mxu0 %v1924
    %v2039 = vpop.f32.mrb[0].mxu0
    %v2040 = vadd.f32 %v1950, %v2039
    %v2041 = vpop.f32.mrb[0].mxu0
    %2042 = vmatprep.mubr.f32.mxu0 %v1961
    %2043 = vmatmul.mubr.f32.gmra.mrb[0].mxu0 %v1925
    %v2044 = vpop.f32.mrb[0].mxu0
    %v2045 = vadd.f32 %v1950, %v2044
    %v2046 = vpop.f32.mrb[0].mxu0
    %2047 = vdwg.mxu0
    %v2048 = vmax.f32 %v2030, 0.0
    %v2049 = vmax.f32 %v2035, 0.0
    %v2050 = vmax.f32 %v2040, 0.0
    %v2051 = vmax.f32 %v2045, 0.0
    %2056 = vrot.lane.b32.xlu0 %v2048, 96
    %v2057 = vpop.permute.xlu0 %2056
    %2058 = vrot.lane.b32.xlu0 %v2049, 96
    %v2059 = vpop.permute.xlu0 %2058
    %2060 = vrot.lane.b32.xlu0 %v2050, 96
    %v2061 = vpop.permute.xlu0 %2060
    %2062 = vrot.lane.b32.xlu0 %v2051, 96
    %v2063 = vpop.permute.xlu0 %2062
    %v2068 = vmax.f32 %v2048, %v2057
    %v2069 = vmax.f32 %v2049, %v2059
    %v2070 = vmax.f32 %v2050, %v2061
    %v2071 = vmax.f32 %v2051, %v2063
    %v2072 = vrot.slane %v2068, 7
    %v2073 = vrot.slane %v2069, 7
    %v2074 = vrot.slane %v2070, 7
    %v2075 = vrot.slane %v2071, 7
    %v2076 = vsel %vm163, %v2074, %v2075
    %v2077 = vsel %vm163, %v2073, %v2074
    %v2078 = vsel %vm163, %v2072, %v2073
    %v2079 = vsel %vm163, %v2075, %v2072
    %v2080 = vmul.f32 %v2079, %v188
    %v2081 = vmul.f32 %v2078, %v189
    %v2082 = vmul.f32 %v2077, %v190
    %v2083 = vmul.f32 %v2076, %v191
    %v2084 = vrot.slane %v2068, 1
    %v2085 = vrot.slane %v2069, 1
    %v2086 = vrot.slane %v2070, 1
    %v2087 = vrot.slane %v2071, 1
    %v2088 = vsel %vm200, %v2086, %v2087
    %v2089 = vsel %vm200, %v2085, %v2086
    %v2090 = vsel %vm200, %v2084, %v2085
    %v2091 = vsel %vm200, %v2087, %v2084
    %v2092 = vmul.f32 %v2090, %v225
    %v2093 = vmul.f32 %v2089, %v226
    %v2094 = vmul.f32 %v2088, %v227
    %v2095 = vmul.f32 %v2091, %v228
    %2100 = vrot.lane.b32.xlu0 %v2068, 32
    %v2101 = vpop.permute.xlu0 %2100
    %2102 = vrot.lane.b32.xlu0 %v2069, 32
    %v2103 = vpop.permute.xlu0 %2102
    %2104 = vrot.lane.b32.xlu0 %v2070, 32
    %v2105 = vpop.permute.xlu0 %2104
    %2106 = vrot.lane.b32.xlu0 %v2071, 32
    %v2107 = vpop.permute.xlu0 %2106
    %2116 = vrot.lane.b32.xlu0 %v2092, 64
    %v2117 = vpop.permute.xlu0 %2116
    %2118 = vrot.lane.b32.xlu0 %v2093, 64
    %v2119 = vpop.permute.xlu0 %2118
    %2120 = vrot.lane.b32.xlu0 %v2094, 64
    %v2121 = vpop.permute.xlu0 %2120
    %2122 = vrot.lane.b32.xlu0 %v2095, 64
    %v2123 = vpop.permute.xlu0 %2122
    %v2128 = vsel %vm269, %v2080, %v2101
    %v2129 = vsel %vm269, %v2081, %v2103
    %v2130 = vsel %vm269, %v2082, %v2105
    %v2131 = vsel %vm269, %v2083, %v2107
    %v2132 = vsel %vm1921, %v2128, %v2117
    %v2133 = vsel %vm1921, %v2129, %v2119
    %v2134 = vsel %vm1921, %v2130, %v2121
    %v2135 = vsel %vm1921, %v2131, %v2123
    %v2136 = vld [vmem:[#allocation2 + $0x500] sm:$0xff]
    %v2137 = vld [vmem:[#allocation2 + $0x510] sm:$0xff]
    %v2138 = vld [vmem:[#allocation2 + $0x520] sm:$0xff]
    %v2139 = vld [vmem:[#allocation2 + $0x530] sm:$0xff]
    %v2140 = vld [vmem:[#allocation2 + $0x540] sm:$0xff]
    %v2141 = vld [vmem:[#allocation2 + $0x550] sm:$0xff]
    %v2142 = vld [vmem:[#allocation2 + $0x560] sm:$0xff]
    %v2143 = vld [vmem:[#allocation2 + $0x570] sm:$0xff]
    %v2144 = vld [vmem:[#allocation2 + $0x580] sm:$0xff]
    %v2145 = vld [vmem:[#allocation2 + $0x590] sm:$0xff]
    %v2146 = vld [vmem:[#allocation2 + $0x5a0] sm:$0xff]
    %v2147 = vld [vmem:[#allocation2 + $0x5b0] sm:$0xff]
    %v2148 = vld [vmem:[#allocation2 + $0x5c0] ss:$0 sm:$0xff]
    %vm2149 = vcmask 785408
    %v2151 = vsel %vm2149, %v2132, 0
    %v2154 = vsel %vm2149, %v2133, 0
    %v2157 = vsel %vm2149, %v2134, 0
    %v2160 = vsel %vm2149, %v2135, 0
    %2162 = vmatprep.subr.mxu0 0.0
    %2163 = vmatpush1.msra.mxu0 %v2136
    %2164 = vmatprep.subr.mxu0 0.0
    %2165 = vmatpush1.msra.mxu0 %v2137
    %2166 = vmatprep.subr.mxu0 0.0
    %2167 = vmatpush1.msra.mxu0 %v2138
    %2168 = vmatprep.subr.mxu0 0.0
    %2169 = vmatpush1.msra.mxu0 %v2139
    %2170 = vmatprep.subr.mxu0 0.0
    %2171 = vmatpush1.msra.mxu0 %v2140
    %2172 = vmatprep.subr.mxu0 0.0
    %2173 = vmatpush1.msra.mxu0 %v2141
    %2174 = vmatprep.subr.mxu0 0.0
    %2175 = vmatpush1.msra.mxu0 %v2142
    %2176 = vmatprep.subr.mxu0 0.0
    %2177 = vmatpush1.msra.mxu0 %v2143
    %2178 = vmatprep.subr.mxu0 0.0
    %2179 = vmatpush1.msra.mxu0 %v2144
    %2180 = vmatprep.subr.mxu0 0.0
    %2181 = vmatpush1.msra.mxu0 %v2145
    %2182 = vmatprep.subr.mxu0 0.0
    %2183 = vmatpush1.msra.mxu0 %v2146
    %2184 = vmatprep.subr.mxu0 0.0
    %2185 = vmatpush1.msra.mxu0 %v2147
    %2186 = vmatprep.subr.mxu0 0.0
    %2187 = vmatpush1.msra.mxu0 0.0
    %2188 = vmatprep.subr.mxu0 0.0
    %2189 = vmatpush1.msra.mxu0 0.0
    %2190 = vmatprep.subr.mxu0 0.0
    %2191 = vmatpush1.msra.mxu0 0.0
    %2192 = vmatprep.subr.mxu0 0.0
    %2193 = vmatpush1.msra.mxu0 0.0
    %2194 = vmatprep.subr.mxu0 0.0
    %2195 = vmatpush1.msra.mxu0 0.0
    %2196 = vmatprep.subr.mxu0 0.0
    %2197 = vmatpush1.msra.mxu0 0.0
    %2198 = vmatprep.subr.mxu0 0.0
    %2199 = vmatpush1.msra.mxu0 0.0
    %2200 = vmatprep.subr.mxu0 0.0
    %2201 = vmatpush1.msra.mxu0 0.0
    %2202 = vmatprep.subr.mxu0 0.0
    %2203 = vmatpush1.msra.mxu0 0.0
    %2204 = vmatprep.subr.mxu0 0.0
    %2205 = vmatpush1.msra.mxu0 0.0
    %2206 = vmatprep.subr.mxu0 0.0
    %2207 = vmatpush1.msra.mxu0 0.0
    %2208 = vmatprep.subr.mxu0 0.0
    %2209 = vmatpush1.msra.mxu0 0.0
    %2210 = vmatprep.subr.mxu0 0.0
    %2211 = vmatpush1.msra.mxu0 0.0
    %2212 = vmatprep.subr.mxu0 0.0
    %2213 = vmatpush1.msra.mxu0 0.0
    %2214 = vmatprep.subr.mxu0 0.0
    %2215 = vmatpush1.msra.mxu0 0.0
    %2216 = vmatprep.subr.mxu0 0.0
    %2217 = vmatpush1.msra.mxu0 0.0
    %2218 = vmatprep.subr.mxu0 0.0
    %2219 = vmatpush1.msra.mxu0 0.0
    %2220 = vmatprep.subr.mxu0 0.0
    %2221 = vmatpush1.msra.mxu0 0.0
    %2222 = vmatprep.subr.mxu0 0.0
    %2223 = vmatpush1.msra.mxu0 0.0
    %2224 = vmatprep.subr.mxu0 0.0
    %2225 = vmatpush1.msra.mxu0 0.0
    %2226 = vmatprep.mubr.f32.mxu0 0.0
    %2227 = vmatmul.mubr.f32.gmra.mrb[0].mxu0 %v2151
    %v2228 = vpop.f32.mrb[0].mxu0
    %v2229 = vadd.f32 %v2148, %v2228
    %v2230 = vpop.f32.mrb[0].mxu0
    %2231 = vmatprep.mubr.f32.mxu0 0.0
    %2232 = vmatmul.mubr.f32.gmra.mrb[0].mxu0 %v2154
    %v2233 = vpop.f32.mrb[0].mxu0
    %v2234 = vadd.f32 %v2148, %v2233
    %v2235 = vpop.f32.mrb[0].mxu0
    %2236 = vmatprep.mubr.f32.mxu0 0.0
    %2237 = vmatmul.mubr.f32.gmra.mrb[0].mxu0 %v2157
    %v2238 = vpop.f32.mrb[0].mxu0
    %v2239 = vadd.f32 %v2148, %v2238
    %v2240 = vpop.f32.mrb[0].mxu0
    %2241 = vmatprep.mubr.f32.mxu0 0.0
    %2242 = vmatmul.mubr.f32.gmra.mrb[0].mxu0 %v2160
    %v2243 = vpop.f32.mrb[0].mxu0
    %v2244 = vadd.f32 %v2148, %v2243
    %v2245 = vpop.f32.mrb[0].mxu0
    %2246 = vdwg.mxu0
    %v2247 = vmax.f32 %v2229, 0.0
    %v2248 = vmax.f32 %v2234, 0.0
    %v2249 = vmax.f32 %v2239, 0.0
    %v2250 = vmax.f32 %v2244, 0.0
    %2255 = vrot.lane.b32.xlu0 %v2247, 112
    %v2256 = vpop.permute.xlu0 %2255
    %2257 = vrot.lane.b32.xlu0 %v2248, 112
    %v2258 = vpop.permute.xlu0 %2257
    %2259 = vrot.lane.b32.xlu0 %v2249, 112
    %v2260 = vpop.permute.xlu0 %2259
    %2261 = vrot.lane.b32.xlu0 %v2250, 112
    %v2262 = vpop.permute.xlu0 %2261
    %v2267 = vmax.f32 %v2247, %v2256
    %v2268 = vmax.f32 %v2248, %v2258
    %v2269 = vmax.f32 %v2249, %v2260
    %v2270 = vmax.f32 %v2250, %v2262
    %2275 = vrot.lane.b32.xlu0 %v2267, 16
    %v2276 = vpop.permute.xlu0 %2275
    %2277 = vrot.lane.b32.xlu0 %v2268, 16
    %v2278 = vpop.permute.xlu0 %2277
    %2279 = vrot.lane.b32.xlu0 %v2269, 16
    %v2280 = vpop.permute.xlu0 %2279
    %2281 = vrot.lane.b32.xlu0 %v2270, 16
    %v2282 = vpop.permute.xlu0 %2281
    %v2287 = vsel %vm61, %v1639, %v2276
    %v2288 = vsel %vm61, %v1640, %v2278
    %v2289 = vsel %vm61, %v1641, %v2280
    %v2290 = vsel %vm61, %v1642, %v2282
    %v2291 = vrot.slane %v2287, 7
    %v2292 = vrot.slane %v2288, 7
    %v2293 = vrot.slane %v2289, 7
    %v2294 = vrot.slane %v2290, 7
    %v2295 = vsel %vm163, %v2293, %v2294
    %v2296 = vsel %vm163, %v2292, %v2293
    %v2297 = vsel %vm163, %v2291, %v2292
    %v2298 = vsel %vm163, %v2294, %v2291
    %v2299 = vmul.f32 %v2298, %v188
    %v2300 = vmul.f32 %v2297, %v189
    %v2301 = vmul.f32 %v2296, %v190
    %v2302 = vmul.f32 %v2295, %v191
    %v2303 = vrot.slane %v2287, 1
    %v2304 = vrot.slane %v2288, 1
    %v2305 = vrot.slane %v2289, 1
    %v2306 = vrot.slane %v2290, 1
    %v2307 = vsel %vm200, %v2305, %v2306
    %v2308 = vsel %vm200, %v2304, %v2305
    %v2309 = vsel %vm200, %v2303, %v2304
    %v2310 = vsel %vm200, %v2306, %v2303
    %v2311 = vmul.f32 %v2309, %v225
    %v2312 = vmul.f32 %v2308, %v226
    %v2313 = vmul.f32 %v2307, %v227
    %v2314 = vmul.f32 %v2310, %v228
    %2319 = vrot.lane.b32.xlu0 %v2287, 32
    %v2320 = vpop.permute.xlu0 %2319
    %2321 = vrot.lane.b32.xlu0 %v2288, 32
    %v2322 = vpop.permute.xlu0 %2321
    %2323 = vrot.lane.b32.xlu0 %v2289, 32
    %v2324 = vpop.permute.xlu0 %2323
    %2325 = vrot.lane.b32.xlu0 %v2290, 32
    %v2326 = vpop.permute.xlu0 %2325
    %2335 = vrot.lane.b32.xlu0 %v2311, 64
    %v2336 = vpop.permute.xlu0 %2335
    %2337 = vrot.lane.b32.xlu0 %v2312, 64
    %v2338 = vpop.permute.xlu0 %2337
    %2339 = vrot.lane.b32.xlu0 %v2313, 64
    %v2340 = vpop.permute.xlu0 %2339
    %2341 = vrot.lane.b32.xlu0 %v2314, 64
    %v2342 = vpop.permute.xlu0 %2341
    %v2347 = vsel %vm269, %v2299, %v2320
    %v2348 = vsel %vm269, %v2300, %v2322
    %v2349 = vsel %vm269, %v2301, %v2324
    %v2350 = vsel %vm269, %v2302, %v2326
    %v2351 = vsel %vm1921, %v2347, %v2336
    %v2352 = vsel %vm1921, %v2348, %v2338
    %v2353 = vsel %vm1921, %v2349, %v2340
    %v2354 = vsel %vm1921, %v2350, %v2342
    %v2355 = vld [vmem:[#allocation2 + $0x5d0] sm:$0xff]
    %v2356 = vld [vmem:[#allocation2 + $0x5e0] sm:$0xff]
    %v2357 = vld [vmem:[#allocation2 + $0x5f0] sm:$0xff]
    %v2358 = vld [vmem:[#allocation2 + $0x600] sm:$0xff]
    %v2359 = vld [vmem:[#allocation2 + $0x610] sm:$0xff]
    %v2360 = vld [vmem:[#allocation2 + $0x620] sm:$0xff]
    %v2361 = vld [vmem:[#allocation2 + $0x630] sm:$0xff]
    %v2362 = vld [vmem:[#allocation2 + $0x640] sm:$0xff]
    %v2363 = vld [vmem:[#allocation2 + $0x650] sm:$0xff]
    %v2364 = vld [vmem:[#allocation2 + $0x660] sm:$0xff]
    %v2365 = vld [vmem:[#allocation2 + $0x670] sm:$0xff]
    %v2366 = vld [vmem:[#allocation2 + $0x680] sm:$0xff]
    %v2367 = vld [vmem:[#allocation2 + $0x690] ss:$0 sm:$0xff]
    %v2369 = vsel %vm2149, %v2351, 0
    %v2372 = vsel %vm2149, %v2352, 0
    %v2375 = vsel %vm2149, %v2353, 0
    %v2378 = vsel %vm2149, %v2354, 0
    %2380 = vmatprep.subr.mxu0 0.0
    %2381 = vmatpush1.msra.mxu0 %v2355
    %2382 = vmatprep.subr.mxu0 0.0
    %2383 = vmatpush1.msra.mxu0 %v2356
    %2384 = vmatprep.subr.mxu0 0.0
    %2385 = vmatpush1.msra.mxu0 %v2357
    %2386 = vmatprep.subr.mxu0 0.0
    %2387 = vmatpush1.msra.mxu0 %v2358
    %2388 = vmatprep.subr.mxu0 0.0
    %2389 = vmatpush1.msra.mxu0 %v2359
    %2390 = vmatprep.subr.mxu0 0.0
    %2391 = vmatpush1.msra.mxu0 %v2360
    %2392 = vmatprep.subr.mxu0 0.0
    %2393 = vmatpush1.msra.mxu0 %v2361
    %2394 = vmatprep.subr.mxu0 0.0
    %2395 = vmatpush1.msra.mxu0 %v2362
    %2396 = vmatprep.subr.mxu0 0.0
    %2397 = vmatpush1.msra.mxu0 %v2363
    %2398 = vmatprep.subr.mxu0 0.0
    %2399 = vmatpush1.msra.mxu0 %v2364
    %2400 = vmatprep.subr.mxu0 0.0
    %2401 = vmatpush1.msra.mxu0 %v2365
    %2402 = vmatprep.subr.mxu0 0.0
    %2403 = vmatpush1.msra.mxu0 %v2366
    %2404 = vmatprep.subr.mxu0 0.0
    %2405 = vmatpush1.msra.mxu0 0.0
    %2406 = vmatprep.subr.mxu0 0.0
    %2407 = vmatpush1.msra.mxu0 0.0
    %2408 = vmatprep.subr.mxu0 0.0
    %2409 = vmatpush1.msra.mxu0 0.0
    %2410 = vmatprep.subr.mxu0 0.0
    %2411 = vmatpush1.msra.mxu0 0.0
    %2412 = vmatprep.subr.mxu0 0.0
    %2413 = vmatpush1.msra.mxu0 0.0
    %2414 = vmatprep.subr.mxu0 0.0
    %2415 = vmatpush1.msra.mxu0 0.0
    %2416 = vmatprep.subr.mxu0 0.0
    %2417 = vmatpush1.msra.mxu0 0.0
    %2418 = vmatprep.subr.mxu0 0.0
    %2419 = vmatpush1.msra.mxu0 0.0
    %2420 = vmatprep.subr.mxu0 0.0
    %2421 = vmatpush1.msra.mxu0 0.0
    %2422 = vmatprep.subr.mxu0 0.0
    %2423 = vmatpush1.msra.mxu0 0.0
    %2424 = vmatprep.subr.mxu0 0.0
    %2425 = vmatpush1.msra.mxu0 0.0
    %2426 = vmatprep.subr.mxu0 0.0
    %2427 = vmatpush1.msra.mxu0 0.0
    %2428 = vmatprep.subr.mxu0 0.0
    %2429 = vmatpush1.msra.mxu0 0.0
    %2430 = vmatprep.subr.mxu0 0.0
    %2431 = vmatpush1.msra.mxu0 0.0
    %2432 = vmatprep.subr.mxu0 0.0
    %2433 = vmatpush1.msra.mxu0 0.0
    %2434 = vmatprep.subr.mxu0 0.0
    %2435 = vmatpush1.msra.mxu0 0.0
    %2436 = vmatprep.subr.mxu0 0.0
    %2437 = vmatpush1.msra.mxu0 0.0
    %2438 = vmatprep.subr.mxu0 0.0
    %2439 = vmatpush1.msra.mxu0 0.0
    %2440 = vmatprep.subr.mxu0 0.0
    %2441 = vmatpush1.msra.mxu0 0.0
    %2442 = vmatprep.subr.mxu0 0.0
    %2443 = vmatpush1.msra.mxu0 0.0
    %2444 = vmatprep.mubr.f32.mxu0 0.0
    %2445 = vmatmul.mubr.f32.gmra.mrb[0].mxu0 %v2369
    %v2446 = vpop.f32.mrb[0].mxu0
    %v2447 = vadd.f32 %v2367, %v2446
    %v2448 = vpop.f32.mrb[0].mxu0
    %2449 = vmatprep.mubr.f32.mxu0 0.0
    %2450 = vmatmul.mubr.f32.gmra.mrb[0].mxu0 %v2372
    %v2451 = vpop.f32.mrb[0].mxu0
    %v2452 = vadd.f32 %v2367, %v2451
    %v2453 = vpop.f32.mrb[0].mxu0
    %2454 = vmatprep.mubr.f32.mxu0 0.0
    %2455 = vmatmul.mubr.f32.gmra.mrb[0].mxu0 %v2375
    %v2456 = vpop.f32.mrb[0].mxu0
    %v2457 = vadd.f32 %v2367, %v2456
    %v2458 = vpop.f32.mrb[0].mxu0
    %2459 = vmatprep.mubr.f32.mxu0 0.0
    %2460 = vmatmul.mubr.f32.gmra.mrb[0].mxu0 %v2378
    %v2461 = vpop.f32.mrb[0].mxu0
    %v2462 = vadd.f32 %v2367, %v2461
    %v2463 = vpop.f32.mrb[0].mxu0
    %2464 = vdwg.mxu0
    %v2465 = vmax.f32 %v2447, 0.0
    %v2466 = vmax.f32 %v2452, 0.0
    %v2467 = vmax.f32 %v2457, 0.0
    %v2468 = vmax.f32 %v2462, 0.0
    %v2469 = vlaneseq
    %v2470 = vand.u32 %v2469, 127
    %v2471 = vld [vmem:[%s1] sm:$0xff]
    %v2472 = vld [vmem:[%s1 + $0x8] sm:$0xff]
    %2473 = vset.pattern.permute.xlu0 0
    %2474 = vperm.xlu0 %2473, %v2471
    %v2475 = vpop.permute.xlu0 %2474
    %2476 = vset.pattern.permute.xlu0 0
    %2477 = vperm.xlu0 %2476, %v2472
    %v2478 = vpop.permute.xlu0 %2477
    %vm2479 = vcmp.eq.s32.totalorder %v2475, %v2470
    %vm2480 = vcmp.eq.s32.totalorder %v2478, %v2470
    %v2481 = vsel %vm2479, 1, 0
    %v2482 = vsel %vm2480, 1, 0
    %v2483 = vcvt.s32.f32 %v2481
    %v2484 = vcvt.s32.f32 %v2482
    %v2485 = vld [vmem:[#allocation4] sm:$0xff]
    %v2486 = vld [vmem:[#allocation4 + $0x8] sm:$0xff]
    %v2487 = vld [vmem:[#allocation4 + $0x10] sm:$0xf]
    %v2488 = vld [vmem:[#allocation4 + $0x18] sm:$0xff]
    %v2489 = vld [vmem:[#allocation4 + $0x20] sm:$0xff]
    %vm2490 = vcmask 162816
    %v2492 = vsel %vm2490, %v2483, 0
    %v2495 = vsel %vm2490, %v2484, 0
    %vm2497 = vcmask 1043456
    %v2499 = vsel %vm2497, %v2487, 0
    %2501 = vmatprep.subr.mxu0 0.0
    %2502 = vmatpush1.msra.mxu0 %v2485
    %2503 = vmatprep.subr.mxu0 0.0
    %2504 = vmatpush1.msra.mxu0 %v2486
    %2505 = vmatprep.subr.mxu0 0.0
    %2506 = vmatpush1.msra.mxu0 %v2499
    %2507 = vmatprep.subr.mxu0 0.0
    %2508 = vmatpush1.msra.mxu0 0.0
    %2509 = vmatprep.subr.mxu0 0.0
    %2510 = vmatpush1.msra.mxu0 0.0
    %2511 = vmatprep.subr.mxu0 0.0
    %2512 = vmatpush1.msra.mxu0 0.0
    %2513 = vmatprep.subr.mxu0 0.0
    %2514 = vmatpush1.msra.mxu0 0.0
    %2515 = vmatprep.subr.mxu0 0.0
    %2516 = vmatpush1.msra.mxu0 0.0
    %2517 = vmatprep.subr.mxu0 0.0
    %2518 = vmatpush1.msra.mxu0 0.0
    %2519 = vmatprep.subr.mxu0 0.0
    %2520 = vmatpush1.msra.mxu0 0.0
    %2521 = vmatprep.subr.mxu0 0.0
    %2522 = vmatpush1.msra.mxu0 0.0
    %2523 = vmatprep.subr.mxu0 0.0
    %2524 = vmatpush1.msra.mxu0 0.0
    %2525 = vmatprep.subr.mxu0 0.0
    %2526 = vmatpush1.msra.mxu0 0.0
    %2527 = vmatprep.subr.mxu0 0.0
    %2528 = vmatpush1.msra.mxu0 0.0
    %2529 = vmatprep.subr.mxu0 0.0
    %2530 = vmatpush1.msra.mxu0 0.0
    %2531 = vmatprep.subr.mxu0 0.0
    %2532 = vmatpush1.msra.mxu0 0.0
    %2533 = vmatprep.subr.mxu0 0.0
    %2534 = vmatpush1.msra.mxu0 0.0
    %2535 = vmatprep.subr.mxu0 0.0
    %2536 = vmatpush1.msra.mxu0 0.0
    %2537 = vmatprep.subr.mxu0 0.0
    %2538 = vmatpush1.msra.mxu0 0.0
    %2539 = vmatprep.subr.mxu0 0.0
    %2540 = vmatpush1.msra.mxu0 0.0
    %2541 = vmatprep.subr.mxu0 0.0
    %2542 = vmatpush1.msra.mxu0 0.0
    %2543 = vmatprep.subr.mxu0 0.0
    %2544 = vmatpush1.msra.mxu0 0.0
    %2545 = vmatprep.subr.mxu0 0.0
    %2546 = vmatpush1.msra.mxu0 0.0
    %2547 = vmatprep.subr.mxu0 0.0
    %2548 = vmatpush1.msra.mxu0 0.0
    %2549 = vmatprep.subr.mxu0 0.0
    %2550 = vmatpush1.msra.mxu0 0.0
    %2551 = vmatprep.subr.mxu0 0.0
    %2552 = vmatpush1.msra.mxu0 0.0
    %2553 = vmatprep.subr.mxu0 0.0
    %2554 = vmatpush1.msra.mxu0 0.0
    %2555 = vmatprep.subr.mxu0 0.0
    %2556 = vmatpush1.msra.mxu0 0.0
    %2557 = vmatprep.subr.mxu0 0.0
    %2558 = vmatpush1.msra.mxu0 0.0
    %2559 = vmatprep.subr.mxu0 0.0
    %2560 = vmatpush1.msra.mxu0 0.0
    %2561 = vmatprep.subr.mxu0 0.0
    %2562 = vmatpush1.msra.mxu0 0.0
    %2563 = vmatprep.subr.mxu0 0.0
    %2564 = vmatpush1.msra.mxu0 0.0
    %2565 = vmatprep.mubr.f32.mxu0 0.0
    %2566 = vmatmul.mubr.f32.gmra.mrb[0].mxu0 %v2492
    %v2567 = vpop.f32.mrb[0].mxu0
    %v2568 = vadd.f32 %v2488, %v2567
    %v2569 = vpop.f32.mrb[0].mxu0
    %2570 = vmatprep.mubr.f32.mxu0 0.0
    %2571 = vmatmul.mubr.f32.gmra.mrb[0].mxu0 %v2495
    %v2572 = vpop.f32.mrb[0].mxu0
    %v2573 = vadd.f32 %v2489, %v2572
    %v2574 = vpop.f32.mrb[0].mxu0
    %2575 = vdwg.mxu0
    %v2576 = vld [vmem:[#allocation4 + $0x28] sm:$0xff]
    %v2577 = vld [vmem:[#allocation4 + $0x30] sm:$0xff]
    %v2578 = vld [vmem:[#allocation4 + $0x38] sm:$0xff]
    %v2579 = vld [vmem:[#allocation4 + $0x40] sm:$0xff]
    %v2580 = vld [vmem:[#allocation4 + $0x48] sm:$0xff]
    %v2581 = vld [vmem:[#allocation4 + $0x50] sm:$0xff]
    %v2582 = vld [vmem:[#allocation4 + $0x58] sm:$0xff]
    %v2583 = vld [vmem:[#allocation4 + $0x60] sm:$0xff]
    %v2584 = vld [vmem:[#allocation4 + $0x68] sm:$0x1]
    %v2585 = vlaneseq
    %v2586 = vshrl.u32 %v2585, 7
    %v2587 = vsub.s32 0, %v2586
    %v2588 = vrot.slane %v2584, %v2587
    %v2590 = vsel %vm269, %v2568, 0
    %v2593 = vsel %vm269, %v2573, 0
    %2595 = vmatprep.subr.mxu0 0.0
    %2596 = vmatpush1.msra.mxu0 %v2580
    %2597 = vmatprep.subr.mxu0 0.0
    %2598 = vmatpush1.msra.mxu0 %v2581
    %2599 = vmatprep.subr.mxu0 0.0
    %2600 = vmatpush1.msra.mxu0 %v2582
    %2601 = vmatprep.subr.mxu0 0.0
    %2602 = vmatpush1.msra.mxu0 %v2583
    %2603 = vmatprep.subr.mxu0 0.0
    %2604 = vmatpush1.msra.mxu0 0.0
    %2605 = vmatprep.subr.mxu0 0.0
    %2606 = vmatpush1.msra.mxu0 0.0
    %2607 = vmatprep.subr.mxu0 0.0
    %2608 = vmatpush1.msra.mxu0 0.0
    %2609 = vmatprep.subr.mxu0 0.0
    %2610 = vmatpush1.msra.mxu0 0.0
    %2611 = vmatprep.subr.mxu0 0.0
    %2612 = vmatpush1.msra.mxu0 0.0
    %2613 = vmatprep.subr.mxu0 0.0
    %2614 = vmatpush1.msra.mxu0 0.0
    %2615 = vmatprep.subr.mxu0 0.0
    %2616 = vmatpush1.msra.mxu0 0.0
    %2617 = vmatprep.subr.mxu0 0.0
    %2618 = vmatpush1.msra.mxu0 0.0
    %2619 = vmatprep.subr.mxu0 0.0
    %2620 = vmatpush1.msra.mxu0 0.0
    %2621 = vmatprep.subr.mxu0 0.0
    %2622 = vmatpush1.msra.mxu0 0.0
    %2623 = vmatprep.subr.mxu0 0.0
    %2624 = vmatpush1.msra.mxu0 0.0
    %2625 = vmatprep.subr.mxu0 0.0
    %2626 = vmatpush1.msra.mxu0 0.0
    %2627 = vmatprep.subr.mxu0 0.0
    %2628 = vmatpush1.msra.mxu0 0.0
    %2629 = vmatprep.subr.mxu0 0.0
    %2630 = vmatpush1.msra.mxu0 0.0
    %2631 = vmatprep.subr.mxu0 0.0
    %2632 = vmatpush1.msra.mxu0 0.0
    %2633 = vmatprep.subr.mxu0 0.0
    %2634 = vmatpush1.msra.mxu0 0.0
    %2635 = vmatprep.subr.mxu0 0.0
    %2636 = vmatpush1.msra.mxu0 0.0
    %2637 = vmatprep.subr.mxu0 0.0
    %2638 = vmatpush1.msra.mxu0 0.0
    %2639 = vmatprep.subr.mxu0 0.0
    %2640 = vmatpush1.msra.mxu0 0.0
    %2641 = vmatprep.subr.mxu0 0.0
    %2642 = vmatpush1.msra.mxu0 0.0
    %2643 = vmatprep.subr.mxu0 0.0
    %2644 = vmatpush1.msra.mxu0 0.0
    %2645 = vmatprep.subr.mxu0 0.0
    %2646 = vmatpush1.msra.mxu0 0.0
    %2647 = vmatprep.subr.mxu0 0.0
    %2648 = vmatpush1.msra.mxu0 0.0
    %2649 = vmatprep.subr.mxu0 0.0
    %2650 = vmatpush1.msra.mxu0 0.0
    %2651 = vmatprep.subr.mxu0 0.0
    %2652 = vmatpush1.msra.mxu0 0.0
    %2653 = vmatprep.subr.mxu0 0.0
    %2654 = vmatpush1.msra.mxu0 0.0
    %2655 = vmatprep.subr.mxu0 0.0
    %2656 = vmatpush1.msra.mxu0 0.0
    %2657 = vmatprep.subr.mxu0 0.0
    %2658 = vmatpush1.msra.mxu0 0.0
    %2659 = vmatprep.mubr.f32.mxu0 0.0
    %2660 = vmatmul.mubr.f32.gmra.mrb[0].mxu0 %v2590
    %v2661 = vpop.f32.mrb[0].mxu0
    %v2662 = vadd.f32 %v2588, %v2661
    %v2663 = vpop.f32.mrb[0].mxu0
    %2664 = vmatprep.mubr.f32.mxu0 0.0
    %2665 = vmatmul.mubr.f32.gmra.mrb[0].mxu0 %v2593
    %v2666 = vpop.f32.mrb[0].mxu0
    %v2667 = vadd.f32 %v2588, %v2666
    %v2668 = vpop.f32.mrb[0].mxu0
    %2669 = vdwg.mxu0
    %v2670 = vld [vmem:[#allocation4 + $0x70] sm:$0xff]
    %v2671 = vld [vmem:[#allocation4 + $0x78] sm:$0xff]
    %v2672 = vld [vmem:[#allocation4 + $0x80] sm:$0xff]
    %v2673 = vld [vmem:[#allocation4 + $0x88] sm:$0xff]
    %v2674 = vld [vmem:[#allocation4 + $0x90] sm:$0x1]
    %v2675 = vmul.f32 %v2662, 0.35355338
    %v2676 = vmul.f32 %v2667, 0.35355338
    %2679 = vrot.lane.b32.xlu0 %v2662, 96
    %v2680 = vpop.permute.xlu0 %2679
    %2681 = vrot.lane.b32.xlu0 %v2667, 96
    %v2682 = vpop.permute.xlu0 %2681
    %vm2683 = vcmask 64512
    %v2685 = vsel %vm2683, %v2675, 0
    %v2688 = vsel %vm2683, %v2676, 0
    %v2690 = vsel %vm2683, %v2680, 0
    %v2692 = vsel %vm2683, %v2682, 0
    %2694 = vmatprep.subr.mxu0 0.0
    %2695 = vmatpush1.xpose.msra.mxu0 %v2690
    %2696 = vmatprep.subr.mxu0 0.0
    %2697 = vmatpush1.xpose.msra.mxu0 %v2692
    %2698 = vmatprep.subr.mxu0 0.0
    %2699 = vmatpush1.xpose.msra.mxu0 0.0
    %2700 = vmatprep.subr.mxu0 0.0
    %2701 = vmatpush1.xpose.msra.mxu0 0.0
    %2702 = vmatprep.subr.mxu0 0.0
    %2703 = vmatpush1.xpose.msra.mxu0 0.0
    %2704 = vmatprep.subr.mxu0 0.0
    %2705 = vmatpush1.xpose.msra.mxu0 0.0
    %2706 = vmatprep.subr.mxu0 0.0
    %2707 = vmatpush1.xpose.msra.mxu0 0.0
    %2708 = vmatprep.subr.mxu0 0.0
    %2709 = vmatpush1.xpose.msra.mxu0 0.0
    %2710 = vmatprep.subr.mxu0 0.0
    %2711 = vmatpush1.xpose.msra.mxu0 0.0
    %2712 = vmatprep.subr.mxu0 0.0
    %2713 = vmatpush1.xpose.msra.mxu0 0.0
    %2714 = vmatprep.subr.mxu0 0.0
    %2715 = vmatpush1.xpose.msra.mxu0 0.0
    %2716 = vmatprep.subr.mxu0 0.0
    %2717 = vmatpush1.xpose.msra.mxu0 0.0
    %2718 = vmatprep.subr.mxu0 0.0
    %2719 = vmatpush1.xpose.msra.mxu0 0.0
    %2720 = vmatprep.subr.mxu0 0.0
    %2721 = vmatpush1.xpose.msra.mxu0 0.0
    %2722 = vmatprep.subr.mxu0 0.0
    %2723 = vmatpush1.xpose.msra.mxu0 0.0
    %2724 = vmatprep.subr.mxu0 0.0
    %2725 = vmatpush1.xpose.msra.mxu0 0.0
    %2726 = vmatprep.subr.mxu0 0.0
    %2727 = vmatpush1.xpose.msra.mxu0 0.0
    %2728 = vmatprep.subr.mxu0 0.0
    %2729 = vmatpush1.xpose.msra.mxu0 0.0
    %2730 = vmatprep.subr.mxu0 0.0
    %2731 = vmatpush1.xpose.msra.mxu0 0.0
    %2732 = vmatprep.subr.mxu0 0.0
    %2733 = vmatpush1.xpose.msra.mxu0 0.0
    %2734 = vmatprep.subr.mxu0 0.0
    %2735 = vmatpush1.xpose.msra.mxu0 0.0
    %2736 = vmatprep.subr.mxu0 0.0
    %2737 = vmatpush1.xpose.msra.mxu0 0.0
    %2738 = vmatprep.subr.mxu0 0.0
    %2739 = vmatpush1.xpose.msra.mxu0 0.0
    %2740 = vmatprep.subr.mxu0 0.0
    %2741 = vmatpush1.xpose.msra.mxu0 0.0
    %2742 = vmatprep.subr.mxu0 0.0
    %2743 = vmatpush1.xpose.msra.mxu0 0.0
    %2744 = vmatprep.subr.mxu0 0.0
    %2745 = vmatpush1.xpose.msra.mxu0 0.0
    %2746 = vmatprep.subr.mxu0 0.0
    %2747 = vmatpush1.xpose.msra.mxu0 0.0
    %2748 = vmatprep.subr.mxu0 0.0
    %2749 = vmatpush1.xpose.msra.mxu0 0.0
    %2750 = vmatprep.subr.mxu0 0.0
    %2751 = vmatpush1.xpose.msra.mxu0 0.0
    %2752 = vmatprep.subr.mxu0 0.0
    %2753 = vmatpush1.xpose.msra.mxu0 0.0
    %2754 = vmatprep.subr.mxu0 0.0
    %2755 = vmatpush1.xpose.msra.mxu0 0.0
    %2756 = vmatprep.subr.mxu0 0.0
    %2757 = vmatpush1.xpose.msra.mxu0 0.0
    %2758 = vmatprep.mubr.f32.mxu0 0.0
    %2759 = vmatmul.mubr.f32.gmra.mrb[0].mxu0 %v2685
    %v2760 = vpop.f32.mrb[0].mxu0
    %v2761 = vadd.f32 %v2576, %v2760
    %v2762 = vpop.f32.mrb[0].mxu0
    %2763 = vmatprep.mubr.f32.mxu0 0.0
    %2764 = vmatmul.mubr.f32.gmra.mrb[0].mxu0 %v2688
    %v2765 = vpop.f32.mrb[0].mxu0
    %v2766 = vadd.f32 %v2577, %v2765
    %v2767 = vpop.f32.mrb[0].mxu0
    %2768 = vdwg.mxu0
    %v2769 = vsel %vm61, %v2761, -inf
    %2770 = vmax.xlane.f32.xlu0 %v2769
    %v2771 = vpop.xlane.xlu0 %2770
    %v2772 = vsel %vm61, %v2766, -inf
    %2773 = vmax.xlane.f32.xlu0 %v2772
    %v2774 = vpop.xlane.xlu0 %2773
    %v2775 = vsub.f32 %v2761, %v2771
    %v2776 = vsub.f32 %v2766, %v2774
    %v2777 = vmul.f32 %v2775, 1.442695
    %v2778 = vpow.pop %v2777
    %v2779 = vmul.f32 %v2776, 1.442695
    %v2780 = vpow.pop %v2779
    %v2781 = vsel %vm61, %v2778, 0.0
    %2782 = vadd.xlane.f32.xlu0 %v2781
    %v2783 = vpop.xlane.xlu0 %2782
    %v2784 = vsel %vm61, %v2780, 0.0
    %2785 = vadd.xlane.f32.xlu0 %v2784
    %v2786 = vpop.xlane.xlu0 %2785
    %v2787 = vrcp.pop %v2783
    %v2788 = vmul.f32 %v2778, %v2787
    %v2789 = vrcp.pop %v2786
    %v2790 = vmul.f32 %v2780, %v2789
    %2791 = vrot.lane.b32.xlu0 %v2662, 64
    %v2792 = vpop.permute.xlu0 %2791
    %2793 = vrot.lane.b32.xlu0 %v2667, 64
    %v2794 = vpop.permute.xlu0 %2793
    %v2798 = vsel %vm61, %v2788, 0
    %v2801 = vsel %vm61, %v2790, 0
    %2803 = vmatprep.subr.mxu0 0.0
    %2804 = vmatpush1.msra.mxu0 %v2792
    %2805 = vmatprep.subr.mxu0 0.0
    %2806 = vmatpush1.msra.mxu0 %v2794
    %2807 = vmatprep.subr.mxu0 0.0
    %2808 = vmatpush1.msra.mxu0 0.0
    %2809 = vmatprep.subr.mxu0 0.0
    %2810 = vmatpush1.msra.mxu0 0.0
    %2811 = vmatprep.subr.mxu0 0.0
    %2812 = vmatpush1.msra.mxu0 0.0
    %2813 = vmatprep.subr.mxu0 0.0
    %2814 = vmatpush1.msra.mxu0 0.0
    %2815 = vmatprep.subr.mxu0 0.0
    %2816 = vmatpush1.msra.mxu0 0.0
    %2817 = vmatprep.subr.mxu0 0.0
    %2818 = vmatpush1.msra.mxu0 0.0
    %2819 = vmatprep.subr.mxu0 0.0
    %2820 = vmatpush1.msra.mxu0 0.0
    %2821 = vmatprep.subr.mxu0 0.0
    %2822 = vmatpush1.msra.mxu0 0.0
    %2823 = vmatprep.subr.mxu0 0.0
    %2824 = vmatpush1.msra.mxu0 0.0
    %2825 = vmatprep.subr.mxu0 0.0
    %2826 = vmatpush1.msra.mxu0 0.0
    %2827 = vmatprep.subr.mxu0 0.0
    %2828 = vmatpush1.msra.mxu0 0.0
    %2829 = vmatprep.subr.mxu0 0.0
    %2830 = vmatpush1.msra.mxu0 0.0
    %2831 = vmatprep.subr.mxu0 0.0
    %2832 = vmatpush1.msra.mxu0 0.0
    %2833 = vmatprep.subr.mxu0 0.0
    %2834 = vmatpush1.msra.mxu0 0.0
    %2835 = vmatprep.subr.mxu0 0.0
    %2836 = vmatpush1.msra.mxu0 0.0
    %2837 = vmatprep.subr.mxu0 0.0
    %2838 = vmatpush1.msra.mxu0 0.0
    %2839 = vmatprep.subr.mxu0 0.0
    %2840 = vmatpush1.msra.mxu0 0.0
    %2841 = vmatprep.subr.mxu0 0.0
    %2842 = vmatpush1.msra.mxu0 0.0
    %2843 = vmatprep.subr.mxu0 0.0
    %2844 = vmatpush1.msra.mxu0 0.0
    %2845 = vmatprep.subr.mxu0 0.0
    %2846 = vmatpush1.msra.mxu0 0.0
    %2847 = vmatprep.subr.mxu0 0.0
    %2848 = vmatpush1.msra.mxu0 0.0
    %2849 = vmatprep.subr.mxu0 0.0
    %2850 = vmatpush1.msra.mxu0 0.0
    %2851 = vmatprep.subr.mxu0 0.0
    %2852 = vmatpush1.msra.mxu0 0.0
    %2853 = vmatprep.subr.mxu0 0.0
    %2854 = vmatpush1.msra.mxu0 0.0
    %2855 = vmatprep.subr.mxu0 0.0
    %2856 = vmatpush1.msra.mxu0 0.0
    %2857 = vmatprep.subr.mxu0 0.0
    %2858 = vmatpush1.msra.mxu0 0.0
    %2859 = vmatprep.subr.mxu0 0.0
    %2860 = vmatpush1.msra.mxu0 0.0
    %2861 = vmatprep.subr.mxu0 0.0
    %2862 = vmatpush1.msra.mxu0 0.0
    %2863 = vmatprep.subr.mxu0 0.0
    %2864 = vmatpush1.msra.mxu0 0.0
    %2865 = vmatprep.subr.mxu0 0.0
    %2866 = vmatpush1.msra.mxu0 0.0
    %2867 = vmatprep.mubr.f32.mxu0 0.0
    %2868 = vmatmul.mubr.f32.gmra.mrb[0].mxu0 %v2798
    %v2869 = vpop.f32.mrb[0].mxu0
    %v2870 = vadd.f32 0.0, %v2869
    %v2871 = vpop.f32.mrb[0].mxu0
    %2872 = vmatprep.mubr.f32.mxu0 0.0
    %2873 = vmatmul.mubr.f32.gmra.mrb[0].mxu0 %v2801
    %v2874 = vpop.f32.mrb[0].mxu0
    %v2875 = vadd.f32 0.0, %v2874
    %v2876 = vpop.f32.mrb[0].mxu0
    %2877 = vdwg.mxu0
    %2878 = vrot.lane.b32.xlu0 %v2675, 120
    %v2879 = vpop.permute.xlu0 %2878
    %2880 = vrot.lane.b32.xlu0 %v2676, 120
    %v2881 = vpop.permute.xlu0 %2880
    %2882 = vrot.lane.b32.xlu0 %v2662, 88
    %v2883 = vpop.permute.xlu0 %2882
    %2884 = vrot.lane.b32.xlu0 %v2667, 88
    %v2885 = vpop.permute.xlu0 %2884
    %v2886 = vsel %vm2683, %v2879, 0
    %v2888 = vsel %vm2683, %v2881, 0
    %v2890 = vsel %vm2683, %v2883, 0
    %v2892 = vsel %vm2683, %v2885, 0
    %2894 = vmatprep.subr.mxu0 0.0
    %2895 = vmatpush1.xpose.msra.mxu0 %v2890
    %2896 = vmatprep.subr.mxu0 0.0
    %2897 = vmatpush1.xpose.msra.mxu0 %v2892
    %2898 = vmatprep.subr.mxu0 0.0
    %2899 = vmatpush1.xpose.msra.mxu0 0.0
    %2900 = vmatprep.subr.mxu0 0.0
    %2901 = vmatpush1.xpose.msra.mxu0 0.0
    %2902 = vmatprep.subr.mxu0 0.0
    %2903 = vmatpush1.xpose.msra.mxu0 0.0
    %2904 = vmatprep.subr.mxu0 0.0
    %2905 = vmatpush1.xpose.msra.mxu0 0.0
    %2906 = vmatprep.subr.mxu0 0.0
    %2907 = vmatpush1.xpose.msra.mxu0 0.0
    %2908 = vmatprep.subr.mxu0 0.0
    %2909 = vmatpush1.xpose.msra.mxu0 0.0
    %2910 = vmatprep.subr.mxu0 0.0
    %2911 = vmatpush1.xpose.msra.mxu0 0.0
    %2912 = vmatprep.subr.mxu0 0.0
    %2913 = vmatpush1.xpose.msra.mxu0 0.0
    %2914 = vmatprep.subr.mxu0 0.0
    %2915 = vmatpush1.xpose.msra.mxu0 0.0
    %2916 = vmatprep.subr.mxu0 0.0
    %2917 = vmatpush1.xpose.msra.mxu0 0.0
    %2918 = vmatprep.subr.mxu0 0.0
    %2919 = vmatpush1.xpose.msra.mxu0 0.0
    %2920 = vmatprep.subr.mxu0 0.0
    %2921 = vmatpush1.xpose.msra.mxu0 0.0
    %2922 = vmatprep.subr.mxu0 0.0
    %2923 = vmatpush1.xpose.msra.mxu0 0.0
    %2924 = vmatprep.subr.mxu0 0.0
    %2925 = vmatpush1.xpose.msra.mxu0 0.0
    %2926 = vmatprep.subr.mxu0 0.0
    %2927 = vmatpush1.xpose.msra.mxu0 0.0
    %2928 = vmatprep.subr.mxu0 0.0
    %2929 = vmatpush1.xpose.msra.mxu0 0.0
    %2930 = vmatprep.subr.mxu0 0.0
    %2931 = vmatpush1.xpose.msra.mxu0 0.0
    %2932 = vmatprep.subr.mxu0 0.0
    %2933 = vmatpush1.xpose.msra.mxu0 0.0
    %2934 = vmatprep.subr.mxu0 0.0
    %2935 = vmatpush1.xpose.msra.mxu0 0.0
    %2936 = vmatprep.subr.mxu0 0.0
    %2937 = vmatpush1.xpose.msra.mxu0 0.0
    %2938 = vmatprep.subr.mxu0 0.0
    %2939 = vmatpush1.xpose.msra.mxu0 0.0
    %2940 = vmatprep.subr.mxu0 0.0
    %2941 = vmatpush1.xpose.msra.mxu0 0.0
    %2942 = vmatprep.subr.mxu0 0.0
    %2943 = vmatpush1.xpose.msra.mxu0 0.0
    %2944 = vmatprep.subr.mxu0 0.0
    %2945 = vmatpush1.xpose.msra.mxu0 0.0
    %2946 = vmatprep.subr.mxu0 0.0
    %2947 = vmatpush1.xpose.msra.mxu0 0.0
    %2948 = vmatprep.subr.mxu0 0.0
    %2949 = vmatpush1.xpose.msra.mxu0 0.0
    %2950 = vmatprep.subr.mxu0 0.0
    %2951 = vmatpush1.xpose.msra.mxu0 0.0
    %2952 = vmatprep.subr.mxu0 0.0
    %2953 = vmatpush1.xpose.msra.mxu0 0.0
    %2954 = vmatprep.subr.mxu0 0.0
    %2955 = vmatpush1.xpose.msra.mxu0 0.0
    %2956 = vmatprep.subr.mxu0 0.0
    %2957 = vmatpush1.xpose.msra.mxu0 0.0
    %2958 = vmatprep.mubr.f32.mxu0 0.0
    %2959 = vmatmul.mubr.f32.gmra.mrb[0].mxu0 %v2886
    %v2960 = vpop.f32.mrb[0].mxu0
    %v2961 = vadd.f32 %v2576, %v2960
    %v2962 = vpop.f32.mrb[0].mxu0
    %2963 = vmatprep.mubr.f32.mxu0 0.0
    %2964 = vmatmul.mubr.f32.gmra.mrb[0].mxu0 %v2888
    %v2965 = vpop.f32.mrb[0].mxu0
    %v2966 = vadd.f32 %v2577, %v2965
    %v2967 = vpop.f32.mrb[0].mxu0
    %2968 = vdwg.mxu0
    %v2969 = vsel %vm61, %v2961, -inf
    %2970 = vmax.xlane.f32.xlu0 %v2969
    %v2971 = vpop.xlane.xlu0 %2970
    %v2972 = vsel %vm61, %v2966, -inf
    %2973 = vmax.xlane.f32.xlu0 %v2972
    %v2974 = vpop.xlane.xlu0 %2973
    %v2975 = vsub.f32 %v2961, %v2971
    %v2976 = vsub.f32 %v2966, %v2974
    %v2977 = vmul.f32 %v2975, 1.442695
    %v2978 = vpow.pop %v2977
    %v2979 = vmul.f32 %v2976, 1.442695
    %v2980 = vpow.pop %v2979
    %v2981 = vsel %vm61, %v2978, 0.0
    %2982 = vadd.xlane.f32.xlu0 %v2981
    %v2983 = vpop.xlane.xlu0 %2982
    %v2984 = vsel %vm61, %v2980, 0.0
    %2985 = vadd.xlane.f32.xlu0 %v2984
    %v2986 = vpop.xlane.xlu0 %2985
    %v2987 = vrcp.pop %v2983
    %v2988 = vmul.f32 %v2978, %v2987
    %v2989 = vrcp.pop %v2986
    %v2990 = vmul.f32 %v2980, %v2989
    %2991 = vrot.lane.b32.xlu0 %v2662, 56
    %v2992 = vpop.permute.xlu0 %2991
    %2993 = vrot.lane.b32.xlu0 %v2667, 56
    %v2994 = vpop.permute.xlu0 %2993
    %v2998 = vsel %vm61, %v2988, 0
    %v3001 = vsel %vm61, %v2990, 0
    %3003 = vmatprep.subr.mxu0 0.0
    %3004 = vmatpush1.msra.mxu0 %v2992
    %3005 = vmatprep.subr.mxu0 0.0
    %3006 = vmatpush1.msra.mxu0 %v2994
    %3007 = vmatprep.subr.mxu0 0.0
    %3008 = vmatpush1.msra.mxu0 0.0
    %3009 = vmatprep.subr.mxu0 0.0
    %3010 = vmatpush1.msra.mxu0 0.0
    %3011 = vmatprep.subr.mxu0 0.0
    %3012 = vmatpush1.msra.mxu0 0.0
    %3013 = vmatprep.subr.mxu0 0.0
    %3014 = vmatpush1.msra.mxu0 0.0
    %3015 = vmatprep.subr.mxu0 0.0
    %3016 = vmatpush1.msra.mxu0 0.0
    %3017 = vmatprep.subr.mxu0 0.0
    %3018 = vmatpush1.msra.mxu0 0.0
    %3019 = vmatprep.subr.mxu0 0.0
    %3020 = vmatpush1.msra.mxu0 0.0
    %3021 = vmatprep.subr.mxu0 0.0
    %3022 = vmatpush1.msra.mxu0 0.0
    %3023 = vmatprep.subr.mxu0 0.0
    %3024 = vmatpush1.msra.mxu0 0.0
    %3025 = vmatprep.subr.mxu0 0.0
    %3026 = vmatpush1.msra.mxu0 0.0
    %3027 = vmatprep.subr.mxu0 0.0
    %3028 = vmatpush1.msra.mxu0 0.0
    %3029 = vmatprep.subr.mxu0 0.0
    %3030 = vmatpush1.msra.mxu0 0.0
    %3031 = vmatprep.subr.mxu0 0.0
    %3032 = vmatpush1.msra.mxu0 0.0
    %3033 = vmatprep.subr.mxu0 0.0
    %3034 = vmatpush1.msra.mxu0 0.0
    %3035 = vmatprep.subr.mxu0 0.0
    %3036 = vmatpush1.msra.mxu0 0.0
    %3037 = vmatprep.subr.mxu0 0.0
    %3038 = vmatpush1.msra.mxu0 0.0
    %3039 = vmatprep.subr.mxu0 0.0
    %3040 = vmatpush1.msra.mxu0 0.0
    %3041 = vmatprep.subr.mxu0 0.0
    %3042 = vmatpush1.msra.mxu0 0.0
    %3043 = vmatprep.subr.mxu0 0.0
    %3044 = vmatpush1.msra.mxu0 0.0
    %3045 = vmatprep.subr.mxu0 0.0
    %3046 = vmatpush1.msra.mxu0 0.0
    %3047 = vmatprep.subr.mxu0 0.0
    %3048 = vmatpush1.msra.mxu0 0.0
    %3049 = vmatprep.subr.mxu0 0.0
    %3050 = vmatpush1.msra.mxu0 0.0
    %3051 = vmatprep.subr.mxu0 0.0
    %3052 = vmatpush1.msra.mxu0 0.0
    %3053 = vmatprep.subr.mxu0 0.0
    %3054 = vmatpush1.msra.mxu0 0.0
    %3055 = vmatprep.subr.mxu0 0.0
    %3056 = vmatpush1.msra.mxu0 0.0
    %3057 = vmatprep.subr.mxu0 0.0
    %3058 = vmatpush1.msra.mxu0 0.0
    %3059 = vmatprep.subr.mxu0 0.0
    %3060 = vmatpush1.msra.mxu0 0.0
    %3061 = vmatprep.subr.mxu0 0.0
    %3062 = vmatpush1.msra.mxu0 0.0
    %3063 = vmatprep.subr.mxu0 0.0
    %3064 = vmatpush1.msra.mxu0 0.0
    %3065 = vmatprep.subr.mxu0 0.0
    %3066 = vmatpush1.msra.mxu0 0.0
    %3067 = vmatprep.mubr.f32.mxu0 0.0
    %3068 = vmatmul.mubr.f32.gmra.mrb[0].mxu0 %v2998
    %v3069 = vpop.f32.mrb[0].mxu0
    %v3070 = vadd.f32 0.0, %v3069
    %v3071 = vpop.f32.mrb[0].mxu0
    %3072 = vmatprep.mubr.f32.mxu0 0.0
    %3073 = vmatmul.mubr.f32.gmra.mrb[0].mxu0 %v3001
    %v3074 = vpop.f32.mrb[0].mxu0
    %v3075 = vadd.f32 0.0, %v3074
    %v3076 = vpop.f32.mrb[0].mxu0
    %3077 = vdwg.mxu0
    %3078 = vrot.lane.b32.xlu0 %v2675, 112
    %v3079 = vpop.permute.xlu0 %3078
    %3080 = vrot.lane.b32.xlu0 %v2676, 112
    %v3081 = vpop.permute.xlu0 %3080
    %3082 = vrot.lane.b32.xlu0 %v2662, 80
    %v3083 = vpop.permute.xlu0 %3082
    %3084 = vrot.lane.b32.xlu0 %v2667, 80
    %v3085 = vpop.permute.xlu0 %3084
    %v3086 = vsel %vm2683, %v3079, 0
    %v3088 = vsel %vm2683, %v3081, 0
    %v3090 = vsel %vm2683, %v3083, 0
    %v3092 = vsel %vm2683, %v3085, 0
    %3094 = vmatprep.subr.mxu0 0.0
    %3095 = vmatpush1.xpose.msra.mxu0 %v3090
    %3096 = vmatprep.subr.mxu0 0.0
    %3097 = vmatpush1.xpose.msra.mxu0 %v3092
    %3098 = vmatprep.subr.mxu0 0.0
    %3099 = vmatpush1.xpose.msra.mxu0 0.0
    %3100 = vmatprep.subr.mxu0 0.0
    %3101 = vmatpush1.xpose.msra.mxu0 0.0
    %3102 = vmatprep.subr.mxu0 0.0
    %3103 = vmatpush1.xpose.msra.mxu0 0.0
    %3104 = vmatprep.subr.mxu0 0.0
    %3105 = vmatpush1.xpose.msra.mxu0 0.0
    %3106 = vmatprep.subr.mxu0 0.0
    %3107 = vmatpush1.xpose.msra.mxu0 0.0
    %3108 = vmatprep.subr.mxu0 0.0
    %3109 = vmatpush1.xpose.msra.mxu0 0.0
    %3110 = vmatprep.subr.mxu0 0.0
    %3111 = vmatpush1.xpose.msra.mxu0 0.0
    %3112 = vmatprep.subr.mxu0 0.0
    %3113 = vmatpush1.xpose.msra.mxu0 0.0
    %3114 = vmatprep.subr.mxu0 0.0
    %3115 = vmatpush1.xpose.msra.mxu0 0.0
    %3116 = vmatprep.subr.mxu0 0.0
    %3117 = vmatpush1.xpose.msra.mxu0 0.0
    %3118 = vmatprep.subr.mxu0 0.0
    %3119 = vmatpush1.xpose.msra.mxu0 0.0
    %3120 = vmatprep.subr.mxu0 0.0
    %3121 = vmatpush1.xpose.msra.mxu0 0.0
    %3122 = vmatprep.subr.mxu0 0.0
    %3123 = vmatpush1.xpose.msra.mxu0 0.0
    %3124 = vmatprep.subr.mxu0 0.0
    %3125 = vmatpush1.xpose.msra.mxu0 0.0
    %3126 = vmatprep.subr.mxu0 0.0
    %3127 = vmatpush1.xpose.msra.mxu0 0.0
    %3128 = vmatprep.subr.mxu0 0.0
    %3129 = vmatpush1.xpose.msra.mxu0 0.0
    %3130 = vmatprep.subr.mxu0 0.0
    %3131 = vmatpush1.xpose.msra.mxu0 0.0
    %3132 = vmatprep.subr.mxu0 0.0
    %3133 = vmatpush1.xpose.msra.mxu0 0.0
    %3134 = vmatprep.subr.mxu0 0.0
    %3135 = vmatpush1.xpose.msra.mxu0 0.0
    %3136 = vmatprep.subr.mxu0 0.0
    %3137 = vmatpush1.xpose.msra.mxu0 0.0
    %3138 = vmatprep.subr.mxu0 0.0
    %3139 = vmatpush1.xpose.msra.mxu0 0.0
    %3140 = vmatprep.subr.mxu0 0.0
    %3141 = vmatpush1.xpose.msra.mxu0 0.0
    %3142 = vmatprep.subr.mxu0 0.0
    %3143 = vmatpush1.xpose.msra.mxu0 0.0
    %3144 = vmatprep.subr.mxu0 0.0
    %3145 = vmatpush1.xpose.msra.mxu0 0.0
    %3146 = vmatprep.subr.mxu0 0.0
    %3147 = vmatpush1.xpose.msra.mxu0 0.0
    %3148 = vmatprep.subr.mxu0 0.0
    %3149 = vmatpush1.xpose.msra.mxu0 0.0
    %3150 = vmatprep.subr.mxu0 0.0
    %3151 = vmatpush1.xpose.msra.mxu0 0.0
    %3152 = vmatprep.subr.mxu0 0.0
    %3153 = vmatpush1.xpose.msra.mxu0 0.0
    %3154 = vmatprep.subr.mxu0 0.0
    %3155 = vmatpush1.xpose.msra.mxu0 0.0
    %3156 = vmatprep.subr.mxu0 0.0
    %3157 = vmatpush1.xpose.msra.mxu0 0.0
    %3158 = vmatprep.mubr.f32.mxu0 0.0
    %3159 = vmatmul.mubr.f32.gmra.mrb[0].mxu0 %v3086
    %v3160 = vpop.f32.mrb[0].mxu0
    %v3161 = vadd.f32 %v2576, %v3160
    %v3162 = vpop.f32.mrb[0].mxu0
    %3163 = vmatprep.mubr.f32.mxu0 0.0
    %3164 = vmatmul.mubr.f32.gmra.mrb[0].mxu0 %v3088
    %v3165 = vpop.f32.mrb[0].mxu0
    %v3166 = vadd.f32 %v2577, %v3165
    %v3167 = vpop.f32.mrb[0].mxu0
    %3168 = vdwg.mxu0
    %v3169 = vsel %vm61, %v3161, -inf
    %3170 = vmax.xlane.f32.xlu0 %v3169
    %v3171 = vpop.xlane.xlu0 %3170
    %v3172 = vsel %vm61, %v3166, -inf
    %3173 = vmax.xlane.f32.xlu0 %v3172
    %v3174 = vpop.xlane.xlu0 %3173
    %v3175 = vsub.f32 %v3161, %v3171
    %v3176 = vsub.f32 %v3166, %v3174
    %v3177 = vmul.f32 %v3175, 1.442695
    %v3178 = vpow.pop %v3177
    %v3179 = vmul.f32 %v3176, 1.442695
    %v3180 = vpow.pop %v3179
    %v3181 = vsel %vm61, %v3178, 0.0
    %3182 = vadd.xlane.f32.xlu0 %v3181
    %v3183 = vpop.xlane.xlu0 %3182
    %v3184 = vsel %vm61, %v3180, 0.0
    %3185 = vadd.xlane.f32.xlu0 %v3184
    %v3186 = vpop.xlane.xlu0 %3185
    %v3187 = vrcp.pop %v3183
    %v3188 = vmul.f32 %v3178, %v3187
    %v3189 = vrcp.pop %v3186
    %v3190 = vmul.f32 %v3180, %v3189
    %3191 = vrot.lane.b32.xlu0 %v2662, 48
    %v3192 = vpop.permute.xlu0 %3191
    %3193 = vrot.lane.b32.xlu0 %v2667, 48
    %v3194 = vpop.permute.xlu0 %3193
    %v3198 = vsel %vm61, %v3188, 0
    %v3201 = vsel %vm61, %v3190, 0
    %3203 = vmatprep.subr.mxu0 0.0
    %3204 = vmatpush1.msra.mxu0 %v3192
    %3205 = vmatprep.subr.mxu0 0.0
    %3206 = vmatpush1.msra.mxu0 %v3194
    %3207 = vmatprep.subr.mxu0 0.0
    %3208 = vmatpush1.msra.mxu0 0.0
    %3209 = vmatprep.subr.mxu0 0.0
    %3210 = vmatpush1.msra.mxu0 0.0
    %3211 = vmatprep.subr.mxu0 0.0
    %3212 = vmatpush1.msra.mxu0 0.0
    %3213 = vmatprep.subr.mxu0 0.0
    %3214 = vmatpush1.msra.mxu0 0.0
    %3215 = vmatprep.subr.mxu0 0.0
    %3216 = vmatpush1.msra.mxu0 0.0
    %3217 = vmatprep.subr.mxu0 0.0
    %3218 = vmatpush1.msra.mxu0 0.0
    %3219 = vmatprep.subr.mxu0 0.0
    %3220 = vmatpush1.msra.mxu0 0.0
    %3221 = vmatprep.subr.mxu0 0.0
    %3222 = vmatpush1.msra.mxu0 0.0
    %3223 = vmatprep.subr.mxu0 0.0
    %3224 = vmatpush1.msra.mxu0 0.0
    %3225 = vmatprep.subr.mxu0 0.0
    %3226 = vmatpush1.msra.mxu0 0.0
    %3227 = vmatprep.subr.mxu0 0.0
    %3228 = vmatpush1.msra.mxu0 0.0
    %3229 = vmatprep.subr.mxu0 0.0
    %3230 = vmatpush1.msra.mxu0 0.0
    %3231 = vmatprep.subr.mxu0 0.0
    %3232 = vmatpush1.msra.mxu0 0.0
    %3233 = vmatprep.subr.mxu0 0.0
    %3234 = vmatpush1.msra.mxu0 0.0
    %3235 = vmatprep.subr.mxu0 0.0
    %3236 = vmatpush1.msra.mxu0 0.0
    %3237 = vmatprep.subr.mxu0 0.0
    %3238 = vmatpush1.msra.mxu0 0.0
    %3239 = vmatprep.subr.mxu0 0.0
    %3240 = vmatpush1.msra.mxu0 0.0
    %3241 = vmatprep.subr.mxu0 0.0
    %3242 = vmatpush1.msra.mxu0 0.0
    %3243 = vmatprep.subr.mxu0 0.0
    %3244 = vmatpush1.msra.mxu0 0.0
    %3245 = vmatprep.subr.mxu0 0.0
    %3246 = vmatpush1.msra.mxu0 0.0
    %3247 = vmatprep.subr.mxu0 0.0
    %3248 = vmatpush1.msra.mxu0 0.0
    %3249 = vmatprep.subr.mxu0 0.0
    %3250 = vmatpush1.msra.mxu0 0.0
    %3251 = vmatprep.subr.mxu0 0.0
    %3252 = vmatpush1.msra.mxu0 0.0
    %3253 = vmatprep.subr.mxu0 0.0
    %3254 = vmatpush1.msra.mxu0 0.0
    %3255 = vmatprep.subr.mxu0 0.0
    %3256 = vmatpush1.msra.mxu0 0.0
    %3257 = vmatprep.subr.mxu0 0.0
    %3258 = vmatpush1.msra.mxu0 0.0
    %3259 = vmatprep.subr.mxu0 0.0
    %3260 = vmatpush1.msra.mxu0 0.0
    %3261 = vmatprep.subr.mxu0 0.0
    %3262 = vmatpush1.msra.mxu0 0.0
    %3263 = vmatprep.subr.mxu0 0.0
    %3264 = vmatpush1.msra.mxu0 0.0
    %3265 = vmatprep.subr.mxu0 0.0
    %3266 = vmatpush1.msra.mxu0 0.0
    %3267 = vmatprep.mubr.f32.mxu0 0.0
    %3268 = vmatmul.mubr.f32.gmra.mrb[0].mxu0 %v3198
    %v3269 = vpop.f32.mrb[0].mxu0
    %v3270 = vadd.f32 0.0, %v3269
    %v3271 = vpop.f32.mrb[0].mxu0
    %3272 = vmatprep.mubr.f32.mxu0 0.0
    %3273 = vmatmul.mubr.f32.gmra.mrb[0].mxu0 %v3201
    %v3274 = vpop.f32.mrb[0].mxu0
    %v3275 = vadd.f32 0.0, %v3274
    %v3276 = vpop.f32.mrb[0].mxu0
    %3277 = vdwg.mxu0
    %3278 = vrot.lane.b32.xlu0 %v2675, 104
    %v3279 = vpop.permute.xlu0 %3278
    %3280 = vrot.lane.b32.xlu0 %v2676, 104
    %v3281 = vpop.permute.xlu0 %3280
    %3282 = vrot.lane.b32.xlu0 %v2662, 72
    %v3283 = vpop.permute.xlu0 %3282
    %3284 = vrot.lane.b32.xlu0 %v2667, 72
    %v3285 = vpop.permute.xlu0 %3284
    %v3286 = vsel %vm2683, %v3279, 0
    %v3288 = vsel %vm2683, %v3281, 0
    %v3290 = vsel %vm2683, %v3283, 0
    %v3292 = vsel %vm2683, %v3285, 0
    %3294 = vmatprep.subr.mxu0 0.0
    %3295 = vmatpush1.xpose.msra.mxu0 %v3290
    %3296 = vmatprep.subr.mxu0 0.0
    %3297 = vmatpush1.xpose.msra.mxu0 %v3292
    %3298 = vmatprep.subr.mxu0 0.0
    %3299 = vmatpush1.xpose.msra.mxu0 0.0
    %3300 = vmatprep.subr.mxu0 0.0
    %3301 = vmatpush1.xpose.msra.mxu0 0.0
    %3302 = vmatprep.subr.mxu0 0.0
    %3303 = vmatpush1.xpose.msra.mxu0 0.0
    %3304 = vmatprep.subr.mxu0 0.0
    %3305 = vmatpush1.xpose.msra.mxu0 0.0
    %3306 = vmatprep.subr.mxu0 0.0
    %3307 = vmatpush1.xpose.msra.mxu0 0.0
    %3308 = vmatprep.subr.mxu0 0.0
    %3309 = vmatpush1.xpose.msra.mxu0 0.0
    %3310 = vmatprep.subr.mxu0 0.0
    %3311 = vmatpush1.xpose.msra.mxu0 0.0
    %3312 = vmatprep.subr.mxu0 0.0
    %3313 = vmatpush1.xpose.msra.mxu0 0.0
    %3314 = vmatprep.subr.mxu0 0.0
    %3315 = vmatpush1.xpose.msra.mxu0 0.0
    %3316 = vmatprep.subr.mxu0 0.0
    %3317 = vmatpush1.xpose.msra.mxu0 0.0
    %3318 = vmatprep.subr.mxu0 0.0
    %3319 = vmatpush1.xpose.msra.mxu0 0.0
    %3320 = vmatprep.subr.mxu0 0.0
    %3321 = vmatpush1.xpose.msra.mxu0 0.0
    %3322 = vmatprep.subr.mxu0 0.0
    %3323 = vmatpush1.xpose.msra.mxu0 0.0
    %3324 = vmatprep.subr.mxu0 0.0
    %3325 = vmatpush1.xpose.msra.mxu0 0.0
    %3326 = vmatprep.subr.mxu0 0.0
    %3327 = vmatpush1.xpose.msra.mxu0 0.0
    %3328 = vmatprep.subr.mxu0 0.0
    %3329 = vmatpush1.xpose.msra.mxu0 0.0
    %3330 = vmatprep.subr.mxu0 0.0
    %3331 = vmatpush1.xpose.msra.mxu0 0.0
    %3332 = vmatprep.subr.mxu0 0.0
    %3333 = vmatpush1.xpose.msra.mxu0 0.0
    %3334 = vmatprep.subr.mxu0 0.0
    %3335 = vmatpush1.xpose.msra.mxu0 0.0
    %3336 = vmatprep.subr.mxu0 0.0
    %3337 = vmatpush1.xpose.msra.mxu0 0.0
    %3338 = vmatprep.subr.mxu0 0.0
    %3339 = vmatpush1.xpose.msra.mxu0 0.0
    %3340 = vmatprep.subr.mxu0 0.0
    %3341 = vmatpush1.xpose.msra.mxu0 0.0
    %3342 = vmatprep.subr.mxu0 0.0
    %3343 = vmatpush1.xpose.msra.mxu0 0.0
    %3344 = vmatprep.subr.mxu0 0.0
    %3345 = vmatpush1.xpose.msra.mxu0 0.0
    %3346 = vmatprep.subr.mxu0 0.0
    %3347 = vmatpush1.xpose.msra.mxu0 0.0
    %3348 = vmatprep.subr.mxu0 0.0
    %3349 = vmatpush1.xpose.msra.mxu0 0.0
    %3350 = vmatprep.subr.mxu0 0.0
    %3351 = vmatpush1.xpose.msra.mxu0 0.0
    %3352 = vmatprep.subr.mxu0 0.0
    %3353 = vmatpush1.xpose.msra.mxu0 0.0
    %3354 = vmatprep.subr.mxu0 0.0
    %3355 = vmatpush1.xpose.msra.mxu0 0.0
    %3356 = vmatprep.subr.mxu0 0.0
    %3357 = vmatpush1.xpose.msra.mxu0 0.0
    %3358 = vmatprep.mubr.f32.mxu0 0.0
    %3359 = vmatmul.mubr.f32.gmra.mrb[0].mxu0 %v3286
    %v3360 = vpop.f32.mrb[0].mxu0
    %v3361 = vadd.f32 %v2576, %v3360
    %v3362 = vpop.f32.mrb[0].mxu0
    %3363 = vmatprep.mubr.f32.mxu0 0.0
    %3364 = vmatmul.mubr.f32.gmra.mrb[0].mxu0 %v3288
    %v3365 = vpop.f32.mrb[0].mxu0
    %v3366 = vadd.f32 %v2577, %v3365
    %v3367 = vpop.f32.mrb[0].mxu0
    %3368 = vdwg.mxu0
    %v3369 = vsel %vm61, %v3361, -inf
    %3370 = vmax.xlane.f32.xlu0 %v3369
    %v3371 = vpop.xlane.xlu0 %3370
    %v3372 = vsel %vm61, %v3366, -inf
    %3373 = vmax.xlane.f32.xlu0 %v3372
    %v3374 = vpop.xlane.xlu0 %3373
    %v3375 = vsub.f32 %v3361, %v3371
    %v3376 = vsub.f32 %v3366, %v3374
    %v3377 = vmul.f32 %v3375, 1.442695
    %v3378 = vpow.pop %v3377
    %v3379 = vmul.f32 %v3376, 1.442695
    %v3380 = vpow.pop %v3379
    %v3381 = vsel %vm61, %v3378, 0.0
    %3382 = vadd.xlane.f32.xlu0 %v3381
    %v3383 = vpop.xlane.xlu0 %3382
    %v3384 = vsel %vm61, %v3380, 0.0
    %3385 = vadd.xlane.f32.xlu0 %v3384
    %v3386 = vpop.xlane.xlu0 %3385
    %v3387 = vrcp.pop %v3383
    %v3388 = vmul.f32 %v3378, %v3387
    %v3389 = vrcp.pop %v3386
    %v3390 = vmul.f32 %v3380, %v3389
    %3391 = vrot.lane.b32.xlu0 %v2662, 40
    %v3392 = vpop.permute.xlu0 %3391
    %3393 = vrot.lane.b32.xlu0 %v2667, 40
    %v3394 = vpop.permute.xlu0 %3393
    %v3398 = vsel %vm61, %v3388, 0
    %v3401 = vsel %vm61, %v3390, 0
    %3403 = vmatprep.subr.mxu0 0.0
    %3404 = vmatpush1.msra.mxu0 %v3392
    %3405 = vmatprep.subr.mxu0 0.0
    %3406 = vmatpush1.msra.mxu0 %v3394
    %3407 = vmatprep.subr.mxu0 0.0
    %3408 = vmatpush1.msra.mxu0 0.0
    %3409 = vmatprep.subr.mxu0 0.0
    %3410 = vmatpush1.msra.mxu0 0.0
    %3411 = vmatprep.subr.mxu0 0.0
    %3412 = vmatpush1.msra.mxu0 0.0
    %3413 = vmatprep.subr.mxu0 0.0
    %3414 = vmatpush1.msra.mxu0 0.0
    %3415 = vmatprep.subr.mxu0 0.0
    %3416 = vmatpush1.msra.mxu0 0.0
    %3417 = vmatprep.subr.mxu0 0.0
    %3418 = vmatpush1.msra.mxu0 0.0
    %3419 = vmatprep.subr.mxu0 0.0
    %3420 = vmatpush1.msra.mxu0 0.0
    %3421 = vmatprep.subr.mxu0 0.0
    %3422 = vmatpush1.msra.mxu0 0.0
    %3423 = vmatprep.subr.mxu0 0.0
    %3424 = vmatpush1.msra.mxu0 0.0
    %3425 = vmatprep.subr.mxu0 0.0
    %3426 = vmatpush1.msra.mxu0 0.0
    %3427 = vmatprep.subr.mxu0 0.0
    %3428 = vmatpush1.msra.mxu0 0.0
    %3429 = vmatprep.subr.mxu0 0.0
    %3430 = vmatpush1.msra.mxu0 0.0
    %3431 = vmatprep.subr.mxu0 0.0
    %3432 = vmatpush1.msra.mxu0 0.0
    %3433 = vmatprep.subr.mxu0 0.0
    %3434 = vmatpush1.msra.mxu0 0.0
    %3435 = vmatprep.subr.mxu0 0.0
    %3436 = vmatpush1.msra.mxu0 0.0
    %3437 = vmatprep.subr.mxu0 0.0
    %3438 = vmatpush1.msra.mxu0 0.0
    %3439 = vmatprep.subr.mxu0 0.0
    %3440 = vmatpush1.msra.mxu0 0.0
    %3441 = vmatprep.subr.mxu0 0.0
    %3442 = vmatpush1.msra.mxu0 0.0
    %3443 = vmatprep.subr.mxu0 0.0
    %3444 = vmatpush1.msra.mxu0 0.0
    %3445 = vmatprep.subr.mxu0 0.0
    %3446 = vmatpush1.msra.mxu0 0.0
    %3447 = vmatprep.subr.mxu0 0.0
    %3448 = vmatpush1.msra.mxu0 0.0
    %3449 = vmatprep.subr.mxu0 0.0
    %3450 = vmatpush1.msra.mxu0 0.0
    %3451 = vmatprep.subr.mxu0 0.0
    %3452 = vmatpush1.msra.mxu0 0.0
    %3453 = vmatprep.subr.mxu0 0.0
    %3454 = vmatpush1.msra.mxu0 0.0
    %3455 = vmatprep.subr.mxu0 0.0
    %3456 = vmatpush1.msra.mxu0 0.0
    %3457 = vmatprep.subr.mxu0 0.0
    %3458 = vmatpush1.msra.mxu0 0.0
    %3459 = vmatprep.subr.mxu0 0.0
    %3460 = vmatpush1.msra.mxu0 0.0
    %3461 = vmatprep.subr.mxu0 0.0
    %3462 = vmatpush1.msra.mxu0 0.0
    %3463 = vmatprep.subr.mxu0 0.0
    %3464 = vmatpush1.msra.mxu0 0.0
    %3465 = vmatprep.subr.mxu0 0.0
    %3466 = vmatpush1.msra.mxu0 0.0
    %3467 = vmatprep.mubr.f32.mxu0 0.0
    %3468 = vmatmul.mubr.f32.gmra.mrb[0].mxu0 %v3398
    %v3469 = vpop.f32.mrb[0].mxu0
    %v3470 = vadd.f32 0.0, %v3469
    %v3471 = vpop.f32.mrb[0].mxu0
    %3472 = vmatprep.mubr.f32.mxu0 0.0
    %3473 = vmatmul.mubr.f32.gmra.mrb[0].mxu0 %v3401
    %v3474 = vpop.f32.mrb[0].mxu0
    %v3475 = vadd.f32 0.0, %v3474
    %v3476 = vpop.f32.mrb[0].mxu0
    %3477 = vdwg.mxu0
    %3480 = vrot.lane.b32.xlu0 %v3070, 8
    %v3481 = vpop.permute.xlu0 %3480
    %3482 = vrot.lane.b32.xlu0 %v3075, 8
    %v3483 = vpop.permute.xlu0 %3482
    %3488 = vrot.lane.b32.xlu0 %v3270, 16
    %v3489 = vpop.permute.xlu0 %3488
    %3490 = vrot.lane.b32.xlu0 %v3275, 16
    %v3491 = vpop.permute.xlu0 %3490
    %3496 = vrot.lane.b32.xlu0 %v3470, 24
    %v3497 = vpop.permute.xlu0 %3496
    %3498 = vrot.lane.b32.xlu0 %v3475, 24
    %v3499 = vpop.permute.xlu0 %3498
    %v3502 = vsel %vm2683, %v2870, %v3481
    %v3503 = vsel %vm2683, %v2875, %v3483
    %v3504 = vsel %vm61, %v3502, %v3489
    %v3505 = vsel %vm61, %v3503, %v3491
    %vm3506 = vcmask 195584
    %v3507 = vsel %vm3506, %v3504, %v3497
    %v3508 = vsel %vm3506, %v3505, %v3499
    %v3509 = vlaneseq
    %v3510 = vshrl.u32 %v3509, 7
    %v3511 = vsub.s32 0, %v3510
    %v3512 = vrot.slane %v2674, %v3511
    %v3514 = vsel %vm269, %v3507, 0
    %v3517 = vsel %vm269, %v3508, 0
    %3519 = vmatprep.subr.mxu0 0.0
    %3520 = vmatpush1.msra.mxu0 %v2670
    %3521 = vmatprep.subr.mxu0 0.0
    %3522 = vmatpush1.msra.mxu0 %v2671
    %3523 = vmatprep.subr.mxu0 0.0
    %3524 = vmatpush1.msra.mxu0 %v2672
    %3525 = vmatprep.subr.mxu0 0.0
    %3526 = vmatpush1.msra.mxu0 %v2673
    %3527 = vmatprep.subr.mxu0 0.0
    %3528 = vmatpush1.msra.mxu0 0.0
    %3529 = vmatprep.subr.mxu0 0.0
    %3530 = vmatpush1.msra.mxu0 0.0
    %3531 = vmatprep.subr.mxu0 0.0
    %3532 = vmatpush1.msra.mxu0 0.0
    %3533 = vmatprep.subr.mxu0 0.0
    %3534 = vmatpush1.msra.mxu0 0.0
    %3535 = vmatprep.subr.mxu0 0.0
    %3536 = vmatpush1.msra.mxu0 0.0
    %3537 = vmatprep.subr.mxu0 0.0
    %3538 = vmatpush1.msra.mxu0 0.0
    %3539 = vmatprep.subr.mxu0 0.0
    %3540 = vmatpush1.msra.mxu0 0.0
    %3541 = vmatprep.subr.mxu0 0.0
    %3542 = vmatpush1.msra.mxu0 0.0
    %3543 = vmatprep.subr.mxu0 0.0
    %3544 = vmatpush1.msra.mxu0 0.0
    %3545 = vmatprep.subr.mxu0 0.0
    %3546 = vmatpush1.msra.mxu0 0.0
    %3547 = vmatprep.subr.mxu0 0.0
    %3548 = vmatpush1.msra.mxu0 0.0
    %3549 = vmatprep.subr.mxu0 0.0
    %3550 = vmatpush1.msra.mxu0 0.0
    %3551 = vmatprep.subr.mxu0 0.0
    %3552 = vmatpush1.msra.mxu0 0.0
    %3553 = vmatprep.subr.mxu0 0.0
    %3554 = vmatpush1.msra.mxu0 0.0
    %3555 = vmatprep.subr.mxu0 0.0
    %3556 = vmatpush1.msra.mxu0 0.0
    %3557 = vmatprep.subr.mxu0 0.0
    %3558 = vmatpush1.msra.mxu0 0.0
    %3559 = vmatprep.subr.mxu0 0.0
    %3560 = vmatpush1.msra.mxu0 0.0
    %3561 = vmatprep.subr.mxu0 0.0
    %3562 = vmatpush1.msra.mxu0 0.0
    %3563 = vmatprep.subr.mxu0 0.0
    %3564 = vmatpush1.msra.mxu0 0.0
    %3565 = vmatprep.subr.mxu0 0.0
    %3566 = vmatpush1.msra.mxu0 0.0
    %3567 = vmatprep.subr.mxu0 0.0
    %3568 = vmatpush1.msra.mxu0 0.0
    %3569 = vmatprep.subr.mxu0 0.0
    %3570 = vmatpush1.msra.mxu0 0.0
    %3571 = vmatprep.subr.mxu0 0.0
    %3572 = vmatpush1.msra.mxu0 0.0
    %3573 = vmatprep.subr.mxu0 0.0
    %3574 = vmatpush1.msra.mxu0 0.0
    %3575 = vmatprep.subr.mxu0 0.0
    %3576 = vmatpush1.msra.mxu0 0.0
    %3577 = vmatprep.subr.mxu0 0.0
    %3578 = vmatpush1.msra.mxu0 0.0
    %3579 = vmatprep.subr.mxu0 0.0
    %3580 = vmatpush1.msra.mxu0 0.0
    %3581 = vmatprep.subr.mxu0 0.0
    %3582 = vmatpush1.msra.mxu0 0.0
    %3583 = vmatprep.mubr.f32.mxu0 0.0
    %3584 = vmatmul.mubr.f32.gmra.mrb[0].mxu0 %v3514
    %v3585 = vpop.f32.mrb[0].mxu0
    %v3586 = vadd.f32 %v3512, %v3585
    %v3587 = vpop.f32.mrb[0].mxu0
    %3588 = vmatprep.mubr.f32.mxu0 0.0
    %3589 = vmatmul.mubr.f32.gmra.mrb[0].mxu0 %v3517
    %v3590 = vpop.f32.mrb[0].mxu0
    %v3591 = vadd.f32 %v3512, %v3590
    %v3592 = vpop.f32.mrb[0].mxu0
    %3593 = vdwg.mxu0
    %v3594 = vadd.f32 %v2568, %v3586
    %v3595 = vadd.f32 %v2573, %v3591
    %v3596 = vsel %vm269, %v3594, 0.0
    %3597 = vadd.xlane.f32.xlu0 %v3596
    %v3598 = vpop.xlane.xlu0 %3597
    %v3599 = vsel %vm269, %v3595, 0.0
    %3600 = vadd.xlane.f32.xlu0 %v3599
    %v3601 = vpop.xlane.xlu0 %3600
    %v3602 = vrcp.pop 32.0
    %v3603 = vmul.f32 %v3598, %v3602
    %v3604 = vmul.f32 %v3601, %v3602
    %v3605 = vsub.f32 %v3594, %v3603
    %v3606 = vsub.f32 %v3595, %v3604
    %v3607 = vmul.f32 %v3605, %v3605
    %v3608 = vmul.f32 %v3606, %v3606
    %v3609 = vsel %vm269, %v3607, 0.0
    %3610 = vadd.xlane.f32.xlu0 %v3609
    %v3611 = vpop.xlane.xlu0 %3610
    %v3612 = vsel %vm269, %v3608, 0.0
    %3613 = vadd.xlane.f32.xlu0 %v3612
    %v3614 = vpop.xlane.xlu0 %3613
    %v3615 = vmul.f32 %v3611, %v3602
    %v3616 = vmul.f32 %v3614, %v3602
    %v3617 = vadd.f32 %v3615, 1e-05
    %v3618 = vadd.f32 %v3616, 1e-05
    %v3619 = vrsqrt.pop %v3617
    %v3620 = vrsqrt.pop %v3618
    %v3621 = vmul.f32 %v3605, %v3619
    %v3622 = vmul.f32 %v3606, %v3620
    %v3623 = vld [vmem:[#allocation4 + $0x180] sm:$0x1]
    %v3624 = vlaneseq
    %v3625 = vshrl.u32 %v3624, 7
    %v3626 = vsub.s32 0, %v3625
    %v3627 = vrot.slane %v3623, %v3626
    %v3628 = vmul.f32 %v3621, %v3627
    %v3629 = vmul.f32 %v3622, %v3627
    %v3630 = vld [vmem:[#allocation4 + $0x188] sm:$0x1]
    %v3631 = vlaneseq
    %v3632 = vshrl.u32 %v3631, 7
    %v3633 = vsub.s32 0, %v3632
    %v3634 = vrot.slane %v3630, %v3633
    %v3635 = vadd.f32 %v3628, %v3634
    %v3636 = vadd.f32 %v3629, %v3634
    %v3637 = vld [vmem:[#allocation4 + $0x98] sm:$0xff]
    %v3638 = vld [vmem:[#allocation4 + $0xa0] sm:$0xff]
    %v3639 = vld [vmem:[#allocation4 + $0xa8] sm:$0xff]
    %v3640 = vld [vmem:[#allocation4 + $0xb0] sm:$0xff]
    %v3641 = vld [vmem:[#allocation4 + $0xb8] sm:$0x1]
    %v3642 = vlaneseq
    %v3643 = vshrl.u32 %v3642, 7
    %v3644 = vsub.s32 0, %v3643
    %v3645 = vrot.slane %v3641, %v3644
    %v3647 = vsel %vm269, %v3635, 0
    %v3650 = vsel %vm269, %v3636, 0
    %3652 = vmatprep.subr.mxu0 0.0
    %3653 = vmatpush1.msra.mxu0 %v3637
    %3654 = vmatprep.subr.mxu0 0.0
    %3655 = vmatpush1.msra.mxu0 %v3638
    %3656 = vmatprep.subr.mxu0 0.0
    %3657 = vmatpush1.msra.mxu0 %v3639
    %3658 = vmatprep.subr.mxu0 0.0
    %3659 = vmatpush1.msra.mxu0 %v3640
    %3660 = vmatprep.subr.mxu0 0.0
    %3661 = vmatpush1.msra.mxu0 0.0
    %3662 = vmatprep.subr.mxu0 0.0
    %3663 = vmatpush1.msra.mxu0 0.0
    %3664 = vmatprep.subr.mxu0 0.0
    %3665 = vmatpush1.msra.mxu0 0.0
    %3666 = vmatprep.subr.mxu0 0.0
    %3667 = vmatpush1.msra.mxu0 0.0
    %3668 = vmatprep.subr.mxu0 0.0
    %3669 = vmatpush1.msra.mxu0 0.0
    %3670 = vmatprep.subr.mxu0 0.0
    %3671 = vmatpush1.msra.mxu0 0.0
    %3672 = vmatprep.subr.mxu0 0.0
    %3673 = vmatpush1.msra.mxu0 0.0
    %3674 = vmatprep.subr.mxu0 0.0
    %3675 = vmatpush1.msra.mxu0 0.0
    %3676 = vmatprep.subr.mxu0 0.0
    %3677 = vmatpush1.msra.mxu0 0.0
    %3678 = vmatprep.subr.mxu0 0.0
    %3679 = vmatpush1.msra.mxu0 0.0
    %3680 = vmatprep.subr.mxu0 0.0
    %3681 = vmatpush1.msra.mxu0 0.0
    %3682 = vmatprep.subr.mxu0 0.0
    %3683 = vmatpush1.msra.mxu0 0.0
    %3684 = vmatprep.subr.mxu0 0.0
    %3685 = vmatpush1.msra.mxu0 0.0
    %3686 = vmatprep.subr.mxu0 0.0
    %3687 = vmatpush1.msra.mxu0 0.0
    %3688 = vmatprep.subr.mxu0 0.0
    %3689 = vmatpush1.msra.mxu0 0.0
    %3690 = vmatprep.subr.mxu0 0.0
    %3691 = vmatpush1.msra.mxu0 0.0
    %3692 = vmatprep.subr.mxu0 0.0
    %3693 = vmatpush1.msra.mxu0 0.0
    %3694 = vmatprep.subr.mxu0 0.0
    %3695 = vmatpush1.msra.mxu0 0.0
    %3696 = vmatprep.subr.mxu0 0.0
    %3697 = vmatpush1.msra.mxu0 0.0
    %3698 = vmatprep.subr.mxu0 0.0
    %3699 = vmatpush1.msra.mxu0 0.0
    %3700 = vmatprep.subr.mxu0 0.0
    %3701 = vmatpush1.msra.mxu0 0.0
    %3702 = vmatprep.subr.mxu0 0.0
    %3703 = vmatpush1.msra.mxu0 0.0
    %3704 = vmatprep.subr.mxu0 0.0
    %3705 = vmatpush1.msra.mxu0 0.0
    %3706 = vmatprep.subr.mxu0 0.0
    %3707 = vmatpush1.msra.mxu0 0.0
    %3708 = vmatprep.subr.mxu0 0.0
    %3709 = vmatpush1.msra.mxu0 0.0
    %3710 = vmatprep.subr.mxu0 0.0
    %3711 = vmatpush1.msra.mxu0 0.0
    %3712 = vmatprep.subr.mxu0 0.0
    %3713 = vmatpush1.msra.mxu0 0.0
    %3714 = vmatprep.subr.mxu0 0.0
    %3715 = vmatpush1.msra.mxu0 0.0
    %3716 = vmatprep.mubr.f32.mxu0 0.0
    %3717 = vmatmul.mubr.f32.gmra.mrb[0].mxu0 %v3647
    %v3718 = vpop.f32.mrb[0].mxu0
    %v3719 = vadd.f32 %v3645, %v3718
    %v3720 = vpop.f32.mrb[0].mxu0
    %3721 = vmatprep.mubr.f32.mxu0 0.0
    %3722 = vmatmul.mubr.f32.gmra.mrb[0].mxu0 %v3650
    %v3723 = vpop.f32.mrb[0].mxu0
    %v3724 = vadd.f32 %v3645, %v3723
    %v3725 = vpop.f32.mrb[0].mxu0
    %3726 = vdwg.mxu0
    %v3727 = vld [vmem:[#allocation4 + $0xc0] sm:$0xff]
    %v3728 = vld [vmem:[#allocation4 + $0xc8] sm:$0xff]
    %v3729 = vld [vmem:[#allocation4 + $0xd0] sm:$0xff]
    %v3730 = vld [vmem:[#allocation4 + $0xd8] sm:$0xff]
    %v3731 = vld [vmem:[#allocation4 + $0xe0] sm:$0x1]
    %v3732 = vlaneseq
    %v3733 = vshrl.u32 %v3732, 7
    %v3734 = vsub.s32 0, %v3733
    %v3735 = vrot.slane %v3731, %v3734
    %v3737 = vsel %vm269, %v2465, 0
    %v3740 = vsel %vm269, %v2466, 0
    %v3743 = vsel %vm269, %v2467, 0
    %v3746 = vsel %vm269, %v2468, 0
    %3748 = vmatprep.subr.mxu0 0.0
    %3749 = vmatpush1.msra.mxu0 %v3727
    %3750 = vmatprep.subr.mxu0 0.0
    %3751 = vmatpush1.msra.mxu0 %v3728
    %3752 = vmatprep.subr.mxu0 0.0
    %3753 = vmatpush1.msra.mxu0 %v3729
    %3754 = vmatprep.subr.mxu0 0.0
    %3755 = vmatpush1.msra.mxu0 %v3730
    %3756 = vmatprep.subr.mxu0 0.0
    %3757 = vmatpush1.msra.mxu0 0.0
    %3758 = vmatprep.subr.mxu0 0.0
    %3759 = vmatpush1.msra.mxu0 0.0
    %3760 = vmatprep.subr.mxu0 0.0
    %3761 = vmatpush1.msra.mxu0 0.0
    %3762 = vmatprep.subr.mxu0 0.0
    %3763 = vmatpush1.msra.mxu0 0.0
    %3764 = vmatprep.subr.mxu0 0.0
    %3765 = vmatpush1.msra.mxu0 0.0
    %3766 = vmatprep.subr.mxu0 0.0
    %3767 = vmatpush1.msra.mxu0 0.0
    %3768 = vmatprep.subr.mxu0 0.0
    %3769 = vmatpush1.msra.mxu0 0.0
    %3770 = vmatprep.subr.mxu0 0.0
    %3771 = vmatpush1.msra.mxu0 0.0
    %3772 = vmatprep.subr.mxu0 0.0
    %3773 = vmatpush1.msra.mxu0 0.0
    %3774 = vmatprep.subr.mxu0 0.0
    %3775 = vmatpush1.msra.mxu0 0.0
    %3776 = vmatprep.subr.mxu0 0.0
    %3777 = vmatpush1.msra.mxu0 0.0
    %3778 = vmatprep.subr.mxu0 0.0
    %3779 = vmatpush1.msra.mxu0 0.0
    %3780 = vmatprep.subr.mxu0 0.0
    %3781 = vmatpush1.msra.mxu0 0.0
    %3782 = vmatprep.subr.mxu0 0.0
    %3783 = vmatpush1.msra.mxu0 0.0
    %3784 = vmatprep.subr.mxu0 0.0
    %3785 = vmatpush1.msra.mxu0 0.0
    %3786 = vmatprep.subr.mxu0 0.0
    %3787 = vmatpush1.msra.mxu0 0.0
    %3788 = vmatprep.subr.mxu0 0.0
    %3789 = vmatpush1.msra.mxu0 0.0
    %3790 = vmatprep.subr.mxu0 0.0
    %3791 = vmatpush1.msra.mxu0 0.0
    %3792 = vmatprep.subr.mxu0 0.0
    %3793 = vmatpush1.msra.mxu0 0.0
    %3794 = vmatprep.subr.mxu0 0.0
    %3795 = vmatpush1.msra.mxu0 0.0
    %3796 = vmatprep.subr.mxu0 0.0
    %3797 = vmatpush1.msra.mxu0 0.0
    %3798 = vmatprep.subr.mxu0 0.0
    %3799 = vmatpush1.msra.mxu0 0.0
    %3800 = vmatprep.subr.mxu0 0.0
    %3801 = vmatpush1.msra.mxu0 0.0
    %3802 = vmatprep.subr.mxu0 0.0
    %3803 = vmatpush1.msra.mxu0 0.0
    %3804 = vmatprep.subr.mxu0 0.0
    %3805 = vmatpush1.msra.mxu0 0.0
    %3806 = vmatprep.subr.mxu0 0.0
    %3807 = vmatpush1.msra.mxu0 0.0
    %3808 = vmatprep.subr.mxu0 0.0
    %3809 = vmatpush1.msra.mxu0 0.0
    %3810 = vmatprep.subr.mxu0 0.0
    %3811 = vmatpush1.msra.mxu0 0.0
    %3812 = vmatprep.mubr.f32.mxu0 0.0
    %3813 = vmatmul.mubr.f32.gmra.mrb[0].mxu0 %v3737
    %v3814 = vpop.f32.mrb[0].mxu0
    %v3815 = vadd.f32 %v3735, %v3814
    %v3816 = vpop.f32.mrb[0].mxu0
    %3817 = vmatprep.mubr.f32.mxu0 0.0
    %3818 = vmatmul.mubr.f32.gmra.mrb[0].mxu0 %v3740
    %v3819 = vpop.f32.mrb[0].mxu0
    %v3820 = vadd.f32 %v3735, %v3819
    %v3821 = vpop.f32.mrb[0].mxu0
    %3822 = vmatprep.mubr.f32.mxu0 0.0
    %3823 = vmatmul.mubr.f32.gmra.mrb[0].mxu0 %v3743
    %v3824 = vpop.f32.mrb[0].mxu0
    %v3825 = vadd.f32 %v3735, %v3824
    %v3826 = vpop.f32.mrb[0].mxu0
    %3827 = vmatprep.mubr.f32.mxu0 0.0
    %3828 = vmatmul.mubr.f32.gmra.mrb[0].mxu0 %v3746
    %v3829 = vpop.f32.mrb[0].mxu0
    %v3830 = vadd.f32 %v3735, %v3829
    %v3831 = vpop.f32.mrb[0].mxu0
    %3832 = vdwg.mxu0
    %v3833 = vld [vmem:[#allocation4 + $0xe8] sm:$0xff]
    %v3834 = vld [vmem:[#allocation4 + $0xf0] sm:$0xff]
    %v3835 = vld [vmem:[#allocation4 + $0xf8] sm:$0xff]
    %v3836 = vld [vmem:[#allocation4 + $0x100] sm:$0xff]
    %v3837 = vld [vmem:[#allocation4 + $0x108] sm:$0x1]
    %v3838 = vmul.f32 %v3719, 0.35355338
    %v3839 = vmul.f32 %v3724, 0.35355338
    %v3841 = vsel %vm2683, %v3838, 0
    %v3844 = vsel %vm2683, %v3839, 0
    %v3847 = vsel %vm2683, %v3815, 0
    %v3850 = vsel %vm2683, %v3820, 0
    %v3853 = vsel %vm2683, %v3825, 0
    %v3856 = vsel %vm2683, %v3830, 0
    %3858 = vmatprep.subr.mxu0 0.0
    %3859 = vmatpush1.xpose.msra.mxu0 %v3847
    %3860 = vmatprep.subr.mxu0 0.0
    %3861 = vmatpush1.xpose.msra.mxu0 %v3850
    %3862 = vmatprep.subr.mxu0 0.0
    %3863 = vmatpush1.xpose.msra.mxu0 %v3853
    %3864 = vmatprep.subr.mxu0 0.0
    %3865 = vmatpush1.xpose.msra.mxu0 %v3856
    %3866 = vmatprep.subr.mxu0 0.0
    %3867 = vmatpush1.xpose.msra.mxu0 0.0
    %3868 = vmatprep.subr.mxu0 0.0
    %3869 = vmatpush1.xpose.msra.mxu0 0.0
    %3870 = vmatprep.subr.mxu0 0.0
    %3871 = vmatpush1.xpose.msra.mxu0 0.0
    %3872 = vmatprep.subr.mxu0 0.0
    %3873 = vmatpush1.xpose.msra.mxu0 0.0
    %3874 = vmatprep.subr.mxu0 0.0
    %3875 = vmatpush1.xpose.msra.mxu0 0.0
    %3876 = vmatprep.subr.mxu0 0.0
    %3877 = vmatpush1.xpose.msra.mxu0 0.0
    %3878 = vmatprep.subr.mxu0 0.0
    %3879 = vmatpush1.xpose.msra.mxu0 0.0
    %3880 = vmatprep.subr.mxu0 0.0
    %3881 = vmatpush1.xpose.msra.mxu0 0.0
    %3882 = vmatprep.subr.mxu0 0.0
    %3883 = vmatpush1.xpose.msra.mxu0 0.0
    %3884 = vmatprep.subr.mxu0 0.0
    %3885 = vmatpush1.xpose.msra.mxu0 0.0
    %3886 = vmatprep.subr.mxu0 0.0
    %3887 = vmatpush1.xpose.msra.mxu0 0.0
    %3888 = vmatprep.subr.mxu0 0.0
    %3889 = vmatpush1.xpose.msra.mxu0 0.0
    %3890 = vmatprep.subr.mxu0 0.0
    %3891 = vmatpush1.xpose.msra.mxu0 0.0
    %3892 = vmatprep.subr.mxu0 0.0
    %3893 = vmatpush1.xpose.msra.mxu0 0.0
    %3894 = vmatprep.subr.mxu0 0.0
    %3895 = vmatpush1.xpose.msra.mxu0 0.0
    %3896 = vmatprep.subr.mxu0 0.0
    %3897 = vmatpush1.xpose.msra.mxu0 0.0
    %3898 = vmatprep.subr.mxu0 0.0
    %3899 = vmatpush1.xpose.msra.mxu0 0.0
    %3900 = vmatprep.subr.mxu0 0.0
    %3901 = vmatpush1.xpose.msra.mxu0 0.0
    %3902 = vmatprep.subr.mxu0 0.0
    %3903 = vmatpush1.xpose.msra.mxu0 0.0
    %3904 = vmatprep.subr.mxu0 0.0
    %3905 = vmatpush1.xpose.msra.mxu0 0.0
    %3906 = vmatprep.subr.mxu0 0.0
    %3907 = vmatpush1.xpose.msra.mxu0 0.0
    %3908 = vmatprep.subr.mxu0 0.0
    %3909 = vmatpush1.xpose.msra.mxu0 0.0
    %3910 = vmatprep.subr.mxu0 0.0
    %3911 = vmatpush1.xpose.msra.mxu0 0.0
    %3912 = vmatprep.subr.mxu0 0.0
    %3913 = vmatpush1.xpose.msra.mxu0 0.0
    %3914 = vmatprep.subr.mxu0 0.0
    %3915 = vmatpush1.xpose.msra.mxu0 0.0
    %3916 = vmatprep.subr.mxu0 0.0
    %3917 = vmatpush1.xpose.msra.mxu0 0.0
    %3918 = vmatprep.subr.mxu0 0.0
    %3919 = vmatpush1.xpose.msra.mxu0 0.0
    %3920 = vmatprep.subr.mxu0 0.0
    %3921 = vmatpush1.xpose.msra.mxu0 0.0
    %3922 = vmatprep.mubr.f32.mxu0 0.0
    %3923 = vmatmul.mubr.f32.gmra.mrb[0].mxu0 %v3841
    %v3924 = vpop.f32.mrb[0].mxu0
    %v3925 = vadd.f32 %v2578, %v3924
    %v3926 = vpop.f32.mrb[0].mxu0
    %3927 = vmatprep.mubr.f32.mxu0 0.0
    %3928 = vmatmul.mubr.f32.gmra.mrb[0].mxu0 %v3844
    %v3929 = vpop.f32.mrb[0].mxu0
    %v3930 = vadd.f32 %v2579, %v3929
    %v3931 = vpop.f32.mrb[0].mxu0
    %3932 = vdwg.mxu0
    %v3933 = vsel %vm269, %v3925, -inf
    %3934 = vmax.xlane.f32.xlu0 %v3933
    %v3935 = vpop.xlane.xlu0 %3934
    %v3936 = vsel %vm269, %v3930, -inf
    %3937 = vmax.xlane.f32.xlu0 %v3936
    %v3938 = vpop.xlane.xlu0 %3937
    %v3939 = vsub.f32 %v3925, %v3935
    %v3940 = vsub.f32 %v3930, %v3938
    %v3941 = vmul.f32 %v3939, 1.442695
    %v3942 = vpow.pop %v3941
    %v3943 = vmul.f32 %v3940, 1.442695
    %v3944 = vpow.pop %v3943
    %v3945 = vsel %vm269, %v3942, 0.0
    %3946 = vadd.xlane.f32.xlu0 %v3945
    %v3947 = vpop.xlane.xlu0 %3946
    %v3948 = vsel %vm269, %v3944, 0.0
    %3949 = vadd.xlane.f32.xlu0 %v3948
    %v3950 = vpop.xlane.xlu0 %3949
    %v3951 = vrcp.pop %v3947
    %v3952 = vmul.f32 %v3942, %v3951
    %v3953 = vrcp.pop %v3950
    %v3954 = vmul.f32 %v3944, %v3953
    %3955 = vrot.lane.b32.xlu0 %v3815, 96
    %v3956 = vpop.permute.xlu0 %3955
    %3957 = vrot.lane.b32.xlu0 %v3820, 96
    %v3958 = vpop.permute.xlu0 %3957
    %3959 = vrot.lane.b32.xlu0 %v3825, 96
    %v3960 = vpop.permute.xlu0 %3959
    %3961 = vrot.lane.b32.xlu0 %v3830, 96
    %v3962 = vpop.permute.xlu0 %3961
    %v3968 = vsel %vm269, %v3952, 0
    %v3971 = vsel %vm269, %v3954, 0
    %3973 = vmatprep.subr.mxu0 0.0
    %3974 = vmatpush1.msra.mxu0 %v3956
    %3975 = vmatprep.subr.mxu0 0.0
    %3976 = vmatpush1.msra.mxu0 %v3958
    %3977 = vmatprep.subr.mxu0 0.0
    %3978 = vmatpush1.msra.mxu0 %v3960
    %3979 = vmatprep.subr.mxu0 0.0
    %3980 = vmatpush1.msra.mxu0 %v3962
    %3981 = vmatprep.subr.mxu0 0.0
    %3982 = vmatpush1.msra.mxu0 0.0
    %3983 = vmatprep.subr.mxu0 0.0
    %3984 = vmatpush1.msra.mxu0 0.0
    %3985 = vmatprep.subr.mxu0 0.0
    %3986 = vmatpush1.msra.mxu0 0.0
    %3987 = vmatprep.subr.mxu0 0.0
    %3988 = vmatpush1.msra.mxu0 0.0
    %3989 = vmatprep.subr.mxu0 0.0
    %3990 = vmatpush1.msra.mxu0 0.0
    %3991 = vmatprep.subr.mxu0 0.0
    %3992 = vmatpush1.msra.mxu0 0.0
    %3993 = vmatprep.subr.mxu0 0.0
    %3994 = vmatpush1.msra.mxu0 0.0
    %3995 = vmatprep.subr.mxu0 0.0
    %3996 = vmatpush1.msra.mxu0 0.0
    %3997 = vmatprep.subr.mxu0 0.0
    %3998 = vmatpush1.msra.mxu0 0.0
    %3999 = vmatprep.subr.mxu0 0.0
    %4000 = vmatpush1.msra.mxu0 0.0
    %4001 = vmatprep.subr.mxu0 0.0
    %4002 = vmatpush1.msra.mxu0 0.0
    %4003 = vmatprep.subr.mxu0 0.0
    %4004 = vmatpush1.msra.mxu0 0.0
    %4005 = vmatprep.subr.mxu0 0.0
    %4006 = vmatpush1.msra.mxu0 0.0
    %4007 = vmatprep.subr.mxu0 0.0
    %4008 = vmatpush1.msra.mxu0 0.0
    %4009 = vmatprep.subr.mxu0 0.0
    %4010 = vmatpush1.msra.mxu0 0.0
    %4011 = vmatprep.subr.mxu0 0.0
    %4012 = vmatpush1.msra.mxu0 0.0
    %4013 = vmatprep.subr.mxu0 0.0
    %4014 = vmatpush1.msra.mxu0 0.0
    %4015 = vmatprep.subr.mxu0 0.0
    %4016 = vmatpush1.msra.mxu0 0.0
    %4017 = vmatprep.subr.mxu0 0.0
    %4018 = vmatpush1.msra.mxu0 0.0
    %4019 = vmatprep.subr.mxu0 0.0
    %4020 = vmatpush1.msra.mxu0 0.0
    %4021 = vmatprep.subr.mxu0 0.0
    %4022 = vmatpush1.msra.mxu0 0.0
    %4023 = vmatprep.subr.mxu0 0.0
    %4024 = vmatpush1.msra.mxu0 0.0
    %4025 = vmatprep.subr.mxu0 0.0
    %4026 = vmatpush1.msra.mxu0 0.0
    %4027 = vmatprep.subr.mxu0 0.0
    %4028 = vmatpush1.msra.mxu0 0.0
    %4029 = vmatprep.subr.mxu0 0.0
    %4030 = vmatpush1.msra.mxu0 0.0
    %4031 = vmatprep.subr.mxu0 0.0
    %4032 = vmatpush1.msra.mxu0 0.0
    %4033 = vmatprep.subr.mxu0 0.0
    %4034 = vmatpush1.msra.mxu0 0.0
    %4035 = vmatprep.subr.mxu0 0.0
    %4036 = vmatpush1.msra.mxu0 0.0
    %4037 = vmatprep.mubr.f32.mxu0 0.0
    %4038 = vmatmul.mubr.f32.gmra.mrb[0].mxu0 %v3968
    %v4039 = vpop.f32.mrb[0].mxu0
    %v4040 = vadd.f32 0.0, %v4039
    %v4041 = vpop.f32.mrb[0].mxu0
    %4042 = vmatprep.mubr.f32.mxu0 0.0
    %4043 = vmatmul.mubr.f32.gmra.mrb[0].mxu0 %v3971
    %v4044 = vpop.f32.mrb[0].mxu0
    %v4045 = vadd.f32 0.0, %v4044
    %v4046 = vpop.f32.mrb[0].mxu0
    %4047 = vdwg.mxu0
    %4048 = vrot.lane.b32.xlu0 %v3838, 120
    %v4049 = vpop.permute.xlu0 %4048
    %4050 = vrot.lane.b32.xlu0 %v3839, 120
    %v4051 = vpop.permute.xlu0 %4050
    %4052 = vrot.lane.b32.xlu0 %v3815, 120
    %v4053 = vpop.permute.xlu0 %4052
    %4054 = vrot.lane.b32.xlu0 %v3820, 120
    %v4055 = vpop.permute.xlu0 %4054
    %4056 = vrot.lane.b32.xlu0 %v3825, 120
    %v4057 = vpop.permute.xlu0 %4056
    %4058 = vrot.lane.b32.xlu0 %v3830, 120
    %v4059 = vpop.permute.xlu0 %4058
    %v4060 = vsel %vm2683, %v4049, 0
    %v4062 = vsel %vm2683, %v4051, 0
    %v4064 = vsel %vm2683, %v4053, 0
    %v4066 = vsel %vm2683, %v4055, 0
    %v4068 = vsel %vm2683, %v4057, 0
    %v4070 = vsel %vm2683, %v4059, 0
    %4072 = vmatprep.subr.mxu0 0.0
    %4073 = vmatpush1.xpose.msra.mxu0 %v4064
    %4074 = vmatprep.subr.mxu0 0.0
    %4075 = vmatpush1.xpose.msra.mxu0 %v4066
    %4076 = vmatprep.subr.mxu0 0.0
    %4077 = vmatpush1.xpose.msra.mxu0 %v4068
    %4078 = vmatprep.subr.mxu0 0.0
    %4079 = vmatpush1.xpose.msra.mxu0 %v4070
    %4080 = vmatprep.subr.mxu0 0.0
    %4081 = vmatpush1.xpose.msra.mxu0 0.0
    %4082 = vmatprep.subr.mxu0 0.0
    %4083 = vmatpush1.xpose.msra.mxu0 0.0
    %4084 = vmatprep.subr.mxu0 0.0
    %4085 = vmatpush1.xpose.msra.mxu0 0.0
    %4086 = vmatprep.subr.mxu0 0.0
    %4087 = vmatpush1.xpose.msra.mxu0 0.0
    %4088 = vmatprep.subr.mxu0 0.0
    %4089 = vmatpush1.xpose.msra.mxu0 0.0
    %4090 = vmatprep.subr.mxu0 0.0
    %4091 = vmatpush1.xpose.msra.mxu0 0.0
    %4092 = vmatprep.subr.mxu0 0.0
    %4093 = vmatpush1.xpose.msra.mxu0 0.0
    %4094 = vmatprep.subr.mxu0 0.0
    %4095 = vmatpush1.xpose.msra.mxu0 0.0
    %4096 = vmatprep.subr.mxu0 0.0
    %4097 = vmatpush1.xpose.msra.mxu0 0.0
    %4098 = vmatprep.subr.mxu0 0.0
    %4099 = vmatpush1.xpose.msra.mxu0 0.0
    %4100 = vmatprep.subr.mxu0 0.0
    %4101 = vmatpush1.xpose.msra.mxu0 0.0
    %4102 = vmatprep.subr.mxu0 0.0
    %4103 = vmatpush1.xpose.msra.mxu0 0.0
    %4104 = vmatprep.subr.mxu0 0.0
    %4105 = vmatpush1.xpose.msra.mxu0 0.0
    %4106 = vmatprep.subr.mxu0 0.0
    %4107 = vmatpush1.xpose.msra.mxu0 0.0
    %4108 = vmatprep.subr.mxu0 0.0
    %4109 = vmatpush1.xpose.msra.mxu0 0.0
    %4110 = vmatprep.subr.mxu0 0.0
    %4111 = vmatpush1.xpose.msra.mxu0 0.0
    %4112 = vmatprep.subr.mxu0 0.0
    %4113 = vmatpush1.xpose.msra.mxu0 0.0
    %4114 = vmatprep.subr.mxu0 0.0
    %4115 = vmatpush1.xpose.msra.mxu0 0.0
    %4116 = vmatprep.subr.mxu0 0.0
    %4117 = vmatpush1.xpose.msra.mxu0 0.0
    %4118 = vmatprep.subr.mxu0 0.0
    %4119 = vmatpush1.xpose.msra.mxu0 0.0
    %4120 = vmatprep.subr.mxu0 0.0
    %4121 = vmatpush1.xpose.msra.mxu0 0.0
    %4122 = vmatprep.subr.mxu0 0.0
    %4123 = vmatpush1.xpose.msra.mxu0 0.0
    %4124 = vmatprep.subr.mxu0 0.0
    %4125 = vmatpush1.xpose.msra.mxu0 0.0
    %4126 = vmatprep.subr.mxu0 0.0
    %4127 = vmatpush1.xpose.msra.mxu0 0.0
    %4128 = vmatprep.subr.mxu0 0.0
    %4129 = vmatpush1.xpose.msra.mxu0 0.0
    %4130 = vmatprep.subr.mxu0 0.0
    %4131 = vmatpush1.xpose.msra.mxu0 0.0
    %4132 = vmatprep.subr.mxu0 0.0
    %4133 = vmatpush1.xpose.msra.mxu0 0.0
    %4134 = vmatprep.subr.mxu0 0.0
    %4135 = vmatpush1.xpose.msra.mxu0 0.0
    %4136 = vmatprep.mubr.f32.mxu0 0.0
    %4137 = vmatmul.mubr.f32.gmra.mrb[0].mxu0 %v4060
    %v4138 = vpop.f32.mrb[0].mxu0
    %v4139 = vadd.f32 %v2578, %v4138
    %v4140 = vpop.f32.mrb[0].mxu0
    %4141 = vmatprep.mubr.f32.mxu0 0.0
    %4142 = vmatmul.mubr.f32.gmra.mrb[0].mxu0 %v4062
    %v4143 = vpop.f32.mrb[0].mxu0
    %v4144 = vadd.f32 %v2579, %v4143
    %v4145 = vpop.f32.mrb[0].mxu0
    %4146 = vdwg.mxu0
    %v4147 = vsel %vm269, %v4139, -inf
    %4148 = vmax.xlane.f32.xlu0 %v4147
    %v4149 = vpop.xlane.xlu0 %4148
    %v4150 = vsel %vm269, %v4144, -inf
    %4151 = vmax.xlane.f32.xlu0 %v4150
    %v4152 = vpop.xlane.xlu0 %4151
    %v4153 = vsub.f32 %v4139, %v4149
    %v4154 = vsub.f32 %v4144, %v4152
    %v4155 = vmul.f32 %v4153, 1.442695
    %v4156 = vpow.pop %v4155
    %v4157 = vmul.f32 %v4154, 1.442695
    %v4158 = vpow.pop %v4157
    %v4159 = vsel %vm269, %v4156, 0.0
    %4160 = vadd.xlane.f32.xlu0 %v4159
    %v4161 = vpop.xlane.xlu0 %4160
    %v4162 = vsel %vm269, %v4158, 0.0
    %4163 = vadd.xlane.f32.xlu0 %v4162
    %v4164 = vpop.xlane.xlu0 %4163
    %v4165 = vrcp.pop %v4161
    %v4166 = vmul.f32 %v4156, %v4165
    %v4167 = vrcp.pop %v4164
    %v4168 = vmul.f32 %v4158, %v4167
    %4169 = vrot.lane.b32.xlu0 %v3815, 88
    %v4170 = vpop.permute.xlu0 %4169
    %4171 = vrot.lane.b32.xlu0 %v3820, 88
    %v4172 = vpop.permute.xlu0 %4171
    %4173 = vrot.lane.b32.xlu0 %v3825, 88
    %v4174 = vpop.permute.xlu0 %4173
    %4175 = vrot.lane.b32.xlu0 %v3830, 88
    %v4176 = vpop.permute.xlu0 %4175
    %v4182 = vsel %vm269, %v4166, 0
    %v4185 = vsel %vm269, %v4168, 0
    %4187 = vmatprep.subr.mxu0 0.0
    %4188 = vmatpush1.msra.mxu0 %v4170
    %4189 = vmatprep.subr.mxu0 0.0
    %4190 = vmatpush1.msra.mxu0 %v4172
    %4191 = vmatprep.subr.mxu0 0.0
    %4192 = vmatpush1.msra.mxu0 %v4174
    %4193 = vmatprep.subr.mxu0 0.0
    %4194 = vmatpush1.msra.mxu0 %v4176
    %4195 = vmatprep.subr.mxu0 0.0
    %4196 = vmatpush1.msra.mxu0 0.0
    %4197 = vmatprep.subr.mxu0 0.0
    %4198 = vmatpush1.msra.mxu0 0.0
    %4199 = vmatprep.subr.mxu0 0.0
    %4200 = vmatpush1.msra.mxu0 0.0
    %4201 = vmatprep.subr.mxu0 0.0
    %4202 = vmatpush1.msra.mxu0 0.0
    %4203 = vmatprep.subr.mxu0 0.0
    %4204 = vmatpush1.msra.mxu0 0.0
    %4205 = vmatprep.subr.mxu0 0.0
    %4206 = vmatpush1.msra.mxu0 0.0
    %4207 = vmatprep.subr.mxu0 0.0
    %4208 = vmatpush1.msra.mxu0 0.0
    %4209 = vmatprep.subr.mxu0 0.0
    %4210 = vmatpush1.msra.mxu0 0.0
    %4211 = vmatprep.subr.mxu0 0.0
    %4212 = vmatpush1.msra.mxu0 0.0
    %4213 = vmatprep.subr.mxu0 0.0
    %4214 = vmatpush1.msra.mxu0 0.0
    %4215 = vmatprep.subr.mxu0 0.0
    %4216 = vmatpush1.msra.mxu0 0.0
    %4217 = vmatprep.subr.mxu0 0.0
    %4218 = vmatpush1.msra.mxu0 0.0
    %4219 = vmatprep.subr.mxu0 0.0
    %4220 = vmatpush1.msra.mxu0 0.0
    %4221 = vmatprep.subr.mxu0 0.0
    %4222 = vmatpush1.msra.mxu0 0.0
    %4223 = vmatprep.subr.mxu0 0.0
    %4224 = vmatpush1.msra.mxu0 0.0
    %4225 = vmatprep.subr.mxu0 0.0
    %4226 = vmatpush1.msra.mxu0 0.0
    %4227 = vmatprep.subr.mxu0 0.0
    %4228 = vmatpush1.msra.mxu0 0.0
    %4229 = vmatprep.subr.mxu0 0.0
    %4230 = vmatpush1.msra.mxu0 0.0
    %4231 = vmatprep.subr.mxu0 0.0
    %4232 = vmatpush1.msra.mxu0 0.0
    %4233 = vmatprep.subr.mxu0 0.0
    %4234 = vmatpush1.msra.mxu0 0.0
    %4235 = vmatprep.subr.mxu0 0.0
    %4236 = vmatpush1.msra.mxu0 0.0
    %4237 = vmatprep.subr.mxu0 0.0
    %4238 = vmatpush1.msra.mxu0 0.0
    %4239 = vmatprep.subr.mxu0 0.0
    %4240 = vmatpush1.msra.mxu0 0.0
    %4241 = vmatprep.subr.mxu0 0.0
    %4242 = vmatpush1.msra.mxu0 0.0
    %4243 = vmatprep.subr.mxu0 0.0
    %4244 = vmatpush1.msra.mxu0 0.0
    %4245 = vmatprep.subr.mxu0 0.0
    %4246 = vmatpush1.msra.mxu0 0.0
    %4247 = vmatprep.subr.mxu0 0.0
    %4248 = vmatpush1.msra.mxu0 0.0
    %4249 = vmatprep.subr.mxu0 0.0
    %4250 = vmatpush1.msra.mxu0 0.0
    %4251 = vmatprep.mubr.f32.mxu0 0.0
    %4252 = vmatmul.mubr.f32.gmra.mrb[0].mxu0 %v4182
    %v4253 = vpop.f32.mrb[0].mxu0
    %v4254 = vadd.f32 0.0, %v4253
    %v4255 = vpop.f32.mrb[0].mxu0
    %4256 = vmatprep.mubr.f32.mxu0 0.0
    %4257 = vmatmul.mubr.f32.gmra.mrb[0].mxu0 %v4185
    %v4258 = vpop.f32.mrb[0].mxu0
    %v4259 = vadd.f32 0.0, %v4258
    %v4260 = vpop.f32.mrb[0].mxu0
    %4261 = vdwg.mxu0
    %4262 = vrot.lane.b32.xlu0 %v3838, 112
    %v4263 = vpop.permute.xlu0 %4262
    %4264 = vrot.lane.b32.xlu0 %v3839, 112
    %v4265 = vpop.permute.xlu0 %4264
    %4266 = vrot.lane.b32.xlu0 %v3815, 112
    %v4267 = vpop.permute.xlu0 %4266
    %4268 = vrot.lane.b32.xlu0 %v3820, 112
    %v4269 = vpop.permute.xlu0 %4268
    %4270 = vrot.lane.b32.xlu0 %v3825, 112
    %v4271 = vpop.permute.xlu0 %4270
    %4272 = vrot.lane.b32.xlu0 %v3830, 112
    %v4273 = vpop.permute.xlu0 %4272
    %v4274 = vsel %vm2683, %v4263, 0
    %v4276 = vsel %vm2683, %v4265, 0
    %v4278 = vsel %vm2683, %v4267, 0
    %v4280 = vsel %vm2683, %v4269, 0
    %v4282 = vsel %vm2683, %v4271, 0
    %v4284 = vsel %vm2683, %v4273, 0
    %4286 = vmatprep.subr.mxu0 0.0
    %4287 = vmatpush1.xpose.msra.mxu0 %v4278
    %4288 = vmatprep.subr.mxu0 0.0
    %4289 = vmatpush1.xpose.msra.mxu0 %v4280
    %4290 = vmatprep.subr.mxu0 0.0
    %4291 = vmatpush1.xpose.msra.mxu0 %v4282
    %4292 = vmatprep.subr.mxu0 0.0
    %4293 = vmatpush1.xpose.msra.mxu0 %v4284
    %4294 = vmatprep.subr.mxu0 0.0
    %4295 = vmatpush1.xpose.msra.mxu0 0.0
    %4296 = vmatprep.subr.mxu0 0.0
    %4297 = vmatpush1.xpose.msra.mxu0 0.0
    %4298 = vmatprep.subr.mxu0 0.0
    %4299 = vmatpush1.xpose.msra.mxu0 0.0
    %4300 = vmatprep.subr.mxu0 0.0
    %4301 = vmatpush1.xpose.msra.mxu0 0.0
    %4302 = vmatprep.subr.mxu0 0.0
    %4303 = vmatpush1.xpose.msra.mxu0 0.0
    %4304 = vmatprep.subr.mxu0 0.0
    %4305 = vmatpush1.xpose.msra.mxu0 0.0
    %4306 = vmatprep.subr.mxu0 0.0
    %4307 = vmatpush1.xpose.msra.mxu0 0.0
    %4308 = vmatprep.subr.mxu0 0.0
    %4309 = vmatpush1.xpose.msra.mxu0 0.0
    %4310 = vmatprep.subr.mxu0 0.0
    %4311 = vmatpush1.xpose.msra.mxu0 0.0
    %4312 = vmatprep.subr.mxu0 0.0
    %4313 = vmatpush1.xpose.msra.mxu0 0.0
    %4314 = vmatprep.subr.mxu0 0.0
    %4315 = vmatpush1.xpose.msra.mxu0 0.0
    %4316 = vmatprep.subr.mxu0 0.0
    %4317 = vmatpush1.xpose.msra.mxu0 0.0
    %4318 = vmatprep.subr.mxu0 0.0
    %4319 = vmatpush1.xpose.msra.mxu0 0.0
    %4320 = vmatprep.subr.mxu0 0.0
    %4321 = vmatpush1.xpose.msra.mxu0 0.0
    %4322 = vmatprep.subr.mxu0 0.0
    %4323 = vmatpush1.xpose.msra.mxu0 0.0
    %4324 = vmatprep.subr.mxu0 0.0
    %4325 = vmatpush1.xpose.msra.mxu0 0.0
    %4326 = vmatprep.subr.mxu0 0.0
    %4327 = vmatpush1.xpose.msra.mxu0 0.0
    %4328 = vmatprep.subr.mxu0 0.0
    %4329 = vmatpush1.xpose.msra.mxu0 0.0
    %4330 = vmatprep.subr.mxu0 0.0
    %4331 = vmatpush1.xpose.msra.mxu0 0.0
    %4332 = vmatprep.subr.mxu0 0.0
    %4333 = vmatpush1.xpose.msra.mxu0 0.0
    %4334 = vmatprep.subr.mxu0 0.0
    %4335 = vmatpush1.xpose.msra.mxu0 0.0
    %4336 = vmatprep.subr.mxu0 0.0
    %4337 = vmatpush1.xpose.msra.mxu0 0.0
    %4338 = vmatprep.subr.mxu0 0.0
    %4339 = vmatpush1.xpose.msra.mxu0 0.0
    %4340 = vmatprep.subr.mxu0 0.0
    %4341 = vmatpush1.xpose.msra.mxu0 0.0
    %4342 = vmatprep.subr.mxu0 0.0
    %4343 = vmatpush1.xpose.msra.mxu0 0.0
    %4344 = vmatprep.subr.mxu0 0.0
    %4345 = vmatpush1.xpose.msra.mxu0 0.0
    %4346 = vmatprep.subr.mxu0 0.0
    %4347 = vmatpush1.xpose.msra.mxu0 0.0
    %4348 = vmatprep.subr.mxu0 0.0
    %4349 = vmatpush1.xpose.msra.mxu0 0.0
    %4350 = vmatprep.mubr.f32.mxu0 0.0
    %4351 = vmatmul.mubr.f32.gmra.mrb[0].mxu0 %v4274
    %v4352 = vpop.f32.mrb[0].mxu0
    %v4353 = vadd.f32 %v2578, %v4352
    %v4354 = vpop.f32.mrb[0].mxu0
    %4355 = vmatprep.mubr.f32.mxu0 0.0
    %4356 = vmatmul.mubr.f32.gmra.mrb[0].mxu0 %v4276
    %v4357 = vpop.f32.mrb[0].mxu0
    %v4358 = vadd.f32 %v2579, %v4357
    %v4359 = vpop.f32.mrb[0].mxu0
    %4360 = vdwg.mxu0
    %v4361 = vsel %vm269, %v4353, -inf
    %4362 = vmax.xlane.f32.xlu0 %v4361
    %v4363 = vpop.xlane.xlu0 %4362
    %v4364 = vsel %vm269, %v4358, -inf
    %4365 = vmax.xlane.f32.xlu0 %v4364
    %v4366 = vpop.xlane.xlu0 %4365
    %v4367 = vsub.f32 %v4353, %v4363
    %v4368 = vsub.f32 %v4358, %v4366
    %v4369 = vmul.f32 %v4367, 1.442695
    %v4370 = vpow.pop %v4369
    %v4371 = vmul.f32 %v4368, 1.442695
    %v4372 = vpow.pop %v4371
    %v4373 = vsel %vm269, %v4370, 0.0
    %4374 = vadd.xlane.f32.xlu0 %v4373
    %v4375 = vpop.xlane.xlu0 %4374
    %v4376 = vsel %vm269, %v4372, 0.0
    %4377 = vadd.xlane.f32.xlu0 %v4376
    %v4378 = vpop.xlane.xlu0 %4377
    %v4379 = vrcp.pop %v4375
    %v4380 = vmul.f32 %v4370, %v4379
    %v4381 = vrcp.pop %v4378
    %v4382 = vmul.f32 %v4372, %v4381
    %4383 = vrot.lane.b32.xlu0 %v3815, 80
    %v4384 = vpop.permute.xlu0 %4383
    %4385 = vrot.lane.b32.xlu0 %v3820, 80
    %v4386 = vpop.permute.xlu0 %4385
    %4387 = vrot.lane.b32.xlu0 %v3825, 80
    %v4388 = vpop.permute.xlu0 %4387
    %4389 = vrot.lane.b32.xlu0 %v3830, 80
    %v4390 = vpop.permute.xlu0 %4389
    %v4396 = vsel %vm269, %v4380, 0
    %v4399 = vsel %vm269, %v4382, 0
    %4401 = vmatprep.subr.mxu0 0.0
    %4402 = vmatpush1.msra.mxu0 %v4384
    %4403 = vmatprep.subr.mxu0 0.0
    %4404 = vmatpush1.msra.mxu0 %v4386
    %4405 = vmatprep.subr.mxu0 0.0
    %4406 = vmatpush1.msra.mxu0 %v4388
    %4407 = vmatprep.subr.mxu0 0.0
    %4408 = vmatpush1.msra.mxu0 %v4390
    %4409 = vmatprep.subr.mxu0 0.0
    %4410 = vmatpush1.msra.mxu0 0.0
    %4411 = vmatprep.subr.mxu0 0.0
    %4412 = vmatpush1.msra.mxu0 0.0
    %4413 = vmatprep.subr.mxu0 0.0
    %4414 = vmatpush1.msra.mxu0 0.0
    %4415 = vmatprep.subr.mxu0 0.0
    %4416 = vmatpush1.msra.mxu0 0.0
    %4417 = vmatprep.subr.mxu0 0.0
    %4418 = vmatpush1.msra.mxu0 0.0
    %4419 = vmatprep.subr.mxu0 0.0
    %4420 = vmatpush1.msra.mxu0 0.0
    %4421 = vmatprep.subr.mxu0 0.0
    %4422 = vmatpush1.msra.mxu0 0.0
    %4423 = vmatprep.subr.mxu0 0.0
    %4424 = vmatpush1.msra.mxu0 0.0
    %4425 = vmatprep.subr.mxu0 0.0
    %4426 = vmatpush1.msra.mxu0 0.0
    %4427 = vmatprep.subr.mxu0 0.0
    %4428 = vmatpush1.msra.mxu0 0.0
    %4429 = vmatprep.subr.mxu0 0.0
    %4430 = vmatpush1.msra.mxu0 0.0
    %4431 = vmatprep.subr.mxu0 0.0
    %4432 = vmatpush1.msra.mxu0 0.0
    %4433 = vmatprep.subr.mxu0 0.0
    %4434 = vmatpush1.msra.mxu0 0.0
    %4435 = vmatprep.subr.mxu0 0.0
    %4436 = vmatpush1.msra.mxu0 0.0
    %4437 = vmatprep.subr.mxu0 0.0
    %4438 = vmatpush1.msra.mxu0 0.0
    %4439 = vmatprep.subr.mxu0 0.0
    %4440 = vmatpush1.msra.mxu0 0.0
    %4441 = vmatprep.subr.mxu0 0.0
    %4442 = vmatpush1.msra.mxu0 0.0
    %4443 = vmatprep.subr.mxu0 0.0
    %4444 = vmatpush1.msra.mxu0 0.0
    %4445 = vmatprep.subr.mxu0 0.0
    %4446 = vmatpush1.msra.mxu0 0.0
    %4447 = vmatprep.subr.mxu0 0.0
    %4448 = vmatpush1.msra.mxu0 0.0
    %4449 = vmatprep.subr.mxu0 0.0
    %4450 = vmatpush1.msra.mxu0 0.0
    %4451 = vmatprep.subr.mxu0 0.0
    %4452 = vmatpush1.msra.mxu0 0.0
    %4453 = vmatprep.subr.mxu0 0.0
    %4454 = vmatpush1.msra.mxu0 0.0
    %4455 = vmatprep.subr.mxu0 0.0
    %4456 = vmatpush1.msra.mxu0 0.0
    %4457 = vmatprep.subr.mxu0 0.0
    %4458 = vmatpush1.msra.mxu0 0.0
    %4459 = vmatprep.subr.mxu0 0.0
    %4460 = vmatpush1.msra.mxu0 0.0
    %4461 = vmatprep.subr.mxu0 0.0
    %4462 = vmatpush1.msra.mxu0 0.0
    %4463 = vmatprep.subr.mxu0 0.0
    %4464 = vmatpush1.msra.mxu0 0.0
    %4465 = vmatprep.mubr.f32.mxu0 0.0
    %4466 = vmatmul.mubr.f32.gmra.mrb[0].mxu0 %v4396
    %v4467 = vpop.f32.mrb[0].mxu0
    %v4468 = vadd.f32 0.0, %v4467
    %v4469 = vpop.f32.mrb[0].mxu0
    %4470 = vmatprep.mubr.f32.mxu0 0.0
    %4471 = vmatmul.mubr.f32.gmra.mrb[0].mxu0 %v4399
    %v4472 = vpop.f32.mrb[0].mxu0
    %v4473 = vadd.f32 0.0, %v4472
    %v4474 = vpop.f32.mrb[0].mxu0
    %4475 = vdwg.mxu0
    %4476 = vrot.lane.b32.xlu0 %v3838, 104
    %v4477 = vpop.permute.xlu0 %4476
    %4478 = vrot.lane.b32.xlu0 %v3839, 104
    %v4479 = vpop.permute.xlu0 %4478
    %4480 = vrot.lane.b32.xlu0 %v3815, 104
    %v4481 = vpop.permute.xlu0 %4480
    %4482 = vrot.lane.b32.xlu0 %v3820, 104
    %v4483 = vpop.permute.xlu0 %4482
    %4484 = vrot.lane.b32.xlu0 %v3825, 104
    %v4485 = vpop.permute.xlu0 %4484
    %4486 = vrot.lane.b32.xlu0 %v3830, 104
    %v4487 = vpop.permute.xlu0 %4486
    %v4488 = vsel %vm2683, %v4477, 0
    %v4490 = vsel %vm2683, %v4479, 0
    %v4492 = vsel %vm2683, %v4481, 0
    %v4494 = vsel %vm2683, %v4483, 0
    %v4496 = vsel %vm2683, %v4485, 0
    %v4498 = vsel %vm2683, %v4487, 0
    %4500 = vmatprep.subr.mxu0 0.0
    %4501 = vmatpush1.xpose.msra.mxu0 %v4492
    %4502 = vmatprep.subr.mxu0 0.0
    %4503 = vmatpush1.xpose.msra.mxu0 %v4494
    %4504 = vmatprep.subr.mxu0 0.0
    %4505 = vmatpush1.xpose.msra.mxu0 %v4496
    %4506 = vmatprep.subr.mxu0 0.0
    %4507 = vmatpush1.xpose.msra.mxu0 %v4498
    %4508 = vmatprep.subr.mxu0 0.0
    %4509 = vmatpush1.xpose.msra.mxu0 0.0
    %4510 = vmatprep.subr.mxu0 0.0
    %4511 = vmatpush1.xpose.msra.mxu0 0.0
    %4512 = vmatprep.subr.mxu0 0.0
    %4513 = vmatpush1.xpose.msra.mxu0 0.0
    %4514 = vmatprep.subr.mxu0 0.0
    %4515 = vmatpush1.xpose.msra.mxu0 0.0
    %4516 = vmatprep.subr.mxu0 0.0
    %4517 = vmatpush1.xpose.msra.mxu0 0.0
    %4518 = vmatprep.subr.mxu0 0.0
    %4519 = vmatpush1.xpose.msra.mxu0 0.0
    %4520 = vmatprep.subr.mxu0 0.0
    %4521 = vmatpush1.xpose.msra.mxu0 0.0
    %4522 = vmatprep.subr.mxu0 0.0
    %4523 = vmatpush1.xpose.msra.mxu0 0.0
    %4524 = vmatprep.subr.mxu0 0.0
    %4525 = vmatpush1.xpose.msra.mxu0 0.0
    %4526 = vmatprep.subr.mxu0 0.0
    %4527 = vmatpush1.xpose.msra.mxu0 0.0
    %4528 = vmatprep.subr.mxu0 0.0
    %4529 = vmatpush1.xpose.msra.mxu0 0.0
    %4530 = vmatprep.subr.mxu0 0.0
    %4531 = vmatpush1.xpose.msra.mxu0 0.0
    %4532 = vmatprep.subr.mxu0 0.0
    %4533 = vmatpush1.xpose.msra.mxu0 0.0
    %4534 = vmatprep.subr.mxu0 0.0
    %4535 = vmatpush1.xpose.msra.mxu0 0.0
    %4536 = vmatprep.subr.mxu0 0.0
    %4537 = vmatpush1.xpose.msra.mxu0 0.0
    %4538 = vmatprep.subr.mxu0 0.0
    %4539 = vmatpush1.xpose.msra.mxu0 0.0
    %4540 = vmatprep.subr.mxu0 0.0
    %4541 = vmatpush1.xpose.msra.mxu0 0.0
    %4542 = vmatprep.subr.mxu0 0.0
    %4543 = vmatpush1.xpose.msra.mxu0 0.0
    %4544 = vmatprep.subr.mxu0 0.0
    %4545 = vmatpush1.xpose.msra.mxu0 0.0
    %4546 = vmatprep.subr.mxu0 0.0
    %4547 = vmatpush1.xpose.msra.mxu0 0.0
    %4548 = vmatprep.subr.mxu0 0.0
    %4549 = vmatpush1.xpose.msra.mxu0 0.0
    %4550 = vmatprep.subr.mxu0 0.0
    %4551 = vmatpush1.xpose.msra.mxu0 0.0
    %4552 = vmatprep.subr.mxu0 0.0
    %4553 = vmatpush1.xpose.msra.mxu0 0.0
    %4554 = vmatprep.subr.mxu0 0.0
    %4555 = vmatpush1.xpose.msra.mxu0 0.0
    %4556 = vmatprep.subr.mxu0 0.0
    %4557 = vmatpush1.xpose.msra.mxu0 0.0
    %4558 = vmatprep.subr.mxu0 0.0
    %4559 = vmatpush1.xpose.msra.mxu0 0.0
    %4560 = vmatprep.subr.mxu0 0.0
    %4561 = vmatpush1.xpose.msra.mxu0 0.0
    %4562 = vmatprep.subr.mxu0 0.0
    %4563 = vmatpush1.xpose.msra.mxu0 0.0
    %4564 = vmatprep.mubr.f32.mxu0 0.0
    %4565 = vmatmul.mubr.f32.gmra.mrb[0].mxu0 %v4488
    %v4566 = vpop.f32.mrb[0].mxu0
    %v4567 = vadd.f32 %v2578, %v4566
    %v4568 = vpop.f32.mrb[0].mxu0
    %4569 = vmatprep.mubr.f32.mxu0 0.0
    %4570 = vmatmul.mubr.f32.gmra.mrb[0].mxu0 %v4490
    %v4571 = vpop.f32.mrb[0].mxu0
    %v4572 = vadd.f32 %v2579, %v4571
    %v4573 = vpop.f32.mrb[0].mxu0
    %4574 = vdwg.mxu0
    %v4575 = vsel %vm269, %v4567, -inf
    %4576 = vmax.xlane.f32.xlu0 %v4575
    %v4577 = vpop.xlane.xlu0 %4576
    %v4578 = vsel %vm269, %v4572, -inf
    %4579 = vmax.xlane.f32.xlu0 %v4578
    %v4580 = vpop.xlane.xlu0 %4579
    %v4581 = vsub.f32 %v4567, %v4577
    %v4582 = vsub.f32 %v4572, %v4580
    %v4583 = vmul.f32 %v4581, 1.442695
    %v4584 = vpow.pop %v4583
    %v4585 = vmul.f32 %v4582, 1.442695
    %v4586 = vpow.pop %v4585
    %v4587 = vsel %vm269, %v4584, 0.0
    %4588 = vadd.xlane.f32.xlu0 %v4587
    %v4589 = vpop.xlane.xlu0 %4588
    %v4590 = vsel %vm269, %v4586, 0.0
    %4591 = vadd.xlane.f32.xlu0 %v4590
    %v4592 = vpop.xlane.xlu0 %4591
    %v4593 = vrcp.pop %v4589
    %v4594 = vmul.f32 %v4584, %v4593
    %v4595 = vrcp.pop %v4592
    %v4596 = vmul.f32 %v4586, %v4595
    %4597 = vrot.lane.b32.xlu0 %v3815, 72
    %v4598 = vpop.permute.xlu0 %4597
    %4599 = vrot.lane.b32.xlu0 %v3820, 72
    %v4600 = vpop.permute.xlu0 %4599
    %4601 = vrot.lane.b32.xlu0 %v3825, 72
    %v4602 = vpop.permute.xlu0 %4601
    %4603 = vrot.lane.b32.xlu0 %v3830, 72
    %v4604 = vpop.permute.xlu0 %4603
    %v4610 = vsel %vm269, %v4594, 0
    %v4613 = vsel %vm269, %v4596, 0
    %4615 = vmatprep.subr.mxu0 0.0
    %4616 = vmatpush1.msra.mxu0 %v4598
    %4617 = vmatprep.subr.mxu0 0.0
    %4618 = vmatpush1.msra.mxu0 %v4600
    %4619 = vmatprep.subr.mxu0 0.0
    %4620 = vmatpush1.msra.mxu0 %v4602
    %4621 = vmatprep.subr.mxu0 0.0
    %4622 = vmatpush1.msra.mxu0 %v4604
    %4623 = vmatprep.subr.mxu0 0.0
    %4624 = vmatpush1.msra.mxu0 0.0
    %4625 = vmatprep.subr.mxu0 0.0
    %4626 = vmatpush1.msra.mxu0 0.0
    %4627 = vmatprep.subr.mxu0 0.0
    %4628 = vmatpush1.msra.mxu0 0.0
    %4629 = vmatprep.subr.mxu0 0.0
    %4630 = vmatpush1.msra.mxu0 0.0
    %4631 = vmatprep.subr.mxu0 0.0
    %4632 = vmatpush1.msra.mxu0 0.0
    %4633 = vmatprep.subr.mxu0 0.0
    %4634 = vmatpush1.msra.mxu0 0.0
    %4635 = vmatprep.subr.mxu0 0.0
    %4636 = vmatpush1.msra.mxu0 0.0
    %4637 = vmatprep.subr.mxu0 0.0
    %4638 = vmatpush1.msra.mxu0 0.0
    %4639 = vmatprep.subr.mxu0 0.0
    %4640 = vmatpush1.msra.mxu0 0.0
    %4641 = vmatprep.subr.mxu0 0.0
    %4642 = vmatpush1.msra.mxu0 0.0
    %4643 = vmatprep.subr.mxu0 0.0
    %4644 = vmatpush1.msra.mxu0 0.0
    %4645 = vmatprep.subr.mxu0 0.0
    %4646 = vmatpush1.msra.mxu0 0.0
    %4647 = vmatprep.subr.mxu0 0.0
    %4648 = vmatpush1.msra.mxu0 0.0
    %4649 = vmatprep.subr.mxu0 0.0
    %4650 = vmatpush1.msra.mxu0 0.0
    %4651 = vmatprep.subr.mxu0 0.0
    %4652 = vmatpush1.msra.mxu0 0.0
    %4653 = vmatprep.subr.mxu0 0.0
    %4654 = vmatpush1.msra.mxu0 0.0
    %4655 = vmatprep.subr.mxu0 0.0
    %4656 = vmatpush1.msra.mxu0 0.0
    %4657 = vmatprep.subr.mxu0 0.0
    %4658 = vmatpush1.msra.mxu0 0.0
    %4659 = vmatprep.subr.mxu0 0.0
    %4660 = vmatpush1.msra.mxu0 0.0
    %4661 = vmatprep.subr.mxu0 0.0
    %4662 = vmatpush1.msra.mxu0 0.0
    %4663 = vmatprep.subr.mxu0 0.0
    %4664 = vmatpush1.msra.mxu0 0.0
    %4665 = vmatprep.subr.mxu0 0.0
    %4666 = vmatpush1.msra.mxu0 0.0
    %4667 = vmatprep.subr.mxu0 0.0
    %4668 = vmatpush1.msra.mxu0 0.0
    %4669 = vmatprep.subr.mxu0 0.0
    %4670 = vmatpush1.msra.mxu0 0.0
    %4671 = vmatprep.subr.mxu0 0.0
    %4672 = vmatpush1.msra.mxu0 0.0
    %4673 = vmatprep.subr.mxu0 0.0
    %4674 = vmatpush1.msra.mxu0 0.0
    %4675 = vmatprep.subr.mxu0 0.0
    %4676 = vmatpush1.msra.mxu0 0.0
    %4677 = vmatprep.subr.mxu0 0.0
    %4678 = vmatpush1.msra.mxu0 0.0
    %4679 = vmatprep.mubr.f32.mxu0 0.0
    %4680 = vmatmul.mubr.f32.gmra.mrb[0].mxu0 %v4610
    %v4681 = vpop.f32.mrb[0].mxu0
    %v4682 = vadd.f32 0.0, %v4681
    %v4683 = vpop.f32.mrb[0].mxu0
    %4684 = vmatprep.mubr.f32.mxu0 0.0
    %4685 = vmatmul.mubr.f32.gmra.mrb[0].mxu0 %v4613
    %v4686 = vpop.f32.mrb[0].mxu0
    %v4687 = vadd.f32 0.0, %v4686
    %v4688 = vpop.f32.mrb[0].mxu0
    %4689 = vdwg.mxu0
    %4692 = vrot.lane.b32.xlu0 %v4254, 8
    %v4693 = vpop.permute.xlu0 %4692
    %4694 = vrot.lane.b32.xlu0 %v4259, 8
    %v4695 = vpop.permute.xlu0 %4694
    %4700 = vrot.lane.b32.xlu0 %v4468, 16
    %v4701 = vpop.permute.xlu0 %4700
    %4702 = vrot.lane.b32.xlu0 %v4473, 16
    %v4703 = vpop.permute.xlu0 %4702
    %4708 = vrot.lane.b32.xlu0 %v4682, 24
    %v4709 = vpop.permute.xlu0 %4708
    %4710 = vrot.lane.b32.xlu0 %v4687, 24
    %v4711 = vpop.permute.xlu0 %4710
    %v4714 = vsel %vm2683, %v4040, %v4693
    %v4715 = vsel %vm2683, %v4045, %v4695
    %v4716 = vsel %vm61, %v4714, %v4701
    %v4717 = vsel %vm61, %v4715, %v4703
    %v4718 = vsel %vm3506, %v4716, %v4709
    %v4719 = vsel %vm3506, %v4717, %v4711
    %v4720 = vlaneseq
    %v4721 = vshrl.u32 %v4720, 7
    %v4722 = vsub.s32 0, %v4721
    %v4723 = vrot.slane %v3837, %v4722
    %v4725 = vsel %vm269, %v4718, 0
    %v4728 = vsel %vm269, %v4719, 0
    %4730 = vmatprep.subr.mxu0 0.0
    %4731 = vmatpush1.msra.mxu0 %v3833
    %4732 = vmatprep.subr.mxu0 0.0
    %4733 = vmatpush1.msra.mxu0 %v3834
    %4734 = vmatprep.subr.mxu0 0.0
    %4735 = vmatpush1.msra.mxu0 %v3835
    %4736 = vmatprep.subr.mxu0 0.0
    %4737 = vmatpush1.msra.mxu0 %v3836
    %4738 = vmatprep.subr.mxu0 0.0
    %4739 = vmatpush1.msra.mxu0 0.0
    %4740 = vmatprep.subr.mxu0 0.0
    %4741 = vmatpush1.msra.mxu0 0.0
    %4742 = vmatprep.subr.mxu0 0.0
    %4743 = vmatpush1.msra.mxu0 0.0
    %4744 = vmatprep.subr.mxu0 0.0
    %4745 = vmatpush1.msra.mxu0 0.0
    %4746 = vmatprep.subr.mxu0 0.0
    %4747 = vmatpush1.msra.mxu0 0.0
    %4748 = vmatprep.subr.mxu0 0.0
    %4749 = vmatpush1.msra.mxu0 0.0
    %4750 = vmatprep.subr.mxu0 0.0
    %4751 = vmatpush1.msra.mxu0 0.0
    %4752 = vmatprep.subr.mxu0 0.0
    %4753 = vmatpush1.msra.mxu0 0.0
    %4754 = vmatprep.subr.mxu0 0.0
    %4755 = vmatpush1.msra.mxu0 0.0
    %4756 = vmatprep.subr.mxu0 0.0
    %4757 = vmatpush1.msra.mxu0 0.0
    %4758 = vmatprep.subr.mxu0 0.0
    %4759 = vmatpush1.msra.mxu0 0.0
    %4760 = vmatprep.subr.mxu0 0.0
    %4761 = vmatpush1.msra.mxu0 0.0
    %4762 = vmatprep.subr.mxu0 0.0
    %4763 = vmatpush1.msra.mxu0 0.0
    %4764 = vmatprep.subr.mxu0 0.0
    %4765 = vmatpush1.msra.mxu0 0.0
    %4766 = vmatprep.subr.mxu0 0.0
    %4767 = vmatpush1.msra.mxu0 0.0
    %4768 = vmatprep.subr.mxu0 0.0
    %4769 = vmatpush1.msra.mxu0 0.0
    %4770 = vmatprep.subr.mxu0 0.0
    %4771 = vmatpush1.msra.mxu0 0.0
    %4772 = vmatprep.subr.mxu0 0.0
    %4773 = vmatpush1.msra.mxu0 0.0
    %4774 = vmatprep.subr.mxu0 0.0
    %4775 = vmatpush1.msra.mxu0 0.0
    %4776 = vmatprep.subr.mxu0 0.0
    %4777 = vmatpush1.msra.mxu0 0.0
    %4778 = vmatprep.subr.mxu0 0.0
    %4779 = vmatpush1.msra.mxu0 0.0
    %4780 = vmatprep.subr.mxu0 0.0
    %4781 = vmatpush1.msra.mxu0 0.0
    %4782 = vmatprep.subr.mxu0 0.0
    %4783 = vmatpush1.msra.mxu0 0.0
    %4784 = vmatprep.subr.mxu0 0.0
    %4785 = vmatpush1.msra.mxu0 0.0
    %4786 = vmatprep.subr.mxu0 0.0
    %4787 = vmatpush1.msra.mxu0 0.0
    %4788 = vmatprep.subr.mxu0 0.0
    %4789 = vmatpush1.msra.mxu0 0.0
    %4790 = vmatprep.subr.mxu0 0.0
    %4791 = vmatpush1.msra.mxu0 0.0
    %4792 = vmatprep.subr.mxu0 0.0
    %4793 = vmatpush1.msra.mxu0 0.0
    %4794 = vmatprep.mubr.f32.mxu0 0.0
    %4795 = vmatmul.mubr.f32.gmra.mrb[0].mxu0 %v4725
    %v4796 = vpop.f32.mrb[0].mxu0
    %v4797 = vadd.f32 %v4723, %v4796
    %v4798 = vpop.f32.mrb[0].mxu0
    %4799 = vmatprep.mubr.f32.mxu0 0.0
    %4800 = vmatmul.mubr.f32.gmra.mrb[0].mxu0 %v4728
    %v4801 = vpop.f32.mrb[0].mxu0
    %v4802 = vadd.f32 %v4723, %v4801
    %v4803 = vpop.f32.mrb[0].mxu0
    %4804 = vdwg.mxu0
    %v4805 = vadd.f32 %v3635, %v4797
    %v4806 = vadd.f32 %v3636, %v4802
    %v4807 = vsel %vm269, %v4805, 0.0
    %4808 = vadd.xlane.f32.xlu0 %v4807
    %v4809 = vpop.xlane.xlu0 %4808
    %v4810 = vsel %vm269, %v4806, 0.0
    %4811 = vadd.xlane.f32.xlu0 %v4810
    %v4812 = vpop.xlane.xlu0 %4811
    %v4813 = vmul.f32 %v4809, %v3602
    %v4814 = vmul.f32 %v4812, %v3602
    %v4815 = vsub.f32 %v4805, %v4813
    %v4816 = vsub.f32 %v4806, %v4814
    %v4817 = vmul.f32 %v4815, %v4815
    %v4818 = vmul.f32 %v4816, %v4816
    %v4819 = vsel %vm269, %v4817, 0.0
    %4820 = vadd.xlane.f32.xlu0 %v4819
    %v4821 = vpop.xlane.xlu0 %4820
    %v4822 = vsel %vm269, %v4818, 0.0
    %4823 = vadd.xlane.f32.xlu0 %v4822
    %v4824 = vpop.xlane.xlu0 %4823
    %v4825 = vmul.f32 %v4821, %v3602
    %v4826 = vmul.f32 %v4824, %v3602
    %v4827 = vadd.f32 %v4825, 1e-05
    %v4828 = vadd.f32 %v4826, 1e-05
    %v4829 = vrsqrt.pop %v4827
    %v4830 = vrsqrt.pop %v4828
    %v4831 = vmul.f32 %v4815, %v4829
    %v4832 = vmul.f32 %v4816, %v4830
    %v4833 = vld [vmem:[#allocation4 + $0x190] sm:$0x1]
    %v4834 = vlaneseq
    %v4835 = vshrl.u32 %v4834, 7
    %v4836 = vsub.s32 0, %v4835
    %v4837 = vrot.slane %v4833, %v4836
    %v4838 = vmul.f32 %v4831, %v4837
    %v4839 = vmul.f32 %v4832, %v4837
    %v4840 = vld [vmem:[#allocation4 + $0x198] sm:$0x1]
    %v4841 = vlaneseq
    %v4842 = vshrl.u32 %v4841, 7
    %v4843 = vsub.s32 0, %v4842
    %v4844 = vrot.slane %v4840, %v4843
    %v4845 = vadd.f32 %v4838, %v4844
    %v4846 = vadd.f32 %v4839, %v4844
    %v4847 = vld [vmem:[#allocation4 + $0x110] sm:$0xff]
    %v4848 = vld [vmem:[#allocation4 + $0x118] sm:$0xff]
    %v4849 = vld [vmem:[#allocation4 + $0x120] sm:$0xff]
    %v4850 = vld [vmem:[#allocation4 + $0x128] sm:$0xff]
    %v4851 = vld [vmem:[#allocation4 + $0x130] sm:$0x1]
    %v4852 = vlaneseq
    %v4853 = vshrl.u32 %v4852, 7
    %v4854 = vsub.s32 0, %v4853
    %v4855 = vrot.slane %v4851, %v4854
    %v4857 = vsel %vm269, %v4845, 0
    %v4860 = vsel %vm269, %v4846, 0
    %4862 = vmatprep.subr.mxu0 0.0
    %4863 = vmatpush1.msra.mxu0 %v4847
    %4864 = vmatprep.subr.mxu0 0.0
    %4865 = vmatpush1.msra.mxu0 %v4848
    %4866 = vmatprep.subr.mxu0 0.0
    %4867 = vmatpush1.msra.mxu0 %v4849
    %4868 = vmatprep.subr.mxu0 0.0
    %4869 = vmatpush1.msra.mxu0 %v4850
    %4870 = vmatprep.subr.mxu0 0.0
    %4871 = vmatpush1.msra.mxu0 0.0
    %4872 = vmatprep.subr.mxu0 0.0
    %4873 = vmatpush1.msra.mxu0 0.0
    %4874 = vmatprep.subr.mxu0 0.0
    %4875 = vmatpush1.msra.mxu0 0.0
    %4876 = vmatprep.subr.mxu0 0.0
    %4877 = vmatpush1.msra.mxu0 0.0
    %4878 = vmatprep.subr.mxu0 0.0
    %4879 = vmatpush1.msra.mxu0 0.0
    %4880 = vmatprep.subr.mxu0 0.0
    %4881 = vmatpush1.msra.mxu0 0.0
    %4882 = vmatprep.subr.mxu0 0.0
    %4883 = vmatpush1.msra.mxu0 0.0
    %4884 = vmatprep.subr.mxu0 0.0
    %4885 = vmatpush1.msra.mxu0 0.0
    %4886 = vmatprep.subr.mxu0 0.0
    %4887 = vmatpush1.msra.mxu0 0.0
    %4888 = vmatprep.subr.mxu0 0.0
    %4889 = vmatpush1.msra.mxu0 0.0
    %4890 = vmatprep.subr.mxu0 0.0
    %4891 = vmatpush1.msra.mxu0 0.0
    %4892 = vmatprep.subr.mxu0 0.0
    %4893 = vmatpush1.msra.mxu0 0.0
    %4894 = vmatprep.subr.mxu0 0.0
    %4895 = vmatpush1.msra.mxu0 0.0
    %4896 = vmatprep.subr.mxu0 0.0
    %4897 = vmatpush1.msra.mxu0 0.0
    %4898 = vmatprep.subr.mxu0 0.0
    %4899 = vmatpush1.msra.mxu0 0.0
    %4900 = vmatprep.subr.mxu0 0.0
    %4901 = vmatpush1.msra.mxu0 0.0
    %4902 = vmatprep.subr.mxu0 0.0
    %4903 = vmatpush1.msra.mxu0 0.0
    %4904 = vmatprep.subr.mxu0 0.0
    %4905 = vmatpush1.msra.mxu0 0.0
    %4906 = vmatprep.subr.mxu0 0.0
    %4907 = vmatpush1.msra.mxu0 0.0
    %4908 = vmatprep.subr.mxu0 0.0
    %4909 = vmatpush1.msra.mxu0 0.0
    %4910 = vmatprep.subr.mxu0 0.0
    %4911 = vmatpush1.msra.mxu0 0.0
    %4912 = vmatprep.subr.mxu0 0.0
    %4913 = vmatpush1.msra.mxu0 0.0
    %4914 = vmatprep.subr.mxu0 0.0
    %4915 = vmatpush1.msra.mxu0 0.0
    %4916 = vmatprep.subr.mxu0 0.0
    %4917 = vmatpush1.msra.mxu0 0.0
    %4918 = vmatprep.subr.mxu0 0.0
    %4919 = vmatpush1.msra.mxu0 0.0
    %4920 = vmatprep.subr.mxu0 0.0
    %4921 = vmatpush1.msra.mxu0 0.0
    %4922 = vmatprep.subr.mxu0 0.0
    %4923 = vmatpush1.msra.mxu0 0.0
    %4924 = vmatprep.subr.mxu0 0.0
    %4925 = vmatpush1.msra.mxu0 0.0
    %4926 = vmatprep.mubr.f32.mxu0 0.0
    %4927 = vmatmul.mubr.f32.gmra.mrb[0].mxu0 %v4857
    %v4928 = vpop.f32.mrb[0].mxu0
    %v4929 = vadd.f32 %v4855, %v4928
    %v4930 = vpop.f32.mrb[0].mxu0
    %4931 = vmatprep.mubr.f32.mxu0 0.0
    %4932 = vmatmul.mubr.f32.gmra.mrb[0].mxu0 %v4860
    %v4933 = vpop.f32.mrb[0].mxu0
    %v4934 = vadd.f32 %v4855, %v4933
    %v4935 = vpop.f32.mrb[0].mxu0
    %4936 = vdwg.mxu0
    %v4937 = vmax.f32 %v4929, 0.0
    %v4938 = vmax.f32 %v4934, 0.0
    %v4939 = vld [vmem:[#allocation4 + $0x138] sm:$0xff]
    %v4940 = vld [vmem:[#allocation4 + $0x140] sm:$0xff]
    %v4941 = vld [vmem:[#allocation4 + $0x148] sm:$0xff]
    %v4942 = vld [vmem:[#allocation4 + $0x150] sm:$0xff]
    %v4943 = vld [vmem:[#allocation4 + $0x158] sm:$0xff]
    %v4944 = vld [vmem:[#allocation4 + $0x160] sm:$0xff]
    %v4945 = vld [vmem:[#allocation4 + $0x168] sm:$0xff]
    %v4946 = vld [vmem:[#allocation4 + $0x170] sm:$0xff]
    %v4948 = vsel %vm1921, %v4937, 0
    %v4951 = vsel %vm1921, %v4938, 0
    %4953 = vmatprep.subr.mxu0 0.0
    %4954 = vmatpush1.msra.mxu0 %v4939
    %4955 = vmatprep.subr.mxu0 0.0
    %4956 = vmatpush1.msra.mxu0 %v4940
    %4957 = vmatprep.subr.mxu0 0.0
    %4958 = vmatpush1.msra.mxu0 %v4941
    %4959 = vmatprep.subr.mxu0 0.0
    %4960 = vmatpush1.msra.mxu0 %v4942
    %4961 = vmatprep.subr.mxu0 0.0
    %4962 = vmatpush1.msra.mxu0 %v4943
    %4963 = vmatprep.subr.mxu0 0.0
    %4964 = vmatpush1.msra.mxu0 %v4944
    %4965 = vmatprep.subr.mxu0 0.0
    %4966 = vmatpush1.msra.mxu0 %v4945
    %4967 = vmatprep.subr.mxu0 0.0
    %4968 = vmatpush1.msra.mxu0 %v4946
    %4969 = vmatprep.subr.mxu0 0.0
    %4970 = vmatpush1.msra.mxu0 0.0
    %4971 = vmatprep.subr.mxu0 0.0
    %4972 = vmatpush1.msra.mxu0 0.0
    %4973 = vmatprep.subr.mxu0 0.0
    %4974 = vmatpush1.msra.mxu0 0.0
    %4975 = vmatprep.subr.mxu0 0.0
    %4976 = vmatpush1.msra.mxu0 0.0
    %4977 = vmatprep.subr.mxu0 0.0
    %4978 = vmatpush1.msra.mxu0 0.0
    %4979 = vmatprep.subr.mxu0 0.0
    %4980 = vmatpush1.msra.mxu0 0.0
    %4981 = vmatprep.subr.mxu0 0.0
    %4982 = vmatpush1.msra.mxu0 0.0
    %4983 = vmatprep.subr.mxu0 0.0
    %4984 = vmatpush1.msra.mxu0 0.0
    %4985 = vmatprep.subr.mxu0 0.0
    %4986 = vmatpush1.msra.mxu0 0.0
    %4987 = vmatprep.subr.mxu0 0.0
    %4988 = vmatpush1.msra.mxu0 0.0
    %4989 = vmatprep.subr.mxu0 0.0
    %4990 = vmatpush1.msra.mxu0 0.0
    %4991 = vmatprep.subr.mxu0 0.0
    %4992 = vmatpush1.msra.mxu0 0.0
    %4993 = vmatprep.subr.mxu0 0.0
    %4994 = vmatpush1.msra.mxu0 0.0
    %4995 = vmatprep.subr.mxu0 0.0
    %4996 = vmatpush1.msra.mxu0 0.0
    %4997 = vmatprep.subr.mxu0 0.0
    %4998 = vmatpush1.msra.mxu0 0.0
    %4999 = vmatprep.subr.mxu0 0.0
    %5000 = vmatpush1.msra.mxu0 0.0
    %5001 = vmatprep.subr.mxu0 0.0
    %5002 = vmatpush1.msra.mxu0 0.0
    %5003 = vmatprep.subr.mxu0 0.0
    %5004 = vmatpush1.msra.mxu0 0.0
    %5005 = vmatprep.subr.mxu0 0.0
    %5006 = vmatpush1.msra.mxu0 0.0
    %5007 = vmatprep.subr.mxu0 0.0
    %5008 = vmatpush1.msra.mxu0 0.0
    %5009 = vmatprep.subr.mxu0 0.0
    %5010 = vmatpush1.msra.mxu0 0.0
    %5011 = vmatprep.subr.mxu0 0.0
    %5012 = vmatpush1.msra.mxu0 0.0
    %5013 = vmatprep.subr.mxu0 0.0
    %5014 = vmatpush1.msra.mxu0 0.0
    %5015 = vmatprep.subr.mxu0 0.0
    %5016 = vmatpush1.msra.mxu0 0.0
    %5017 = vmatprep.mubr.f32.mxu0 0.0
    %5018 = vmatmul.mubr.f32.gmra.mrb[0].mxu0 %v4948
    %v5019 = vpop.f32.mrb[0].mxu0
    %v5020 = vadd.f32 0.0, %v5019
    %v5021 = vpop.f32.mrb[0].mxu0
    %5022 = vmatprep.mubr.f32.mxu0 0.0
    %5023 = vmatmul.mubr.f32.gmra.mrb[0].mxu0 %v4951
    %v5024 = vpop.f32.mrb[0].mxu0
    %v5025 = vadd.f32 0.0, %v5024
    %v5026 = vpop.f32.mrb[0].mxu0
    %5027 = vdwg.mxu0
    %v5028 = vadd.f32 %v4845, %v5020
    %v5029 = vadd.f32 %v4846, %v5025
    %v5030 = vld [vmem:[#allocation4 + $0x178] sm:$0x1]
    %v5031 = vlaneseq
    %v5032 = vshrl.u32 %v5031, 7
    %v5033 = vsub.s32 0, %v5032
    %v5034 = vrot.slane %v5030, %v5033
    %v5035 = vadd.f32 %v5028, %v5034
    %v5036 = vadd.f32 %v5029, %v5034
    %v5037 = vsel %vm269, %v5035, 0.0
    %5038 = vadd.xlane.f32.xlu0 %v5037
    %v5039 = vpop.xlane.xlu0 %5038
    %v5040 = vsel %vm269, %v5036, 0.0
    %5041 = vadd.xlane.f32.xlu0 %v5040
    %v5042 = vpop.xlane.xlu0 %5041
    %v5043 = vmul.f32 %v5039, %v3602
    %v5044 = vmul.f32 %v5042, %v3602
    %v5045 = vsub.f32 %v5035, %v5043
    %v5046 = vsub.f32 %v5036, %v5044
    %v5047 = vmul.f32 %v5045, %v5045
    %v5048 = vmul.f32 %v5046, %v5046
    %v5049 = vsel %vm269, %v5047, 0.0
    %5050 = vadd.xlane.f32.xlu0 %v5049
    %v5051 = vpop.xlane.xlu0 %5050
    %v5052 = vsel %vm269, %v5048, 0.0
    %5053 = vadd.xlane.f32.xlu0 %v5052
    %v5054 = vpop.xlane.xlu0 %5053
    %v5055 = vmul.f32 %v5051, %v3602
    %v5056 = vmul.f32 %v5054, %v3602
    %v5057 = vadd.f32 %v5055, 1e-05
    %v5058 = vadd.f32 %v5056, 1e-05
    %v5059 = vrsqrt.pop %v5057
    %v5060 = vrsqrt.pop %v5058
    %v5061 = vmul.f32 %v5045, %v5059
    %v5062 = vmul.f32 %v5046, %v5060
    %v5063 = vld [vmem:[#allocation4 + $0x1a0] sm:$0x1]
    %v5064 = vlaneseq
    %v5065 = vshrl.u32 %v5064, 7
    %v5066 = vsub.s32 0, %v5065
    %v5067 = vrot.slane %v5063, %v5066
    %v5068 = vmul.f32 %v5061, %v5067
    %v5069 = vmul.f32 %v5062, %v5067
    %v5070 = vld [vmem:[#allocation4 + $0x1a8] sm:$0x1]
    %v5071 = vlaneseq
    %v5072 = vshrl.u32 %v5071, 7
    %v5073 = vsub.s32 0, %v5072
    %v5074 = vrot.slane %v5070, %v5073
    %v5075 = vadd.f32 %v5068, %v5074
    %v5076 = vadd.f32 %v5069, %v5074
    %v5077 = vld [vmem:[#allocation4 + $0x1b0] sm:$0xff]
    %v5078 = vld [vmem:[#allocation4 + $0x1b8] sm:$0xff]
    %v5079 = vld [vmem:[#allocation4 + $0x1c0] sm:$0xff]
    %v5080 = vld [vmem:[#allocation4 + $0x1c8] sm:$0xff]
    %v5081 = vld [vmem:[#allocation4 + $0x1d0] sm:$0x1]
    %v5082 = vlaneseq
    %v5083 = vshrl.u32 %v5082, 7
    %v5084 = vsub.s32 0, %v5083
    %v5085 = vrot.slane %v5081, %v5084
    %v5087 = vsel %vm269, %v5075, 0
    %v5090 = vsel %vm269, %v5076, 0
    %5092 = vmatprep.subr.mxu0 0.0
    %5093 = vmatpush1.msra.mxu0 %v5077
    %5094 = vmatprep.subr.mxu0 0.0
    %5095 = vmatpush1.msra.mxu0 %v5078
    %5096 = vmatprep.subr.mxu0 0.0
    %5097 = vmatpush1.msra.mxu0 %v5079
    %5098 = vmatprep.subr.mxu0 0.0
    %5099 = vmatpush1.msra.mxu0 %v5080
    %5100 = vmatprep.subr.mxu0 0.0
    %5101 = vmatpush1.msra.mxu0 0.0
    %5102 = vmatprep.subr.mxu0 0.0
    %5103 = vmatpush1.msra.mxu0 0.0
    %5104 = vmatprep.subr.mxu0 0.0
    %5105 = vmatpush1.msra.mxu0 0.0
    %5106 = vmatprep.subr.mxu0 0.0
    %5107 = vmatpush1.msra.mxu0 0.0
    %5108 = vmatprep.subr.mxu0 0.0
    %5109 = vmatpush1.msra.mxu0 0.0
    %5110 = vmatprep.subr.mxu0 0.0
    %5111 = vmatpush1.msra.mxu0 0.0
    %5112 = vmatprep.subr.mxu0 0.0
    %5113 = vmatpush1.msra.mxu0 0.0
    %5114 = vmatprep.subr.mxu0 0.0
    %5115 = vmatpush1.msra.mxu0 0.0
    %5116 = vmatprep.subr.mxu0 0.0
    %5117 = vmatpush1.msra.mxu0 0.0
    %5118 = vmatprep.subr.mxu0 0.0
    %5119 = vmatpush1.msra.mxu0 0.0
    %5120 = vmatprep.subr.mxu0 0.0
    %5121 = vmatpush1.msra.mxu0 0.0
    %5122 = vmatprep.subr.mxu0 0.0
    %5123 = vmatpush1.msra.mxu0 0.0
    %5124 = vmatprep.subr.mxu0 0.0
    %5125 = vmatpush1.msra.mxu0 0.0
    %5126 = vmatprep.subr.mxu0 0.0
    %5127 = vmatpush1.msra.mxu0 0.0
    %5128 = vmatprep.subr.mxu0 0.0
    %5129 = vmatpush1.msra.mxu0 0.0
    %5130 = vmatprep.subr.mxu0 0.0
    %5131 = vmatpush1.msra.mxu0 0.0
    %5132 = vmatprep.subr.mxu0 0.0
    %5133 = vmatpush1.msra.mxu0 0.0
    %5134 = vmatprep.subr.mxu0 0.0
    %5135 = vmatpush1.msra.mxu0 0.0
    %5136 = vmatprep.subr.mxu0 0.0
    %5137 = vmatpush1.msra.mxu0 0.0
    %5138 = vmatprep.subr.mxu0 0.0
    %5139 = vmatpush1.msra.mxu0 0.0
    %5140 = vmatprep.subr.mxu0 0.0
    %5141 = vmatpush1.msra.mxu0 0.0
    %5142 = vmatprep.subr.mxu0 0.0
    %5143 = vmatpush1.msra.mxu0 0.0
    %5144 = vmatprep.subr.mxu0 0.0
    %5145 = vmatpush1.msra.mxu0 0.0
    %5146 = vmatprep.subr.mxu0 0.0
    %5147 = vmatpush1.msra.mxu0 0.0
    %5148 = vmatprep.subr.mxu0 0.0
    %5149 = vmatpush1.msra.mxu0 0.0
    %5150 = vmatprep.subr.mxu0 0.0
    %5151 = vmatpush1.msra.mxu0 0.0
    %5152 = vmatprep.subr.mxu0 0.0
    %5153 = vmatpush1.msra.mxu0 0.0
    %5154 = vmatprep.subr.mxu0 0.0
    %5155 = vmatpush1.msra.mxu0 0.0
    %5156 = vmatprep.mubr.f32.mxu0 0.0
    %5157 = vmatmul.mubr.f32.gmra.mrb[0].mxu0 %v5087
    %v5158 = vpop.f32.mrb[0].mxu0
    %v5159 = vadd.f32 %v5085, %v5158
    %v5160 = vpop.f32.mrb[0].mxu0
    %5161 = vmatprep.mubr.f32.mxu0 0.0
    %5162 = vmatmul.mubr.f32.gmra.mrb[0].mxu0 %v5090
    %v5163 = vpop.f32.mrb[0].mxu0
    %v5164 = vadd.f32 %v5085, %v5163
    %v5165 = vpop.f32.mrb[0].mxu0
    %5166 = vdwg.mxu0
    %v5167 = vld [vmem:[#allocation4 + $0x1d8] sm:$0xff]
    %v5168 = vld [vmem:[#allocation4 + $0x1e0] sm:$0xff]
    %v5169 = vld [vmem:[#allocation4 + $0x1e8] sm:$0xff]
    %v5170 = vld [vmem:[#allocation4 + $0x1f0] sm:$0xff]
    %v5171 = vld [vmem:[#allocation4 + $0x1f8] sm:$0x1]
    %v5172 = vmul.f32 %v5159, 0.35355338
    %v5173 = vmul.f32 %v5164, 0.35355338
    %5176 = vrot.lane.b32.xlu0 %v5159, 96
    %v5177 = vpop.permute.xlu0 %5176
    %5178 = vrot.lane.b32.xlu0 %v5164, 96
    %v5179 = vpop.permute.xlu0 %5178
    %v5181 = vsel %vm2683, %v5172, 0
    %v5184 = vsel %vm2683, %v5173, 0
    %v5186 = vsel %vm2683, %v5177, 0
    %v5188 = vsel %vm2683, %v5179, 0
    %5190 = vmatprep.subr.mxu0 0.0
    %5191 = vmatpush1.xpose.msra.mxu0 %v5186
    %5192 = vmatprep.subr.mxu0 0.0
    %5193 = vmatpush1.xpose.msra.mxu0 %v5188
    %5194 = vmatprep.subr.mxu0 0.0
    %5195 = vmatpush1.xpose.msra.mxu0 0.0
    %5196 = vmatprep.subr.mxu0 0.0
    %5197 = vmatpush1.xpose.msra.mxu0 0.0
    %5198 = vmatprep.subr.mxu0 0.0
    %5199 = vmatpush1.xpose.msra.mxu0 0.0
    %5200 = vmatprep.subr.mxu0 0.0
    %5201 = vmatpush1.xpose.msra.mxu0 0.0
    %5202 = vmatprep.subr.mxu0 0.0
    %5203 = vmatpush1.xpose.msra.mxu0 0.0
    %5204 = vmatprep.subr.mxu0 0.0
    %5205 = vmatpush1.xpose.msra.mxu0 0.0
    %5206 = vmatprep.subr.mxu0 0.0
    %5207 = vmatpush1.xpose.msra.mxu0 0.0
    %5208 = vmatprep.subr.mxu0 0.0
    %5209 = vmatpush1.xpose.msra.mxu0 0.0
    %5210 = vmatprep.subr.mxu0 0.0
    %5211 = vmatpush1.xpose.msra.mxu0 0.0
    %5212 = vmatprep.subr.mxu0 0.0
    %5213 = vmatpush1.xpose.msra.mxu0 0.0
    %5214 = vmatprep.subr.mxu0 0.0
    %5215 = vmatpush1.xpose.msra.mxu0 0.0
    %5216 = vmatprep.subr.mxu0 0.0
    %5217 = vmatpush1.xpose.msra.mxu0 0.0
    %5218 = vmatprep.subr.mxu0 0.0
    %5219 = vmatpush1.xpose.msra.mxu0 0.0
    %5220 = vmatprep.subr.mxu0 0.0
    %5221 = vmatpush1.xpose.msra.mxu0 0.0
    %5222 = vmatprep.subr.mxu0 0.0
    %5223 = vmatpush1.xpose.msra.mxu0 0.0
    %5224 = vmatprep.subr.mxu0 0.0
    %5225 = vmatpush1.xpose.msra.mxu0 0.0
    %5226 = vmatprep.subr.mxu0 0.0
    %5227 = vmatpush1.xpose.msra.mxu0 0.0
    %5228 = vmatprep.subr.mxu0 0.0
    %5229 = vmatpush1.xpose.msra.mxu0 0.0
    %5230 = vmatprep.subr.mxu0 0.0
    %5231 = vmatpush1.xpose.msra.mxu0 0.0
    %5232 = vmatprep.subr.mxu0 0.0
    %5233 = vmatpush1.xpose.msra.mxu0 0.0
    %5234 = vmatprep.subr.mxu0 0.0
    %5235 = vmatpush1.xpose.msra.mxu0 0.0
    %5236 = vmatprep.subr.mxu0 0.0
    %5237 = vmatpush1.xpose.msra.mxu0 0.0
    %5238 = vmatprep.subr.mxu0 0.0
    %5239 = vmatpush1.xpose.msra.mxu0 0.0
    %5240 = vmatprep.subr.mxu0 0.0
    %5241 = vmatpush1.xpose.msra.mxu0 0.0
    %5242 = vmatprep.subr.mxu0 0.0
    %5243 = vmatpush1.xpose.msra.mxu0 0.0
    %5244 = vmatprep.subr.mxu0 0.0
    %5245 = vmatpush1.xpose.msra.mxu0 0.0
    %5246 = vmatprep.subr.mxu0 0.0
    %5247 = vmatpush1.xpose.msra.mxu0 0.0
    %5248 = vmatprep.subr.mxu0 0.0
    %5249 = vmatpush1.xpose.msra.mxu0 0.0
    %5250 = vmatprep.subr.mxu0 0.0
    %5251 = vmatpush1.xpose.msra.mxu0 0.0
    %5252 = vmatprep.subr.mxu0 0.0
    %5253 = vmatpush1.xpose.msra.mxu0 0.0
    %5254 = vmatprep.mubr.f32.mxu0 0.0
    %5255 = vmatmul.mubr.f32.gmra.mrb[0].mxu0 %v5181
    %v5256 = vpop.f32.mrb[0].mxu0
    %v5257 = vadd.f32 %v2576, %v5256
    %v5258 = vpop.f32.mrb[0].mxu0
    %5259 = vmatprep.mubr.f32.mxu0 0.0
    %5260 = vmatmul.mubr.f32.gmra.mrb[0].mxu0 %v5184
    %v5261 = vpop.f32.mrb[0].mxu0
    %v5262 = vadd.f32 %v2577, %v5261
    %v5263 = vpop.f32.mrb[0].mxu0
    %5264 = vdwg.mxu0
    %v5265 = vsel %vm61, %v5257, -inf
    %5266 = vmax.xlane.f32.xlu0 %v5265
    %v5267 = vpop.xlane.xlu0 %5266
    %v5268 = vsel %vm61, %v5262, -inf
    %5269 = vmax.xlane.f32.xlu0 %v5268
    %v5270 = vpop.xlane.xlu0 %5269
    %v5271 = vsub.f32 %v5257, %v5267
    %v5272 = vsub.f32 %v5262, %v5270
    %v5273 = vmul.f32 %v5271, 1.442695
    %v5274 = vpow.pop %v5273
    %v5275 = vmul.f32 %v5272, 1.442695
    %v5276 = vpow.pop %v5275
    %v5277 = vsel %vm61, %v5274, 0.0
    %5278 = vadd.xlane.f32.xlu0 %v5277
    %v5279 = vpop.xlane.xlu0 %5278
    %v5280 = vsel %vm61, %v5276, 0.0
    %5281 = vadd.xlane.f32.xlu0 %v5280
    %v5282 = vpop.xlane.xlu0 %5281
    %v5283 = vrcp.pop %v5279
    %v5284 = vmul.f32 %v5274, %v5283
    %v5285 = vrcp.pop %v5282
    %v5286 = vmul.f32 %v5276, %v5285
    %5287 = vrot.lane.b32.xlu0 %v5159, 64
    %v5288 = vpop.permute.xlu0 %5287
    %5289 = vrot.lane.b32.xlu0 %v5164, 64
    %v5290 = vpop.permute.xlu0 %5289
    %v5294 = vsel %vm61, %v5284, 0
    %v5297 = vsel %vm61, %v5286, 0
    %5299 = vmatprep.subr.mxu0 0.0
    %5300 = vmatpush1.msra.mxu0 %v5288
    %5301 = vmatprep.subr.mxu0 0.0
    %5302 = vmatpush1.msra.mxu0 %v5290
    %5303 = vmatprep.subr.mxu0 0.0
    %5304 = vmatpush1.msra.mxu0 0.0
    %5305 = vmatprep.subr.mxu0 0.0
    %5306 = vmatpush1.msra.mxu0 0.0
    %5307 = vmatprep.subr.mxu0 0.0
    %5308 = vmatpush1.msra.mxu0 0.0
    %5309 = vmatprep.subr.mxu0 0.0
    %5310 = vmatpush1.msra.mxu0 0.0
    %5311 = vmatprep.subr.mxu0 0.0
    %5312 = vmatpush1.msra.mxu0 0.0
    %5313 = vmatprep.subr.mxu0 0.0
    %5314 = vmatpush1.msra.mxu0 0.0
    %5315 = vmatprep.subr.mxu0 0.0
    %5316 = vmatpush1.msra.mxu0 0.0
    %5317 = vmatprep.subr.mxu0 0.0
    %5318 = vmatpush1.msra.mxu0 0.0
    %5319 = vmatprep.subr.mxu0 0.0
    %5320 = vmatpush1.msra.mxu0 0.0
    %5321 = vmatprep.subr.mxu0 0.0
    %5322 = vmatpush1.msra.mxu0 0.0
    %5323 = vmatprep.subr.mxu0 0.0
    %5324 = vmatpush1.msra.mxu0 0.0
    %5325 = vmatprep.subr.mxu0 0.0
    %5326 = vmatpush1.msra.mxu0 0.0
    %5327 = vmatprep.subr.mxu0 0.0
    %5328 = vmatpush1.msra.mxu0 0.0
    %5329 = vmatprep.subr.mxu0 0.0
    %5330 = vmatpush1.msra.mxu0 0.0
    %5331 = vmatprep.subr.mxu0 0.0
    %5332 = vmatpush1.msra.mxu0 0.0
    %5333 = vmatprep.subr.mxu0 0.0
    %5334 = vmatpush1.msra.mxu0 0.0
    %5335 = vmatprep.subr.mxu0 0.0
    %5336 = vmatpush1.msra.mxu0 0.0
    %5337 = vmatprep.subr.mxu0 0.0
    %5338 = vmatpush1.msra.mxu0 0.0
    %5339 = vmatprep.subr.mxu0 0.0
    %5340 = vmatpush1.msra.mxu0 0.0
    %5341 = vmatprep.subr.mxu0 0.0
    %5342 = vmatpush1.msra.mxu0 0.0
    %5343 = vmatprep.subr.mxu0 0.0
    %5344 = vmatpush1.msra.mxu0 0.0
    %5345 = vmatprep.subr.mxu0 0.0
    %5346 = vmatpush1.msra.mxu0 0.0
    %5347 = vmatprep.subr.mxu0 0.0
    %5348 = vmatpush1.msra.mxu0 0.0
    %5349 = vmatprep.subr.mxu0 0.0
    %5350 = vmatpush1.msra.mxu0 0.0
    %5351 = vmatprep.subr.mxu0 0.0
    %5352 = vmatpush1.msra.mxu0 0.0
    %5353 = vmatprep.subr.mxu0 0.0
    %5354 = vmatpush1.msra.mxu0 0.0
    %5355 = vmatprep.subr.mxu0 0.0
    %5356 = vmatpush1.msra.mxu0 0.0
    %5357 = vmatprep.subr.mxu0 0.0
    %5358 = vmatpush1.msra.mxu0 0.0
    %5359 = vmatprep.subr.mxu0 0.0
    %5360 = vmatpush1.msra.mxu0 0.0
    %5361 = vmatprep.subr.mxu0 0.0
    %5362 = vmatpush1.msra.mxu0 0.0
    %5363 = vmatprep.mubr.f32.mxu0 0.0
    %5364 = vmatmul.mubr.f32.gmra.mrb[0].mxu0 %v5294
    %v5365 = vpop.f32.mrb[0].mxu0
    %v5366 = vadd.f32 0.0, %v5365
    %v5367 = vpop.f32.mrb[0].mxu0
    %5368 = vmatprep.mubr.f32.mxu0 0.0
    %5369 = vmatmul.mubr.f32.gmra.mrb[0].mxu0 %v5297
    %v5370 = vpop.f32.mrb[0].mxu0
    %v5371 = vadd.f32 0.0, %v5370
    %v5372 = vpop.f32.mrb[0].mxu0
    %5373 = vdwg.mxu0
    %5374 = vrot.lane.b32.xlu0 %v5172, 120
    %v5375 = vpop.permute.xlu0 %5374
    %5376 = vrot.lane.b32.xlu0 %v5173, 120
    %v5377 = vpop.permute.xlu0 %5376
    %5378 = vrot.lane.b32.xlu0 %v5159, 88
    %v5379 = vpop.permute.xlu0 %5378
    %5380 = vrot.lane.b32.xlu0 %v5164, 88
    %v5381 = vpop.permute.xlu0 %5380
    %v5382 = vsel %vm2683, %v5375, 0
    %v5384 = vsel %vm2683, %v5377, 0
    %v5386 = vsel %vm2683, %v5379, 0
    %v5388 = vsel %vm2683, %v5381, 0
    %5390 = vmatprep.subr.mxu0 0.0
    %5391 = vmatpush1.xpose.msra.mxu0 %v5386
    %5392 = vmatprep.subr.mxu0 0.0
    %5393 = vmatpush1.xpose.msra.mxu0 %v5388
    %5394 = vmatprep.subr.mxu0 0.0
    %5395 = vmatpush1.xpose.msra.mxu0 0.0
    %5396 = vmatprep.subr.mxu0 0.0
    %5397 = vmatpush1.xpose.msra.mxu0 0.0
    %5398 = vmatprep.subr.mxu0 0.0
    %5399 = vmatpush1.xpose.msra.mxu0 0.0
    %5400 = vmatprep.subr.mxu0 0.0
    %5401 = vmatpush1.xpose.msra.mxu0 0.0
    %5402 = vmatprep.subr.mxu0 0.0
    %5403 = vmatpush1.xpose.msra.mxu0 0.0
    %5404 = vmatprep.subr.mxu0 0.0
    %5405 = vmatpush1.xpose.msra.mxu0 0.0
    %5406 = vmatprep.subr.mxu0 0.0
    %5407 = vmatpush1.xpose.msra.mxu0 0.0
    %5408 = vmatprep.subr.mxu0 0.0
    %5409 = vmatpush1.xpose.msra.mxu0 0.0
    %5410 = vmatprep.subr.mxu0 0.0
    %5411 = vmatpush1.xpose.msra.mxu0 0.0
    %5412 = vmatprep.subr.mxu0 0.0
    %5413 = vmatpush1.xpose.msra.mxu0 0.0
    %5414 = vmatprep.subr.mxu0 0.0
    %5415 = vmatpush1.xpose.msra.mxu0 0.0
    %5416 = vmatprep.subr.mxu0 0.0
    %5417 = vmatpush1.xpose.msra.mxu0 0.0
    %5418 = vmatprep.subr.mxu0 0.0
    %5419 = vmatpush1.xpose.msra.mxu0 0.0
    %5420 = vmatprep.subr.mxu0 0.0
    %5421 = vmatpush1.xpose.msra.mxu0 0.0
    %5422 = vmatprep.subr.mxu0 0.0
    %5423 = vmatpush1.xpose.msra.mxu0 0.0
    %5424 = vmatprep.subr.mxu0 0.0
    %5425 = vmatpush1.xpose.msra.mxu0 0.0
    %5426 = vmatprep.subr.mxu0 0.0
    %5427 = vmatpush1.xpose.msra.mxu0 0.0
    %5428 = vmatprep.subr.mxu0 0.0
    %5429 = vmatpush1.xpose.msra.mxu0 0.0
    %5430 = vmatprep.subr.mxu0 0.0
    %5431 = vmatpush1.xpose.msra.mxu0 0.0
    %5432 = vmatprep.subr.mxu0 0.0
    %5433 = vmatpush1.xpose.msra.mxu0 0.0
    %5434 = vmatprep.subr.mxu0 0.0
    %5435 = vmatpush1.xpose.msra.mxu0 0.0
    %5436 = vmatprep.subr.mxu0 0.0
    %5437 = vmatpush1.xpose.msra.mxu0 0.0
    %5438 = vmatprep.subr.mxu0 0.0
    %5439 = vmatpush1.xpose.msra.mxu0 0.0
    %5440 = vmatprep.subr.mxu0 0.0
    %5441 = vmatpush1.xpose.msra.mxu0 0.0
    %5442 = vmatprep.subr.mxu0 0.0
    %5443 = vmatpush1.xpose.msra.mxu0 0.0
    %5444 = vmatprep.subr.mxu0 0.0
    %5445 = vmatpush1.xpose.msra.mxu0 0.0
    %5446 = vmatprep.subr.mxu0 0.0
    %5447 = vmatpush1.xpose.msra.mxu0 0.0
    %5448 = vmatprep.subr.mxu0 0.0
    %5449 = vmatpush1.xpose.msra.mxu0 0.0
    %5450 = vmatprep.subr.mxu0 0.0
    %5451 = vmatpush1.xpose.msra.mxu0 0.0
    %5452 = vmatprep.subr.mxu0 0.0
    %5453 = vmatpush1.xpose.msra.mxu0 0.0
    %5454 = vmatprep.mubr.f32.mxu0 0.0
    %5455 = vmatmul.mubr.f32.gmra.mrb[0].mxu0 %v5382
    %v5456 = vpop.f32.mrb[0].mxu0
    %v5457 = vadd.f32 %v2576, %v5456
    %v5458 = vpop.f32.mrb[0].mxu0
    %5459 = vmatprep.mubr.f32.mxu0 0.0
    %5460 = vmatmul.mubr.f32.gmra.mrb[0].mxu0 %v5384
    %v5461 = vpop.f32.mrb[0].mxu0
    %v5462 = vadd.f32 %v2577, %v5461
    %v5463 = vpop.f32.mrb[0].mxu0
    %5464 = vdwg.mxu0
    %v5465 = vsel %vm61, %v5457, -inf
    %5466 = vmax.xlane.f32.xlu0 %v5465
    %v5467 = vpop.xlane.xlu0 %5466
    %v5468 = vsel %vm61, %v5462, -inf
    %5469 = vmax.xlane.f32.xlu0 %v5468
    %v5470 = vpop.xlane.xlu0 %5469
    %v5471 = vsub.f32 %v5457, %v5467
    %v5472 = vsub.f32 %v5462, %v5470
    %v5473 = vmul.f32 %v5471, 1.442695
    %v5474 = vpow.pop %v5473
    %v5475 = vmul.f32 %v5472, 1.442695
    %v5476 = vpow.pop %v5475
    %v5477 = vsel %vm61, %v5474, 0.0
    %5478 = vadd.xlane.f32.xlu0 %v5477
    %v5479 = vpop.xlane.xlu0 %5478
    %v5480 = vsel %vm61, %v5476, 0.0
    %5481 = vadd.xlane.f32.xlu0 %v5480
    %v5482 = vpop.xlane.xlu0 %5481
    %v5483 = vrcp.pop %v5479
    %v5484 = vmul.f32 %v5474, %v5483
    %v5485 = vrcp.pop %v5482
    %v5486 = vmul.f32 %v5476, %v5485
    %5487 = vrot.lane.b32.xlu0 %v5159, 56
    %v5488 = vpop.permute.xlu0 %5487
    %5489 = vrot.lane.b32.xlu0 %v5164, 56
    %v5490 = vpop.permute.xlu0 %5489
    %v5494 = vsel %vm61, %v5484, 0
    %v5497 = vsel %vm61, %v5486, 0
    %5499 = vmatprep.subr.mxu0 0.0
    %5500 = vmatpush1.msra.mxu0 %v5488
    %5501 = vmatprep.subr.mxu0 0.0
    %5502 = vmatpush1.msra.mxu0 %v5490
    %5503 = vmatprep.subr.mxu0 0.0
    %5504 = vmatpush1.msra.mxu0 0.0
    %5505 = vmatprep.subr.mxu0 0.0
    %5506 = vmatpush1.msra.mxu0 0.0
    %5507 = vmatprep.subr.mxu0 0.0
    %5508 = vmatpush1.msra.mxu0 0.0
    %5509 = vmatprep.subr.mxu0 0.0
    %5510 = vmatpush1.msra.mxu0 0.0
    %5511 = vmatprep.subr.mxu0 0.0
    %5512 = vmatpush1.msra.mxu0 0.0
    %5513 = vmatprep.subr.mxu0 0.0
    %5514 = vmatpush1.msra.mxu0 0.0
    %5515 = vmatprep.subr.mxu0 0.0
    %5516 = vmatpush1.msra.mxu0 0.0
    %5517 = vmatprep.subr.mxu0 0.0
    %5518 = vmatpush1.msra.mxu0 0.0
    %5519 = vmatprep.subr.mxu0 0.0
    %5520 = vmatpush1.msra.mxu0 0.0
    %5521 = vmatprep.subr.mxu0 0.0
    %5522 = vmatpush1.msra.mxu0 0.0
    %5523 = vmatprep.subr.mxu0 0.0
    %5524 = vmatpush1.msra.mxu0 0.0
    %5525 = vmatprep.subr.mxu0 0.0
    %5526 = vmatpush1.msra.mxu0 0.0
    %5527 = vmatprep.subr.mxu0 0.0
    %5528 = vmatpush1.msra.mxu0 0.0
    %5529 = vmatprep.subr.mxu0 0.0
    %5530 = vmatpush1.msra.mxu0 0.0
    %5531 = vmatprep.subr.mxu0 0.0
    %5532 = vmatpush1.msra.mxu0 0.0
    %5533 = vmatprep.subr.mxu0 0.0
    %5534 = vmatpush1.msra.mxu0 0.0
    %5535 = vmatprep.subr.mxu0 0.0
    %5536 = vmatpush1.msra.mxu0 0.0
    %5537 = vmatprep.subr.mxu0 0.0
    %5538 = vmatpush1.msra.mxu0 0.0
    %5539 = vmatprep.subr.mxu0 0.0
    %5540 = vmatpush1.msra.mxu0 0.0
    %5541 = vmatprep.subr.mxu0 0.0
    %5542 = vmatpush1.msra.mxu0 0.0
    %5543 = vmatprep.subr.mxu0 0.0
    %5544 = vmatpush1.msra.mxu0 0.0
    %5545 = vmatprep.subr.mxu0 0.0
    %5546 = vmatpush1.msra.mxu0 0.0
    %5547 = vmatprep.subr.mxu0 0.0
    %5548 = vmatpush1.msra.mxu0 0.0
    %5549 = vmatprep.subr.mxu0 0.0
    %5550 = vmatpush1.msra.mxu0 0.0
    %5551 = vmatprep.subr.mxu0 0.0
    %5552 = vmatpush1.msra.mxu0 0.0
    %5553 = vmatprep.subr.mxu0 0.0
    %5554 = vmatpush1.msra.mxu0 0.0
    %5555 = vmatprep.subr.mxu0 0.0
    %5556 = vmatpush1.msra.mxu0 0.0
    %5557 = vmatprep.subr.mxu0 0.0
    %5558 = vmatpush1.msra.mxu0 0.0
    %5559 = vmatprep.subr.mxu0 0.0
    %5560 = vmatpush1.msra.mxu0 0.0
    %5561 = vmatprep.subr.mxu0 0.0
    %5562 = vmatpush1.msra.mxu0 0.0
    %5563 = vmatprep.mubr.f32.mxu0 0.0
    %5564 = vmatmul.mubr.f32.gmra.mrb[0].mxu0 %v5494
    %v5565 = vpop.f32.mrb[0].mxu0
    %v5566 = vadd.f32 0.0, %v5565
    %v5567 = vpop.f32.mrb[0].mxu0
    %5568 = vmatprep.mubr.f32.mxu0 0.0
    %5569 = vmatmul.mubr.f32.gmra.mrb[0].mxu0 %v5497
    %v5570 = vpop.f32.mrb[0].mxu0
    %v5571 = vadd.f32 0.0, %v5570
    %v5572 = vpop.f32.mrb[0].mxu0
    %5573 = vdwg.mxu0
    %5574 = vrot.lane.b32.xlu0 %v5172, 112
    %v5575 = vpop.permute.xlu0 %5574
    %5576 = vrot.lane.b32.xlu0 %v5173, 112
    %v5577 = vpop.permute.xlu0 %5576
    %5578 = vrot.lane.b32.xlu0 %v5159, 80
    %v5579 = vpop.permute.xlu0 %5578
    %5580 = vrot.lane.b32.xlu0 %v5164, 80
    %v5581 = vpop.permute.xlu0 %5580
    %v5582 = vsel %vm2683, %v5575, 0
    %v5584 = vsel %vm2683, %v5577, 0
    %v5586 = vsel %vm2683, %v5579, 0
    %v5588 = vsel %vm2683, %v5581, 0
    %5590 = vmatprep.subr.mxu0 0.0
    %5591 = vmatpush1.xpose.msra.mxu0 %v5586
    %5592 = vmatprep.subr.mxu0 0.0
    %5593 = vmatpush1.xpose.msra.mxu0 %v5588
    %5594 = vmatprep.subr.mxu0 0.0
    %5595 = vmatpush1.xpose.msra.mxu0 0.0
    %5596 = vmatprep.subr.mxu0 0.0
    %5597 = vmatpush1.xpose.msra.mxu0 0.0
    %5598 = vmatprep.subr.mxu0 0.0
    %5599 = vmatpush1.xpose.msra.mxu0 0.0
    %5600 = vmatprep.subr.mxu0 0.0
    %5601 = vmatpush1.xpose.msra.mxu0 0.0
    %5602 = vmatprep.subr.mxu0 0.0
    %5603 = vmatpush1.xpose.msra.mxu0 0.0
    %5604 = vmatprep.subr.mxu0 0.0
    %5605 = vmatpush1.xpose.msra.mxu0 0.0
    %5606 = vmatprep.subr.mxu0 0.0
    %5607 = vmatpush1.xpose.msra.mxu0 0.0
    %5608 = vmatprep.subr.mxu0 0.0
    %5609 = vmatpush1.xpose.msra.mxu0 0.0
    %5610 = vmatprep.subr.mxu0 0.0
    %5611 = vmatpush1.xpose.msra.mxu0 0.0
    %5612 = vmatprep.subr.mxu0 0.0
    %5613 = vmatpush1.xpose.msra.mxu0 0.0
    %5614 = vmatprep.subr.mxu0 0.0
    %5615 = vmatpush1.xpose.msra.mxu0 0.0
    %5616 = vmatprep.subr.mxu0 0.0
    %5617 = vmatpush1.xpose.msra.mxu0 0.0
    %5618 = vmatprep.subr.mxu0 0.0
    %5619 = vmatpush1.xpose.msra.mxu0 0.0
    %5620 = vmatprep.subr.mxu0 0.0
    %5621 = vmatpush1.xpose.msra.mxu0 0.0
    %5622 = vmatprep.subr.mxu0 0.0
    %5623 = vmatpush1.xpose.msra.mxu0 0.0
    %5624 = vmatprep.subr.mxu0 0.0
    %5625 = vmatpush1.xpose.msra.mxu0 0.0
    %5626 = vmatprep.subr.mxu0 0.0
    %5627 = vmatpush1.xpose.msra.mxu0 0.0
    %5628 = vmatprep.subr.mxu0 0.0
    %5629 = vmatpush1.xpose.msra.mxu0 0.0
    %5630 = vmatprep.subr.mxu0 0.0
    %5631 = vmatpush1.xpose.msra.mxu0 0.0
    %5632 = vmatprep.subr.mxu0 0.0
    %5633 = vmatpush1.xpose.msra.mxu0 0.0
    %5634 = vmatprep.subr.mxu0 0.0
    %5635 = vmatpush1.xpose.msra.mxu0 0.0
    %5636 = vmatprep.subr.mxu0 0.0
    %5637 = vmatpush1.xpose.msra.mxu0 0.0
    %5638 = vmatprep.subr.mxu0 0.0
    %5639 = vmatpush1.xpose.msra.mxu0 0.0
    %5640 = vmatprep.subr.mxu0 0.0
    %5641 = vmatpush1.xpose.msra.mxu0 0.0
    %5642 = vmatprep.subr.mxu0 0.0
    %5643 = vmatpush1.xpose.msra.mxu0 0.0
    %5644 = vmatprep.subr.mxu0 0.0
    %5645 = vmatpush1.xpose.msra.mxu0 0.0
    %5646 = vmatprep.subr.mxu0 0.0
    %5647 = vmatpush1.xpose.msra.mxu0 0.0
    %5648 = vmatprep.subr.mxu0 0.0
    %5649 = vmatpush1.xpose.msra.mxu0 0.0
    %5650 = vmatprep.subr.mxu0 0.0
    %5651 = vmatpush1.xpose.msra.mxu0 0.0
    %5652 = vmatprep.subr.mxu0 0.0
    %5653 = vmatpush1.xpose.msra.mxu0 0.0
    %5654 = vmatprep.mubr.f32.mxu0 0.0
    %5655 = vmatmul.mubr.f32.gmra.mrb[0].mxu0 %v5582
    %v5656 = vpop.f32.mrb[0].mxu0
    %v5657 = vadd.f32 %v2576, %v5656
    %v5658 = vpop.f32.mrb[0].mxu0
    %5659 = vmatprep.mubr.f32.mxu0 0.0
    %5660 = vmatmul.mubr.f32.gmra.mrb[0].mxu0 %v5584
    %v5661 = vpop.f32.mrb[0].mxu0
    %v5662 = vadd.f32 %v2577, %v5661
    %v5663 = vpop.f32.mrb[0].mxu0
    %5664 = vdwg.mxu0
    %v5665 = vsel %vm61, %v5657, -inf
    %5666 = vmax.xlane.f32.xlu0 %v5665
    %v5667 = vpop.xlane.xlu0 %5666
    %v5668 = vsel %vm61, %v5662, -inf
    %5669 = vmax.xlane.f32.xlu0 %v5668
    %v5670 = vpop.xlane.xlu0 %5669
    %v5671 = vsub.f32 %v5657, %v5667
    %v5672 = vsub.f32 %v5662, %v5670
    %v5673 = vmul.f32 %v5671, 1.442695
    %v5674 = vpow.pop %v5673
    %v5675 = vmul.f32 %v5672, 1.442695
    %v5676 = vpow.pop %v5675
    %v5677 = vsel %vm61, %v5674, 0.0
    %5678 = vadd.xlane.f32.xlu0 %v5677
    %v5679 = vpop.xlane.xlu0 %5678
    %v5680 = vsel %vm61, %v5676, 0.0
    %5681 = vadd.xlane.f32.xlu0 %v5680
    %v5682 = vpop.xlane.xlu0 %5681
    %v5683 = vrcp.pop %v5679
    %v5684 = vmul.f32 %v5674, %v5683
    %v5685 = vrcp.pop %v5682
    %v5686 = vmul.f32 %v5676, %v5685
    %5687 = vrot.lane.b32.xlu0 %v5159, 48
    %v5688 = vpop.permute.xlu0 %5687
    %5689 = vrot.lane.b32.xlu0 %v5164, 48
    %v5690 = vpop.permute.xlu0 %5689
    %v5694 = vsel %vm61, %v5684, 0
    %v5697 = vsel %vm61, %v5686, 0
    %5699 = vmatprep.subr.mxu0 0.0
    %5700 = vmatpush1.msra.mxu0 %v5688
    %5701 = vmatprep.subr.mxu0 0.0
    %5702 = vmatpush1.msra.mxu0 %v5690
    %5703 = vmatprep.subr.mxu0 0.0
    %5704 = vmatpush1.msra.mxu0 0.0
    %5705 = vmatprep.subr.mxu0 0.0
    %5706 = vmatpush1.msra.mxu0 0.0
    %5707 = vmatprep.subr.mxu0 0.0
    %5708 = vmatpush1.msra.mxu0 0.0
    %5709 = vmatprep.subr.mxu0 0.0
    %5710 = vmatpush1.msra.mxu0 0.0
    %5711 = vmatprep.subr.mxu0 0.0
    %5712 = vmatpush1.msra.mxu0 0.0
    %5713 = vmatprep.subr.mxu0 0.0
    %5714 = vmatpush1.msra.mxu0 0.0
    %5715 = vmatprep.subr.mxu0 0.0
    %5716 = vmatpush1.msra.mxu0 0.0
    %5717 = vmatprep.subr.mxu0 0.0
    %5718 = vmatpush1.msra.mxu0 0.0
    %5719 = vmatprep.subr.mxu0 0.0
    %5720 = vmatpush1.msra.mxu0 0.0
    %5721 = vmatprep.subr.mxu0 0.0
    %5722 = vmatpush1.msra.mxu0 0.0
    %5723 = vmatprep.subr.mxu0 0.0
    %5724 = vmatpush1.msra.mxu0 0.0
    %5725 = vmatprep.subr.mxu0 0.0
    %5726 = vmatpush1.msra.mxu0 0.0
    %5727 = vmatprep.subr.mxu0 0.0
    %5728 = vmatpush1.msra.mxu0 0.0
    %5729 = vmatprep.subr.mxu0 0.0
    %5730 = vmatpush1.msra.mxu0 0.0
    %5731 = vmatprep.subr.mxu0 0.0
    %5732 = vmatpush1.msra.mxu0 0.0
    %5733 = vmatprep.subr.mxu0 0.0
    %5734 = vmatpush1.msra.mxu0 0.0
    %5735 = vmatprep.subr.mxu0 0.0
    %5736 = vmatpush1.msra.mxu0 0.0
    %5737 = vmatprep.subr.mxu0 0.0
    %5738 = vmatpush1.msra.mxu0 0.0
    %5739 = vmatprep.subr.mxu0 0.0
    %5740 = vmatpush1.msra.mxu0 0.0
    %5741 = vmatprep.subr.mxu0 0.0
    %5742 = vmatpush1.msra.mxu0 0.0
    %5743 = vmatprep.subr.mxu0 0.0
    %5744 = vmatpush1.msra.mxu0 0.0
    %5745 = vmatprep.subr.mxu0 0.0
    %5746 = vmatpush1.msra.mxu0 0.0
    %5747 = vmatprep.subr.mxu0 0.0
    %5748 = vmatpush1.msra.mxu0 0.0
    %5749 = vmatprep.subr.mxu0 0.0
    %5750 = vmatpush1.msra.mxu0 0.0
    %5751 = vmatprep.subr.mxu0 0.0
    %5752 = vmatpush1.msra.mxu0 0.0
    %5753 = vmatprep.subr.mxu0 0.0
    %5754 = vmatpush1.msra.mxu0 0.0
    %5755 = vmatprep.subr.mxu0 0.0
    %5756 = vmatpush1.msra.mxu0 0.0
    %5757 = vmatprep.subr.mxu0 0.0
    %5758 = vmatpush1.msra.mxu0 0.0
    %5759 = vmatprep.subr.mxu0 0.0
    %5760 = vmatpush1.msra.mxu0 0.0
    %5761 = vmatprep.subr.mxu0 0.0
    %5762 = vmatpush1.msra.mxu0 0.0
    %5763 = vmatprep.mubr.f32.mxu0 0.0
    %5764 = vmatmul.mubr.f32.gmra.mrb[0].mxu0 %v5694
    %v5765 = vpop.f32.mrb[0].mxu0
    %v5766 = vadd.f32 0.0, %v5765
    %v5767 = vpop.f32.mrb[0].mxu0
    %5768 = vmatprep.mubr.f32.mxu0 0.0
    %5769 = vmatmul.mubr.f32.gmra.mrb[0].mxu0 %v5697
    %v5770 = vpop.f32.mrb[0].mxu0
    %v5771 = vadd.f32 0.0, %v5770
    %v5772 = vpop.f32.mrb[0].mxu0
    %5773 = vdwg.mxu0
    %5774 = vrot.lane.b32.xlu0 %v5172, 104
    %v5775 = vpop.permute.xlu0 %5774
    %5776 = vrot.lane.b32.xlu0 %v5173, 104
    %v5777 = vpop.permute.xlu0 %5776
    %5778 = vrot.lane.b32.xlu0 %v5159, 72
    %v5779 = vpop.permute.xlu0 %5778
    %5780 = vrot.lane.b32.xlu0 %v5164, 72
    %v5781 = vpop.permute.xlu0 %5780
    %v5782 = vsel %vm2683, %v5775, 0
    %v5784 = vsel %vm2683, %v5777, 0
    %v5786 = vsel %vm2683, %v5779, 0
    %v5788 = vsel %vm2683, %v5781, 0
    %5790 = vmatprep.subr.mxu0 0.0
    %5791 = vmatpush1.xpose.msra.mxu0 %v5786
    %5792 = vmatprep.subr.mxu0 0.0
    %5793 = vmatpush1.xpose.msra.mxu0 %v5788
    %5794 = vmatprep.subr.mxu0 0.0
    %5795 = vmatpush1.xpose.msra.mxu0 0.0
    %5796 = vmatprep.subr.mxu0 0.0
    %5797 = vmatpush1.xpose.msra.mxu0 0.0
    %5798 = vmatprep.subr.mxu0 0.0
    %5799 = vmatpush1.xpose.msra.mxu0 0.0
    %5800 = vmatprep.subr.mxu0 0.0
    %5801 = vmatpush1.xpose.msra.mxu0 0.0
    %5802 = vmatprep.subr.mxu0 0.0
    %5803 = vmatpush1.xpose.msra.mxu0 0.0
    %5804 = vmatprep.subr.mxu0 0.0
    %5805 = vmatpush1.xpose.msra.mxu0 0.0
    %5806 = vmatprep.subr.mxu0 0.0
    %5807 = vmatpush1.xpose.msra.mxu0 0.0
    %5808 = vmatprep.subr.mxu0 0.0
    %5809 = vmatpush1.xpose.msra.mxu0 0.0
    %5810 = vmatprep.subr.mxu0 0.0
    %5811 = vmatpush1.xpose.msra.mxu0 0.0
    %5812 = vmatprep.subr.mxu0 0.0
    %5813 = vmatpush1.xpose.msra.mxu0 0.0
    %5814 = vmatprep.subr.mxu0 0.0
    %5815 = vmatpush1.xpose.msra.mxu0 0.0
    %5816 = vmatprep.subr.mxu0 0.0
    %5817 = vmatpush1.xpose.msra.mxu0 0.0
    %5818 = vmatprep.subr.mxu0 0.0
    %5819 = vmatpush1.xpose.msra.mxu0 0.0
    %5820 = vmatprep.subr.mxu0 0.0
    %5821 = vmatpush1.xpose.msra.mxu0 0.0
    %5822 = vmatprep.subr.mxu0 0.0
    %5823 = vmatpush1.xpose.msra.mxu0 0.0
    %5824 = vmatprep.subr.mxu0 0.0
    %5825 = vmatpush1.xpose.msra.mxu0 0.0
    %5826 = vmatprep.subr.mxu0 0.0
    %5827 = vmatpush1.xpose.msra.mxu0 0.0
    %5828 = vmatprep.subr.mxu0 0.0
    %5829 = vmatpush1.xpose.msra.mxu0 0.0
    %5830 = vmatprep.subr.mxu0 0.0
    %5831 = vmatpush1.xpose.msra.mxu0 0.0
    %5832 = vmatprep.subr.mxu0 0.0
    %5833 = vmatpush1.xpose.msra.mxu0 0.0
    %5834 = vmatprep.subr.mxu0 0.0
    %5835 = vmatpush1.xpose.msra.mxu0 0.0
    %5836 = vmatprep.subr.mxu0 0.0
    %5837 = vmatpush1.xpose.msra.mxu0 0.0
    %5838 = vmatprep.subr.mxu0 0.0
    %5839 = vmatpush1.xpose.msra.mxu0 0.0
    %5840 = vmatprep.subr.mxu0 0.0
    %5841 = vmatpush1.xpose.msra.mxu0 0.0
    %5842 = vmatprep.subr.mxu0 0.0
    %5843 = vmatpush1.xpose.msra.mxu0 0.0
    %5844 = vmatprep.subr.mxu0 0.0
    %5845 = vmatpush1.xpose.msra.mxu0 0.0
    %5846 = vmatprep.subr.mxu0 0.0
    %5847 = vmatpush1.xpose.msra.mxu0 0.0
    %5848 = vmatprep.subr.mxu0 0.0
    %5849 = vmatpush1.xpose.msra.mxu0 0.0
    %5850 = vmatprep.subr.mxu0 0.0
    %5851 = vmatpush1.xpose.msra.mxu0 0.0
    %5852 = vmatprep.subr.mxu0 0.0
    %5853 = vmatpush1.xpose.msra.mxu0 0.0
    %5854 = vmatprep.mubr.f32.mxu0 0.0
    %5855 = vmatmul.mubr.f32.gmra.mrb[0].mxu0 %v5782
    %v5856 = vpop.f32.mrb[0].mxu0
    %v5857 = vadd.f32 %v2576, %v5856
    %v5858 = vpop.f32.mrb[0].mxu0
    %5859 = vmatprep.mubr.f32.mxu0 0.0
    %5860 = vmatmul.mubr.f32.gmra.mrb[0].mxu0 %v5784
    %v5861 = vpop.f32.mrb[0].mxu0
    %v5862 = vadd.f32 %v2577, %v5861
    %v5863 = vpop.f32.mrb[0].mxu0
    %5864 = vdwg.mxu0
    %v5865 = vsel %vm61, %v5857, -inf
    %5866 = vmax.xlane.f32.xlu0 %v5865
    %v5867 = vpop.xlane.xlu0 %5866
    %v5868 = vsel %vm61, %v5862, -inf
    %5869 = vmax.xlane.f32.xlu0 %v5868
    %v5870 = vpop.xlane.xlu0 %5869
    %v5871 = vsub.f32 %v5857, %v5867
    %v5872 = vsub.f32 %v5862, %v5870
    %v5873 = vmul.f32 %v5871, 1.442695
    %v5874 = vpow.pop %v5873
    %v5875 = vmul.f32 %v5872, 1.442695
    %v5876 = vpow.pop %v5875
    %v5877 = vsel %vm61, %v5874, 0.0
    %5878 = vadd.xlane.f32.xlu0 %v5877
    %v5879 = vpop.xlane.xlu0 %5878
    %v5880 = vsel %vm61, %v5876, 0.0
    %5881 = vadd.xlane.f32.xlu0 %v5880
    %v5882 = vpop.xlane.xlu0 %5881
    %v5883 = vrcp.pop %v5879
    %v5884 = vmul.f32 %v5874, %v5883
    %v5885 = vrcp.pop %v5882
    %v5886 = vmul.f32 %v5876, %v5885
    %5887 = vrot.lane.b32.xlu0 %v5159, 40
    %v5888 = vpop.permute.xlu0 %5887
    %5889 = vrot.lane.b32.xlu0 %v5164, 40
    %v5890 = vpop.permute.xlu0 %5889
    %v5894 = vsel %vm61, %v5884, 0
    %v5897 = vsel %vm61, %v5886, 0
    %5899 = vmatprep.subr.mxu0 0.0
    %5900 = vmatpush1.msra.mxu0 %v5888
    %5901 = vmatprep.subr.mxu0 0.0
    %5902 = vmatpush1.msra.mxu0 %v5890
    %5903 = vmatprep.subr.mxu0 0.0
    %5904 = vmatpush1.msra.mxu0 0.0
    %5905 = vmatprep.subr.mxu0 0.0
    %5906 = vmatpush1.msra.mxu0 0.0
    %5907 = vmatprep.subr.mxu0 0.0
    %5908 = vmatpush1.msra.mxu0 0.0
    %5909 = vmatprep.subr.mxu0 0.0
    %5910 = vmatpush1.msra.mxu0 0.0
    %5911 = vmatprep.subr.mxu0 0.0
    %5912 = vmatpush1.msra.mxu0 0.0
    %5913 = vmatprep.subr.mxu0 0.0
    %5914 = vmatpush1.msra.mxu0 0.0
    %5915 = vmatprep.subr.mxu0 0.0
    %5916 = vmatpush1.msra.mxu0 0.0
    %5917 = vmatprep.subr.mxu0 0.0
    %5918 = vmatpush1.msra.mxu0 0.0
    %5919 = vmatprep.subr.mxu0 0.0
    %5920 = vmatpush1.msra.mxu0 0.0
    %5921 = vmatprep.subr.mxu0 0.0
    %5922 = vmatpush1.msra.mxu0 0.0
    %5923 = vmatprep.subr.mxu0 0.0
    %5924 = vmatpush1.msra.mxu0 0.0
    %5925 = vmatprep.subr.mxu0 0.0
    %5926 = vmatpush1.msra.mxu0 0.0
    %5927 = vmatprep.subr.mxu0 0.0
    %5928 = vmatpush1.msra.mxu0 0.0
    %5929 = vmatprep.subr.mxu0 0.0
    %5930 = vmatpush1.msra.mxu0 0.0
    %5931 = vmatprep.subr.mxu0 0.0
    %5932 = vmatpush1.msra.mxu0 0.0
    %5933 = vmatprep.subr.mxu0 0.0
    %5934 = vmatpush1.msra.mxu0 0.0
    %5935 = vmatprep.subr.mxu0 0.0
    %5936 = vmatpush1.msra.mxu0 0.0
    %5937 = vmatprep.subr.mxu0 0.0
    %5938 = vmatpush1.msra.mxu0 0.0
    %5939 = vmatprep.subr.mxu0 0.0
    %5940 = vmatpush1.msra.mxu0 0.0
    %5941 = vmatprep.subr.mxu0 0.0
    %5942 = vmatpush1.msra.mxu0 0.0
    %5943 = vmatprep.subr.mxu0 0.0
    %5944 = vmatpush1.msra.mxu0 0.0
    %5945 = vmatprep.subr.mxu0 0.0
    %5946 = vmatpush1.msra.mxu0 0.0
    %5947 = vmatprep.subr.mxu0 0.0
    %5948 = vmatpush1.msra.mxu0 0.0
    %5949 = vmatprep.subr.mxu0 0.0
    %5950 = vmatpush1.msra.mxu0 0.0
    %5951 = vmatprep.subr.mxu0 0.0
    %5952 = vmatpush1.msra.mxu0 0.0
    %5953 = vmatprep.subr.mxu0 0.0
    %5954 = vmatpush1.msra.mxu0 0.0
    %5955 = vmatprep.subr.mxu0 0.0
    %5956 = vmatpush1.msra.mxu0 0.0
    %5957 = vmatprep.subr.mxu0 0.0
    %5958 = vmatpush1.msra.mxu0 0.0
    %5959 = vmatprep.subr.mxu0 0.0
    %5960 = vmatpush1.msra.mxu0 0.0
    %5961 = vmatprep.subr.mxu0 0.0
    %5962 = vmatpush1.msra.mxu0 0.0
    %5963 = vmatprep.mubr.f32.mxu0 0.0
    %5964 = vmatmul.mubr.f32.gmra.mrb[0].mxu0 %v5894
    %v5965 = vpop.f32.mrb[0].mxu0
    %v5966 = vadd.f32 0.0, %v5965
    %v5967 = vpop.f32.mrb[0].mxu0
    %5968 = vmatprep.mubr.f32.mxu0 0.0
    %5969 = vmatmul.mubr.f32.gmra.mrb[0].mxu0 %v5897
    %v5970 = vpop.f32.mrb[0].mxu0
    %v5971 = vadd.f32 0.0, %v5970
    %v5972 = vpop.f32.mrb[0].mxu0
    %5973 = vdwg.mxu0
    %5976 = vrot.lane.b32.xlu0 %v5566, 8
    %v5977 = vpop.permute.xlu0 %5976
    %5978 = vrot.lane.b32.xlu0 %v5571, 8
    %v5979 = vpop.permute.xlu0 %5978
    %5984 = vrot.lane.b32.xlu0 %v5766, 16
    %v5985 = vpop.permute.xlu0 %5984
    %5986 = vrot.lane.b32.xlu0 %v5771, 16
    %v5987 = vpop.permute.xlu0 %5986
    %5992 = vrot.lane.b32.xlu0 %v5966, 24
    %v5993 = vpop.permute.xlu0 %5992
    %5994 = vrot.lane.b32.xlu0 %v5971, 24
    %v5995 = vpop.permute.xlu0 %5994
    %v5998 = vsel %vm2683, %v5366, %v5977
    %v5999 = vsel %vm2683, %v5371, %v5979
    %v6000 = vsel %vm61, %v5998, %v5985
    %v6001 = vsel %vm61, %v5999, %v5987
    %v6002 = vsel %vm3506, %v6000, %v5993
    %v6003 = vsel %vm3506, %v6001, %v5995
    %v6004 = vlaneseq
    %v6005 = vshrl.u32 %v6004, 7
    %v6006 = vsub.s32 0, %v6005
    %v6007 = vrot.slane %v5171, %v6006
    %v6009 = vsel %vm269, %v6002, 0
    %v6012 = vsel %vm269, %v6003, 0
    %6014 = vmatprep.subr.mxu0 0.0
    %6015 = vmatpush1.msra.mxu0 %v5167
    %6016 = vmatprep.subr.mxu0 0.0
    %6017 = vmatpush1.msra.mxu0 %v5168
    %6018 = vmatprep.subr.mxu0 0.0
    %6019 = vmatpush1.msra.mxu0 %v5169
    %6020 = vmatprep.subr.mxu0 0.0
    %6021 = vmatpush1.msra.mxu0 %v5170
    %6022 = vmatprep.subr.mxu0 0.0
    %6023 = vmatpush1.msra.mxu0 0.0
    %6024 = vmatprep.subr.mxu0 0.0
    %6025 = vmatpush1.msra.mxu0 0.0
    %6026 = vmatprep.subr.mxu0 0.0
    %6027 = vmatpush1.msra.mxu0 0.0
    %6028 = vmatprep.subr.mxu0 0.0
    %6029 = vmatpush1.msra.mxu0 0.0
    %6030 = vmatprep.subr.mxu0 0.0
    %6031 = vmatpush1.msra.mxu0 0.0
    %6032 = vmatprep.subr.mxu0 0.0
    %6033 = vmatpush1.msra.mxu0 0.0
    %6034 = vmatprep.subr.mxu0 0.0
    %6035 = vmatpush1.msra.mxu0 0.0
    %6036 = vmatprep.subr.mxu0 0.0
    %6037 = vmatpush1.msra.mxu0 0.0
    %6038 = vmatprep.subr.mxu0 0.0
    %6039 = vmatpush1.msra.mxu0 0.0
    %6040 = vmatprep.subr.mxu0 0.0
    %6041 = vmatpush1.msra.mxu0 0.0
    %6042 = vmatprep.subr.mxu0 0.0
    %6043 = vmatpush1.msra.mxu0 0.0
    %6044 = vmatprep.subr.mxu0 0.0
    %6045 = vmatpush1.msra.mxu0 0.0
    %6046 = vmatprep.subr.mxu0 0.0
    %6047 = vmatpush1.msra.mxu0 0.0
    %6048 = vmatprep.subr.mxu0 0.0
    %6049 = vmatpush1.msra.mxu0 0.0
    %6050 = vmatprep.subr.mxu0 0.0
    %6051 = vmatpush1.msra.mxu0 0.0
    %6052 = vmatprep.subr.mxu0 0.0
    %6053 = vmatpush1.msra.mxu0 0.0
    %6054 = vmatprep.subr.mxu0 0.0
    %6055 = vmatpush1.msra.mxu0 0.0
    %6056 = vmatprep.subr.mxu0 0.0
    %6057 = vmatpush1.msra.mxu0 0.0
    %6058 = vmatprep.subr.mxu0 0.0
    %6059 = vmatpush1.msra.mxu0 0.0
    %6060 = vmatprep.subr.mxu0 0.0
    %6061 = vmatpush1.msra.mxu0 0.0
    %6062 = vmatprep.subr.mxu0 0.0
    %6063 = vmatpush1.msra.mxu0 0.0
    %6064 = vmatprep.subr.mxu0 0.0
    %6065 = vmatpush1.msra.mxu0 0.0
    %6066 = vmatprep.subr.mxu0 0.0
    %6067 = vmatpush1.msra.mxu0 0.0
    %6068 = vmatprep.subr.mxu0 0.0
    %6069 = vmatpush1.msra.mxu0 0.0
    %6070 = vmatprep.subr.mxu0 0.0
    %6071 = vmatpush1.msra.mxu0 0.0
    %6072 = vmatprep.subr.mxu0 0.0
    %6073 = vmatpush1.msra.mxu0 0.0
    %6074 = vmatprep.subr.mxu0 0.0
    %6075 = vmatpush1.msra.mxu0 0.0
    %6076 = vmatprep.subr.mxu0 0.0
    %6077 = vmatpush1.msra.mxu0 0.0
    %6078 = vmatprep.mubr.f32.mxu0 0.0
    %6079 = vmatmul.mubr.f32.gmra.mrb[0].mxu0 %v6009
    %v6080 = vpop.f32.mrb[0].mxu0
    %v6081 = vadd.f32 %v6007, %v6080
    %v6082 = vpop.f32.mrb[0].mxu0
    %6083 = vmatprep.mubr.f32.mxu0 0.0
    %6084 = vmatmul.mubr.f32.gmra.mrb[0].mxu0 %v6012
    %v6085 = vpop.f32.mrb[0].mxu0
    %v6086 = vadd.f32 %v6007, %v6085
    %v6087 = vpop.f32.mrb[0].mxu0
    %6088 = vdwg.mxu0
    %v6089 = vadd.f32 %v5075, %v6081
    %v6090 = vadd.f32 %v5076, %v6086
    %v6091 = vsel %vm269, %v6089, 0.0
    %6092 = vadd.xlane.f32.xlu0 %v6091
    %v6093 = vpop.xlane.xlu0 %6092
    %v6094 = vsel %vm269, %v6090, 0.0
    %6095 = vadd.xlane.f32.xlu0 %v6094
    %v6096 = vpop.xlane.xlu0 %6095
    %v6097 = vmul.f32 %v6093, %v3602
    %v6098 = vmul.f32 %v6096, %v3602
    %v6099 = vsub.f32 %v6089, %v6097
    %v6100 = vsub.f32 %v6090, %v6098
    %v6101 = vmul.f32 %v6099, %v6099
    %v6102 = vmul.f32 %v6100, %v6100
    %v6103 = vsel %vm269, %v6101, 0.0
    %6104 = vadd.xlane.f32.xlu0 %v6103
    %v6105 = vpop.xlane.xlu0 %6104
    %v6106 = vsel %vm269, %v6102, 0.0
    %6107 = vadd.xlane.f32.xlu0 %v6106
    %v6108 = vpop.xlane.xlu0 %6107
    %v6109 = vmul.f32 %v6105, %v3602
    %v6110 = vmul.f32 %v6108, %v3602
    %v6111 = vadd.f32 %v6109, 1e-05
    %v6112 = vadd.f32 %v6110, 1e-05
    %v6113 = vrsqrt.pop %v6111
    %v6114 = vrsqrt.pop %v6112
    %v6115 = vmul.f32 %v6099, %v6113
    %v6116 = vmul.f32 %v6100, %v6114
    %v6117 = vld [vmem:[#allocation4 + $0x2e8] sm:$0x1]
    %v6118 = vlaneseq
    %v6119 = vshrl.u32 %v6118, 7
    %v6120 = vsub.s32 0, %v6119
    %v6121 = vrot.slane %v6117, %v6120
    %v6122 = vmul.f32 %v6115, %v6121
    %v6123 = vmul.f32 %v6116, %v6121
    %v6124 = vld [vmem:[#allocation4 + $0x2f0] sm:$0x1]
    %v6125 = vlaneseq
    %v6126 = vshrl.u32 %v6125, 7
    %v6127 = vsub.s32 0, %v6126
    %v6128 = vrot.slane %v6124, %v6127
    %v6129 = vadd.f32 %v6122, %v6128
    %v6130 = vadd.f32 %v6123, %v6128
    %v6131 = vld [vmem:[#allocation4 + $0x200] sm:$0xff]
    %v6132 = vld [vmem:[#allocation4 + $0x208] sm:$0xff]
    %v6133 = vld [vmem:[#allocation4 + $0x210] sm:$0xff]
    %v6134 = vld [vmem:[#allocation4 + $0x218] sm:$0xff]
    %v6135 = vld [vmem:[#allocation4 + $0x220] sm:$0x1]
    %v6136 = vlaneseq
    %v6137 = vshrl.u32 %v6136, 7
    %v6138 = vsub.s32 0, %v6137
    %v6139 = vrot.slane %v6135, %v6138
    %v6141 = vsel %vm269, %v6129, 0
    %v6144 = vsel %vm269, %v6130, 0
    %6146 = vmatprep.subr.mxu0 0.0
    %6147 = vmatpush1.msra.mxu0 %v6131
    %6148 = vmatprep.subr.mxu0 0.0
    %6149 = vmatpush1.msra.mxu0 %v6132
    %6150 = vmatprep.subr.mxu0 0.0
    %6151 = vmatpush1.msra.mxu0 %v6133
    %6152 = vmatprep.subr.mxu0 0.0
    %6153 = vmatpush1.msra.mxu0 %v6134
    %6154 = vmatprep.subr.mxu0 0.0
    %6155 = vmatpush1.msra.mxu0 0.0
    %6156 = vmatprep.subr.mxu0 0.0
    %6157 = vmatpush1.msra.mxu0 0.0
    %6158 = vmatprep.subr.mxu0 0.0
    %6159 = vmatpush1.msra.mxu0 0.0
    %6160 = vmatprep.subr.mxu0 0.0
    %6161 = vmatpush1.msra.mxu0 0.0
    %6162 = vmatprep.subr.mxu0 0.0
    %6163 = vmatpush1.msra.mxu0 0.0
    %6164 = vmatprep.subr.mxu0 0.0
    %6165 = vmatpush1.msra.mxu0 0.0
    %6166 = vmatprep.subr.mxu0 0.0
    %6167 = vmatpush1.msra.mxu0 0.0
    %6168 = vmatprep.subr.mxu0 0.0
    %6169 = vmatpush1.msra.mxu0 0.0
    %6170 = vmatprep.subr.mxu0 0.0
    %6171 = vmatpush1.msra.mxu0 0.0
    %6172 = vmatprep.subr.mxu0 0.0
    %6173 = vmatpush1.msra.mxu0 0.0
    %6174 = vmatprep.subr.mxu0 0.0
    %6175 = vmatpush1.msra.mxu0 0.0
    %6176 = vmatprep.subr.mxu0 0.0
    %6177 = vmatpush1.msra.mxu0 0.0
    %6178 = vmatprep.subr.mxu0 0.0
    %6179 = vmatpush1.msra.mxu0 0.0
    %6180 = vmatprep.subr.mxu0 0.0
    %6181 = vmatpush1.msra.mxu0 0.0
    %6182 = vmatprep.subr.mxu0 0.0
    %6183 = vmatpush1.msra.mxu0 0.0
    %6184 = vmatprep.subr.mxu0 0.0
    %6185 = vmatpush1.msra.mxu0 0.0
    %6186 = vmatprep.subr.mxu0 0.0
    %6187 = vmatpush1.msra.mxu0 0.0
    %6188 = vmatprep.subr.mxu0 0.0
    %6189 = vmatpush1.msra.mxu0 0.0
    %6190 = vmatprep.subr.mxu0 0.0
    %6191 = vmatpush1.msra.mxu0 0.0
    %6192 = vmatprep.subr.mxu0 0.0
    %6193 = vmatpush1.msra.mxu0 0.0
    %6194 = vmatprep.subr.mxu0 0.0
    %6195 = vmatpush1.msra.mxu0 0.0
    %6196 = vmatprep.subr.mxu0 0.0
    %6197 = vmatpush1.msra.mxu0 0.0
    %6198 = vmatprep.subr.mxu0 0.0
    %6199 = vmatpush1.msra.mxu0 0.0
    %6200 = vmatprep.subr.mxu0 0.0
    %6201 = vmatpush1.msra.mxu0 0.0
    %6202 = vmatprep.subr.mxu0 0.0
    %6203 = vmatpush1.msra.mxu0 0.0
    %6204 = vmatprep.subr.mxu0 0.0
    %6205 = vmatpush1.msra.mxu0 0.0
    %6206 = vmatprep.subr.mxu0 0.0
    %6207 = vmatpush1.msra.mxu0 0.0
    %6208 = vmatprep.subr.mxu0 0.0
    %6209 = vmatpush1.msra.mxu0 0.0
    %6210 = vmatprep.mubr.f32.mxu0 0.0
    %6211 = vmatmul.mubr.f32.gmra.mrb[0].mxu0 %v6141
    %v6212 = vpop.f32.mrb[0].mxu0
    %v6213 = vadd.f32 %v6139, %v6212
    %v6214 = vpop.f32.mrb[0].mxu0
    %6215 = vmatprep.mubr.f32.mxu0 0.0
    %6216 = vmatmul.mubr.f32.gmra.mrb[0].mxu0 %v6144
    %v6217 = vpop.f32.mrb[0].mxu0
    %v6218 = vadd.f32 %v6139, %v6217
    %v6219 = vpop.f32.mrb[0].mxu0
    %6220 = vdwg.mxu0
    %v6221 = vld [vmem:[#allocation4 + $0x228] sm:$0xff]
    %v6222 = vld [vmem:[#allocation4 + $0x230] sm:$0xff]
    %v6223 = vld [vmem:[#allocation4 + $0x238] sm:$0xff]
    %v6224 = vld [vmem:[#allocation4 + $0x240] sm:$0xff]
    %v6225 = vld [vmem:[#allocation4 + $0x248] sm:$0x1]
    %v6226 = vlaneseq
    %v6227 = vshrl.u32 %v6226, 7
    %v6228 = vsub.s32 0, %v6227
    %v6229 = vrot.slane %v6225, %v6228
    %6230 = vmatprep.subr.mxu0 0.0
    %6231 = vmatpush1.msra.mxu0 %v6221
    %6232 = vmatprep.subr.mxu0 0.0
    %6233 = vmatpush1.msra.mxu0 %v6222
    %6234 = vmatprep.subr.mxu0 0.0
    %6235 = vmatpush1.msra.mxu0 %v6223
    %6236 = vmatprep.subr.mxu0 0.0
    %6237 = vmatpush1.msra.mxu0 %v6224
    %6238 = vmatprep.subr.mxu0 0.0
    %6239 = vmatpush1.msra.mxu0 0.0
    %6240 = vmatprep.subr.mxu0 0.0
    %6241 = vmatpush1.msra.mxu0 0.0
    %6242 = vmatprep.subr.mxu0 0.0
    %6243 = vmatpush1.msra.mxu0 0.0
    %6244 = vmatprep.subr.mxu0 0.0
    %6245 = vmatpush1.msra.mxu0 0.0
    %6246 = vmatprep.subr.mxu0 0.0
    %6247 = vmatpush1.msra.mxu0 0.0
    %6248 = vmatprep.subr.mxu0 0.0
    %6249 = vmatpush1.msra.mxu0 0.0
    %6250 = vmatprep.subr.mxu0 0.0
    %6251 = vmatpush1.msra.mxu0 0.0
    %6252 = vmatprep.subr.mxu0 0.0
    %6253 = vmatpush1.msra.mxu0 0.0
    %6254 = vmatprep.subr.mxu0 0.0
    %6255 = vmatpush1.msra.mxu0 0.0
    %6256 = vmatprep.subr.mxu0 0.0
    %6257 = vmatpush1.msra.mxu0 0.0
    %6258 = vmatprep.subr.mxu0 0.0
    %6259 = vmatpush1.msra.mxu0 0.0
    %6260 = vmatprep.subr.mxu0 0.0
    %6261 = vmatpush1.msra.mxu0 0.0
    %6262 = vmatprep.subr.mxu0 0.0
    %6263 = vmatpush1.msra.mxu0 0.0
    %6264 = vmatprep.subr.mxu0 0.0
    %6265 = vmatpush1.msra.mxu0 0.0
    %6266 = vmatprep.subr.mxu0 0.0
    %6267 = vmatpush1.msra.mxu0 0.0
    %6268 = vmatprep.subr.mxu0 0.0
    %6269 = vmatpush1.msra.mxu0 0.0
    %6270 = vmatprep.subr.mxu0 0.0
    %6271 = vmatpush1.msra.mxu0 0.0
    %6272 = vmatprep.subr.mxu0 0.0
    %6273 = vmatpush1.msra.mxu0 0.0
    %6274 = vmatprep.subr.mxu0 0.0
    %6275 = vmatpush1.msra.mxu0 0.0
    %6276 = vmatprep.subr.mxu0 0.0
    %6277 = vmatpush1.msra.mxu0 0.0
    %6278 = vmatprep.subr.mxu0 0.0
    %6279 = vmatpush1.msra.mxu0 0.0
    %6280 = vmatprep.subr.mxu0 0.0
    %6281 = vmatpush1.msra.mxu0 0.0
    %6282 = vmatprep.subr.mxu0 0.0
    %6283 = vmatpush1.msra.mxu0 0.0
    %6284 = vmatprep.subr.mxu0 0.0
    %6285 = vmatpush1.msra.mxu0 0.0
    %6286 = vmatprep.subr.mxu0 0.0
    %6287 = vmatpush1.msra.mxu0 0.0
    %6288 = vmatprep.subr.mxu0 0.0
    %6289 = vmatpush1.msra.mxu0 0.0
    %6290 = vmatprep.subr.mxu0 0.0
    %6291 = vmatpush1.msra.mxu0 0.0
    %6292 = vmatprep.subr.mxu0 0.0
    %6293 = vmatpush1.msra.mxu0 0.0
    %6294 = vmatprep.mubr.f32.mxu0 0.0
    %6295 = vmatmul.mubr.f32.gmra.mrb[0].mxu0 %v3737
    %v6296 = vpop.f32.mrb[0].mxu0
    %v6297 = vadd.f32 %v6229, %v6296
    %v6298 = vpop.f32.mrb[0].mxu0
    %6299 = vmatprep.mubr.f32.mxu0 0.0
    %6300 = vmatmul.mubr.f32.gmra.mrb[0].mxu0 %v3740
    %v6301 = vpop.f32.mrb[0].mxu0
    %v6302 = vadd.f32 %v6229, %v6301
    %v6303 = vpop.f32.mrb[0].mxu0
    %6304 = vmatprep.mubr.f32.mxu0 0.0
    %6305 = vmatmul.mubr.f32.gmra.mrb[0].mxu0 %v3743
    %v6306 = vpop.f32.mrb[0].mxu0
    %v6307 = vadd.f32 %v6229, %v6306
    %v6308 = vpop.f32.mrb[0].mxu0
    %6309 = vmatprep.mubr.f32.mxu0 0.0
    %6310 = vmatmul.mubr.f32.gmra.mrb[0].mxu0 %v3746
    %v6311 = vpop.f32.mrb[0].mxu0
    %v6312 = vadd.f32 %v6229, %v6311
    %v6313 = vpop.f32.mrb[0].mxu0
    %6314 = vdwg.mxu0
    %v6315 = vld [vmem:[#allocation4 + $0x250] sm:$0xff]
    %v6316 = vld [vmem:[#allocation4 + $0x258] sm:$0xff]
    %v6317 = vld [vmem:[#allocation4 + $0x260] sm:$0xff]
    %v6318 = vld [vmem:[#allocation4 + $0x268] sm:$0xff]
    %v6319 = vld [vmem:[#allocation4 + $0x270] sm:$0x1]
    %v6320 = vmul.f32 %v6213, 0.35355338
    %v6321 = vmul.f32 %v6218, 0.35355338
    %v6323 = vsel %vm2683, %v6320, 0
    %v6326 = vsel %vm2683, %v6321, 0
    %v6329 = vsel %vm2683, %v6297, 0
    %v6332 = vsel %vm2683, %v6302, 0
    %v6335 = vsel %vm2683, %v6307, 0
    %v6338 = vsel %vm2683, %v6312, 0
    %6340 = vmatprep.subr.mxu0 0.0
    %6341 = vmatpush1.xpose.msra.mxu0 %v6329
    %6342 = vmatprep.subr.mxu0 0.0
    %6343 = vmatpush1.xpose.msra.mxu0 %v6332
    %6344 = vmatprep.subr.mxu0 0.0
    %6345 = vmatpush1.xpose.msra.mxu0 %v6335
    %6346 = vmatprep.subr.mxu0 0.0
    %6347 = vmatpush1.xpose.msra.mxu0 %v6338
    %6348 = vmatprep.subr.mxu0 0.0
    %6349 = vmatpush1.xpose.msra.mxu0 0.0
    %6350 = vmatprep.subr.mxu0 0.0
    %6351 = vmatpush1.xpose.msra.mxu0 0.0
    %6352 = vmatprep.subr.mxu0 0.0
    %6353 = vmatpush1.xpose.msra.mxu0 0.0
    %6354 = vmatprep.subr.mxu0 0.0
    %6355 = vmatpush1.xpose.msra.mxu0 0.0
    %6356 = vmatprep.subr.mxu0 0.0
    %6357 = vmatpush1.xpose.msra.mxu0 0.0
    %6358 = vmatprep.subr.mxu0 0.0
    %6359 = vmatpush1.xpose.msra.mxu0 0.0
    %6360 = vmatprep.subr.mxu0 0.0
    %6361 = vmatpush1.xpose.msra.mxu0 0.0
    %6362 = vmatprep.subr.mxu0 0.0
    %6363 = vmatpush1.xpose.msra.mxu0 0.0
    %6364 = vmatprep.subr.mxu0 0.0
    %6365 = vmatpush1.xpose.msra.mxu0 0.0
    %6366 = vmatprep.subr.mxu0 0.0
    %6367 = vmatpush1.xpose.msra.mxu0 0.0
    %6368 = vmatprep.subr.mxu0 0.0
    %6369 = vmatpush1.xpose.msra.mxu0 0.0
    %6370 = vmatprep.subr.mxu0 0.0
    %6371 = vmatpush1.xpose.msra.mxu0 0.0
    %6372 = vmatprep.subr.mxu0 0.0
    %6373 = vmatpush1.xpose.msra.mxu0 0.0
    %6374 = vmatprep.subr.mxu0 0.0
    %6375 = vmatpush1.xpose.msra.mxu0 0.0
    %6376 = vmatprep.subr.mxu0 0.0
    %6377 = vmatpush1.xpose.msra.mxu0 0.0
    %6378 = vmatprep.subr.mxu0 0.0
    %6379 = vmatpush1.xpose.msra.mxu0 0.0
    %6380 = vmatprep.subr.mxu0 0.0
    %6381 = vmatpush1.xpose.msra.mxu0 0.0
    %6382 = vmatprep.subr.mxu0 0.0
    %6383 = vmatpush1.xpose.msra.mxu0 0.0
    %6384 = vmatprep.subr.mxu0 0.0
    %6385 = vmatpush1.xpose.msra.mxu0 0.0
    %6386 = vmatprep.subr.mxu0 0.0
    %6387 = vmatpush1.xpose.msra.mxu0 0.0
    %6388 = vmatprep.subr.mxu0 0.0
    %6389 = vmatpush1.xpose.msra.mxu0 0.0
    %6390 = vmatprep.subr.mxu0 0.0
    %6391 = vmatpush1.xpose.msra.mxu0 0.0
    %6392 = vmatprep.subr.mxu0 0.0
    %6393 = vmatpush1.xpose.msra.mxu0 0.0
    %6394 = vmatprep.subr.mxu0 0.0
    %6395 = vmatpush1.xpose.msra.mxu0 0.0
    %6396 = vmatprep.subr.mxu0 0.0
    %6397 = vmatpush1.xpose.msra.mxu0 0.0
    %6398 = vmatprep.subr.mxu0 0.0
    %6399 = vmatpush1.xpose.msra.mxu0 0.0
    %6400 = vmatprep.subr.mxu0 0.0
    %6401 = vmatpush1.xpose.msra.mxu0 0.0
    %6402 = vmatprep.subr.mxu0 0.0
    %6403 = vmatpush1.xpose.msra.mxu0 0.0
    %6404 = vmatprep.mubr.f32.mxu0 0.0
    %6405 = vmatmul.mubr.f32.gmra.mrb[0].mxu0 %v6323
    %v6406 = vpop.f32.mrb[0].mxu0
    %v6407 = vadd.f32 %v2578, %v6406
    %v6408 = vpop.f32.mrb[0].mxu0
    %6409 = vmatprep.mubr.f32.mxu0 0.0
    %6410 = vmatmul.mubr.f32.gmra.mrb[0].mxu0 %v6326
    %v6411 = vpop.f32.mrb[0].mxu0
    %v6412 = vadd.f32 %v2579, %v6411
    %v6413 = vpop.f32.mrb[0].mxu0
    %6414 = vdwg.mxu0
    %v6415 = vsel %vm269, %v6407, -inf
    %6416 = vmax.xlane.f32.xlu0 %v6415
    %v6417 = vpop.xlane.xlu0 %6416
    %v6418 = vsel %vm269, %v6412, -inf
    %6419 = vmax.xlane.f32.xlu0 %v6418
    %v6420 = vpop.xlane.xlu0 %6419
    %v6421 = vsub.f32 %v6407, %v6417
    %v6422 = vsub.f32 %v6412, %v6420
    %v6423 = vmul.f32 %v6421, 1.442695
    %v6424 = vpow.pop %v6423
    %v6425 = vmul.f32 %v6422, 1.442695
    %v6426 = vpow.pop %v6425
    %v6427 = vsel %vm269, %v6424, 0.0
    %6428 = vadd.xlane.f32.xlu0 %v6427
    %v6429 = vpop.xlane.xlu0 %6428
    %v6430 = vsel %vm269, %v6426, 0.0
    %6431 = vadd.xlane.f32.xlu0 %v6430
    %v6432 = vpop.xlane.xlu0 %6431
    %v6433 = vrcp.pop %v6429
    %v6434 = vmul.f32 %v6424, %v6433
    %v6435 = vrcp.pop %v6432
    %v6436 = vmul.f32 %v6426, %v6435
    %6437 = vrot.lane.b32.xlu0 %v6297, 96
    %v6438 = vpop.permute.xlu0 %6437
    %6439 = vrot.lane.b32.xlu0 %v6302, 96
    %v6440 = vpop.permute.xlu0 %6439
    %6441 = vrot.lane.b32.xlu0 %v6307, 96
    %v6442 = vpop.permute.xlu0 %6441
    %6443 = vrot.lane.b32.xlu0 %v6312, 96
    %v6444 = vpop.permute.xlu0 %6443
    %v6450 = vsel %vm269, %v6434, 0
    %v6453 = vsel %vm269, %v6436, 0
    %6455 = vmatprep.subr.mxu0 0.0
    %6456 = vmatpush1.msra.mxu0 %v6438
    %6457 = vmatprep.subr.mxu0 0.0
    %6458 = vmatpush1.msra.mxu0 %v6440
    %6459 = vmatprep.subr.mxu0 0.0
    %6460 = vmatpush1.msra.mxu0 %v6442
    %6461 = vmatprep.subr.mxu0 0.0
    %6462 = vmatpush1.msra.mxu0 %v6444
    %6463 = vmatprep.subr.mxu0 0.0
    %6464 = vmatpush1.msra.mxu0 0.0
    %6465 = vmatprep.subr.mxu0 0.0
    %6466 = vmatpush1.msra.mxu0 0.0
    %6467 = vmatprep.subr.mxu0 0.0
    %6468 = vmatpush1.msra.mxu0 0.0
    %6469 = vmatprep.subr.mxu0 0.0
    %6470 = vmatpush1.msra.mxu0 0.0
    %6471 = vmatprep.subr.mxu0 0.0
    %6472 = vmatpush1.msra.mxu0 0.0
    %6473 = vmatprep.subr.mxu0 0.0
    %6474 = vmatpush1.msra.mxu0 0.0
    %6475 = vmatprep.subr.mxu0 0.0
    %6476 = vmatpush1.msra.mxu0 0.0
    %6477 = vmatprep.subr.mxu0 0.0
    %6478 = vmatpush1.msra.mxu0 0.0
    %6479 = vmatprep.subr.mxu0 0.0
    %6480 = vmatpush1.msra.mxu0 0.0
    %6481 = vmatprep.subr.mxu0 0.0
    %6482 = vmatpush1.msra.mxu0 0.0
    %6483 = vmatprep.subr.mxu0 0.0
    %6484 = vmatpush1.msra.mxu0 0.0
    %6485 = vmatprep.subr.mxu0 0.0
    %6486 = vmatpush1.msra.mxu0 0.0
    %6487 = vmatprep.subr.mxu0 0.0
    %6488 = vmatpush1.msra.mxu0 0.0
    %6489 = vmatprep.subr.mxu0 0.0
    %6490 = vmatpush1.msra.mxu0 0.0
    %6491 = vmatprep.subr.mxu0 0.0
    %6492 = vmatpush1.msra.mxu0 0.0
    %6493 = vmatprep.subr.mxu0 0.0
    %6494 = vmatpush1.msra.mxu0 0.0
    %6495 = vmatprep.subr.mxu0 0.0
    %6496 = vmatpush1.msra.mxu0 0.0
    %6497 = vmatprep.subr.mxu0 0.0
    %6498 = vmatpush1.msra.mxu0 0.0
    %6499 = vmatprep.subr.mxu0 0.0
    %6500 = vmatpush1.msra.mxu0 0.0
    %6501 = vmatprep.subr.mxu0 0.0
    %6502 = vmatpush1.msra.mxu0 0.0
    %6503 = vmatprep.subr.mxu0 0.0
    %6504 = vmatpush1.msra.mxu0 0.0
    %6505 = vmatprep.subr.mxu0 0.0
    %6506 = vmatpush1.msra.mxu0 0.0
    %6507 = vmatprep.subr.mxu0 0.0
    %6508 = vmatpush1.msra.mxu0 0.0
    %6509 = vmatprep.subr.mxu0 0.0
    %6510 = vmatpush1.msra.mxu0 0.0
    %6511 = vmatprep.subr.mxu0 0.0
    %6512 = vmatpush1.msra.mxu0 0.0
    %6513 = vmatprep.subr.mxu0 0.0
    %6514 = vmatpush1.msra.mxu0 0.0
    %6515 = vmatprep.subr.mxu0 0.0
    %6516 = vmatpush1.msra.mxu0 0.0
    %6517 = vmatprep.subr.mxu0 0.0
    %6518 = vmatpush1.msra.mxu0 0.0
    %6519 = vmatprep.mubr.f32.mxu0 0.0
    %6520 = vmatmul.mubr.f32.gmra.mrb[0].mxu0 %v6450
    %v6521 = vpop.f32.mrb[0].mxu0
    %v6522 = vadd.f32 0.0, %v6521
    %v6523 = vpop.f32.mrb[0].mxu0
    %6524 = vmatprep.mubr.f32.mxu0 0.0
    %6525 = vmatmul.mubr.f32.gmra.mrb[0].mxu0 %v6453
    %v6526 = vpop.f32.mrb[0].mxu0
    %v6527 = vadd.f32 0.0, %v6526
    %v6528 = vpop.f32.mrb[0].mxu0
    %6529 = vdwg.mxu0
    %6530 = vrot.lane.b32.xlu0 %v6320, 120
    %v6531 = vpop.permute.xlu0 %6530
    %6532 = vrot.lane.b32.xlu0 %v6321, 120
    %v6533 = vpop.permute.xlu0 %6532
    %6534 = vrot.lane.b32.xlu0 %v6297, 120
    %v6535 = vpop.permute.xlu0 %6534
    %6536 = vrot.lane.b32.xlu0 %v6302, 120
    %v6537 = vpop.permute.xlu0 %6536
    %6538 = vrot.lane.b32.xlu0 %v6307, 120
    %v6539 = vpop.permute.xlu0 %6538
    %6540 = vrot.lane.b32.xlu0 %v6312, 120
    %v6541 = vpop.permute.xlu0 %6540
    %v6542 = vsel %vm2683, %v6531, 0
    %v6544 = vsel %vm2683, %v6533, 0
    %v6546 = vsel %vm2683, %v6535, 0
    %v6548 = vsel %vm2683, %v6537, 0
    %v6550 = vsel %vm2683, %v6539, 0
    %v6552 = vsel %vm2683, %v6541, 0
    %6554 = vmatprep.subr.mxu0 0.0
    %6555 = vmatpush1.xpose.msra.mxu0 %v6546
    %6556 = vmatprep.subr.mxu0 0.0
    %6557 = vmatpush1.xpose.msra.mxu0 %v6548
    %6558 = vmatprep.subr.mxu0 0.0
    %6559 = vmatpush1.xpose.msra.mxu0 %v6550
    %6560 = vmatprep.subr.mxu0 0.0
    %6561 = vmatpush1.xpose.msra.mxu0 %v6552
    %6562 = vmatprep.subr.mxu0 0.0
    %6563 = vmatpush1.xpose.msra.mxu0 0.0
    %6564 = vmatprep.subr.mxu0 0.0
    %6565 = vmatpush1.xpose.msra.mxu0 0.0
    %6566 = vmatprep.subr.mxu0 0.0
    %6567 = vmatpush1.xpose.msra.mxu0 0.0
    %6568 = vmatprep.subr.mxu0 0.0
    %6569 = vmatpush1.xpose.msra.mxu0 0.0
    %6570 = vmatprep.subr.mxu0 0.0
    %6571 = vmatpush1.xpose.msra.mxu0 0.0
    %6572 = vmatprep.subr.mxu0 0.0
    %6573 = vmatpush1.xpose.msra.mxu0 0.0
    %6574 = vmatprep.subr.mxu0 0.0
    %6575 = vmatpush1.xpose.msra.mxu0 0.0
    %6576 = vmatprep.subr.mxu0 0.0
    %6577 = vmatpush1.xpose.msra.mxu0 0.0
    %6578 = vmatprep.subr.mxu0 0.0
    %6579 = vmatpush1.xpose.msra.mxu0 0.0
    %6580 = vmatprep.subr.mxu0 0.0
    %6581 = vmatpush1.xpose.msra.mxu0 0.0
    %6582 = vmatprep.subr.mxu0 0.0
    %6583 = vmatpush1.xpose.msra.mxu0 0.0
    %6584 = vmatprep.subr.mxu0 0.0
    %6585 = vmatpush1.xpose.msra.mxu0 0.0
    %6586 = vmatprep.subr.mxu0 0.0
    %6587 = vmatpush1.xpose.msra.mxu0 0.0
    %6588 = vmatprep.subr.mxu0 0.0
    %6589 = vmatpush1.xpose.msra.mxu0 0.0
    %6590 = vmatprep.subr.mxu0 0.0
    %6591 = vmatpush1.xpose.msra.mxu0 0.0
    %6592 = vmatprep.subr.mxu0 0.0
    %6593 = vmatpush1.xpose.msra.mxu0 0.0
    %6594 = vmatprep.subr.mxu0 0.0
    %6595 = vmatpush1.xpose.msra.mxu0 0.0
    %6596 = vmatprep.subr.mxu0 0.0
    %6597 = vmatpush1.xpose.msra.mxu0 0.0
    %6598 = vmatprep.subr.mxu0 0.0
    %6599 = vmatpush1.xpose.msra.mxu0 0.0
    %6600 = vmatprep.subr.mxu0 0.0
    %6601 = vmatpush1.xpose.msra.mxu0 0.0
    %6602 = vmatprep.subr.mxu0 0.0
    %6603 = vmatpush1.xpose.msra.mxu0 0.0
    %6604 = vmatprep.subr.mxu0 0.0
    %6605 = vmatpush1.xpose.msra.mxu0 0.0
    %6606 = vmatprep.subr.mxu0 0.0
    %6607 = vmatpush1.xpose.msra.mxu0 0.0
    %6608 = vmatprep.subr.mxu0 0.0
    %6609 = vmatpush1.xpose.msra.mxu0 0.0
    %6610 = vmatprep.subr.mxu0 0.0
    %6611 = vmatpush1.xpose.msra.mxu0 0.0
    %6612 = vmatprep.subr.mxu0 0.0
    %6613 = vmatpush1.xpose.msra.mxu0 0.0
    %6614 = vmatprep.subr.mxu0 0.0
    %6615 = vmatpush1.xpose.msra.mxu0 0.0
    %6616 = vmatprep.subr.mxu0 0.0
    %6617 = vmatpush1.xpose.msra.mxu0 0.0
    %6618 = vmatprep.mubr.f32.mxu0 0.0
    %6619 = vmatmul.mubr.f32.gmra.mrb[0].mxu0 %v6542
    %v6620 = vpop.f32.mrb[0].mxu0
    %v6621 = vadd.f32 %v2578, %v6620
    %v6622 = vpop.f32.mrb[0].mxu0
    %6623 = vmatprep.mubr.f32.mxu0 0.0
    %6624 = vmatmul.mubr.f32.gmra.mrb[0].mxu0 %v6544
    %v6625 = vpop.f32.mrb[0].mxu0
    %v6626 = vadd.f32 %v2579, %v6625
    %v6627 = vpop.f32.mrb[0].mxu0
    %6628 = vdwg.mxu0
    %v6629 = vsel %vm269, %v6621, -inf
    %6630 = vmax.xlane.f32.xlu0 %v6629
    %v6631 = vpop.xlane.xlu0 %6630
    %v6632 = vsel %vm269, %v6626, -inf
    %6633 = vmax.xlane.f32.xlu0 %v6632
    %v6634 = vpop.xlane.xlu0 %6633
    %v6635 = vsub.f32 %v6621, %v6631
    %v6636 = vsub.f32 %v6626, %v6634
    %v6637 = vmul.f32 %v6635, 1.442695
    %v6638 = vpow.pop %v6637
    %v6639 = vmul.f32 %v6636, 1.442695
    %v6640 = vpow.pop %v6639
    %v6641 = vsel %vm269, %v6638, 0.0
    %6642 = vadd.xlane.f32.xlu0 %v6641
    %v6643 = vpop.xlane.xlu0 %6642
    %v6644 = vsel %vm269, %v6640, 0.0
    %6645 = vadd.xlane.f32.xlu0 %v6644
    %v6646 = vpop.xlane.xlu0 %6645
    %v6647 = vrcp.pop %v6643
    %v6648 = vmul.f32 %v6638, %v6647
    %v6649 = vrcp.pop %v6646
    %v6650 = vmul.f32 %v6640, %v6649
    %6651 = vrot.lane.b32.xlu0 %v6297, 88
    %v6652 = vpop.permute.xlu0 %6651
    %6653 = vrot.lane.b32.xlu0 %v6302, 88
    %v6654 = vpop.permute.xlu0 %6653
    %6655 = vrot.lane.b32.xlu0 %v6307, 88
    %v6656 = vpop.permute.xlu0 %6655
    %6657 = vrot.lane.b32.xlu0 %v6312, 88
    %v6658 = vpop.permute.xlu0 %6657
    %v6664 = vsel %vm269, %v6648, 0
    %v6667 = vsel %vm269, %v6650, 0
    %6669 = vmatprep.subr.mxu0 0.0
    %6670 = vmatpush1.msra.mxu0 %v6652
    %6671 = vmatprep.subr.mxu0 0.0
    %6672 = vmatpush1.msra.mxu0 %v6654
    %6673 = vmatprep.subr.mxu0 0.0
    %6674 = vmatpush1.msra.mxu0 %v6656
    %6675 = vmatprep.subr.mxu0 0.0
    %6676 = vmatpush1.msra.mxu0 %v6658
    %6677 = vmatprep.subr.mxu0 0.0
    %6678 = vmatpush1.msra.mxu0 0.0
    %6679 = vmatprep.subr.mxu0 0.0
    %6680 = vmatpush1.msra.mxu0 0.0
    %6681 = vmatprep.subr.mxu0 0.0
    %6682 = vmatpush1.msra.mxu0 0.0
    %6683 = vmatprep.subr.mxu0 0.0
    %6684 = vmatpush1.msra.mxu0 0.0
    %6685 = vmatprep.subr.mxu0 0.0
    %6686 = vmatpush1.msra.mxu0 0.0
    %6687 = vmatprep.subr.mxu0 0.0
    %6688 = vmatpush1.msra.mxu0 0.0
    %6689 = vmatprep.subr.mxu0 0.0
    %6690 = vmatpush1.msra.mxu0 0.0
    %6691 = vmatprep.subr.mxu0 0.0
    %6692 = vmatpush1.msra.mxu0 0.0
    %6693 = vmatprep.subr.mxu0 0.0
    %6694 = vmatpush1.msra.mxu0 0.0
    %6695 = vmatprep.subr.mxu0 0.0
    %6696 = vmatpush1.msra.mxu0 0.0
    %6697 = vmatprep.subr.mxu0 0.0
    %6698 = vmatpush1.msra.mxu0 0.0
    %6699 = vmatprep.subr.mxu0 0.0
    %6700 = vmatpush1.msra.mxu0 0.0
    %6701 = vmatprep.subr.mxu0 0.0
    %6702 = vmatpush1.msra.mxu0 0.0
    %6703 = vmatprep.subr.mxu0 0.0
    %6704 = vmatpush1.msra.mxu0 0.0
    %6705 = vmatprep.subr.mxu0 0.0
    %6706 = vmatpush1.msra.mxu0 0.0
    %6707 = vmatprep.subr.mxu0 0.0
    %6708 = vmatpush1.msra.mxu0 0.0
    %6709 = vmatprep.subr.mxu0 0.0
    %6710 = vmatpush1.msra.mxu0 0.0
    %6711 = vmatprep.subr.mxu0 0.0
    %6712 = vmatpush1.msra.mxu0 0.0
    %6713 = vmatprep.subr.mxu0 0.0
    %6714 = vmatpush1.msra.mxu0 0.0
    %6715 = vmatprep.subr.mxu0 0.0
    %6716 = vmatpush1.msra.mxu0 0.0
    %6717 = vmatprep.subr.mxu0 0.0
    %6718 = vmatpush1.msra.mxu0 0.0
    %6719 = vmatprep.subr.mxu0 0.0
    %6720 = vmatpush1.msra.mxu0 0.0
    %6721 = vmatprep.subr.mxu0 0.0
    %6722 = vmatpush1.msra.mxu0 0.0
    %6723 = vmatprep.subr.mxu0 0.0
    %6724 = vmatpush1.msra.mxu0 0.0
    %6725 = vmatprep.subr.mxu0 0.0
    %6726 = vmatpush1.msra.mxu0 0.0
    %6727 = vmatprep.subr.mxu0 0.0
    %6728 = vmatpush1.msra.mxu0 0.0
    %6729 = vmatprep.subr.mxu0 0.0
    %6730 = vmatpush1.msra.mxu0 0.0
    %6731 = vmatprep.subr.mxu0 0.0
    %6732 = vmatpush1.msra.mxu0 0.0
    %6733 = vmatprep.mubr.f32.mxu0 0.0
    %6734 = vmatmul.mubr.f32.gmra.mrb[0].mxu0 %v6664
    %v6735 = vpop.f32.mrb[0].mxu0
    %v6736 = vadd.f32 0.0, %v6735
    %v6737 = vpop.f32.mrb[0].mxu0
    %6738 = vmatprep.mubr.f32.mxu0 0.0
    %6739 = vmatmul.mubr.f32.gmra.mrb[0].mxu0 %v6667
    %v6740 = vpop.f32.mrb[0].mxu0
    %v6741 = vadd.f32 0.0, %v6740
    %v6742 = vpop.f32.mrb[0].mxu0
    %6743 = vdwg.mxu0
    %6744 = vrot.lane.b32.xlu0 %v6320, 112
    %v6745 = vpop.permute.xlu0 %6744
    %6746 = vrot.lane.b32.xlu0 %v6321, 112
    %v6747 = vpop.permute.xlu0 %6746
    %6748 = vrot.lane.b32.xlu0 %v6297, 112
    %v6749 = vpop.permute.xlu0 %6748
    %6750 = vrot.lane.b32.xlu0 %v6302, 112
    %v6751 = vpop.permute.xlu0 %6750
    %6752 = vrot.lane.b32.xlu0 %v6307, 112
    %v6753 = vpop.permute.xlu0 %6752
    %6754 = vrot.lane.b32.xlu0 %v6312, 112
    %v6755 = vpop.permute.xlu0 %6754
    %v6756 = vsel %vm2683, %v6745, 0
    %v6758 = vsel %vm2683, %v6747, 0
    %v6760 = vsel %vm2683, %v6749, 0
    %v6762 = vsel %vm2683, %v6751, 0
    %v6764 = vsel %vm2683, %v6753, 0
    %v6766 = vsel %vm2683, %v6755, 0
    %6768 = vmatprep.subr.mxu0 0.0
    %6769 = vmatpush1.xpose.msra.mxu0 %v6760
    %6770 = vmatprep.subr.mxu0 0.0
    %6771 = vmatpush1.xpose.msra.mxu0 %v6762
    %6772 = vmatprep.subr.mxu0 0.0
    %6773 = vmatpush1.xpose.msra.mxu0 %v6764
    %6774 = vmatprep.subr.mxu0 0.0
    %6775 = vmatpush1.xpose.msra.mxu0 %v6766
    %6776 = vmatprep.subr.mxu0 0.0
    %6777 = vmatpush1.xpose.msra.mxu0 0.0
    %6778 = vmatprep.subr.mxu0 0.0
    %6779 = vmatpush1.xpose.msra.mxu0 0.0
    %6780 = vmatprep.subr.mxu0 0.0
    %6781 = vmatpush1.xpose.msra.mxu0 0.0
    %6782 = vmatprep.subr.mxu0 0.0
    %6783 = vmatpush1.xpose.msra.mxu0 0.0
    %6784 = vmatprep.subr.mxu0 0.0
    %6785 = vmatpush1.xpose.msra.mxu0 0.0
    %6786 = vmatprep.subr.mxu0 0.0
    %6787 = vmatpush1.xpose.msra.mxu0 0.0
    %6788 = vmatprep.subr.mxu0 0.0
    %6789 = vmatpush1.xpose.msra.mxu0 0.0
    %6790 = vmatprep.subr.mxu0 0.0
    %6791 = vmatpush1.xpose.msra.mxu0 0.0
    %6792 = vmatprep.subr.mxu0 0.0
    %6793 = vmatpush1.xpose.msra.mxu0 0.0
    %6794 = vmatprep.subr.mxu0 0.0
    %6795 = vmatpush1.xpose.msra.mxu0 0.0
    %6796 = vmatprep.subr.mxu0 0.0
    %6797 = vmatpush1.xpose.msra.mxu0 0.0
    %6798 = vmatprep.subr.mxu0 0.0
    %6799 = vmatpush1.xpose.msra.mxu0 0.0
    %6800 = vmatprep.subr.mxu0 0.0
    %6801 = vmatpush1.xpose.msra.mxu0 0.0
    %6802 = vmatprep.subr.mxu0 0.0
    %6803 = vmatpush1.xpose.msra.mxu0 0.0
    %6804 = vmatprep.subr.mxu0 0.0
    %6805 = vmatpush1.xpose.msra.mxu0 0.0
    %6806 = vmatprep.subr.mxu0 0.0
    %6807 = vmatpush1.xpose.msra.mxu0 0.0
    %6808 = vmatprep.subr.mxu0 0.0
    %6809 = vmatpush1.xpose.msra.mxu0 0.0
    %6810 = vmatprep.subr.mxu0 0.0
    %6811 = vmatpush1.xpose.msra.mxu0 0.0
    %6812 = vmatprep.subr.mxu0 0.0
    %6813 = vmatpush1.xpose.msra.mxu0 0.0
    %6814 = vmatprep.subr.mxu0 0.0
    %6815 = vmatpush1.xpose.msra.mxu0 0.0
    %6816 = vmatprep.subr.mxu0 0.0
    %6817 = vmatpush1.xpose.msra.mxu0 0.0
    %6818 = vmatprep.subr.mxu0 0.0
    %6819 = vmatpush1.xpose.msra.mxu0 0.0
    %6820 = vmatprep.subr.mxu0 0.0
    %6821 = vmatpush1.xpose.msra.mxu0 0.0
    %6822 = vmatprep.subr.mxu0 0.0
    %6823 = vmatpush1.xpose.msra.mxu0 0.0
    %6824 = vmatprep.subr.mxu0 0.0
    %6825 = vmatpush1.xpose.msra.mxu0 0.0
    %6826 = vmatprep.subr.mxu0 0.0
    %6827 = vmatpush1.xpose.msra.mxu0 0.0
    %6828 = vmatprep.subr.mxu0 0.0
    %6829 = vmatpush1.xpose.msra.mxu0 0.0
    %6830 = vmatprep.subr.mxu0 0.0
    %6831 = vmatpush1.xpose.msra.mxu0 0.0
    %6832 = vmatprep.mubr.f32.mxu0 0.0
    %6833 = vmatmul.mubr.f32.gmra.mrb[0].mxu0 %v6756
    %v6834 = vpop.f32.mrb[0].mxu0
    %v6835 = vadd.f32 %v2578, %v6834
    %v6836 = vpop.f32.mrb[0].mxu0
    %6837 = vmatprep.mubr.f32.mxu0 0.0
    %6838 = vmatmul.mubr.f32.gmra.mrb[0].mxu0 %v6758
    %v6839 = vpop.f32.mrb[0].mxu0
    %v6840 = vadd.f32 %v2579, %v6839
    %v6841 = vpop.f32.mrb[0].mxu0
    %6842 = vdwg.mxu0
    %v6843 = vsel %vm269, %v6835, -inf
    %6844 = vmax.xlane.f32.xlu0 %v6843
    %v6845 = vpop.xlane.xlu0 %6844
    %v6846 = vsel %vm269, %v6840, -inf
    %6847 = vmax.xlane.f32.xlu0 %v6846
    %v6848 = vpop.xlane.xlu0 %6847
    %v6849 = vsub.f32 %v6835, %v6845
    %v6850 = vsub.f32 %v6840, %v6848
    %v6851 = vmul.f32 %v6849, 1.442695
    %v6852 = vpow.pop %v6851
    %v6853 = vmul.f32 %v6850, 1.442695
    %v6854 = vpow.pop %v6853
    %v6855 = vsel %vm269, %v6852, 0.0
    %6856 = vadd.xlane.f32.xlu0 %v6855
    %v6857 = vpop.xlane.xlu0 %6856
    %v6858 = vsel %vm269, %v6854, 0.0
    %6859 = vadd.xlane.f32.xlu0 %v6858
    %v6860 = vpop.xlane.xlu0 %6859
    %v6861 = vrcp.pop %v6857
    %v6862 = vmul.f32 %v6852, %v6861
    %v6863 = vrcp.pop %v6860
    %v6864 = vmul.f32 %v6854, %v6863
    %6865 = vrot.lane.b32.xlu0 %v6297, 80
    %v6866 = vpop.permute.xlu0 %6865
    %6867 = vrot.lane.b32.xlu0 %v6302, 80
    %v6868 = vpop.permute.xlu0 %6867
    %6869 = vrot.lane.b32.xlu0 %v6307, 80
    %v6870 = vpop.permute.xlu0 %6869
    %6871 = vrot.lane.b32.xlu0 %v6312, 80
    %v6872 = vpop.permute.xlu0 %6871
    %v6878 = vsel %vm269, %v6862, 0
    %v6881 = vsel %vm269, %v6864, 0
    %6883 = vmatprep.subr.mxu0 0.0
    %6884 = vmatpush1.msra.mxu0 %v6866
    %6885 = vmatprep.subr.mxu0 0.0
    %6886 = vmatpush1.msra.mxu0 %v6868
    %6887 = vmatprep.subr.mxu0 0.0
    %6888 = vmatpush1.msra.mxu0 %v6870
    %6889 = vmatprep.subr.mxu0 0.0
    %6890 = vmatpush1.msra.mxu0 %v6872
    %6891 = vmatprep.subr.mxu0 0.0
    %6892 = vmatpush1.msra.mxu0 0.0
    %6893 = vmatprep.subr.mxu0 0.0
    %6894 = vmatpush1.msra.mxu0 0.0
    %6895 = vmatprep.subr.mxu0 0.0
    %6896 = vmatpush1.msra.mxu0 0.0
    %6897 = vmatprep.subr.mxu0 0.0
    %6898 = vmatpush1.msra.mxu0 0.0
    %6899 = vmatprep.subr.mxu0 0.0
    %6900 = vmatpush1.msra.mxu0 0.0
    %6901 = vmatprep.subr.mxu0 0.0
    %6902 = vmatpush1.msra.mxu0 0.0
    %6903 = vmatprep.subr.mxu0 0.0
    %6904 = vmatpush1.msra.mxu0 0.0
    %6905 = vmatprep.subr.mxu0 0.0
    %6906 = vmatpush1.msra.mxu0 0.0
    %6907 = vmatprep.subr.mxu0 0.0
    %6908 = vmatpush1.msra.mxu0 0.0
    %6909 = vmatprep.subr.mxu0 0.0
    %6910 = vmatpush1.msra.mxu0 0.0
    %6911 = vmatprep.subr.mxu0 0.0
    %6912 = vmatpush1.msra.mxu0 0.0
    %6913 = vmatprep.subr.mxu0 0.0
    %6914 = vmatpush1.msra.mxu0 0.0
    %6915 = vmatprep.subr.mxu0 0.0
    %6916 = vmatpush1.msra.mxu0 0.0
    %6917 = vmatprep.subr.mxu0 0.0
    %6918 = vmatpush1.msra.mxu0 0.0
    %6919 = vmatprep.subr.mxu0 0.0
    %6920 = vmatpush1.msra.mxu0 0.0
    %6921 = vmatprep.subr.mxu0 0.0
    %6922 = vmatpush1.msra.mxu0 0.0
    %6923 = vmatprep.subr.mxu0 0.0
    %6924 = vmatpush1.msra.mxu0 0.0
    %6925 = vmatprep.subr.mxu0 0.0
    %6926 = vmatpush1.msra.mxu0 0.0
    %6927 = vmatprep.subr.mxu0 0.0
    %6928 = vmatpush1.msra.mxu0 0.0
    %6929 = vmatprep.subr.mxu0 0.0
    %6930 = vmatpush1.msra.mxu0 0.0
    %6931 = vmatprep.subr.mxu0 0.0
    %6932 = vmatpush1.msra.mxu0 0.0
    %6933 = vmatprep.subr.mxu0 0.0
    %6934 = vmatpush1.msra.mxu0 0.0
    %6935 = vmatprep.subr.mxu0 0.0
    %6936 = vmatpush1.msra.mxu0 0.0
    %6937 = vmatprep.subr.mxu0 0.0
    %6938 = vmatpush1.msra.mxu0 0.0
    %6939 = vmatprep.subr.mxu0 0.0
    %6940 = vmatpush1.msra.mxu0 0.0
    %6941 = vmatprep.subr.mxu0 0.0
    %6942 = vmatpush1.msra.mxu0 0.0
    %6943 = vmatprep.subr.mxu0 0.0
    %6944 = vmatpush1.msra.mxu0 0.0
    %6945 = vmatprep.subr.mxu0 0.0
    %6946 = vmatpush1.msra.mxu0 0.0
    %6947 = vmatprep.mubr.f32.mxu0 0.0
    %6948 = vmatmul.mubr.f32.gmra.mrb[0].mxu0 %v6878
    %v6949 = vpop.f32.mrb[0].mxu0
    %v6950 = vadd.f32 0.0, %v6949
    %v6951 = vpop.f32.mrb[0].mxu0
    %6952 = vmatprep.mubr.f32.mxu0 0.0
    %6953 = vmatmul.mubr.f32.gmra.mrb[0].mxu0 %v6881
    %v6954 = vpop.f32.mrb[0].mxu0
    %v6955 = vadd.f32 0.0, %v6954
    %v6956 = vpop.f32.mrb[0].mxu0
    %6957 = vdwg.mxu0
    %6958 = vrot.lane.b32.xlu0 %v6320, 104
    %v6959 = vpop.permute.xlu0 %6958
    %6960 = vrot.lane.b32.xlu0 %v6321, 104
    %v6961 = vpop.permute.xlu0 %6960
    %6962 = vrot.lane.b32.xlu0 %v6297, 104
    %v6963 = vpop.permute.xlu0 %6962
    %6964 = vrot.lane.b32.xlu0 %v6302, 104
    %v6965 = vpop.permute.xlu0 %6964
    %6966 = vrot.lane.b32.xlu0 %v6307, 104
    %v6967 = vpop.permute.xlu0 %6966
    %6968 = vrot.lane.b32.xlu0 %v6312, 104
    %v6969 = vpop.permute.xlu0 %6968
    %v6970 = vsel %vm2683, %v6959, 0
    %v6972 = vsel %vm2683, %v6961, 0
    %v6974 = vsel %vm2683, %v6963, 0
    %v6976 = vsel %vm2683, %v6965, 0
    %v6978 = vsel %vm2683, %v6967, 0
    %v6980 = vsel %vm2683, %v6969, 0
    %6982 = vmatprep.subr.mxu0 0.0
    %6983 = vmatpush1.xpose.msra.mxu0 %v6974
    %6984 = vmatprep.subr.mxu0 0.0
    %6985 = vmatpush1.xpose.msra.mxu0 %v6976
    %6986 = vmatprep.subr.mxu0 0.0
    %6987 = vmatpush1.xpose.msra.mxu0 %v6978
    %6988 = vmatprep.subr.mxu0 0.0
    %6989 = vmatpush1.xpose.msra.mxu0 %v6980
    %6990 = vmatprep.subr.mxu0 0.0
    %6991 = vmatpush1.xpose.msra.mxu0 0.0
    %6992 = vmatprep.subr.mxu0 0.0
    %6993 = vmatpush1.xpose.msra.mxu0 0.0
    %6994 = vmatprep.subr.mxu0 0.0
    %6995 = vmatpush1.xpose.msra.mxu0 0.0
    %6996 = vmatprep.subr.mxu0 0.0
    %6997 = vmatpush1.xpose.msra.mxu0 0.0
    %6998 = vmatprep.subr.mxu0 0.0
    %6999 = vmatpush1.xpose.msra.mxu0 0.0
    %7000 = vmatprep.subr.mxu0 0.0
    %7001 = vmatpush1.xpose.msra.mxu0 0.0
    %7002 = vmatprep.subr.mxu0 0.0
    %7003 = vmatpush1.xpose.msra.mxu0 0.0
    %7004 = vmatprep.subr.mxu0 0.0
    %7005 = vmatpush1.xpose.msra.mxu0 0.0
    %7006 = vmatprep.subr.mxu0 0.0
    %7007 = vmatpush1.xpose.msra.mxu0 0.0
    %7008 = vmatprep.subr.mxu0 0.0
    %7009 = vmatpush1.xpose.msra.mxu0 0.0
    %7010 = vmatprep.subr.mxu0 0.0
    %7011 = vmatpush1.xpose.msra.mxu0 0.0
    %7012 = vmatprep.subr.mxu0 0.0
    %7013 = vmatpush1.xpose.msra.mxu0 0.0
    %7014 = vmatprep.subr.mxu0 0.0
    %7015 = vmatpush1.xpose.msra.mxu0 0.0
    %7016 = vmatprep.subr.mxu0 0.0
    %7017 = vmatpush1.xpose.msra.mxu0 0.0
    %7018 = vmatprep.subr.mxu0 0.0
    %7019 = vmatpush1.xpose.msra.mxu0 0.0
    %7020 = vmatprep.subr.mxu0 0.0
    %7021 = vmatpush1.xpose.msra.mxu0 0.0
    %7022 = vmatprep.subr.mxu0 0.0
    %7023 = vmatpush1.xpose.msra.mxu0 0.0
    %7024 = vmatprep.subr.mxu0 0.0
    %7025 = vmatpush1.xpose.msra.mxu0 0.0
    %7026 = vmatprep.subr.mxu0 0.0
    %7027 = vmatpush1.xpose.msra.mxu0 0.0
    %7028 = vmatprep.subr.mxu0 0.0
    %7029 = vmatpush1.xpose.msra.mxu0 0.0
    %7030 = vmatprep.subr.mxu0 0.0
    %7031 = vmatpush1.xpose.msra.mxu0 0.0
    %7032 = vmatprep.subr.mxu0 0.0
    %7033 = vmatpush1.xpose.msra.mxu0 0.0
    %7034 = vmatprep.subr.mxu0 0.0
    %7035 = vmatpush1.xpose.msra.mxu0 0.0
    %7036 = vmatprep.subr.mxu0 0.0
    %7037 = vmatpush1.xpose.msra.mxu0 0.0
    %7038 = vmatprep.subr.mxu0 0.0
    %7039 = vmatpush1.xpose.msra.mxu0 0.0
    %7040 = vmatprep.subr.mxu0 0.0
    %7041 = vmatpush1.xpose.msra.mxu0 0.0
    %7042 = vmatprep.subr.mxu0 0.0
    %7043 = vmatpush1.xpose.msra.mxu0 0.0
    %7044 = vmatprep.subr.mxu0 0.0
    %7045 = vmatpush1.xpose.msra.mxu0 0.0
    %7046 = vmatprep.mubr.f32.mxu0 0.0
    %7047 = vmatmul.mubr.f32.gmra.mrb[0].mxu0 %v6970
    %v7048 = vpop.f32.mrb[0].mxu0
    %v7049 = vadd.f32 %v2578, %v7048
    %v7050 = vpop.f32.mrb[0].mxu0
    %7051 = vmatprep.mubr.f32.mxu0 0.0
    %7052 = vmatmul.mubr.f32.gmra.mrb[0].mxu0 %v6972
    %v7053 = vpop.f32.mrb[0].mxu0
    %v7054 = vadd.f32 %v2579, %v7053
    %v7055 = vpop.f32.mrb[0].mxu0
    %7056 = vdwg.mxu0
    %v7057 = vsel %vm269, %v7049, -inf
    %7058 = vmax.xlane.f32.xlu0 %v7057
    %v7059 = vpop.xlane.xlu0 %7058
    %v7060 = vsel %vm269, %v7054, -inf
    %7061 = vmax.xlane.f32.xlu0 %v7060
    %v7062 = vpop.xlane.xlu0 %7061
    %v7063 = vsub.f32 %v7049, %v7059
    %v7064 = vsub.f32 %v7054, %v7062
    %v7065 = vmul.f32 %v7063, 1.442695
    %v7066 = vpow.pop %v7065
    %v7067 = vmul.f32 %v7064, 1.442695
    %v7068 = vpow.pop %v7067
    %v7069 = vsel %vm269, %v7066, 0.0
    %7070 = vadd.xlane.f32.xlu0 %v7069
    %v7071 = vpop.xlane.xlu0 %7070
    %v7072 = vsel %vm269, %v7068, 0.0
    %7073 = vadd.xlane.f32.xlu0 %v7072
    %v7074 = vpop.xlane.xlu0 %7073
    %v7075 = vrcp.pop %v7071
    %v7076 = vmul.f32 %v7066, %v7075
    %v7077 = vrcp.pop %v7074
    %v7078 = vmul.f32 %v7068, %v7077
    %7079 = vrot.lane.b32.xlu0 %v6297, 72
    %v7080 = vpop.permute.xlu0 %7079
    %7081 = vrot.lane.b32.xlu0 %v6302, 72
    %v7082 = vpop.permute.xlu0 %7081
    %7083 = vrot.lane.b32.xlu0 %v6307, 72
    %v7084 = vpop.permute.xlu0 %7083
    %7085 = vrot.lane.b32.xlu0 %v6312, 72
    %v7086 = vpop.permute.xlu0 %7085
    %v7092 = vsel %vm269, %v7076, 0
    %v7095 = vsel %vm269, %v7078, 0
    %7097 = vmatprep.subr.mxu0 0.0
    %7098 = vmatpush1.msra.mxu0 %v7080
    %7099 = vmatprep.subr.mxu0 0.0
    %7100 = vmatpush1.msra.mxu0 %v7082
    %7101 = vmatprep.subr.mxu0 0.0
    %7102 = vmatpush1.msra.mxu0 %v7084
    %7103 = vmatprep.subr.mxu0 0.0
    %7104 = vmatpush1.msra.mxu0 %v7086
    %7105 = vmatprep.subr.mxu0 0.0
    %7106 = vmatpush1.msra.mxu0 0.0
    %7107 = vmatprep.subr.mxu0 0.0
    %7108 = vmatpush1.msra.mxu0 0.0
    %7109 = vmatprep.subr.mxu0 0.0
    %7110 = vmatpush1.msra.mxu0 0.0
    %7111 = vmatprep.subr.mxu0 0.0
    %7112 = vmatpush1.msra.mxu0 0.0
    %7113 = vmatprep.subr.mxu0 0.0
    %7114 = vmatpush1.msra.mxu0 0.0
    %7115 = vmatprep.subr.mxu0 0.0
    %7116 = vmatpush1.msra.mxu0 0.0
    %7117 = vmatprep.subr.mxu0 0.0
    %7118 = vmatpush1.msra.mxu0 0.0
    %7119 = vmatprep.subr.mxu0 0.0
    %7120 = vmatpush1.msra.mxu0 0.0
    %7121 = vmatprep.subr.mxu0 0.0
    %7122 = vmatpush1.msra.mxu0 0.0
    %7123 = vmatprep.subr.mxu0 0.0
    %7124 = vmatpush1.msra.mxu0 0.0
    %7125 = vmatprep.subr.mxu0 0.0
    %7126 = vmatpush1.msra.mxu0 0.0
    %7127 = vmatprep.subr.mxu0 0.0
    %7128 = vmatpush1.msra.mxu0 0.0
    %7129 = vmatprep.subr.mxu0 0.0
    %7130 = vmatpush1.msra.mxu0 0.0
    %7131 = vmatprep.subr.mxu0 0.0
    %7132 = vmatpush1.msra.mxu0 0.0
    %7133 = vmatprep.subr.mxu0 0.0
    %7134 = vmatpush1.msra.mxu0 0.0
    %7135 = vmatprep.subr.mxu0 0.0
    %7136 = vmatpush1.msra.mxu0 0.0
    %7137 = vmatprep.subr.mxu0 0.0
    %7138 = vmatpush1.msra.mxu0 0.0
    %7139 = vmatprep.subr.mxu0 0.0
    %7140 = vmatpush1.msra.mxu0 0.0
    %7141 = vmatprep.subr.mxu0 0.0
    %7142 = vmatpush1.msra.mxu0 0.0
    %7143 = vmatprep.subr.mxu0 0.0
    %7144 = vmatpush1.msra.mxu0 0.0
    %7145 = vmatprep.subr.mxu0 0.0
    %7146 = vmatpush1.msra.mxu0 0.0
    %7147 = vmatprep.subr.mxu0 0.0
    %7148 = vmatpush1.msra.mxu0 0.0
    %7149 = vmatprep.subr.mxu0 0.0
    %7150 = vmatpush1.msra.mxu0 0.0
    %7151 = vmatprep.subr.mxu0 0.0
    %7152 = vmatpush1.msra.mxu0 0.0
    %7153 = vmatprep.subr.mxu0 0.0
    %7154 = vmatpush1.msra.mxu0 0.0
    %7155 = vmatprep.subr.mxu0 0.0
    %7156 = vmatpush1.msra.mxu0 0.0
    %7157 = vmatprep.subr.mxu0 0.0
    %7158 = vmatpush1.msra.mxu0 0.0
    %7159 = vmatprep.subr.mxu0 0.0
    %7160 = vmatpush1.msra.mxu0 0.0
    %7161 = vmatprep.mubr.f32.mxu0 0.0
    %7162 = vmatmul.mubr.f32.gmra.mrb[0].mxu0 %v7092
    %v7163 = vpop.f32.mrb[0].mxu0
    %v7164 = vadd.f32 0.0, %v7163
    %v7165 = vpop.f32.mrb[0].mxu0
    %7166 = vmatprep.mubr.f32.mxu0 0.0
    %7167 = vmatmul.mubr.f32.gmra.mrb[0].mxu0 %v7095
    %v7168 = vpop.f32.mrb[0].mxu0
    %v7169 = vadd.f32 0.0, %v7168
    %v7170 = vpop.f32.mrb[0].mxu0
    %7171 = vdwg.mxu0
    %7174 = vrot.lane.b32.xlu0 %v6736, 8
    %v7175 = vpop.permute.xlu0 %7174
    %7176 = vrot.lane.b32.xlu0 %v6741, 8
    %v7177 = vpop.permute.xlu0 %7176
    %7182 = vrot.lane.b32.xlu0 %v6950, 16
    %v7183 = vpop.permute.xlu0 %7182
    %7184 = vrot.lane.b32.xlu0 %v6955, 16
    %v7185 = vpop.permute.xlu0 %7184
    %7190 = vrot.lane.b32.xlu0 %v7164, 24
    %v7191 = vpop.permute.xlu0 %7190
    %7192 = vrot.lane.b32.xlu0 %v7169, 24
    %v7193 = vpop.permute.xlu0 %7192
    %v7196 = vsel %vm2683, %v6522, %v7175
    %v7197 = vsel %vm2683, %v6527, %v7177
    %v7198 = vsel %vm61, %v7196, %v7183
    %v7199 = vsel %vm61, %v7197, %v7185
    %v7200 = vsel %vm3506, %v7198, %v7191
    %v7201 = vsel %vm3506, %v7199, %v7193
    %v7202 = vlaneseq
    %v7203 = vshrl.u32 %v7202, 7
    %v7204 = vsub.s32 0, %v7203
    %v7205 = vrot.slane %v6319, %v7204
    %v7207 = vsel %vm269, %v7200, 0
    %v7210 = vsel %vm269, %v7201, 0
    %7212 = vmatprep.subr.mxu0 0.0
    %7213 = vmatpush1.msra.mxu0 %v6315
    %7214 = vmatprep.subr.mxu0 0.0
    %7215 = vmatpush1.msra.mxu0 %v6316
    %7216 = vmatprep.subr.mxu0 0.0
    %7217 = vmatpush1.msra.mxu0 %v6317
    %7218 = vmatprep.subr.mxu0 0.0
    %7219 = vmatpush1.msra.mxu0 %v6318
    %7220 = vmatprep.subr.mxu0 0.0
    %7221 = vmatpush1.msra.mxu0 0.0
    %7222 = vmatprep.subr.mxu0 0.0
    %7223 = vmatpush1.msra.mxu0 0.0
    %7224 = vmatprep.subr.mxu0 0.0
    %7225 = vmatpush1.msra.mxu0 0.0
    %7226 = vmatprep.subr.mxu0 0.0
    %7227 = vmatpush1.msra.mxu0 0.0
    %7228 = vmatprep.subr.mxu0 0.0
    %7229 = vmatpush1.msra.mxu0 0.0
    %7230 = vmatprep.subr.mxu0 0.0
    %7231 = vmatpush1.msra.mxu0 0.0
    %7232 = vmatprep.subr.mxu0 0.0
    %7233 = vmatpush1.msra.mxu0 0.0
    %7234 = vmatprep.subr.mxu0 0.0
    %7235 = vmatpush1.msra.mxu0 0.0
    %7236 = vmatprep.subr.mxu0 0.0
    %7237 = vmatpush1.msra.mxu0 0.0
    %7238 = vmatprep.subr.mxu0 0.0
    %7239 = vmatpush1.msra.mxu0 0.0
    %7240 = vmatprep.subr.mxu0 0.0
    %7241 = vmatpush1.msra.mxu0 0.0
    %7242 = vmatprep.subr.mxu0 0.0
    %7243 = vmatpush1.msra.mxu0 0.0
    %7244 = vmatprep.subr.mxu0 0.0
    %7245 = vmatpush1.msra.mxu0 0.0
    %7246 = vmatprep.subr.mxu0 0.0
    %7247 = vmatpush1.msra.mxu0 0.0
    %7248 = vmatprep.subr.mxu0 0.0
    %7249 = vmatpush1.msra.mxu0 0.0
    %7250 = vmatprep.subr.mxu0 0.0
    %7251 = vmatpush1.msra.mxu0 0.0
    %7252 = vmatprep.subr.mxu0 0.0
    %7253 = vmatpush1.msra.mxu0 0.0
    %7254 = vmatprep.subr.mxu0 0.0
    %7255 = vmatpush1.msra.mxu0 0.0
    %7256 = vmatprep.subr.mxu0 0.0
    %7257 = vmatpush1.msra.mxu0 0.0
    %7258 = vmatprep.subr.mxu0 0.0
    %7259 = vmatpush1.msra.mxu0 0.0
    %7260 = vmatprep.subr.mxu0 0.0
    %7261 = vmatpush1.msra.mxu0 0.0
    %7262 = vmatprep.subr.mxu0 0.0
    %7263 = vmatpush1.msra.mxu0 0.0
    %7264 = vmatprep.subr.mxu0 0.0
    %7265 = vmatpush1.msra.mxu0 0.0
    %7266 = vmatprep.subr.mxu0 0.0
    %7267 = vmatpush1.msra.mxu0 0.0
    %7268 = vmatprep.subr.mxu0 0.0
    %7269 = vmatpush1.msra.mxu0 0.0
    %7270 = vmatprep.subr.mxu0 0.0
    %7271 = vmatpush1.msra.mxu0 0.0
    %7272 = vmatprep.subr.mxu0 0.0
    %7273 = vmatpush1.msra.mxu0 0.0
    %7274 = vmatprep.subr.mxu0 0.0
    %7275 = vmatpush1.msra.mxu0 0.0
    %7276 = vmatprep.mubr.f32.mxu0 0.0
    %7277 = vmatmul.mubr.f32.gmra.mrb[0].mxu0 %v7207
    %v7278 = vpop.f32.mrb[0].mxu0
    %v7279 = vadd.f32 %v7205, %v7278
    %v7280 = vpop.f32.mrb[0].mxu0
    %7281 = vmatprep.mubr.f32.mxu0 0.0
    %7282 = vmatmul.mubr.f32.gmra.mrb[0].mxu0 %v7210
    %v7283 = vpop.f32.mrb[0].mxu0
    %v7284 = vadd.f32 %v7205, %v7283
    %v7285 = vpop.f32.mrb[0].mxu0
    %7286 = vdwg.mxu0
    %v7287 = vadd.f32 %v6129, %v7279
    %v7288 = vadd.f32 %v6130, %v7284
    %v7289 = vsel %vm269, %v7287, 0.0
    %7290 = vadd.xlane.f32.xlu0 %v7289
    %v7291 = vpop.xlane.xlu0 %7290
    %v7292 = vsel %vm269, %v7288, 0.0
    %7293 = vadd.xlane.f32.xlu0 %v7292
    %v7294 = vpop.xlane.xlu0 %7293
    %v7295 = vmul.f32 %v7291, %v3602
    %v7296 = vmul.f32 %v7294, %v3602
    %v7297 = vsub.f32 %v7287, %v7295
    %v7298 = vsub.f32 %v7288, %v7296
    %v7299 = vmul.f32 %v7297, %v7297
    %v7300 = vmul.f32 %v7298, %v7298
    %v7301 = vsel %vm269, %v7299, 0.0
    %7302 = vadd.xlane.f32.xlu0 %v7301
    %v7303 = vpop.xlane.xlu0 %7302
    %v7304 = vsel %vm269, %v7300, 0.0
    %7305 = vadd.xlane.f32.xlu0 %v7304
    %v7306 = vpop.xlane.xlu0 %7305
    %v7307 = vmul.f32 %v7303, %v3602
    %v7308 = vmul.f32 %v7306, %v3602
    %v7309 = vadd.f32 %v7307, 1e-05
    %v7310 = vadd.f32 %v7308, 1e-05
    %v7311 = vrsqrt.pop %v7309
    %v7312 = vrsqrt.pop %v7310
    %v7313 = vmul.f32 %v7297, %v7311
    %v7314 = vmul.f32 %v7298, %v7312
    %v7315 = vld [vmem:[#allocation4 + $0x2f8] sm:$0x1]
    %v7316 = vlaneseq
    %v7317 = vshrl.u32 %v7316, 7
    %v7318 = vsub.s32 0, %v7317
    %v7319 = vrot.slane %v7315, %v7318
    %v7320 = vmul.f32 %v7313, %v7319
    %v7321 = vmul.f32 %v7314, %v7319
    %v7322 = vld [vmem:[#allocation4 + $0x300] sm:$0x1]
    %v7323 = vlaneseq
    %v7324 = vshrl.u32 %v7323, 7
    %v7325 = vsub.s32 0, %v7324
    %v7326 = vrot.slane %v7322, %v7325
    %v7327 = vadd.f32 %v7320, %v7326
    %v7328 = vadd.f32 %v7321, %v7326
    %v7329 = vld [vmem:[#allocation4 + $0x278] sm:$0xff]
    %v7330 = vld [vmem:[#allocation4 + $0x280] sm:$0xff]
    %v7331 = vld [vmem:[#allocation4 + $0x288] sm:$0xff]
    %v7332 = vld [vmem:[#allocation4 + $0x290] sm:$0xff]
    %v7333 = vld [vmem:[#allocation4 + $0x298] sm:$0x1]
    %v7334 = vlaneseq
    %v7335 = vshrl.u32 %v7334, 7
    %v7336 = vsub.s32 0, %v7335
    %v7337 = vrot.slane %v7333, %v7336
    %v7339 = vsel %vm269, %v7327, 0
    %v7342 = vsel %vm269, %v7328, 0
    %7344 = vmatprep.subr.mxu0 0.0
    %7345 = vmatpush1.msra.mxu0 %v7329
    %7346 = vmatprep.subr.mxu0 0.0
    %7347 = vmatpush1.msra.mxu0 %v7330
    %7348 = vmatprep.subr.mxu0 0.0
    %7349 = vmatpush1.msra.mxu0 %v7331
    %7350 = vmatprep.subr.mxu0 0.0
    %7351 = vmatpush1.msra.mxu0 %v7332
    %7352 = vmatprep.subr.mxu0 0.0
    %7353 = vmatpush1.msra.mxu0 0.0
    %7354 = vmatprep.subr.mxu0 0.0
    %7355 = vmatpush1.msra.mxu0 0.0
    %7356 = vmatprep.subr.mxu0 0.0
    %7357 = vmatpush1.msra.mxu0 0.0
    %7358 = vmatprep.subr.mxu0 0.0
    %7359 = vmatpush1.msra.mxu0 0.0
    %7360 = vmatprep.subr.mxu0 0.0
    %7361 = vmatpush1.msra.mxu0 0.0
    %7362 = vmatprep.subr.mxu0 0.0
    %7363 = vmatpush1.msra.mxu0 0.0
    %7364 = vmatprep.subr.mxu0 0.0
    %7365 = vmatpush1.msra.mxu0 0.0
    %7366 = vmatprep.subr.mxu0 0.0
    %7367 = vmatpush1.msra.mxu0 0.0
    %7368 = vmatprep.subr.mxu0 0.0
    %7369 = vmatpush1.msra.mxu0 0.0
    %7370 = vmatprep.subr.mxu0 0.0
    %7371 = vmatpush1.msra.mxu0 0.0
    %7372 = vmatprep.subr.mxu0 0.0
    %7373 = vmatpush1.msra.mxu0 0.0
    %7374 = vmatprep.subr.mxu0 0.0
    %7375 = vmatpush1.msra.mxu0 0.0
    %7376 = vmatprep.subr.mxu0 0.0
    %7377 = vmatpush1.msra.mxu0 0.0
    %7378 = vmatprep.subr.mxu0 0.0
    %7379 = vmatpush1.msra.mxu0 0.0
    %7380 = vmatprep.subr.mxu0 0.0
    %7381 = vmatpush1.msra.mxu0 0.0
    %7382 = vmatprep.subr.mxu0 0.0
    %7383 = vmatpush1.msra.mxu0 0.0
    %7384 = vmatprep.subr.mxu0 0.0
    %7385 = vmatpush1.msra.mxu0 0.0
    %7386 = vmatprep.subr.mxu0 0.0
    %7387 = vmatpush1.msra.mxu0 0.0
    %7388 = vmatprep.subr.mxu0 0.0
    %7389 = vmatpush1.msra.mxu0 0.0
    %7390 = vmatprep.subr.mxu0 0.0
    %7391 = vmatpush1.msra.mxu0 0.0
    %7392 = vmatprep.subr.mxu0 0.0
    %7393 = vmatpush1.msra.mxu0 0.0
    %7394 = vmatprep.subr.mxu0 0.0
    %7395 = vmatpush1.msra.mxu0 0.0
    %7396 = vmatprep.subr.mxu0 0.0
    %7397 = vmatpush1.msra.mxu0 0.0
    %7398 = vmatprep.subr.mxu0 0.0
    %7399 = vmatpush1.msra.mxu0 0.0
    %7400 = vmatprep.subr.mxu0 0.0
    %7401 = vmatpush1.msra.mxu0 0.0
    %7402 = vmatprep.subr.mxu0 0.0
    %7403 = vmatpush1.msra.mxu0 0.0
    %7404 = vmatprep.subr.mxu0 0.0
    %7405 = vmatpush1.msra.mxu0 0.0
    %7406 = vmatprep.subr.mxu0 0.0
    %7407 = vmatpush1.msra.mxu0 0.0
    %7408 = vmatprep.mubr.f32.mxu0 0.0
    %7409 = vmatmul.mubr.f32.gmra.mrb[0].mxu0 %v7339
    %v7410 = vpop.f32.mrb[0].mxu0
    %v7411 = vadd.f32 %v7337, %v7410
    %v7412 = vpop.f32.mrb[0].mxu0
    %7413 = vmatprep.mubr.f32.mxu0 0.0
    %7414 = vmatmul.mubr.f32.gmra.mrb[0].mxu0 %v7342
    %v7415 = vpop.f32.mrb[0].mxu0
    %v7416 = vadd.f32 %v7337, %v7415
    %v7417 = vpop.f32.mrb[0].mxu0
    %7418 = vdwg.mxu0
    %v7419 = vmax.f32 %v7411, 0.0
    %v7420 = vmax.f32 %v7416, 0.0
    %v7421 = vld [vmem:[#allocation4 + $0x2a0] sm:$0xff]
    %v7422 = vld [vmem:[#allocation4 + $0x2a8] sm:$0xff]
    %v7423 = vld [vmem:[#allocation4 + $0x2b0] sm:$0xff]
    %v7424 = vld [vmem:[#allocation4 + $0x2b8] sm:$0xff]
    %v7425 = vld [vmem:[#allocation4 + $0x2c0] sm:$0xff]
    %v7426 = vld [vmem:[#allocation4 + $0x2c8] sm:$0xff]
    %v7427 = vld [vmem:[#allocation4 + $0x2d0] sm:$0xff]
    %v7428 = vld [vmem:[#allocation4 + $0x2d8] sm:$0xff]
    %v7430 = vsel %vm1921, %v7419, 0
    %v7433 = vsel %vm1921, %v7420, 0
    %7435 = vmatprep.subr.mxu0 0.0
    %7436 = vmatpush1.msra.mxu0 %v7421
    %7437 = vmatprep.subr.mxu0 0.0
    %7438 = vmatpush1.msra.mxu0 %v7422
    %7439 = vmatprep.subr.mxu0 0.0
    %7440 = vmatpush1.msra.mxu0 %v7423
    %7441 = vmatprep.subr.mxu0 0.0
    %7442 = vmatpush1.msra.mxu0 %v7424
    %7443 = vmatprep.subr.mxu0 0.0
    %7444 = vmatpush1.msra.mxu0 %v7425
    %7445 = vmatprep.subr.mxu0 0.0
    %7446 = vmatpush1.msra.mxu0 %v7426
    %7447 = vmatprep.subr.mxu0 0.0
    %7448 = vmatpush1.msra.mxu0 %v7427
    %7449 = vmatprep.subr.mxu0 0.0
    %7450 = vmatpush1.msra.mxu0 %v7428
    %7451 = vmatprep.subr.mxu0 0.0
    %7452 = vmatpush1.msra.mxu0 0.0
    %7453 = vmatprep.subr.mxu0 0.0
    %7454 = vmatpush1.msra.mxu0 0.0
    %7455 = vmatprep.subr.mxu0 0.0
    %7456 = vmatpush1.msra.mxu0 0.0
    %7457 = vmatprep.subr.mxu0 0.0
    %7458 = vmatpush1.msra.mxu0 0.0
    %7459 = vmatprep.subr.mxu0 0.0
    %7460 = vmatpush1.msra.mxu0 0.0
    %7461 = vmatprep.subr.mxu0 0.0
    %7462 = vmatpush1.msra.mxu0 0.0
    %7463 = vmatprep.subr.mxu0 0.0
    %7464 = vmatpush1.msra.mxu0 0.0
    %7465 = vmatprep.subr.mxu0 0.0
    %7466 = vmatpush1.msra.mxu0 0.0
    %7467 = vmatprep.subr.mxu0 0.0
    %7468 = vmatpush1.msra.mxu0 0.0
    %7469 = vmatprep.subr.mxu0 0.0
    %7470 = vmatpush1.msra.mxu0 0.0
    %7471 = vmatprep.subr.mxu0 0.0
    %7472 = vmatpush1.msra.mxu0 0.0
    %7473 = vmatprep.subr.mxu0 0.0
    %7474 = vmatpush1.msra.mxu0 0.0
    %7475 = vmatprep.subr.mxu0 0.0
    %7476 = vmatpush1.msra.mxu0 0.0
    %7477 = vmatprep.subr.mxu0 0.0
    %7478 = vmatpush1.msra.mxu0 0.0
    %7479 = vmatprep.subr.mxu0 0.0
    %7480 = vmatpush1.msra.mxu0 0.0
    %7481 = vmatprep.subr.mxu0 0.0
    %7482 = vmatpush1.msra.mxu0 0.0
    %7483 = vmatprep.subr.mxu0 0.0
    %7484 = vmatpush1.msra.mxu0 0.0
    %7485 = vmatprep.subr.mxu0 0.0
    %7486 = vmatpush1.msra.mxu0 0.0
    %7487 = vmatprep.subr.mxu0 0.0
    %7488 = vmatpush1.msra.mxu0 0.0
    %7489 = vmatprep.subr.mxu0 0.0
    %7490 = vmatpush1.msra.mxu0 0.0
    %7491 = vmatprep.subr.mxu0 0.0
    %7492 = vmatpush1.msra.mxu0 0.0
    %7493 = vmatprep.subr.mxu0 0.0
    %7494 = vmatpush1.msra.mxu0 0.0
    %7495 = vmatprep.subr.mxu0 0.0
    %7496 = vmatpush1.msra.mxu0 0.0
    %7497 = vmatprep.subr.mxu0 0.0
    %7498 = vmatpush1.msra.mxu0 0.0
    %7499 = vmatprep.mubr.f32.mxu0 0.0
    %7500 = vmatmul.mubr.f32.gmra.mrb[0].mxu0 %v7430
    %v7501 = vpop.f32.mrb[0].mxu0
    %v7502 = vadd.f32 0.0, %v7501
    %v7503 = vpop.f32.mrb[0].mxu0
    %7504 = vmatprep.mubr.f32.mxu0 0.0
    %7505 = vmatmul.mubr.f32.gmra.mrb[0].mxu0 %v7433
    %v7506 = vpop.f32.mrb[0].mxu0
    %v7507 = vadd.f32 0.0, %v7506
    %v7508 = vpop.f32.mrb[0].mxu0
    %7509 = vdwg.mxu0
    %v7510 = vadd.f32 %v7327, %v7502
    %v7511 = vadd.f32 %v7328, %v7507
    %v7512 = vld [vmem:[#allocation4 + $0x2e0] sm:$0x1]
    %v7513 = vlaneseq
    %v7514 = vshrl.u32 %v7513, 7
    %v7515 = vsub.s32 0, %v7514
    %v7516 = vrot.slane %v7512, %v7515
    %v7517 = vadd.f32 %v7510, %v7516
    %v7518 = vadd.f32 %v7511, %v7516
    %v7519 = vsel %vm269, %v7517, 0.0
    %7520 = vadd.xlane.f32.xlu0 %v7519
    %v7521 = vpop.xlane.xlu0 %7520
    %v7522 = vsel %vm269, %v7518, 0.0
    %7523 = vadd.xlane.f32.xlu0 %v7522
    %v7524 = vpop.xlane.xlu0 %7523
    %v7525 = vmul.f32 %v7521, %v3602
    %v7526 = vmul.f32 %v7524, %v3602
    %v7527 = vsub.f32 %v7517, %v7525
    %v7528 = vsub.f32 %v7518, %v7526
    %v7529 = vmul.f32 %v7527, %v7527
    %v7530 = vmul.f32 %v7528, %v7528
    %v7531 = vsel %vm269, %v7529, 0.0
    %7532 = vadd.xlane.f32.xlu0 %v7531
    %v7533 = vpop.xlane.xlu0 %7532
    %v7534 = vsel %vm269, %v7530, 0.0
    %7535 = vadd.xlane.f32.xlu0 %v7534
    %v7536 = vpop.xlane.xlu0 %7535
    %v7537 = vmul.f32 %v7533, %v3602
    %v7538 = vmul.f32 %v7536, %v3602
    %v7539 = vadd.f32 %v7537, 1e-05
    %v7540 = vadd.f32 %v7538, 1e-05
    %v7541 = vrsqrt.pop %v7539
    %v7542 = vrsqrt.pop %v7540
    %v7543 = vmul.f32 %v7527, %v7541
    %v7544 = vmul.f32 %v7528, %v7542
    %v7545 = vld [vmem:[#allocation4 + $0x308] sm:$0x1]
    %v7546 = vlaneseq
    %v7547 = vshrl.u32 %v7546, 7
    %v7548 = vsub.s32 0, %v7547
    %v7549 = vrot.slane %v7545, %v7548
    %v7550 = vmul.f32 %v7543, %v7549
    %v7551 = vmul.f32 %v7544, %v7549
    %v7552 = vld [vmem:[#allocation4 + $0x310] sm:$0x1]
    %v7553 = vlaneseq
    %v7554 = vshrl.u32 %v7553, 7
    %v7555 = vsub.s32 0, %v7554
    %v7556 = vrot.slane %v7552, %v7555
    %v7557 = vadd.f32 %v7550, %v7556
    %v7558 = vadd.f32 %v7551, %v7556
    %v7559 = vld [vmem:[#allocation4 + $0x318] sm:$0xff]
    %v7560 = vld [vmem:[#allocation4 + $0x320] sm:$0xff]
    %v7561 = vld [vmem:[#allocation4 + $0x328] sm:$0xff]
    %v7562 = vld [vmem:[#allocation4 + $0x330] sm:$0xff]
    %v7563 = vld [vmem:[#allocation4 + $0x338] sm:$0x1]
    %v7564 = vlaneseq
    %v7565 = vshrl.u32 %v7564, 7
    %v7566 = vsub.s32 0, %v7565
    %v7567 = vrot.slane %v7563, %v7566
    %v7569 = vsel %vm269, %v7557, 0
    %v7572 = vsel %vm269, %v7558, 0
    %7574 = vmatprep.subr.mxu0 0.0
    %7575 = vmatpush1.msra.mxu0 %v7559
    %7576 = vmatprep.subr.mxu0 0.0
    %7577 = vmatpush1.msra.mxu0 %v7560
    %7578 = vmatprep.subr.mxu0 0.0
    %7579 = vmatpush1.msra.mxu0 %v7561
    %7580 = vmatprep.subr.mxu0 0.0
    %7581 = vmatpush1.msra.mxu0 %v7562
    %7582 = vmatprep.subr.mxu0 0.0
    %7583 = vmatpush1.msra.mxu0 0.0
    %7584 = vmatprep.subr.mxu0 0.0
    %7585 = vmatpush1.msra.mxu0 0.0
    %7586 = vmatprep.subr.mxu0 0.0
    %7587 = vmatpush1.msra.mxu0 0.0
    %7588 = vmatprep.subr.mxu0 0.0
    %7589 = vmatpush1.msra.mxu0 0.0
    %7590 = vmatprep.subr.mxu0 0.0
    %7591 = vmatpush1.msra.mxu0 0.0
    %7592 = vmatprep.subr.mxu0 0.0
    %7593 = vmatpush1.msra.mxu0 0.0
    %7594 = vmatprep.subr.mxu0 0.0
    %7595 = vmatpush1.msra.mxu0 0.0
    %7596 = vmatprep.subr.mxu0 0.0
    %7597 = vmatpush1.msra.mxu0 0.0
    %7598 = vmatprep.subr.mxu0 0.0
    %7599 = vmatpush1.msra.mxu0 0.0
    %7600 = vmatprep.subr.mxu0 0.0
    %7601 = vmatpush1.msra.mxu0 0.0
    %7602 = vmatprep.subr.mxu0 0.0
    %7603 = vmatpush1.msra.mxu0 0.0
    %7604 = vmatprep.subr.mxu0 0.0
    %7605 = vmatpush1.msra.mxu0 0.0
    %7606 = vmatprep.subr.mxu0 0.0
    %7607 = vmatpush1.msra.mxu0 0.0
    %7608 = vmatprep.subr.mxu0 0.0
    %7609 = vmatpush1.msra.mxu0 0.0
    %7610 = vmatprep.subr.mxu0 0.0
    %7611 = vmatpush1.msra.mxu0 0.0
    %7612 = vmatprep.subr.mxu0 0.0
    %7613 = vmatpush1.msra.mxu0 0.0
    %7614 = vmatprep.subr.mxu0 0.0
    %7615 = vmatpush1.msra.mxu0 0.0
    %7616 = vmatprep.subr.mxu0 0.0
    %7617 = vmatpush1.msra.mxu0 0.0
    %7618 = vmatprep.subr.mxu0 0.0
    %7619 = vmatpush1.msra.mxu0 0.0
    %7620 = vmatprep.subr.mxu0 0.0
    %7621 = vmatpush1.msra.mxu0 0.0
    %7622 = vmatprep.subr.mxu0 0.0
    %7623 = vmatpush1.msra.mxu0 0.0
    %7624 = vmatprep.subr.mxu0 0.0
    %7625 = vmatpush1.msra.mxu0 0.0
    %7626 = vmatprep.subr.mxu0 0.0
    %7627 = vmatpush1.msra.mxu0 0.0
    %7628 = vmatprep.subr.mxu0 0.0
    %7629 = vmatpush1.msra.mxu0 0.0
    %7630 = vmatprep.subr.mxu0 0.0
    %7631 = vmatpush1.msra.mxu0 0.0
    %7632 = vmatprep.subr.mxu0 0.0
    %7633 = vmatpush1.msra.mxu0 0.0
    %7634 = vmatprep.subr.mxu0 0.0
    %7635 = vmatpush1.msra.mxu0 0.0
    %7636 = vmatprep.subr.mxu0 0.0
    %7637 = vmatpush1.msra.mxu0 0.0
    %7638 = vmatprep.mubr.f32.mxu0 0.0
    %7639 = vmatmul.mubr.f32.gmra.mrb[0].mxu0 %v7569
    %v7640 = vpop.f32.mrb[0].mxu0
    %v7641 = vadd.f32 %v7567, %v7640
    %v7642 = vpop.f32.mrb[0].mxu0
    %7643 = vmatprep.mubr.f32.mxu0 0.0
    %7644 = vmatmul.mubr.f32.gmra.mrb[0].mxu0 %v7572
    %v7645 = vpop.f32.mrb[0].mxu0
    %v7646 = vadd.f32 %v7567, %v7645
    %v7647 = vpop.f32.mrb[0].mxu0
    %7648 = vdwg.mxu0
    %7649 = vst [vmem:[%s4] sm:$0xff] %v7641
    %7650 = vst [vmem:[%s4 + $0x8] sm:$0xff] %v7646
    // Predicated region
    $region26: #{_lambda_.1} parent=1 // pred_check
      _
    $region27: #{_lambda_.1} parent=1 // pred_check_branch
      %7652 = sbr.rel (0) target = $region29
    $region28: #{_lambda_.1} parent=1 // pred_region
      _
    $region29: #{_lambda_.1} parent=1 // pred_fallthru
      _
    // Predicated region
    $region30: #{_lambda_.1} parent=1 // pred_check
      _
    $region31: #{_lambda_.1} parent=1 // pred_check_branch
      %7654 = sbr.rel (0) target = $region33
    $region32: #{_lambda_.1} parent=1 // pred_region
      _
    $region33: #{_lambda_.1} parent=1 // pred_fallthru
      _
    %7655 = vsyncpa [#allocation3], 1
    %7656 = vsyncpa [#allocation5], 1

</llo_original>
